<compile_context>
chip_gen: v6e
topology: v6e:2x2x1
jax: 0.10.0
libtpu: 0.0.40
codegen_flags: <defaults>
</compile_context>

<pallas_src>
import functools
import math

import jax
import jax.numpy as jnp
from jax.experimental import pallas as pl
from jax.experimental.pallas import tpu as pltpu

IMAGE_SIZE = 16      # small stand-in for 256 (same architecture / semantics)
NUM_CLASSES = 3
BATCH = 2


# ----------------------------- Pallas kernels -------------------------------

def _conv_relu_pool_kernel(ph_ref, w_ref, b_ref, o_ref, *, Hh, Wh, Cin, Cout,
                           fold_taps):
    """Fused 3x3 conv (pad=1) + bias + ReLU + 2x2/2 max-pool for one image.

    ph_ref : (1, 4, L, Cin) bf16  2x2 phase split of the zero-padded input;
             phase (pa, pb) holds xpad[2u+pa, 2v+pb, :] flattened row-major
             over (u, v); L = (Hh+1)*(Wh+1).
    w_ref  : fold_taps=False -> (1, 9, Cin, Cout) per-tap weights (kh,kw major)
             fold_taps=True  -> (1, 9*Cin, Cout)  taps folded into K
    b_ref  : (1, 1, Cout) f32
    o_ref  : (1, Hh*(Wh+1), Cout) bf16 pooled output with a junk column at
             q == Wh of every row (stripped in the wrapper).
    """
    Wh1 = Wh + 1
    N = Hh * Wh1 - 1
    bias = b_ref[0].astype(jnp.float32)                      # (1, Cout)

    # Only 16 distinct (s, t) panels feed the 4 (pool slot) x 9 (tap)
    # contributions -- load each shifted slice exactly once per grid step.
    panels = {}
    for s in range(4):
        for t in range(4):
            pa, pb = s % 2, t % 2
            start = (s // 2) * Wh1 + (t // 2)
            panels[(s, t)] = ph_ref[0, pa * 2 + pb, start:start + N, :]  # (N, Cin)

    pooled = None
    for di in range(2):                                      # 2x2 pool-window slot
        for dj in range(2):
            if fold_taps:
                # One K = 9*Cin MXU dot per pool slot (fills systolic depth,
                # removes 8 accumulate-adds from the VALU slot).
                xs = jnp.concatenate(
                    [panels[(di + kh, dj + kw)]
                     for kh in range(3) for kw in range(3)], axis=-1)    # (N, 9*Cin)
                acc = jnp.dot(xs, w_ref[0], preferred_element_type=jnp.float32)
            else:
                acc = jnp.zeros((N, Cout), jnp.float32)
                for kh in range(3):
                    for kw in range(3):
                        acc = acc + jnp.dot(panels[(di + kh, dj + kw)],
                                            w_ref[0, kh * 3 + kw],
                                            preferred_element_type=jnp.float32)
            y = jnp.maximum(acc + bias, 0.0)                 # bias + ReLU in f32
            pooled = y if pooled is None else jnp.maximum(pooled, y)

    # One contiguous store; the trailing row of the Wh1-wide block is junk
    # (stripped in the wrapper) -- zero it for determinism.
    o_ref[0, :N, :] = pooled.astype(o_ref.dtype)
    o_ref[0, N:, :] = jnp.zeros((Hh * Wh1 - N, Cout), o_ref.dtype)


def _fc_kernel(x_ref, w1_ref, b1_ref, w2_ref, b2_ref, o_ref, acc_ref):
    """K-tiled Linear(F,128)+ReLU+Linear(128,C); grid axis = K tiles of fc1."""
    k = pl.program_id(0)

    @pl.when(k == 0)
    def _init():
        acc_ref[...] = jnp.zeros_like(acc_ref)

    acc_ref[...] += jnp.dot(x_ref[...], w1_ref[...],
                            preferred_element_type=jnp.float32)

    @pl.when(k == pl.num_programs(0) - 1)
    def _finalize():
        h = jnp.maximum(acc_ref[...] + b1_ref[...], 0.0)
        o_ref[...] = jnp.dot(h, w2_ref[...],
                             preferred_element_type=jnp.float32) + b2_ref[...]


# ----------------------------- Pallas wrappers ------------------------------

def conv3x3_relu_pool(phases, w, b, *, Hh, Wh, Cin, Cout, batch, fold_taps):
    """phases: (2*batch, 4, L, Cin) bf16; w: branch-stacked weights; b: (2,1,Cout)
    -> (2*batch, Hh*(Wh+1), Cout) bf16 pooled output (with junk column)."""
    NB = phases.shape[0]
    Wh1 = Wh + 1
    L = (Hh + 1) * Wh1
    kernel = functools.partial(_conv_relu_pool_kernel, Hh=Hh, Wh=Wh, Cin=Cin,
                               Cout=Cout, fold_taps=fold_taps)
    if fold_taps:
        w_spec = pl.BlockSpec((1, 9 * Cin, Cout), lambda br, n: (br, 0, 0))
    else:
        w_spec = pl.BlockSpec((1, 9, Cin, Cout), lambda br, n: (br, 0, 0, 0))
    return pl.pallas_call(
        kernel,
        out_shape=jax.ShapeDtypeStruct((NB, Hh * Wh1, Cout), jnp.bfloat16),
        grid=(2, batch),                                     # (branch, batch)
        in_specs=[
            pl.BlockSpec((1, 4, L, Cin), lambda br, n: (br * batch + n, 0, 0, 0)),
            # weight/bias depend only on branch -> stay VMEM-resident across
            # the faster-moving batch axis.
            w_spec,
            pl.BlockSpec((1, 1, Cout), lambda br, n: (br, 0, 0)),
        ],
        out_specs=pl.BlockSpec((1, Hh * Wh1, Cout),
                               lambda br, n: (br * batch + n, 0, 0)),
        compiler_params=pltpu.CompilerParams(
            dimension_semantics=("parallel", "parallel"),
            vmem_limit_bytes=32 * 1024 * 1024),
    )(phases, w, b)


def combined_fc(x, w1, b1, w2, b2, *, tk=8192):
    """x: (B, F) bf16 -> (B, NUM_CLASSES) f32; fc1 is K-tiled, fc2 fused."""
    B, F = x.shape
    H = w1.shape[1]
    C = w2.shape[1]
    tk = math.gcd(F, tk)          # largest divisor of F that is <= tk (no F-fallback)
    return pl.pallas_call(
        _fc_kernel,
        out_shape=jax.ShapeDtypeStruct((B, C), jnp.float32),
        grid=(F // tk,),
        in_specs=[
            pl.BlockSpec((B, tk), lambda k: (0, k)),
            pl.BlockSpec((tk, H), lambda k: (k, 0)),
            pl.BlockSpec((1, H), lambda k: (0, 0)),
            pl.BlockSpec((H, C), lambda k: (0, 0)),
            pl.BlockSpec((1, C), lambda k: (0, 0)),
        ],
        out_specs=pl.BlockSpec((B, C), lambda k: (0, 0)),
        scratch_shapes=[pltpu.VMEM((B, H), jnp.float32)],
        compiler_params=pltpu.CompilerParams(
            dimension_semantics=("arbitrary",),
            vmem_limit_bytes=32 * 1024 * 1024),
    )(x, w1, b1, w2, b2)


# ------------------------------- JAX glue -----------------------------------

def _phase_split(x_nhwc):
    """(N, H, W, C) -> (N, 4, (H/2+1)*(W/2+1), C): pad by 1, 2x2 space-to-depth."""
    n, H, W, C = x_nhwc.shape
    xp = jnp.pad(x_nhwc, ((0, 0), (1, 1), (1, 1), (0, 0)))
    Hp, Wp = H + 2, W + 2
    xp = xp.reshape(n, Hp // 2, 2, Wp // 2, 2, C)
    xp = jnp.transpose(xp, (0, 2, 4, 1, 3, 5))               # (n, pa, pb, u, v, C)
    return xp.reshape(n, 4, (Hp // 2) * (Wp // 2), C)


def image_mask_net(params, x_image, x_mask):
    B, _, H, W = x_image.shape
    cd = jnp.bfloat16    # MXU-operand dtype; all accumulation stays f32

    # Merge the two branches along a leading "branch" axis; pad mask 1->3 ch.
    x_img = jnp.transpose(x_image, (0, 2, 3, 1))                     # NHWC
    x_msk = jnp.transpose(x_mask, (0, 2, 3, 1))
    x_msk = jnp.pad(x_msk, ((0, 0), (0, 0), (0, 0), (0, 2)))
    x_all = jnp.concatenate([x_img, x_msk], axis=0).astype(cd)       # (2B, H, W, 3)

    # bf16 weight streams for the MXU (a real checkpoint would store these
    # bf16 in HBM directly); biases stay f32.
    msk_w1 = jnp.pad(params["msk_w1"], ((0, 0), (0, 0), (0, 2), (0, 0)))
    w1 = jnp.stack([params["img_w1"], msk_w1], 0).reshape(2, 9, 3, 32).astype(cd)
    b1 = jnp.stack([params["img_b1"], params["msk_b1"]], 0)          # (2, 1, 32)
    # Layer-2 weights with the 9 taps folded into the contraction dim (K=288).
    w2 = jnp.stack([params["img_w2"], params["msk_w2"]], 0).reshape(2, 288, 64).astype(cd)
    b2 = jnp.stack([params["img_b2"], params["msk_b2"]], 0)          # (2, 1, 64)

    H2, W2, H4, W4 = H // 2, W // 2, H // 4, W // 4

    y1 = conv3x3_relu_pool(_phase_split(x_all), w1, b1,
                           Hh=H2, Wh=W2, Cin=3, Cout=32, batch=B,
                           fold_taps=False)                   # (2B, H2*(W2+1), 32)
    # Strip the junk pool column here; it fuses with the next phase split.
    y1 = y1.reshape(2 * B, H2, W2 + 1, 32)[:, :, :W2, :]
    # TODO(synk): emit y1 directly in the padded 2x2-phase layout from the
    # layer-1 kernel to skip this XLA pad/reshape/transpose round trip.
    y2 = conv3x3_relu_pool(_phase_split(y1), w2, b2,
                           Hh=H4, Wh=W4, Cin=32, Cout=64, batch=B,
                           fold_taps=True)                    # (2B, H4*(W4+1), 64)
    y2 = y2.reshape(2 * B, H4, W4 + 1, 64)[:, :, :W4, :]

    # Flatten in (C, H, W) order to match torch's .view(B, -1) on NCHW tensors.
    feat = jnp.transpose(y2, (0, 3, 1, 2)).reshape(2 * B, -1)
    combined = jnp.concatenate([feat[:B], feat[B:]], axis=1)         # image, mask

    return combined_fc(combined, params["fc_w1"].astype(cd), params["fc_b1"],
                       params["fc_w2"], params["fc_b2"])


def init_params(key):
    ks = jax.random.split(key, 12)
    feat_dim = 64 * 2 * (IMAGE_SIZE // 4) * (IMAGE_SIZE // 4)

    def w(k, shape, scale=0.05):
        return (scale * jax.random.normal(k, shape)).astype(jnp.float32)

    # Conv weights are HWIO (PyTorch Conv2d is OIHW; permute before loading).
    return {
        "img_w1": w(ks[0], (3, 3, 3, 32)),  "img_b1": w(ks[1], (1, 32)),
        "img_w2": w(ks[2], (3, 3, 32, 64)), "img_b2": w(ks[3], (1, 64)),
        "msk_w1": w(ks[4], (3, 3, 1, 32)),  "msk_b1": w(ks[5], (1, 32)),
        "msk_w2": w(ks[6], (3, 3, 32, 64)), "msk_b2": w(ks[7], (1, 64)),
        "fc_w1": w(ks[8], (feat_dim, 128)), "fc_b1": w(ks[9], (1, 128)),
        "fc_w2": w(ks[10], (128, NUM_CLASSES)), "fc_b2": w(ks[11], (1, NUM_CLASSES)),
    }


# --------------------------- pure-JAX reference -----------------------------

def reference_forward(params, x_image, x_mask):
    hi = jax.lax.Precision.HIGHEST

    def conv(x, w, bias):
        y = jax.lax.conv_general_dilated(
            x, w, window_strides=(1, 1), padding=((1, 1), (1, 1)),
            dimension_numbers=("NCHW", "HWIO", "NCHW"), precision=hi)
        return jnp.maximum(y + bias.reshape(1, -1, 1, 1), 0.0)

    def pool(x):
        return jax.lax.reduce_window(x, -jnp.inf, jax.lax.max,
                                     (1, 1, 2, 2), (1, 1, 2, 2), "VALID")

    def branch(x, w1, b1, w2, b2):
        y = pool(conv(x, w1, b1))
        y = pool(conv(y, w2, b2))
        return y.reshape(y.shape[0], -1)

    f_img = branch(x_image, params["img_w1"], params["img_b1"],
                   params["img_w2"], params["img_b2"])
    f_msk = branch(x_mask, params["msk_w1"], params["msk_b1"],
                   params["msk_w2"], params["msk_b2"])
    comb = jnp.concatenate([f_img, f_msk], axis=1)
    h = jnp.maximum(jnp.dot(comb, params["fc_w1"], precision=hi) + params["fc_b1"], 0.0)
    return jnp.dot(h, params["fc_w2"], precision=hi) + params["fc_b2"]


if __name__ == "__main__":
    key = jax.random.PRNGKey(0)
    k_img, k_msk, k_params = jax.random.split(key, 3)

    x_image = jax.random.normal(k_img, (BATCH, 3, IMAGE_SIZE, IMAGE_SIZE), dtype=jnp.float32)
    x_mask = jax.random.normal(k_msk, (BATCH, 1, IMAGE_SIZE, IMAGE_SIZE), dtype=jnp.float32)
    params = init_params(k_params)

    out = jax.block_until_ready(jax.jit(image_mask_net)(params, x_image, x_mask))
    assert out.shape == (BATCH, NUM_CLASSES)

    ref = reference_forward(params, x_image, x_mask)
    assert jnp.allclose(out, ref, rtol=2e-2, atol=2e-2), (
        f"mismatch vs reference, max abs diff {jnp.max(jnp.abs(out - ref))}")
    print("KERNEL_OK")
</pallas_src>

<mosaic_0001>
module attributes {stable_mosaic.version = 11 : i64} {
  func.func @_conv_relu_pool_kernel(%arg0: i32, %arg1: i32, %arg2: memref<1x4x81x3xbf16, #tpu.memory_space<vmem>>, %arg3: memref<1x9x3x32xbf16, #tpu.memory_space<vmem>>, %arg4: memref<1x1x32xf32, #tpu.memory_space<vmem>>, %arg5: memref<1x72x32xbf16, #tpu.memory_space<vmem>>) attributes {dimension_semantics = [#tpu.dimension_semantics<parallel>, #tpu.dimension_semantics<parallel>], iteration_bounds = array<i64: 2, 2>, scalar_prefetch = 0 : i64, scratch_operands = 0 : i64, tpu.core_type = #tpu.core_type<tc>, window_params = [{transform_indices = @transform_0, window_bounds = array<i64: 1, 4, 81, 3>}, {transform_indices = @transform_1, window_bounds = array<i64: 1, 9, 3, 32>}, {transform_indices = @transform_2, window_bounds = array<i64: 1, 1, 32>}, {transform_indices = @transform_3, window_bounds = array<i64: 1, 72, 32>}]} {
    %c0 = arith.constant 0 : index
    %c0_0 = arith.constant 0 : index
    %c0_1 = arith.constant 0 : index
    %0 = vector.load %arg4[%c0, %c0_0, %c0_1] : memref<1x1x32xf32, #tpu.memory_space<vmem>>, vector<1x1x32xf32>
    %1 = vector.shape_cast %0 : vector<1x1x32xf32> to vector<1x32xf32>
    %c0_2 = arith.constant 0 : index
    %c0_3 = arith.constant 0 : index
    %c0_4 = arith.constant 0 : index
    %c0_5 = arith.constant 0 : index
    %2 = vector.load %arg2[%c0_2, %c0_3, %c0_4, %c0_5] : memref<1x4x81x3xbf16, #tpu.memory_space<vmem>>, vector<1x1x71x3xbf16>
    %3 = vector.shape_cast %2 : vector<1x1x71x3xbf16> to vector<71x3xbf16>
    %c0_6 = arith.constant 0 : index
    %c1 = arith.constant 1 : index
    %c0_7 = arith.constant 0 : index
    %c0_8 = arith.constant 0 : index
    %4 = vector.load %arg2[%c0_6, %c1, %c0_7, %c0_8] : memref<1x4x81x3xbf16, #tpu.memory_space<vmem>>, vector<1x1x71x3xbf16>
    %5 = vector.shape_cast %4 : vector<1x1x71x3xbf16> to vector<71x3xbf16>
    %c0_9 = arith.constant 0 : index
    %c0_10 = arith.constant 0 : index
    %c1_11 = arith.constant 1 : index
    %c0_12 = arith.constant 0 : index
    %6 = vector.load %arg2[%c0_9, %c0_10, %c1_11, %c0_12] : memref<1x4x81x3xbf16, #tpu.memory_space<vmem>>, vector<1x1x71x3xbf16>
    %7 = vector.shape_cast %6 : vector<1x1x71x3xbf16> to vector<71x3xbf16>
    %c0_13 = arith.constant 0 : index
    %c1_14 = arith.constant 1 : index
    %c1_15 = arith.constant 1 : index
    %c0_16 = arith.constant 0 : index
    %8 = vector.load %arg2[%c0_13, %c1_14, %c1_15, %c0_16] : memref<1x4x81x3xbf16, #tpu.memory_space<vmem>>, vector<1x1x71x3xbf16>
    %9 = vector.shape_cast %8 : vector<1x1x71x3xbf16> to vector<71x3xbf16>
    %c0_17 = arith.constant 0 : index
    %c2 = arith.constant 2 : index
    %c0_18 = arith.constant 0 : index
    %c0_19 = arith.constant 0 : index
    %10 = vector.load %arg2[%c0_17, %c2, %c0_18, %c0_19] : memref<1x4x81x3xbf16, #tpu.memory_space<vmem>>, vector<1x1x71x3xbf16>
    %11 = vector.shape_cast %10 : vector<1x1x71x3xbf16> to vector<71x3xbf16>
    %c0_20 = arith.constant 0 : index
    %c3 = arith.constant 3 : index
    %c0_21 = arith.constant 0 : index
    %c0_22 = arith.constant 0 : index
    %12 = vector.load %arg2[%c0_20, %c3, %c0_21, %c0_22] : memref<1x4x81x3xbf16, #tpu.memory_space<vmem>>, vector<1x1x71x3xbf16>
    %13 = vector.shape_cast %12 : vector<1x1x71x3xbf16> to vector<71x3xbf16>
    %c0_23 = arith.constant 0 : index
    %c2_24 = arith.constant 2 : index
    %c1_25 = arith.constant 1 : index
    %c0_26 = arith.constant 0 : index
    %14 = vector.load %arg2[%c0_23, %c2_24, %c1_25, %c0_26] : memref<1x4x81x3xbf16, #tpu.memory_space<vmem>>, vector<1x1x71x3xbf16>
    %15 = vector.shape_cast %14 : vector<1x1x71x3xbf16> to vector<71x3xbf16>
    %c0_27 = arith.constant 0 : index
    %c3_28 = arith.constant 3 : index
    %c1_29 = arith.constant 1 : index
    %c0_30 = arith.constant 0 : index
    %16 = vector.load %arg2[%c0_27, %c3_28, %c1_29, %c0_30] : memref<1x4x81x3xbf16, #tpu.memory_space<vmem>>, vector<1x1x71x3xbf16>
    %17 = vector.shape_cast %16 : vector<1x1x71x3xbf16> to vector<71x3xbf16>
    %c0_31 = arith.constant 0 : index
    %c0_32 = arith.constant 0 : index
    %c9 = arith.constant 9 : index
    %c0_33 = arith.constant 0 : index
    %18 = vector.load %arg2[%c0_31, %c0_32, %c9, %c0_33] : memref<1x4x81x3xbf16, #tpu.memory_space<vmem>>, vector<1x1x71x3xbf16>
    %19 = vector.shape_cast %18 : vector<1x1x71x3xbf16> to vector<71x3xbf16>
    %c0_34 = arith.constant 0 : index
    %c1_35 = arith.constant 1 : index
    %c9_36 = arith.constant 9 : index
    %c0_37 = arith.constant 0 : index
    %20 = vector.load %arg2[%c0_34, %c1_35, %c9_36, %c0_37] : memref<1x4x81x3xbf16, #tpu.memory_space<vmem>>, vector<1x1x71x3xbf16>
    %21 = vector.shape_cast %20 : vector<1x1x71x3xbf16> to vector<71x3xbf16>
    %c0_38 = arith.constant 0 : index
    %c0_39 = arith.constant 0 : index
    %c10 = arith.constant 10 : index
    %c0_40 = arith.constant 0 : index
    %22 = vector.load %arg2[%c0_38, %c0_39, %c10, %c0_40] : memref<1x4x81x3xbf16, #tpu.memory_space<vmem>>, vector<1x1x71x3xbf16>
    %23 = vector.shape_cast %22 : vector<1x1x71x3xbf16> to vector<71x3xbf16>
    %c0_41 = arith.constant 0 : index
    %c1_42 = arith.constant 1 : index
    %c10_43 = arith.constant 10 : index
    %c0_44 = arith.constant 0 : index
    %24 = vector.load %arg2[%c0_41, %c1_42, %c10_43, %c0_44] : memref<1x4x81x3xbf16, #tpu.memory_space<vmem>>, vector<1x1x71x3xbf16>
    %25 = vector.shape_cast %24 : vector<1x1x71x3xbf16> to vector<71x3xbf16>
    %c0_45 = arith.constant 0 : index
    %c2_46 = arith.constant 2 : index
    %c9_47 = arith.constant 9 : index
    %c0_48 = arith.constant 0 : index
    %26 = vector.load %arg2[%c0_45, %c2_46, %c9_47, %c0_48] : memref<1x4x81x3xbf16, #tpu.memory_space<vmem>>, vector<1x1x71x3xbf16>
    %27 = vector.shape_cast %26 : vector<1x1x71x3xbf16> to vector<71x3xbf16>
    %c0_49 = arith.constant 0 : index
    %c3_50 = arith.constant 3 : index
    %c9_51 = arith.constant 9 : index
    %c0_52 = arith.constant 0 : index
    %28 = vector.load %arg2[%c0_49, %c3_50, %c9_51, %c0_52] : memref<1x4x81x3xbf16, #tpu.memory_space<vmem>>, vector<1x1x71x3xbf16>
    %29 = vector.shape_cast %28 : vector<1x1x71x3xbf16> to vector<71x3xbf16>
    %c0_53 = arith.constant 0 : index
    %c2_54 = arith.constant 2 : index
    %c10_55 = arith.constant 10 : index
    %c0_56 = arith.constant 0 : index
    %30 = vector.load %arg2[%c0_53, %c2_54, %c10_55, %c0_56] : memref<1x4x81x3xbf16, #tpu.memory_space<vmem>>, vector<1x1x71x3xbf16>
    %31 = vector.shape_cast %30 : vector<1x1x71x3xbf16> to vector<71x3xbf16>
    %c0_57 = arith.constant 0 : index
    %c3_58 = arith.constant 3 : index
    %c10_59 = arith.constant 10 : index
    %c0_60 = arith.constant 0 : index
    %32 = vector.load %arg2[%c0_57, %c3_58, %c10_59, %c0_60] : memref<1x4x81x3xbf16, #tpu.memory_space<vmem>>, vector<1x1x71x3xbf16>
    %33 = vector.shape_cast %32 : vector<1x1x71x3xbf16> to vector<71x3xbf16>
    %cst = arith.constant 0.000000e+00 : f32
    %34 = vector.broadcast %cst : f32 to vector<71x32xf32>
    %c0_61 = arith.constant 0 : index
    %c0_62 = arith.constant 0 : index
    %c0_63 = arith.constant 0 : index
    %c0_64 = arith.constant 0 : index
    %35 = vector.load %arg3[%c0_61, %c0_62, %c0_63, %c0_64] : memref<1x9x3x32xbf16, #tpu.memory_space<vmem>>, vector<1x1x3x32xbf16>
    %36 = vector.shape_cast %35 : vector<1x1x3x32xbf16> to vector<3x32xbf16>
    %cst_65 = arith.constant dense<0.000000e+00> : vector<71x32xf32>
    %37 = tpu.matmul %3, %36, %cst_65 {dimension_numbers = #tpu.dot_dimension_numbers<[1], [0], [0], [1], [0, 0, 1, 1], [], []>} : vector<71x3xbf16>, vector<3x32xbf16>, vector<71x32xf32> -> vector<71x32xf32>
    %38 = arith.addf %34, %37 : vector<71x32xf32>
    %c0_66 = arith.constant 0 : index
    %c1_67 = arith.constant 1 : index
    %c0_68 = arith.constant 0 : index
    %c0_69 = arith.constant 0 : index
    %39 = vector.load %arg3[%c0_66, %c1_67, %c0_68, %c0_69] : memref<1x9x3x32xbf16, #tpu.memory_space<vmem>>, vector<1x1x3x32xbf16>
    %40 = vector.shape_cast %39 : vector<1x1x3x32xbf16> to vector<3x32xbf16>
    %cst_70 = arith.constant dense<0.000000e+00> : vector<71x32xf32>
    %41 = tpu.matmul %5, %40, %cst_70 {dimension_numbers = #tpu.dot_dimension_numbers<[1], [0], [0], [1], [0, 0, 1, 1], [], []>} : vector<71x3xbf16>, vector<3x32xbf16>, vector<71x32xf32> -> vector<71x32xf32>
    %42 = arith.addf %38, %41 : vector<71x32xf32>
    %c0_71 = arith.constant 0 : index
    %c2_72 = arith.constant 2 : index
    %c0_73 = arith.constant 0 : index
    %c0_74 = arith.constant 0 : index
    %43 = vector.load %arg3[%c0_71, %c2_72, %c0_73, %c0_74] : memref<1x9x3x32xbf16, #tpu.memory_space<vmem>>, vector<1x1x3x32xbf16>
    %44 = vector.shape_cast %43 : vector<1x1x3x32xbf16> to vector<3x32xbf16>
    %cst_75 = arith.constant dense<0.000000e+00> : vector<71x32xf32>
    %45 = tpu.matmul %7, %44, %cst_75 {dimension_numbers = #tpu.dot_dimension_numbers<[1], [0], [0], [1], [0, 0, 1, 1], [], []>} : vector<71x3xbf16>, vector<3x32xbf16>, vector<71x32xf32> -> vector<71x32xf32>
    %46 = arith.addf %42, %45 : vector<71x32xf32>
    %c0_76 = arith.constant 0 : index
    %c3_77 = arith.constant 3 : index
    %c0_78 = arith.constant 0 : index
    %c0_79 = arith.constant 0 : index
    %47 = vector.load %arg3[%c0_76, %c3_77, %c0_78, %c0_79] : memref<1x9x3x32xbf16, #tpu.memory_space<vmem>>, vector<1x1x3x32xbf16>
    %48 = vector.shape_cast %47 : vector<1x1x3x32xbf16> to vector<3x32xbf16>
    %cst_80 = arith.constant dense<0.000000e+00> : vector<71x32xf32>
    %49 = tpu.matmul %11, %48, %cst_80 {dimension_numbers = #tpu.dot_dimension_numbers<[1], [0], [0], [1], [0, 0, 1, 1], [], []>} : vector<71x3xbf16>, vector<3x32xbf16>, vector<71x32xf32> -> vector<71x32xf32>
    %50 = arith.addf %46, %49 : vector<71x32xf32>
    %c0_81 = arith.constant 0 : index
    %c4 = arith.constant 4 : index
    %c0_82 = arith.constant 0 : index
    %c0_83 = arith.constant 0 : index
    %51 = vector.load %arg3[%c0_81, %c4, %c0_82, %c0_83] : memref<1x9x3x32xbf16, #tpu.memory_space<vmem>>, vector<1x1x3x32xbf16>
    %52 = vector.shape_cast %51 : vector<1x1x3x32xbf16> to vector<3x32xbf16>
    %cst_84 = arith.constant dense<0.000000e+00> : vector<71x32xf32>
    %53 = tpu.matmul %13, %52, %cst_84 {dimension_numbers = #tpu.dot_dimension_numbers<[1], [0], [0], [1], [0, 0, 1, 1], [], []>} : vector<71x3xbf16>, vector<3x32xbf16>, vector<71x32xf32> -> vector<71x32xf32>
    %54 = arith.addf %50, %53 : vector<71x32xf32>
    %c0_85 = arith.constant 0 : index
    %c5 = arith.constant 5 : index
    %c0_86 = arith.constant 0 : index
    %c0_87 = arith.constant 0 : index
    %55 = vector.load %arg3[%c0_85, %c5, %c0_86, %c0_87] : memref<1x9x3x32xbf16, #tpu.memory_space<vmem>>, vector<1x1x3x32xbf16>
    %56 = vector.shape_cast %55 : vector<1x1x3x32xbf16> to vector<3x32xbf16>
    %cst_88 = arith.constant dense<0.000000e+00> : vector<71x32xf32>
    %57 = tpu.matmul %15, %56, %cst_88 {dimension_numbers = #tpu.dot_dimension_numbers<[1], [0], [0], [1], [0, 0, 1, 1], [], []>} : vector<71x3xbf16>, vector<3x32xbf16>, vector<71x32xf32> -> vector<71x32xf32>
    %58 = arith.addf %54, %57 : vector<71x32xf32>
    %c0_89 = arith.constant 0 : index
    %c6 = arith.constant 6 : index
    %c0_90 = arith.constant 0 : index
    %c0_91 = arith.constant 0 : index
    %59 = vector.load %arg3[%c0_89, %c6, %c0_90, %c0_91] : memref<1x9x3x32xbf16, #tpu.memory_space<vmem>>, vector<1x1x3x32xbf16>
    %60 = vector.shape_cast %59 : vector<1x1x3x32xbf16> to vector<3x32xbf16>
    %cst_92 = arith.constant dense<0.000000e+00> : vector<71x32xf32>
    %61 = tpu.matmul %19, %60, %cst_92 {dimension_numbers = #tpu.dot_dimension_numbers<[1], [0], [0], [1], [0, 0, 1, 1], [], []>} : vector<71x3xbf16>, vector<3x32xbf16>, vector<71x32xf32> -> vector<71x32xf32>
    %62 = arith.addf %58, %61 : vector<71x32xf32>
    %c0_93 = arith.constant 0 : index
    %c7 = arith.constant 7 : index
    %c0_94 = arith.constant 0 : index
    %c0_95 = arith.constant 0 : index
    %63 = vector.load %arg3[%c0_93, %c7, %c0_94, %c0_95] : memref<1x9x3x32xbf16, #tpu.memory_space<vmem>>, vector<1x1x3x32xbf16>
    %64 = vector.shape_cast %63 : vector<1x1x3x32xbf16> to vector<3x32xbf16>
    %cst_96 = arith.constant dense<0.000000e+00> : vector<71x32xf32>
    %65 = tpu.matmul %21, %64, %cst_96 {dimension_numbers = #tpu.dot_dimension_numbers<[1], [0], [0], [1], [0, 0, 1, 1], [], []>} : vector<71x3xbf16>, vector<3x32xbf16>, vector<71x32xf32> -> vector<71x32xf32>
    %66 = arith.addf %62, %65 : vector<71x32xf32>
    %c0_97 = arith.constant 0 : index
    %c8 = arith.constant 8 : index
    %c0_98 = arith.constant 0 : index
    %c0_99 = arith.constant 0 : index
    %67 = vector.load %arg3[%c0_97, %c8, %c0_98, %c0_99] : memref<1x9x3x32xbf16, #tpu.memory_space<vmem>>, vector<1x1x3x32xbf16>
    %68 = vector.shape_cast %67 : vector<1x1x3x32xbf16> to vector<3x32xbf16>
    %cst_100 = arith.constant dense<0.000000e+00> : vector<71x32xf32>
    %69 = tpu.matmul %23, %68, %cst_100 {dimension_numbers = #tpu.dot_dimension_numbers<[1], [0], [0], [1], [0, 0, 1, 1], [], []>} : vector<71x3xbf16>, vector<3x32xbf16>, vector<71x32xf32> -> vector<71x32xf32>
    %70 = arith.addf %66, %69 : vector<71x32xf32>
    %71 = vector.broadcast %1 : vector<1x32xf32> to vector<71x32xf32>
    %72 = arith.addf %70, %71 : vector<71x32xf32>
    %cst_101 = arith.constant 0.000000e+00 : f32
    %73 = vector.broadcast %cst_101 : f32 to vector<71x32xf32>
    %74 = arith.maximumf %72, %73 : vector<71x32xf32>
    %cst_102 = arith.constant 0.000000e+00 : f32
    %75 = vector.broadcast %cst_102 : f32 to vector<71x32xf32>
    %c0_103 = arith.constant 0 : index
    %c0_104 = arith.constant 0 : index
    %c0_105 = arith.constant 0 : index
    %c0_106 = arith.constant 0 : index
    %76 = vector.load %arg3[%c0_103, %c0_104, %c0_105, %c0_106] : memref<1x9x3x32xbf16, #tpu.memory_space<vmem>>, vector<1x1x3x32xbf16>
    %77 = vector.shape_cast %76 : vector<1x1x3x32xbf16> to vector<3x32xbf16>
    %cst_107 = arith.constant dense<0.000000e+00> : vector<71x32xf32>
    %78 = tpu.matmul %5, %77, %cst_107 {dimension_numbers = #tpu.dot_dimension_numbers<[1], [0], [0], [1], [0, 0, 1, 1], [], []>} : vector<71x3xbf16>, vector<3x32xbf16>, vector<71x32xf32> -> vector<71x32xf32>
    %79 = arith.addf %75, %78 : vector<71x32xf32>
    %c0_108 = arith.constant 0 : index
    %c1_109 = arith.constant 1 : index
    %c0_110 = arith.constant 0 : index
    %c0_111 = arith.constant 0 : index
    %80 = vector.load %arg3[%c0_108, %c1_109, %c0_110, %c0_111] : memref<1x9x3x32xbf16, #tpu.memory_space<vmem>>, vector<1x1x3x32xbf16>
    %81 = vector.shape_cast %80 : vector<1x1x3x32xbf16> to vector<3x32xbf16>
    %cst_112 = arith.constant dense<0.000000e+00> : vector<71x32xf32>
    %82 = tpu.matmul %7, %81, %cst_112 {dimension_numbers = #tpu.dot_dimension_numbers<[1], [0], [0], [1], [0, 0, 1, 1], [], []>} : vector<71x3xbf16>, vector<3x32xbf16>, vector<71x32xf32> -> vector<71x32xf32>
    %83 = arith.addf %79, %82 : vector<71x32xf32>
    %c0_113 = arith.constant 0 : index
    %c2_114 = arith.constant 2 : index
    %c0_115 = arith.constant 0 : index
    %c0_116 = arith.constant 0 : index
    %84 = vector.load %arg3[%c0_113, %c2_114, %c0_115, %c0_116] : memref<1x9x3x32xbf16, #tpu.memory_space<vmem>>, vector<1x1x3x32xbf16>
    %85 = vector.shape_cast %84 : vector<1x1x3x32xbf16> to vector<3x32xbf16>
    %cst_117 = arith.constant dense<0.000000e+00> : vector<71x32xf32>
    %86 = tpu.matmul %9, %85, %cst_117 {dimension_numbers = #tpu.dot_dimension_numbers<[1], [0], [0], [1], [0, 0, 1, 1], [], []>} : vector<71x3xbf16>, vector<3x32xbf16>, vector<71x32xf32> -> vector<71x32xf32>
    %87 = arith.addf %83, %86 : vector<71x32xf32>
    %c0_118 = arith.constant 0 : index
    %c3_119 = arith.constant 3 : index
    %c0_120 = arith.constant 0 : index
    %c0_121 = arith.constant 0 : index
    %88 = vector.load %arg3[%c0_118, %c3_119, %c0_120, %c0_121] : memref<1x9x3x32xbf16, #tpu.memory_space<vmem>>, vector<1x1x3x32xbf16>
    %89 = vector.shape_cast %88 : vector<1x1x3x32xbf16> to vector<3x32xbf16>
    %cst_122 = arith.constant dense<0.000000e+00> : vector<71x32xf32>
    %90 = tpu.matmul %13, %89, %cst_122 {dimension_numbers = #tpu.dot_dimension_numbers<[1], [0], [0], [1], [0, 0, 1, 1], [], []>} : vector<71x3xbf16>, vector<3x32xbf16>, vector<71x32xf32> -> vector<71x32xf32>
    %91 = arith.addf %87, %90 : vector<71x32xf32>
    %c0_123 = arith.constant 0 : index
    %c4_124 = arith.constant 4 : index
    %c0_125 = arith.constant 0 : index
    %c0_126 = arith.constant 0 : index
    %92 = vector.load %arg3[%c0_123, %c4_124, %c0_125, %c0_126] : memref<1x9x3x32xbf16, #tpu.memory_space<vmem>>, vector<1x1x3x32xbf16>
    %93 = vector.shape_cast %92 : vector<1x1x3x32xbf16> to vector<3x32xbf16>
    %cst_127 = arith.constant dense<0.000000e+00> : vector<71x32xf32>
    %94 = tpu.matmul %15, %93, %cst_127 {dimension_numbers = #tpu.dot_dimension_numbers<[1], [0], [0], [1], [0, 0, 1, 1], [], []>} : vector<71x3xbf16>, vector<3x32xbf16>, vector<71x32xf32> -> vector<71x32xf32>
    %95 = arith.addf %91, %94 : vector<71x32xf32>
    %c0_128 = arith.constant 0 : index
    %c5_129 = arith.constant 5 : index
    %c0_130 = arith.constant 0 : index
    %c0_131 = arith.constant 0 : index
    %96 = vector.load %arg3[%c0_128, %c5_129, %c0_130, %c0_131] : memref<1x9x3x32xbf16, #tpu.memory_space<vmem>>, vector<1x1x3x32xbf16>
    %97 = vector.shape_cast %96 : vector<1x1x3x32xbf16> to vector<3x32xbf16>
    %cst_132 = arith.constant dense<0.000000e+00> : vector<71x32xf32>
    %98 = tpu.matmul %17, %97, %cst_132 {dimension_numbers = #tpu.dot_dimension_numbers<[1], [0], [0], [1], [0, 0, 1, 1], [], []>} : vector<71x3xbf16>, vector<3x32xbf16>, vector<71x32xf32> -> vector<71x32xf32>
    %99 = arith.addf %95, %98 : vector<71x32xf32>
    %c0_133 = arith.constant 0 : index
    %c6_134 = arith.constant 6 : index
    %c0_135 = arith.constant 0 : index
    %c0_136 = arith.constant 0 : index
    %100 = vector.load %arg3[%c0_133, %c6_134, %c0_135, %c0_136] : memref<1x9x3x32xbf16, #tpu.memory_space<vmem>>, vector<1x1x3x32xbf16>
    %101 = vector.shape_cast %100 : vector<1x1x3x32xbf16> to vector<3x32xbf16>
    %cst_137 = arith.constant dense<0.000000e+00> : vector<71x32xf32>
    %102 = tpu.matmul %21, %101, %cst_137 {dimension_numbers = #tpu.dot_dimension_numbers<[1], [0], [0], [1], [0, 0, 1, 1], [], []>} : vector<71x3xbf16>, vector<3x32xbf16>, vector<71x32xf32> -> vector<71x32xf32>
    %103 = arith.addf %99, %102 : vector<71x32xf32>
    %c0_138 = arith.constant 0 : index
    %c7_139 = arith.constant 7 : index
    %c0_140 = arith.constant 0 : index
    %c0_141 = arith.constant 0 : index
    %104 = vector.load %arg3[%c0_138, %c7_139, %c0_140, %c0_141] : memref<1x9x3x32xbf16, #tpu.memory_space<vmem>>, vector<1x1x3x32xbf16>
    %105 = vector.shape_cast %104 : vector<1x1x3x32xbf16> to vector<3x32xbf16>
    %cst_142 = arith.constant dense<0.000000e+00> : vector<71x32xf32>
    %106 = tpu.matmul %23, %105, %cst_142 {dimension_numbers = #tpu.dot_dimension_numbers<[1], [0], [0], [1], [0, 0, 1, 1], [], []>} : vector<71x3xbf16>, vector<3x32xbf16>, vector<71x32xf32> -> vector<71x32xf32>
    %107 = arith.addf %103, %106 : vector<71x32xf32>
    %c0_143 = arith.constant 0 : index
    %c8_144 = arith.constant 8 : index
    %c0_145 = arith.constant 0 : index
    %c0_146 = arith.constant 0 : index
    %108 = vector.load %arg3[%c0_143, %c8_144, %c0_145, %c0_146] : memref<1x9x3x32xbf16, #tpu.memory_space<vmem>>, vector<1x1x3x32xbf16>
    %109 = vector.shape_cast %108 : vector<1x1x3x32xbf16> to vector<3x32xbf16>
    %cst_147 = arith.constant dense<0.000000e+00> : vector<71x32xf32>
    %110 = tpu.matmul %25, %109, %cst_147 {dimension_numbers = #tpu.dot_dimension_numbers<[1], [0], [0], [1], [0, 0, 1, 1], [], []>} : vector<71x3xbf16>, vector<3x32xbf16>, vector<71x32xf32> -> vector<71x32xf32>
    %111 = arith.addf %107, %110 : vector<71x32xf32>
    %112 = vector.broadcast %1 : vector<1x32xf32> to vector<71x32xf32>
    %113 = arith.addf %111, %112 : vector<71x32xf32>
    %cst_148 = arith.constant 0.000000e+00 : f32
    %114 = vector.broadcast %cst_148 : f32 to vector<71x32xf32>
    %115 = arith.maximumf %113, %114 : vector<71x32xf32>
    %116 = arith.maximumf %74, %115 : vector<71x32xf32>
    %cst_149 = arith.constant 0.000000e+00 : f32
    %117 = vector.broadcast %cst_149 : f32 to vector<71x32xf32>
    %c0_150 = arith.constant 0 : index
    %c0_151 = arith.constant 0 : index
    %c0_152 = arith.constant 0 : index
    %c0_153 = arith.constant 0 : index
    %118 = vector.load %arg3[%c0_150, %c0_151, %c0_152, %c0_153] : memref<1x9x3x32xbf16, #tpu.memory_space<vmem>>, vector<1x1x3x32xbf16>
    %119 = vector.shape_cast %118 : vector<1x1x3x32xbf16> to vector<3x32xbf16>
    %cst_154 = arith.constant dense<0.000000e+00> : vector<71x32xf32>
    %120 = tpu.matmul %11, %119, %cst_154 {dimension_numbers = #tpu.dot_dimension_numbers<[1], [0], [0], [1], [0, 0, 1, 1], [], []>} : vector<71x3xbf16>, vector<3x32xbf16>, vector<71x32xf32> -> vector<71x32xf32>
    %121 = arith.addf %117, %120 : vector<71x32xf32>
    %c0_155 = arith.constant 0 : index
    %c1_156 = arith.constant 1 : index
    %c0_157 = arith.constant 0 : index
    %c0_158 = arith.constant 0 : index
    %122 = vector.load %arg3[%c0_155, %c1_156, %c0_157, %c0_158] : memref<1x9x3x32xbf16, #tpu.memory_space<vmem>>, vector<1x1x3x32xbf16>
    %123 = vector.shape_cast %122 : vector<1x1x3x32xbf16> to vector<3x32xbf16>
    %cst_159 = arith.constant dense<0.000000e+00> : vector<71x32xf32>
    %124 = tpu.matmul %13, %123, %cst_159 {dimension_numbers = #tpu.dot_dimension_numbers<[1], [0], [0], [1], [0, 0, 1, 1], [], []>} : vector<71x3xbf16>, vector<3x32xbf16>, vector<71x32xf32> -> vector<71x32xf32>
    %125 = arith.addf %121, %124 : vector<71x32xf32>
    %c0_160 = arith.constant 0 : index
    %c2_161 = arith.constant 2 : index
    %c0_162 = arith.constant 0 : index
    %c0_163 = arith.constant 0 : index
    %126 = vector.load %arg3[%c0_160, %c2_161, %c0_162, %c0_163] : memref<1x9x3x32xbf16, #tpu.memory_space<vmem>>, vector<1x1x3x32xbf16>
    %127 = vector.shape_cast %126 : vector<1x1x3x32xbf16> to vector<3x32xbf16>
    %cst_164 = arith.constant dense<0.000000e+00> : vector<71x32xf32>
    %128 = tpu.matmul %15, %127, %cst_164 {dimension_numbers = #tpu.dot_dimension_numbers<[1], [0], [0], [1], [0, 0, 1, 1], [], []>} : vector<71x3xbf16>, vector<3x32xbf16>, vector<71x32xf32> -> vector<71x32xf32>
    %129 = arith.addf %125, %128 : vector<71x32xf32>
    %c0_165 = arith.constant 0 : index
    %c3_166 = arith.constant 3 : index
    %c0_167 = arith.constant 0 : index
    %c0_168 = arith.constant 0 : index
    %130 = vector.load %arg3[%c0_165, %c3_166, %c0_167, %c0_168] : memref<1x9x3x32xbf16, #tpu.memory_space<vmem>>, vector<1x1x3x32xbf16>
    %131 = vector.shape_cast %130 : vector<1x1x3x32xbf16> to vector<3x32xbf16>
    %cst_169 = arith.constant dense<0.000000e+00> : vector<71x32xf32>
    %132 = tpu.matmul %19, %131, %cst_169 {dimension_numbers = #tpu.dot_dimension_numbers<[1], [0], [0], [1], [0, 0, 1, 1], [], []>} : vector<71x3xbf16>, vector<3x32xbf16>, vector<71x32xf32> -> vector<71x32xf32>
    %133 = arith.addf %129, %132 : vector<71x32xf32>
    %c0_170 = arith.constant 0 : index
    %c4_171 = arith.constant 4 : index
    %c0_172 = arith.constant 0 : index
    %c0_173 = arith.constant 0 : index
    %134 = vector.load %arg3[%c0_170, %c4_171, %c0_172, %c0_173] : memref<1x9x3x32xbf16, #tpu.memory_space<vmem>>, vector<1x1x3x32xbf16>
    %135 = vector.shape_cast %134 : vector<1x1x3x32xbf16> to vector<3x32xbf16>
    %cst_174 = arith.constant dense<0.000000e+00> : vector<71x32xf32>
    %136 = tpu.matmul %21, %135, %cst_174 {dimension_numbers = #tpu.dot_dimension_numbers<[1], [0], [0], [1], [0, 0, 1, 1], [], []>} : vector<71x3xbf16>, vector<3x32xbf16>, vector<71x32xf32> -> vector<71x32xf32>
    %137 = arith.addf %133, %136 : vector<71x32xf32>
    %c0_175 = arith.constant 0 : index
    %c5_176 = arith.constant 5 : index
    %c0_177 = arith.constant 0 : index
    %c0_178 = arith.constant 0 : index
    %138 = vector.load %arg3[%c0_175, %c5_176, %c0_177, %c0_178] : memref<1x9x3x32xbf16, #tpu.memory_space<vmem>>, vector<1x1x3x32xbf16>
    %139 = vector.shape_cast %138 : vector<1x1x3x32xbf16> to vector<3x32xbf16>
    %cst_179 = arith.constant dense<0.000000e+00> : vector<71x32xf32>
    %140 = tpu.matmul %23, %139, %cst_179 {dimension_numbers = #tpu.dot_dimension_numbers<[1], [0], [0], [1], [0, 0, 1, 1], [], []>} : vector<71x3xbf16>, vector<3x32xbf16>, vector<71x32xf32> -> vector<71x32xf32>
    %141 = arith.addf %137, %140 : vector<71x32xf32>
    %c0_180 = arith.constant 0 : index
    %c6_181 = arith.constant 6 : index
    %c0_182 = arith.constant 0 : index
    %c0_183 = arith.constant 0 : index
    %142 = vector.load %arg3[%c0_180, %c6_181, %c0_182, %c0_183] : memref<1x9x3x32xbf16, #tpu.memory_space<vmem>>, vector<1x1x3x32xbf16>
    %143 = vector.shape_cast %142 : vector<1x1x3x32xbf16> to vector<3x32xbf16>
    %cst_184 = arith.constant dense<0.000000e+00> : vector<71x32xf32>
    %144 = tpu.matmul %27, %143, %cst_184 {dimension_numbers = #tpu.dot_dimension_numbers<[1], [0], [0], [1], [0, 0, 1, 1], [], []>} : vector<71x3xbf16>, vector<3x32xbf16>, vector<71x32xf32> -> vector<71x32xf32>
    %145 = arith.addf %141, %144 : vector<71x32xf32>
    %c0_185 = arith.constant 0 : index
    %c7_186 = arith.constant 7 : index
    %c0_187 = arith.constant 0 : index
    %c0_188 = arith.constant 0 : index
    %146 = vector.load %arg3[%c0_185, %c7_186, %c0_187, %c0_188] : memref<1x9x3x32xbf16, #tpu.memory_space<vmem>>, vector<1x1x3x32xbf16>
    %147 = vector.shape_cast %146 : vector<1x1x3x32xbf16> to vector<3x32xbf16>
    %cst_189 = arith.constant dense<0.000000e+00> : vector<71x32xf32>
    %148 = tpu.matmul %29, %147, %cst_189 {dimension_numbers = #tpu.dot_dimension_numbers<[1], [0], [0], [1], [0, 0, 1, 1], [], []>} : vector<71x3xbf16>, vector<3x32xbf16>, vector<71x32xf32> -> vector<71x32xf32>
    %149 = arith.addf %145, %148 : vector<71x32xf32>
    %c0_190 = arith.constant 0 : index
    %c8_191 = arith.constant 8 : index
    %c0_192 = arith.constant 0 : index
    %c0_193 = arith.constant 0 : index
    %150 = vector.load %arg3[%c0_190, %c8_191, %c0_192, %c0_193] : memref<1x9x3x32xbf16, #tpu.memory_space<vmem>>, vector<1x1x3x32xbf16>
    %151 = vector.shape_cast %150 : vector<1x1x3x32xbf16> to vector<3x32xbf16>
    %cst_194 = arith.constant dense<0.000000e+00> : vector<71x32xf32>
    %152 = tpu.matmul %31, %151, %cst_194 {dimension_numbers = #tpu.dot_dimension_numbers<[1], [0], [0], [1], [0, 0, 1, 1], [], []>} : vector<71x3xbf16>, vector<3x32xbf16>, vector<71x32xf32> -> vector<71x32xf32>
    %153 = arith.addf %149, %152 : vector<71x32xf32>
    %154 = vector.broadcast %1 : vector<1x32xf32> to vector<71x32xf32>
    %155 = arith.addf %153, %154 : vector<71x32xf32>
    %cst_195 = arith.constant 0.000000e+00 : f32
    %156 = vector.broadcast %cst_195 : f32 to vector<71x32xf32>
    %157 = arith.maximumf %155, %156 : vector<71x32xf32>
    %158 = arith.maximumf %116, %157 : vector<71x32xf32>
    %cst_196 = arith.constant 0.000000e+00 : f32
    %159 = vector.broadcast %cst_196 : f32 to vector<71x32xf32>
    %c0_197 = arith.constant 0 : index
    %c0_198 = arith.constant 0 : index
    %c0_199 = arith.constant 0 : index
    %c0_200 = arith.constant 0 : index
    %160 = vector.load %arg3[%c0_197, %c0_198, %c0_199, %c0_200] : memref<1x9x3x32xbf16, #tpu.memory_space<vmem>>, vector<1x1x3x32xbf16>
    %161 = vector.shape_cast %160 : vector<1x1x3x32xbf16> to vector<3x32xbf16>
    %cst_201 = arith.constant dense<0.000000e+00> : vector<71x32xf32>
    %162 = tpu.matmul %13, %161, %cst_201 {dimension_numbers = #tpu.dot_dimension_numbers<[1], [0], [0], [1], [0, 0, 1, 1], [], []>} : vector<71x3xbf16>, vector<3x32xbf16>, vector<71x32xf32> -> vector<71x32xf32>
    %163 = arith.addf %159, %162 : vector<71x32xf32>
    %c0_202 = arith.constant 0 : index
    %c1_203 = arith.constant 1 : index
    %c0_204 = arith.constant 0 : index
    %c0_205 = arith.constant 0 : index
    %164 = vector.load %arg3[%c0_202, %c1_203, %c0_204, %c0_205] : memref<1x9x3x32xbf16, #tpu.memory_space<vmem>>, vector<1x1x3x32xbf16>
    %165 = vector.shape_cast %164 : vector<1x1x3x32xbf16> to vector<3x32xbf16>
    %cst_206 = arith.constant dense<0.000000e+00> : vector<71x32xf32>
    %166 = tpu.matmul %15, %165, %cst_206 {dimension_numbers = #tpu.dot_dimension_numbers<[1], [0], [0], [1], [0, 0, 1, 1], [], []>} : vector<71x3xbf16>, vector<3x32xbf16>, vector<71x32xf32> -> vector<71x32xf32>
    %167 = arith.addf %163, %166 : vector<71x32xf32>
    %c0_207 = arith.constant 0 : index
    %c2_208 = arith.constant 2 : index
    %c0_209 = arith.constant 0 : index
    %c0_210 = arith.constant 0 : index
    %168 = vector.load %arg3[%c0_207, %c2_208, %c0_209, %c0_210] : memref<1x9x3x32xbf16, #tpu.memory_space<vmem>>, vector<1x1x3x32xbf16>
    %169 = vector.shape_cast %168 : vector<1x1x3x32xbf16> to vector<3x32xbf16>
    %cst_211 = arith.constant dense<0.000000e+00> : vector<71x32xf32>
    %170 = tpu.matmul %17, %169, %cst_211 {dimension_numbers = #tpu.dot_dimension_numbers<[1], [0], [0], [1], [0, 0, 1, 1], [], []>} : vector<71x3xbf16>, vector<3x32xbf16>, vector<71x32xf32> -> vector<71x32xf32>
    %171 = arith.addf %167, %170 : vector<71x32xf32>
    %c0_212 = arith.constant 0 : index
    %c3_213 = arith.constant 3 : index
    %c0_214 = arith.constant 0 : index
    %c0_215 = arith.constant 0 : index
    %172 = vector.load %arg3[%c0_212, %c3_213, %c0_214, %c0_215] : memref<1x9x3x32xbf16, #tpu.memory_space<vmem>>, vector<1x1x3x32xbf16>
    %173 = vector.shape_cast %172 : vector<1x1x3x32xbf16> to vector<3x32xbf16>
    %cst_216 = arith.constant dense<0.000000e+00> : vector<71x32xf32>
    %174 = tpu.matmul %21, %173, %cst_216 {dimension_numbers = #tpu.dot_dimension_numbers<[1], [0], [0], [1], [0, 0, 1, 1], [], []>} : vector<71x3xbf16>, vector<3x32xbf16>, vector<71x32xf32> -> vector<71x32xf32>
    %175 = arith.addf %171, %174 : vector<71x32xf32>
    %c0_217 = arith.constant 0 : index
    %c4_218 = arith.constant 4 : index
    %c0_219 = arith.constant 0 : index
    %c0_220 = arith.constant 0 : index
    %176 = vector.load %arg3[%c0_217, %c4_218, %c0_219, %c0_220] : memref<1x9x3x32xbf16, #tpu.memory_space<vmem>>, vector<1x1x3x32xbf16>
    %177 = vector.shape_cast %176 : vector<1x1x3x32xbf16> to vector<3x32xbf16>
    %cst_221 = arith.constant dense<0.000000e+00> : vector<71x32xf32>
    %178 = tpu.matmul %23, %177, %cst_221 {dimension_numbers = #tpu.dot_dimension_numbers<[1], [0], [0], [1], [0, 0, 1, 1], [], []>} : vector<71x3xbf16>, vector<3x32xbf16>, vector<71x32xf32> -> vector<71x32xf32>
    %179 = arith.addf %175, %178 : vector<71x32xf32>
    %c0_222 = arith.constant 0 : index
    %c5_223 = arith.constant 5 : index
    %c0_224 = arith.constant 0 : index
    %c0_225 = arith.constant 0 : index
    %180 = vector.load %arg3[%c0_222, %c5_223, %c0_224, %c0_225] : memref<1x9x3x32xbf16, #tpu.memory_space<vmem>>, vector<1x1x3x32xbf16>
    %181 = vector.shape_cast %180 : vector<1x1x3x32xbf16> to vector<3x32xbf16>
    %cst_226 = arith.constant dense<0.000000e+00> : vector<71x32xf32>
    %182 = tpu.matmul %25, %181, %cst_226 {dimension_numbers = #tpu.dot_dimension_numbers<[1], [0], [0], [1], [0, 0, 1, 1], [], []>} : vector<71x3xbf16>, vector<3x32xbf16>, vector<71x32xf32> -> vector<71x32xf32>
    %183 = arith.addf %179, %182 : vector<71x32xf32>
    %c0_227 = arith.constant 0 : index
    %c6_228 = arith.constant 6 : index
    %c0_229 = arith.constant 0 : index
    %c0_230 = arith.constant 0 : index
    %184 = vector.load %arg3[%c0_227, %c6_228, %c0_229, %c0_230] : memref<1x9x3x32xbf16, #tpu.memory_space<vmem>>, vector<1x1x3x32xbf16>
    %185 = vector.shape_cast %184 : vector<1x1x3x32xbf16> to vector<3x32xbf16>
    %cst_231 = arith.constant dense<0.000000e+00> : vector<71x32xf32>
    %186 = tpu.matmul %29, %185, %cst_231 {dimension_numbers = #tpu.dot_dimension_numbers<[1], [0], [0], [1], [0, 0, 1, 1], [], []>} : vector<71x3xbf16>, vector<3x32xbf16>, vector<71x32xf32> -> vector<71x32xf32>
    %187 = arith.addf %183, %186 : vector<71x32xf32>
    %c0_232 = arith.constant 0 : index
    %c7_233 = arith.constant 7 : index
    %c0_234 = arith.constant 0 : index
    %c0_235 = arith.constant 0 : index
    %188 = vector.load %arg3[%c0_232, %c7_233, %c0_234, %c0_235] : memref<1x9x3x32xbf16, #tpu.memory_space<vmem>>, vector<1x1x3x32xbf16>
    %189 = vector.shape_cast %188 : vector<1x1x3x32xbf16> to vector<3x32xbf16>
    %cst_236 = arith.constant dense<0.000000e+00> : vector<71x32xf32>
    %190 = tpu.matmul %31, %189, %cst_236 {dimension_numbers = #tpu.dot_dimension_numbers<[1], [0], [0], [1], [0, 0, 1, 1], [], []>} : vector<71x3xbf16>, vector<3x32xbf16>, vector<71x32xf32> -> vector<71x32xf32>
    %191 = arith.addf %187, %190 : vector<71x32xf32>
    %c0_237 = arith.constant 0 : index
    %c8_238 = arith.constant 8 : index
    %c0_239 = arith.constant 0 : index
    %c0_240 = arith.constant 0 : index
    %192 = vector.load %arg3[%c0_237, %c8_238, %c0_239, %c0_240] : memref<1x9x3x32xbf16, #tpu.memory_space<vmem>>, vector<1x1x3x32xbf16>
    %193 = vector.shape_cast %192 : vector<1x1x3x32xbf16> to vector<3x32xbf16>
    %cst_241 = arith.constant dense<0.000000e+00> : vector<71x32xf32>
    %194 = tpu.matmul %33, %193, %cst_241 {dimension_numbers = #tpu.dot_dimension_numbers<[1], [0], [0], [1], [0, 0, 1, 1], [], []>} : vector<71x3xbf16>, vector<3x32xbf16>, vector<71x32xf32> -> vector<71x32xf32>
    %195 = arith.addf %191, %194 : vector<71x32xf32>
    %196 = vector.broadcast %1 : vector<1x32xf32> to vector<71x32xf32>
    %197 = arith.addf %195, %196 : vector<71x32xf32>
    %cst_242 = arith.constant 0.000000e+00 : f32
    %198 = vector.broadcast %cst_242 : f32 to vector<71x32xf32>
    %199 = arith.maximumf %197, %198 : vector<71x32xf32>
    %200 = arith.maximumf %158, %199 : vector<71x32xf32>
    %201 = arith.truncf %200 : vector<71x32xf32> to vector<71x32xbf16>
    %c0_243 = arith.constant 0 : index
    %c0_244 = arith.constant 0 : index
    %c0_245 = arith.constant 0 : index
    %202 = vector.load %arg5[%c0_243, %c0_244, %c0_245] : memref<1x72x32xbf16, #tpu.memory_space<vmem>>, vector<1x71x32xbf16>
    %203 = vector.shape_cast %202 : vector<1x71x32xbf16> to vector<71x32xbf16>
    %204 = vector.shape_cast %201 : vector<71x32xbf16> to vector<1x71x32xbf16>
    tpu.vector_store %arg5[%c0_243, %c0_244, %c0_245], %204 {strides = array<i32>} : memref<1x72x32xbf16, #tpu.memory_space<vmem>>, vector<1x71x32xbf16>,
    %cst_246 = arith.constant 0.000000e+00 : bf16
    %205 = vector.broadcast %cst_246 : bf16 to vector<1x32xbf16>
    %c0_247 = arith.constant 0 : index
    %c71 = arith.constant 71 : index
    %c0_248 = arith.constant 0 : index
    %206 = vector.load %arg5[%c0_247, %c71, %c0_248] : memref<1x72x32xbf16, #tpu.memory_space<vmem>>, vector<1x1x32xbf16>
    %207 = vector.shape_cast %206 : vector<1x1x32xbf16> to vector<1x32xbf16>
    %208 = vector.shape_cast %205 : vector<1x32xbf16> to vector<1x1x32xbf16>
    tpu.vector_store %arg5[%c0_247, %c71, %c0_248], %208 {strides = array<i32>} : memref<1x72x32xbf16, #tpu.memory_space<vmem>>, vector<1x1x32xbf16>,
    return
  }
  func.func @transform_0(%arg0: i32, %arg1: i32) -> (i32, i32, i32, i32) {
    %c2_i32 = arith.constant 2 : i32
    %0 = arith.muli %arg0, %c2_i32 : i32
    %1 = arith.addi %0, %arg1 : i32
    %c0_i32 = arith.constant 0 : i32
    %c0_i32_0 = arith.constant 0 : i32
    %c0_i32_1 = arith.constant 0 : i32
    %c0_i32_2 = arith.constant 0 : i32
    return %1, %c0_i32, %c0_i32_0, %c0_i32_1 : i32, i32, i32, i32
  }
  func.func @transform_1(%arg0: i32, %arg1: i32) -> (i32, i32, i32, i32) {
    %c0_i32 = arith.constant 0 : i32
    %c0_i32_0 = arith.constant 0 : i32
    %c0_i32_1 = arith.constant 0 : i32
    %c0_i32_2 = arith.constant 0 : i32
    return %arg0, %c0_i32, %c0_i32_0, %c0_i32_1 : i32, i32, i32, i32
  }
  func.func @transform_2(%arg0: i32, %arg1: i32) -> (i32, i32, i32) {
    %c0_i32 = arith.constant 0 : i32
    %c0_i32_0 = arith.constant 0 : i32
    %c0_i32_1 = arith.constant 0 : i32
    return %arg0, %c0_i32, %c0_i32_0 : i32, i32, i32
  }
  func.func @transform_3(%arg0: i32, %arg1: i32) -> (i32, i32, i32) {
    %c2_i32 = arith.constant 2 : i32
    %0 = arith.muli %arg0, %c2_i32 : i32
    %1 = arith.addi %0, %arg1 : i32
    %c0_i32 = arith.constant 0 : i32
    %c0_i32_0 = arith.constant 0 : i32
    %c0_i32_1 = arith.constant 0 : i32
    return %1, %c0_i32, %c0_i32_0 : i32, i32, i32
  }
}

module attributes {stable_mosaic.version = 11 : i64} {
  func.func @_conv_relu_pool_kernel(%arg0: i32, %arg1: i32, %arg2: memref<1x4x25x32xbf16, #tpu.memory_space<vmem>>, %arg3: memref<1x288x64xbf16, #tpu.memory_space<vmem>>, %arg4: memref<1x1x64xf32, #tpu.memory_space<vmem>>, %arg5: memref<1x20x64xbf16, #tpu.memory_space<vmem>>) attributes {dimension_semantics = [#tpu.dimension_semantics<parallel>, #tpu.dimension_semantics<parallel>], iteration_bounds = array<i64: 2, 2>, scalar_prefetch = 0 : i64, scratch_operands = 0 : i64, tpu.core_type = #tpu.core_type<tc>, window_params = [{transform_indices = @transform_0, window_bounds = array<i64: 1, 4, 25, 32>}, {transform_indices = @transform_1, window_bounds = array<i64: 1, 288, 64>}, {transform_indices = @transform_2, window_bounds = array<i64: 1, 1, 64>}, {transform_indices = @transform_3, window_bounds = array<i64: 1, 20, 64>}]} {
    %c0 = arith.constant 0 : index
    %c0_0 = arith.constant 0 : index
    %c0_1 = arith.constant 0 : index
    %0 = vector.load %arg4[%c0, %c0_0, %c0_1] : memref<1x1x64xf32, #tpu.memory_space<vmem>>, vector<1x1x64xf32>
    %1 = vector.shape_cast %0 : vector<1x1x64xf32> to vector<1x64xf32>
    %c0_2 = arith.constant 0 : index
    %c0_3 = arith.constant 0 : index
    %c0_4 = arith.constant 0 : index
    %c0_5 = arith.constant 0 : index
    %2 = vector.load %arg2[%c0_2, %c0_3, %c0_4, %c0_5] : memref<1x4x25x32xbf16, #tpu.memory_space<vmem>>, vector<1x1x19x32xbf16>
    %3 = vector.shape_cast %2 : vector<1x1x19x32xbf16> to vector<19x32xbf16>
    %c0_6 = arith.constant 0 : index
    %c1 = arith.constant 1 : index
    %c0_7 = arith.constant 0 : index
    %c0_8 = arith.constant 0 : index
    %4 = vector.load %arg2[%c0_6, %c1, %c0_7, %c0_8] : memref<1x4x25x32xbf16, #tpu.memory_space<vmem>>, vector<1x1x19x32xbf16>
    %5 = vector.shape_cast %4 : vector<1x1x19x32xbf16> to vector<19x32xbf16>
    %c0_9 = arith.constant 0 : index
    %c0_10 = arith.constant 0 : index
    %c1_11 = arith.constant 1 : index
    %c0_12 = arith.constant 0 : index
    %6 = vector.load %arg2[%c0_9, %c0_10, %c1_11, %c0_12] : memref<1x4x25x32xbf16, #tpu.memory_space<vmem>>, vector<1x1x19x32xbf16>
    %7 = vector.shape_cast %6 : vector<1x1x19x32xbf16> to vector<19x32xbf16>
    %c0_13 = arith.constant 0 : index
    %c1_14 = arith.constant 1 : index
    %c1_15 = arith.constant 1 : index
    %c0_16 = arith.constant 0 : index
    %8 = vector.load %arg2[%c0_13, %c1_14, %c1_15, %c0_16] : memref<1x4x25x32xbf16, #tpu.memory_space<vmem>>, vector<1x1x19x32xbf16>
    %9 = vector.shape_cast %8 : vector<1x1x19x32xbf16> to vector<19x32xbf16>
    %c0_17 = arith.constant 0 : index
    %c2 = arith.constant 2 : index
    %c0_18 = arith.constant 0 : index
    %c0_19 = arith.constant 0 : index
    %10 = vector.load %arg2[%c0_17, %c2, %c0_18, %c0_19] : memref<1x4x25x32xbf16, #tpu.memory_space<vmem>>, vector<1x1x19x32xbf16>
    %11 = vector.shape_cast %10 : vector<1x1x19x32xbf16> to vector<19x32xbf16>
    %c0_20 = arith.constant 0 : index
    %c3 = arith.constant 3 : index
    %c0_21 = arith.constant 0 : index
    %c0_22 = arith.constant 0 : index
    %12 = vector.load %arg2[%c0_20, %c3, %c0_21, %c0_22] : memref<1x4x25x32xbf16, #tpu.memory_space<vmem>>, vector<1x1x19x32xbf16>
    %13 = vector.shape_cast %12 : vector<1x1x19x32xbf16> to vector<19x32xbf16>
    %c0_23 = arith.constant 0 : index
    %c2_24 = arith.constant 2 : index
    %c1_25 = arith.constant 1 : index
    %c0_26 = arith.constant 0 : index
    %14 = vector.load %arg2[%c0_23, %c2_24, %c1_25, %c0_26] : memref<1x4x25x32xbf16, #tpu.memory_space<vmem>>, vector<1x1x19x32xbf16>
    %15 = vector.shape_cast %14 : vector<1x1x19x32xbf16> to vector<19x32xbf16>
    %c0_27 = arith.constant 0 : index
    %c3_28 = arith.constant 3 : index
    %c1_29 = arith.constant 1 : index
    %c0_30 = arith.constant 0 : index
    %16 = vector.load %arg2[%c0_27, %c3_28, %c1_29, %c0_30] : memref<1x4x25x32xbf16, #tpu.memory_space<vmem>>, vector<1x1x19x32xbf16>
    %17 = vector.shape_cast %16 : vector<1x1x19x32xbf16> to vector<19x32xbf16>
    %c0_31 = arith.constant 0 : index
    %c0_32 = arith.constant 0 : index
    %c5 = arith.constant 5 : index
    %c0_33 = arith.constant 0 : index
    %18 = vector.load %arg2[%c0_31, %c0_32, %c5, %c0_33] : memref<1x4x25x32xbf16, #tpu.memory_space<vmem>>, vector<1x1x19x32xbf16>
    %19 = vector.shape_cast %18 : vector<1x1x19x32xbf16> to vector<19x32xbf16>
    %c0_34 = arith.constant 0 : index
    %c1_35 = arith.constant 1 : index
    %c5_36 = arith.constant 5 : index
    %c0_37 = arith.constant 0 : index
    %20 = vector.load %arg2[%c0_34, %c1_35, %c5_36, %c0_37] : memref<1x4x25x32xbf16, #tpu.memory_space<vmem>>, vector<1x1x19x32xbf16>
    %21 = vector.shape_cast %20 : vector<1x1x19x32xbf16> to vector<19x32xbf16>
    %c0_38 = arith.constant 0 : index
    %c0_39 = arith.constant 0 : index
    %c6 = arith.constant 6 : index
    %c0_40 = arith.constant 0 : index
    %22 = vector.load %arg2[%c0_38, %c0_39, %c6, %c0_40] : memref<1x4x25x32xbf16, #tpu.memory_space<vmem>>, vector<1x1x19x32xbf16>
    %23 = vector.shape_cast %22 : vector<1x1x19x32xbf16> to vector<19x32xbf16>
    %c0_41 = arith.constant 0 : index
    %c1_42 = arith.constant 1 : index
    %c6_43 = arith.constant 6 : index
    %c0_44 = arith.constant 0 : index
    %24 = vector.load %arg2[%c0_41, %c1_42, %c6_43, %c0_44] : memref<1x4x25x32xbf16, #tpu.memory_space<vmem>>, vector<1x1x19x32xbf16>
    %25 = vector.shape_cast %24 : vector<1x1x19x32xbf16> to vector<19x32xbf16>
    %c0_45 = arith.constant 0 : index
    %c2_46 = arith.constant 2 : index
    %c5_47 = arith.constant 5 : index
    %c0_48 = arith.constant 0 : index
    %26 = vector.load %arg2[%c0_45, %c2_46, %c5_47, %c0_48] : memref<1x4x25x32xbf16, #tpu.memory_space<vmem>>, vector<1x1x19x32xbf16>
    %27 = vector.shape_cast %26 : vector<1x1x19x32xbf16> to vector<19x32xbf16>
    %c0_49 = arith.constant 0 : index
    %c3_50 = arith.constant 3 : index
    %c5_51 = arith.constant 5 : index
    %c0_52 = arith.constant 0 : index
    %28 = vector.load %arg2[%c0_49, %c3_50, %c5_51, %c0_52] : memref<1x4x25x32xbf16, #tpu.memory_space<vmem>>, vector<1x1x19x32xbf16>
    %29 = vector.shape_cast %28 : vector<1x1x19x32xbf16> to vector<19x32xbf16>
    %c0_53 = arith.constant 0 : index
    %c2_54 = arith.constant 2 : index
    %c6_55 = arith.constant 6 : index
    %c0_56 = arith.constant 0 : index
    %30 = vector.load %arg2[%c0_53, %c2_54, %c6_55, %c0_56] : memref<1x4x25x32xbf16, #tpu.memory_space<vmem>>, vector<1x1x19x32xbf16>
    %31 = vector.shape_cast %30 : vector<1x1x19x32xbf16> to vector<19x32xbf16>
    %c0_57 = arith.constant 0 : index
    %c3_58 = arith.constant 3 : index
    %c6_59 = arith.constant 6 : index
    %c0_60 = arith.constant 0 : index
    %32 = vector.load %arg2[%c0_57, %c3_58, %c6_59, %c0_60] : memref<1x4x25x32xbf16, #tpu.memory_space<vmem>>, vector<1x1x19x32xbf16>
    %33 = vector.shape_cast %32 : vector<1x1x19x32xbf16> to vector<19x32xbf16>
    %34 = tpu.concatenate %3, %5, %7, %11, %13, %15, %19, %21, %23 in 1 : vector<19x32xbf16>, vector<19x32xbf16>, vector<19x32xbf16>, vector<19x32xbf16>, vector<19x32xbf16>, vector<19x32xbf16>, vector<19x32xbf16>, vector<19x32xbf16>, vector<19x32xbf16> -> vector<19x288xbf16>
    %c0_61 = arith.constant 0 : index
    %c0_62 = arith.constant 0 : index
    %c0_63 = arith.constant 0 : index
    %35 = vector.load %arg3[%c0_61, %c0_62, %c0_63] : memref<1x288x64xbf16, #tpu.memory_space<vmem>>, vector<1x288x64xbf16>
    %36 = vector.shape_cast %35 : vector<1x288x64xbf16> to vector<288x64xbf16>
    %cst = arith.constant dense<0.000000e+00> : vector<19x64xf32>
    %37 = tpu.matmul %34, %36, %cst {dimension_numbers = #tpu.dot_dimension_numbers<[1], [0], [0], [1], [0, 0, 1, 1], [], []>} : vector<19x288xbf16>, vector<288x64xbf16>, vector<19x64xf32> -> vector<19x64xf32>
    %38 = vector.broadcast %1 : vector<1x64xf32> to vector<19x64xf32>
    %39 = arith.addf %37, %38 : vector<19x64xf32>
    %cst_64 = arith.constant 0.000000e+00 : f32
    %40 = vector.broadcast %cst_64 : f32 to vector<19x64xf32>
    %41 = arith.maximumf %39, %40 : vector<19x64xf32>
    %42 = tpu.concatenate %5, %7, %9, %13, %15, %17, %21, %23, %25 in 1 : vector<19x32xbf16>, vector<19x32xbf16>, vector<19x32xbf16>, vector<19x32xbf16>, vector<19x32xbf16>, vector<19x32xbf16>, vector<19x32xbf16>, vector<19x32xbf16>, vector<19x32xbf16> -> vector<19x288xbf16>
    %c0_65 = arith.constant 0 : index
    %c0_66 = arith.constant 0 : index
    %c0_67 = arith.constant 0 : index
    %43 = vector.load %arg3[%c0_65, %c0_66, %c0_67] : memref<1x288x64xbf16, #tpu.memory_space<vmem>>, vector<1x288x64xbf16>
    %44 = vector.shape_cast %43 : vector<1x288x64xbf16> to vector<288x64xbf16>
    %cst_68 = arith.constant dense<0.000000e+00> : vector<19x64xf32>
    %45 = tpu.matmul %42, %44, %cst_68 {dimension_numbers = #tpu.dot_dimension_numbers<[1], [0], [0], [1], [0, 0, 1, 1], [], []>} : vector<19x288xbf16>, vector<288x64xbf16>, vector<19x64xf32> -> vector<19x64xf32>
    %46 = vector.broadcast %1 : vector<1x64xf32> to vector<19x64xf32>
    %47 = arith.addf %45, %46 : vector<19x64xf32>
    %cst_69 = arith.constant 0.000000e+00 : f32
    %48 = vector.broadcast %cst_69 : f32 to vector<19x64xf32>
    %49 = arith.maximumf %47, %48 : vector<19x64xf32>
    %50 = arith.maximumf %41, %49 : vector<19x64xf32>
    %51 = tpu.concatenate %11, %13, %15, %19, %21, %23, %27, %29, %31 in 1 : vector<19x32xbf16>, vector<19x32xbf16>, vector<19x32xbf16>, vector<19x32xbf16>, vector<19x32xbf16>, vector<19x32xbf16>, vector<19x32xbf16>, vector<19x32xbf16>, vector<19x32xbf16> -> vector<19x288xbf16>
    %c0_70 = arith.constant 0 : index
    %c0_71 = arith.constant 0 : index
    %c0_72 = arith.constant 0 : index
    %52 = vector.load %arg3[%c0_70, %c0_71, %c0_72] : memref<1x288x64xbf16, #tpu.memory_space<vmem>>, vector<1x288x64xbf16>
    %53 = vector.shape_cast %52 : vector<1x288x64xbf16> to vector<288x64xbf16>
    %cst_73 = arith.constant dense<0.000000e+00> : vector<19x64xf32>
    %54 = tpu.matmul %51, %53, %cst_73 {dimension_numbers = #tpu.dot_dimension_numbers<[1], [0], [0], [1], [0, 0, 1, 1], [], []>} : vector<19x288xbf16>, vector<288x64xbf16>, vector<19x64xf32> -> vector<19x64xf32>
    %55 = vector.broadcast %1 : vector<1x64xf32> to vector<19x64xf32>
    %56 = arith.addf %54, %55 : vector<19x64xf32>
    %cst_74 = arith.constant 0.000000e+00 : f32
    %57 = vector.broadcast %cst_74 : f32 to vector<19x64xf32>
    %58 = arith.maximumf %56, %57 : vector<19x64xf32>
    %59 = arith.maximumf %50, %58 : vector<19x64xf32>
    %60 = tpu.concatenate %13, %15, %17, %21, %23, %25, %29, %31, %33 in 1 : vector<19x32xbf16>, vector<19x32xbf16>, vector<19x32xbf16>, vector<19x32xbf16>, vector<19x32xbf16>, vector<19x32xbf16>, vector<19x32xbf16>, vector<19x32xbf16>, vector<19x32xbf16> -> vector<19x288xbf16>
    %c0_75 = arith.constant 0 : index
    %c0_76 = arith.constant 0 : index
    %c0_77 = arith.constant 0 : index
    %61 = vector.load %arg3[%c0_75, %c0_76, %c0_77] : memref<1x288x64xbf16, #tpu.memory_space<vmem>>, vector<1x288x64xbf16>
    %62 = vector.shape_cast %61 : vector<1x288x64xbf16> to vector<288x64xbf16>
    %cst_78 = arith.constant dense<0.000000e+00> : vector<19x64xf32>
    %63 = tpu.matmul %60, %62, %cst_78 {dimension_numbers = #tpu.dot_dimension_numbers<[1], [0], [0], [1], [0, 0, 1, 1], [], []>} : vector<19x288xbf16>, vector<288x64xbf16>, vector<19x64xf32> -> vector<19x64xf32>
    %64 = vector.broadcast %1 : vector<1x64xf32> to vector<19x64xf32>
    %65 = arith.addf %63, %64 : vector<19x64xf32>
    %cst_79 = arith.constant 0.000000e+00 : f32
    %66 = vector.broadcast %cst_79 : f32 to vector<19x64xf32>
    %67 = arith.maximumf %65, %66 : vector<19x64xf32>
    %68 = arith.maximumf %59, %67 : vector<19x64xf32>
    %69 = arith.truncf %68 : vector<19x64xf32> to vector<19x64xbf16>
    %c0_80 = arith.constant 0 : index
    %c0_81 = arith.constant 0 : index
    %c0_82 = arith.constant 0 : index
    %70 = vector.load %arg5[%c0_80, %c0_81, %c0_82] : memref<1x20x64xbf16, #tpu.memory_space<vmem>>, vector<1x19x64xbf16>
    %71 = vector.shape_cast %70 : vector<1x19x64xbf16> to vector<19x64xbf16>
    %72 = vector.shape_cast %69 : vector<19x64xbf16> to vector<1x19x64xbf16>
    tpu.vector_store %arg5[%c0_80, %c0_81, %c0_82], %72 {strides = array<i32>} : memref<1x20x64xbf16, #tpu.memory_space<vmem>>, vector<1x19x64xbf16>,
    %cst_83 = arith.constant 0.000000e+00 : bf16
    %73 = vector.broadcast %cst_83 : bf16 to vector<1x64xbf16>
    %c0_84 = arith.constant 0 : index
    %c19 = arith.constant 19 : index
    %c0_85 = arith.constant 0 : index
    %74 = vector.load %arg5[%c0_84, %c19, %c0_85] : memref<1x20x64xbf16, #tpu.memory_space<vmem>>, vector<1x1x64xbf16>
    %75 = vector.shape_cast %74 : vector<1x1x64xbf16> to vector<1x64xbf16>
    %76 = vector.shape_cast %73 : vector<1x64xbf16> to vector<1x1x64xbf16>
    tpu.vector_store %arg5[%c0_84, %c19, %c0_85], %76 {strides = array<i32>} : memref<1x20x64xbf16, #tpu.memory_space<vmem>>, vector<1x1x64xbf16>,
    return
  }
  func.func @transform_0(%arg0: i32, %arg1: i32) -> (i32, i32, i32, i32) {
    %c2_i32 = arith.constant 2 : i32
    %0 = arith.muli %arg0, %c2_i32 : i32
    %1 = arith.addi %0, %arg1 : i32
    %c0_i32 = arith.constant 0 : i32
    %c0_i32_0 = arith.constant 0 : i32
    %c0_i32_1 = arith.constant 0 : i32
    %c0_i32_2 = arith.constant 0 : i32
    return %1, %c0_i32, %c0_i32_0, %c0_i32_1 : i32, i32, i32, i32
  }
  func.func @transform_1(%arg0: i32, %arg1: i32) -> (i32, i32, i32) {
    %c0_i32 = arith.constant 0 : i32
    %c0_i32_0 = arith.constant 0 : i32
    %c0_i32_1 = arith.constant 0 : i32
    return %arg0, %c0_i32, %c0_i32_0 : i32, i32, i32
  }
  func.func @transform_2(%arg0: i32, %arg1: i32) -> (i32, i32, i32) {
    %c0_i32 = arith.constant 0 : i32
    %c0_i32_0 = arith.constant 0 : i32
    %c0_i32_1 = arith.constant 0 : i32
    return %arg0, %c0_i32, %c0_i32_0 : i32, i32, i32
  }
  func.func @transform_3(%arg0: i32, %arg1: i32) -> (i32, i32, i32) {
    %c2_i32 = arith.constant 2 : i32
    %0 = arith.muli %arg0, %c2_i32 : i32
    %1 = arith.addi %0, %arg1 : i32
    %c0_i32 = arith.constant 0 : i32
    %c0_i32_0 = arith.constant 0 : i32
    %c0_i32_1 = arith.constant 0 : i32
    return %1, %c0_i32, %c0_i32_0 : i32, i32, i32
  }
}

module attributes {stable_mosaic.version = 11 : i64} {
  func.func @_fc_kernel(%arg0: i32, %arg1: memref<2x2048xbf16, #tpu.memory_space<vmem>>, %arg2: memref<2048x128xbf16, #tpu.memory_space<vmem>>, %arg3: memref<1x128xf32, #tpu.memory_space<vmem>>, %arg4: memref<128x3xf32, #tpu.memory_space<vmem>>, %arg5: memref<1x3xf32, #tpu.memory_space<vmem>>, %arg6: memref<2x3xf32, #tpu.memory_space<vmem>>, %arg7: memref<2x128xf32, #tpu.memory_space<vmem>>) attributes {dimension_semantics = [#tpu.dimension_semantics<arbitrary>], iteration_bounds = array<i64: 1>, scalar_prefetch = 0 : i64, scratch_operands = 1 : i64, tpu.core_type = #tpu.core_type<tc>, window_params = [{transform_indices = @transform_0, window_bounds = array<i64: 2, 2048>}, {transform_indices = @transform_1, window_bounds = array<i64: 2048, 128>}, {pipeline_mode = #tpu.pipeline_mode<synchronous>, transform_indices = @transform_2, window_bounds = array<i64: 1, 128>}, {pipeline_mode = #tpu.pipeline_mode<synchronous>, transform_indices = @transform_3, window_bounds = array<i64: 128, 3>}, {pipeline_mode = #tpu.pipeline_mode<synchronous>, transform_indices = @transform_4, window_bounds = array<i64: 1, 3>}, {pipeline_mode = #tpu.pipeline_mode<synchronous>, transform_indices = @transform_5, window_bounds = array<i64: 2, 3>}]} {
    %c0_i32 = arith.constant 0 : i32
    %0 = arith.cmpi eq, %arg0, %c0_i32 : i32
    %1 = arith.extui %0 : i1 to i32
    %c0_i32_0 = arith.constant 0 : i32
    %2 = arith.cmpi ne, %1, %c0_i32_0 : i32
    scf.if %2 {
      %cst_10 = arith.constant 0.000000e+00 : f32
      %12 = vector.broadcast %cst_10 : f32 to vector<2x128xf32>
      %c0_11 = arith.constant 0 : index
      %c0_12 = arith.constant 0 : index
      %13 = vector.load %arg7[%c0_11, %c0_12] : memref<2x128xf32, #tpu.memory_space<vmem>>, vector<2x128xf32>
      tpu.vector_store %arg7[%c0_11, %c0_12], %12 {strides = array<i32>} : memref<2x128xf32, #tpu.memory_space<vmem>>, vector<2x128xf32>,
    } else {
    }
    %c0 = arith.constant 0 : index
    %c0_1 = arith.constant 0 : index
    %3 = vector.load %arg7[%c0, %c0_1] : memref<2x128xf32, #tpu.memory_space<vmem>>, vector<2x128xf32>
    %c0_2 = arith.constant 0 : index
    %c0_3 = arith.constant 0 : index
    %4 = vector.load %arg1[%c0_2, %c0_3] : memref<2x2048xbf16, #tpu.memory_space<vmem>>, vector<2x2048xbf16>
    %c0_4 = arith.constant 0 : index
    %c0_5 = arith.constant 0 : index
    %5 = vector.load %arg2[%c0_4, %c0_5] : memref<2048x128xbf16, #tpu.memory_space<vmem>>, vector<2048x128xbf16>
    %cst = arith.constant dense<0.000000e+00> : vector<2x128xf32>
    %6 = tpu.matmul %4, %5, %cst {dimension_numbers = #tpu.dot_dimension_numbers<[1], [0], [0], [1], [0, 0, 1, 1], [], []>} : vector<2x2048xbf16>, vector<2048x128xbf16>, vector<2x128xf32> -> vector<2x128xf32>
    %7 = arith.addf %3, %6 : vector<2x128xf32>
    %c0_6 = arith.constant 0 : index
    %c0_7 = arith.constant 0 : index
    %8 = vector.load %arg7[%c0_6, %c0_7] : memref<2x128xf32, #tpu.memory_space<vmem>>, vector<2x128xf32>
    tpu.vector_store %arg7[%c0_6, %c0_7], %7 {strides = array<i32>} : memref<2x128xf32, #tpu.memory_space<vmem>>, vector<2x128xf32>,
    %c0_i32_8 = arith.constant 0 : i32
    %9 = arith.cmpi eq, %arg0, %c0_i32_8 : i32
    %10 = arith.extui %9 : i1 to i32
    %c0_i32_9 = arith.constant 0 : i32
    %11 = arith.cmpi ne, %10, %c0_i32_9 : i32
    scf.if %11 {
      %c0_10 = arith.constant 0 : index
      %c0_11 = arith.constant 0 : index
      %12 = vector.load %arg7[%c0_10, %c0_11] : memref<2x128xf32, #tpu.memory_space<vmem>>, vector<2x128xf32>
      %c0_12 = arith.constant 0 : index
      %c0_13 = arith.constant 0 : index
      %13 = vector.load %arg3[%c0_12, %c0_13] : memref<1x128xf32, #tpu.memory_space<vmem>>, vector<1x128xf32>
      %14 = vector.broadcast %13 : vector<1x128xf32> to vector<2x128xf32>
      %15 = arith.addf %12, %14 : vector<2x128xf32>
      %cst_14 = arith.constant 0.000000e+00 : f32
      %16 = vector.broadcast %cst_14 : f32 to vector<2x128xf32>
      %17 = arith.maximumf %15, %16 : vector<2x128xf32>
      %c0_15 = arith.constant 0 : index
      %c0_16 = arith.constant 0 : index
      %18 = vector.load %arg4[%c0_15, %c0_16] : memref<128x3xf32, #tpu.memory_space<vmem>>, vector<128x3xf32>
      %cst_17 = arith.constant dense<0.000000e+00> : vector<2x3xf32>
      %19 = tpu.matmul %17, %18, %cst_17 {dimension_numbers = #tpu.dot_dimension_numbers<[1], [0], [0], [1], [0, 0, 1, 1], [], []>} : vector<2x128xf32>, vector<128x3xf32>, vector<2x3xf32> -> vector<2x3xf32>
      %c0_18 = arith.constant 0 : index
      %c0_19 = arith.constant 0 : index
      %20 = vector.load %arg5[%c0_18, %c0_19] : memref<1x3xf32, #tpu.memory_space<vmem>>, vector<1x3xf32>
      %21 = vector.broadcast %20 : vector<1x3xf32> to vector<2x3xf32>
      %22 = arith.addf %19, %21 : vector<2x3xf32>
      %c0_20 = arith.constant 0 : index
      %c0_21 = arith.constant 0 : index
      %23 = vector.load %arg6[%c0_20, %c0_21] : memref<2x3xf32, #tpu.memory_space<vmem>>, vector<2x3xf32>
      tpu.vector_store %arg6[%c0_20, %c0_21], %22 {strides = array<i32>} : memref<2x3xf32, #tpu.memory_space<vmem>>, vector<2x3xf32>,
    } else {
    }
    return
  }
  func.func @transform_0(%arg0: i32) -> (i32, i32) {
    %c0_i32 = arith.constant 0 : i32
    %c0_i32_0 = arith.constant 0 : i32
    return %c0_i32, %arg0 : i32, i32
  }
  func.func @transform_1(%arg0: i32) -> (i32, i32) {
    %c0_i32 = arith.constant 0 : i32
    %c0_i32_0 = arith.constant 0 : i32
    return %arg0, %c0_i32 : i32, i32
  }
  func.func @transform_2(%arg0: i32) -> (i32, i32) {
    %c0_i32 = arith.constant 0 : i32
    %c0_i32_0 = arith.constant 0 : i32
    %c0_i32_1 = arith.constant 0 : i32
    return %c0_i32, %c0_i32_0 : i32, i32
  }
  func.func @transform_3(%arg0: i32) -> (i32, i32) {
    %c0_i32 = arith.constant 0 : i32
    %c0_i32_0 = arith.constant 0 : i32
    %c0_i32_1 = arith.constant 0 : i32
    return %c0_i32, %c0_i32_0 : i32, i32
  }
  func.func @transform_4(%arg0: i32) -> (i32, i32) {
    %c0_i32 = arith.constant 0 : i32
    %c0_i32_0 = arith.constant 0 : i32
    %c0_i32_1 = arith.constant 0 : i32
    return %c0_i32, %c0_i32_0 : i32, i32
  }
  func.func @transform_5(%arg0: i32) -> (i32, i32) {
    %c0_i32 = arith.constant 0 : i32
    %c0_i32_0 = arith.constant 0 : i32
    %c0_i32_1 = arith.constant 0 : i32
    return %c0_i32, %c0_i32_0 : i32, i32
  }
}

</mosaic_0001>

<llo_original>
// kernel: image_mask_net.4
$region0: #{image_mask_net.4}
  #allocation0 [shape = 'u32[]', space=smem, size = 0x4, offset = 0x4, fixed_abs, tag = 'smem constant byte address 0x4 - core index']
  #allocation1 [shape = 'u32[144,128]{1,0:T(1,128)}', space=vmem, size = 0x12000, scoped, tag = 'internal scratch']
  %s0 = inlined_call_operand.vmem [shape: bf16[4,4,25,32], index: 0, kind: input, shape index: {}]
  %s1 = inlined_call_operand.vmem [shape: bf16[2,288,64], index: 1, kind: input, shape index: {}]
  %s2 = inlined_call_operand.vmem [shape: f32[2,1,64], index: 2, kind: input, shape index: {}]
  %s3 = inlined_call_operand.vmem [shape: bf16[4,20,64], index: 3, kind: output, shape index: {}]
  %s4 = sld [smem:[#allocation0]]
  $region45: #{image_mask_net.4} parent=0
    _
  %s6 = ssub.s32 1, %s4
  %s7 = scalar_select 0, %s6, %s4
  loop: start=0, step=1, limit=6
  $region2: #{image_mask_net.4} parent=0 // loop_pre_header
    _
  $region3: #{image_mask_net.4} parent=0 // loop_header
    %s9 = sphi 0, %s13
    %p10 = scmp.ge.s32.totalorder %s9, 6
    %s16 = sphi 0, %s28
    %s17 = sphi 0, %s24
    %s18 = sphi 0, %s16
    %s19 = sphi 0, %s17
    %s20 = sphi 0, %s18
    %s21 = sphi 0, %s19
    %s35 = sphi 0, %s37
    %s38 = sphi 0, %s35
    %s39 = sphi 0, %s38
    %s55 = sphi 0, %s39
    %s61 = sphi 0, %s63
    %s64 = sphi 0, %s61
    %s65 = sphi 0, %s64
    %s81 = sphi 0, %s65
    %s87 = sphi 0, %s89
    %s90 = sphi 0, %s87
    %s91 = sphi 0, %s90
    %s107 = sphi 0, %s91
    %s117 = sphi 0, %s119
    %s120 = sphi 0, %s117
    %s121 = sphi 0, %s120
    %s137 = sphi 0, %s121
  $region4: #{image_mask_net.4} parent=0 // loop_header_branch
    %12 = sbr.rel (%p10) target = $region8
  $region5: #{image_mask_net.4} parent=0 // loop_body
    %s14 = ssub.s32 %s9, 1
    %s15 = ssub.s32 %s9, 2
    %s22 = sadd.s32 1, %s17
    %p23 = scmp.ge.s32.totalorder %s22, 2
    %s24 = scalar_select %p23, 0, %s22
    %s25 = sadd.s32 1, %s16
    %s26 = scalar_select %p23, %s25, %s16
    %p27 = scmp.ge.s32.totalorder %s26, 2
    %s28 = scalar_select %p27, 0, %s26
    %s29 = smul.u32 %s16, 2
    %s30 = sadd.s32 %s29, %s17
    %s31 = smul.u32 %s28, 2
    %s32 = sadd.s32 %s31, %s24
    %s33 = ssub.s32 %s30, %s32
    %p34 = scmp.eq.s32.totalorder %s33, 0
    %s36 = sadd.s32 %s35, 1
    %s37 = scalar_select %p34, %s35, %s36
    %p40 = pneg %p34
    %p41 = scmp.eq.s32.totalorder %s9, 3
    %p42 = por %p40, %p41
    %p43 = scmp.ne.s32.totalorder %s35, %s38
    %p44 = scmp.eq.s32.totalorder %s9, 0
    %p45 = por %p43, %p44
    %p46 = scmp.ne.s32.totalorder %s35, %s38
    %p47 = scmp.eq.s32.totalorder %s14, 3
    %p48 = por %p46, %p47
    %p49 = scmp.ne.s32.totalorder %s38, %s39
    %p50 = scmp.eq.s32.totalorder %s14, 0
    %p51 = por %p49, %p50
    %p52 = scmp.ne.s32.totalorder %s38, %s39
    %p53 = scmp.eq.s32.totalorder %s15, 3
    %p54 = por %p52, %p53
    %p56 = scmp.ne.s32.totalorder %s39, %s55
    %p57 = scmp.eq.s32.totalorder %s15, 0
    %p58 = por %p56, %p57
    %s59 = ssub.s32 %s16, %s28
    %p60 = scmp.eq.s32.totalorder %s59, 0
    %s62 = sadd.s32 %s61, 1
    %s63 = scalar_select %p60, %s61, %s62
    %p66 = pneg %p60
    %p67 = scmp.eq.s32.totalorder %s9, 3
    %p68 = por %p66, %p67
    %p69 = scmp.ne.s32.totalorder %s61, %s64
    %p70 = scmp.eq.s32.totalorder %s9, 0
    %p71 = por %p69, %p70
    %p72 = scmp.ne.s32.totalorder %s61, %s64
    %p73 = scmp.eq.s32.totalorder %s14, 3
    %p74 = por %p72, %p73
    %p75 = scmp.ne.s32.totalorder %s64, %s65
    %p76 = scmp.eq.s32.totalorder %s14, 0
    %p77 = por %p75, %p76
    %p78 = scmp.ne.s32.totalorder %s64, %s65
    %p79 = scmp.eq.s32.totalorder %s15, 3
    %p80 = por %p78, %p79
    %p82 = scmp.ne.s32.totalorder %s65, %s81
    %p83 = scmp.eq.s32.totalorder %s15, 0
    %p84 = por %p82, %p83
    %s85 = ssub.s32 %s16, %s28
    %p86 = scmp.eq.s32.totalorder %s85, 0
    %s88 = sadd.s32 %s87, 1
    %s89 = scalar_select %p86, %s87, %s88
    %p92 = pneg %p86
    %p93 = scmp.eq.s32.totalorder %s9, 3
    %p94 = por %p92, %p93
    %p95 = scmp.ne.s32.totalorder %s87, %s90
    %p96 = scmp.eq.s32.totalorder %s9, 0
    %p97 = por %p95, %p96
    %p98 = scmp.ne.s32.totalorder %s87, %s90
    %p99 = scmp.eq.s32.totalorder %s14, 3
    %p100 = por %p98, %p99
    %p101 = scmp.ne.s32.totalorder %s90, %s91
    %p102 = scmp.eq.s32.totalorder %s14, 0
    %p103 = por %p101, %p102
    %p104 = scmp.ne.s32.totalorder %s90, %s91
    %p105 = scmp.eq.s32.totalorder %s15, 3
    %p106 = por %p104, %p105
    %p108 = scmp.ne.s32.totalorder %s91, %s107
    %p109 = scmp.eq.s32.totalorder %s15, 0
    %p110 = por %p108, %p109
    %s111 = smul.u32 %s16, 2
    %s112 = sadd.s32 %s111, %s17
    %s113 = smul.u32 %s28, 2
    %s114 = sadd.s32 %s113, %s24
    %s115 = ssub.s32 %s112, %s114
    %p116 = scmp.eq.s32.totalorder %s115, 0
    %s118 = sadd.s32 %s117, 1
    %s119 = scalar_select %p116, %s117, %s118
    %p122 = pneg %p116
    %p123 = scmp.eq.s32.totalorder %s9, 3
    %p124 = por %p122, %p123
    %p125 = scmp.ne.s32.totalorder %s117, %s120
    %p126 = scmp.eq.s32.totalorder %s9, 0
    %p127 = por %p125, %p126
    %p128 = scmp.ne.s32.totalorder %s117, %s120
    %p129 = scmp.eq.s32.totalorder %s14, 3
    %p130 = por %p128, %p129
    %p131 = scmp.ne.s32.totalorder %s120, %s121
    %p132 = scmp.eq.s32.totalorder %s14, 0
    %p133 = por %p131, %p132
    %p134 = scmp.ne.s32.totalorder %s120, %s121
    %p135 = scmp.eq.s32.totalorder %s15, 3
    %p136 = por %p134, %p135
    %p138 = scmp.ne.s32.totalorder %s121, %s137
    %p139 = scmp.eq.s32.totalorder %s15, 0
    %p140 = por %p138, %p139
    %p141 = scmp.le.s32.totalorder 1, %s9
    %p142 = scmp.lt.s32.totalorder %s9, 5
    %p143 = pnand %p141, %p142
    %p144 = pneg %p143
    // Predicated region
    $region9: #{image_mask_net.4} parent=5 // pred_check
      _
    $region10: #{image_mask_net.4} parent=5 // pred_check_branch
      %146 = sbr.rel (%p143) target = $region12
    $region11: #{image_mask_net.4} parent=5 // pred_region
      %s147 = ssub.s32 %s9, 1
    $region12: #{image_mask_net.4} parent=5 // pred_fallthru
      _
    %p148 = scmp.lt.s32.totalorder %s9, 4
    // Predicated region
    $region13: #{image_mask_net.4} parent=5 // pred_check
      %p149 = pneg %p148
    $region14: #{image_mask_net.4} parent=5 // pred_check_branch
      %151 = sbr.rel (%p149) target = $region16
    $region15: #{image_mask_net.4} parent=5 // pred_region
      // Predicated region
      $region17: #{image_mask_net.4} parent=15 // pred_check
        %p152 = pneg %p45
      $region18: #{image_mask_net.4} parent=15 // pred_check_branch
        %154 = sbr.rel (%p152) target = $region20
      $region19: #{image_mask_net.4} parent=15 // pred_region
        %s155 = smul.u32 %s16, 2
        %s156 = sadd.s32 %s155, %s17
        %p157 = scmp.lt.s32.totalorder %s156, 3
        %s158 = scalar_select %p157, %s156, 3
        %s159 = smul.addr %s158, 16
        %s160 = smul.addr %s159, 4
        %s161 = scalar_lea.vmem %s0, %s160
        %s162 = smul.u32 %s16, 2
        %s163 = sadd.s32 %s162, %s17
      $region20: #{image_mask_net.4} parent=15 // pred_fallthru
        _
      // Predicated region
      $region21: #{image_mask_net.4} parent=15 // pred_check
        %p164 = pneg %p71
      $region22: #{image_mask_net.4} parent=15 // pred_check_branch
        %166 = sbr.rel (%p164) target = $region24
      $region23: #{image_mask_net.4} parent=15 // pred_region
        %p167 = scmp.lt.s32.totalorder %s16, 1
        %s168 = scalar_select %p167, %s16, 1
        %s169 = smul.addr %s168, 36
        %s170 = smul.addr %s169, 4
        %s171 = scalar_lea.vmem %s1, %s170
      $region24: #{image_mask_net.4} parent=15 // pred_fallthru
        _
      // Predicated region
      $region25: #{image_mask_net.4} parent=15 // pred_check
        %p172 = pneg %p97
      $region26: #{image_mask_net.4} parent=15 // pred_check_branch
        %174 = sbr.rel (%p172) target = $region28
      $region27: #{image_mask_net.4} parent=15 // pred_region
        %p175 = scmp.lt.s32.totalorder %s16, 1
        %s176 = scalar_select %p175, %s16, 1
        %s177 = scalar_lea.vmem %s2, %s176
      $region28: #{image_mask_net.4} parent=15 // pred_fallthru
        _
    $region16: #{image_mask_net.4} parent=5 // pred_fallthru
      _
    %p178 = scmp.le.s32.totalorder 1, %s9
    %p179 = scmp.lt.s32.totalorder %s9, 5
    %p180 = pnand %p178, %p179
    %p181 = pneg %p180
    // Predicated region
    $region29: #{image_mask_net.4} parent=5 // pred_check
      _
    $region30: #{image_mask_net.4} parent=5 // pred_check_branch
      %183 = sbr.rel (%p180) target = $region32
    $region31: #{image_mask_net.4} parent=5 // pred_region
      %s184 = ssub.s32 %s9, 1
      %s185 = smul.u32 %s18, 2
      %s186 = sadd.s32 %s185, %s19
      %p187 = scmp.lt.s32.totalorder %s186, 3
      %s188 = scalar_select %p187, %s186, 3
      %s189 = smul.addr %s188, 16
      %s190 = smul.addr %s189, 4
      %s191 = scalar_lea.vmem %s0, %s190
      %p192 = pneg %p51
      %p193 = pneg %p48
      %p194 = scmp.lt.s32.totalorder %s18, 1
      %s195 = scalar_select %p194, %s18, 1
      %s196 = smul.addr %s195, 36
      %s197 = smul.addr %s196, 4
      %s198 = scalar_lea.vmem %s1, %s197
      %p199 = pneg %p77
      %p200 = pneg %p74
      %p201 = scmp.lt.s32.totalorder %s18, 1
      %s202 = scalar_select %p201, %s18, 1
      %s203 = scalar_lea.vmem %s2, %s202
      %p204 = pneg %p103
      %p205 = pneg %p100
      %p206 = pneg %p133
      %p207 = pneg %p130
      %s208 = smul.u32 %s18, 2
      %s209 = sadd.s32 %s208, %s19
      %p210 = scmp.lt.s32.totalorder %s209, 3
      %s211 = scalar_select %p210, %s209, 3
      %s212 = smul.addr %s211, 3
      %s213 = smul.addr %s212, 4
      %s214 = scalar_lea.vmem %s3, %s213
      %s215 = smul.u32 %s18, 2
      %s216 = sadd.s32 %s215, %s19
      %p217 = scmp.lt.s32.totalorder %s216, 3
      %s218 = scalar_select %p217, %s216, 3
      %s219 = smul.addr %s218, 16
      %s220 = smul.addr %s219, 4
      %s221 = scalar_lea.vmem %s0, %s220
      %s222 = smul.u32 %s18, 2
      %s223 = sadd.s32 %s222, %s19
      %p224 = scmp.lt.s32.totalorder %s18, 1
      %s225 = scalar_select %p224, %s18, 1
      %s226 = smul.addr %s225, 36
      %s227 = smul.addr %s226, 4
      %s228 = scalar_lea.vmem %s1, %s227
      %p229 = scmp.lt.s32.totalorder %s18, 1
      %s230 = scalar_select %p229, %s18, 1
      %s231 = scalar_lea.vmem %s2, %s230
      %s232 = smul.u32 %s18, 2
      %s233 = sadd.s32 %s232, %s19
      %p234 = scmp.lt.s32.totalorder %s233, 3
      %s235 = scalar_select %p234, %s233, 3
      %s236 = smul.addr %s235, 3
      %s237 = smul.addr %s236, 4
      %s238 = scalar_lea.vmem %s3, %s237
      %s239 = smul.u32 %s18, 2
      %s240 = sadd.s32 %s239, %s19
      %v242 = vld [vmem:[%s231] sm:$0x1]
      %v243 = vld [vmem:[%s221] sm:$0xf]
      %v244 = vld [vmem:[%s221 + $0x4] sm:$0xf]
      %v245 = vld [vmem:[%s221 + $0x8] sm:$0x3]
      %s246 = scalar_lea.vmem %s221, 16
      %v247 = vld [vmem:[%s246] sm:$0xf]
      %v248 = vld [vmem:[%s246 + $0x4] sm:$0xf]
      %v249 = vld [vmem:[%s246 + $0x8] sm:$0x3]
      %s250 = scalar_lea.vmem %s221, 32
      %v251 = vld [vmem:[%s250] sm:$0xf]
      %v252 = vld [vmem:[%s250 + $0x4] sm:$0xf]
      %v253 = vld [vmem:[%s250 + $0x8] sm:$0x3]
      %s254 = scalar_lea.vmem %s221, 48
      %v255 = vld [vmem:[%s254] sm:$0xf]
      %v256 = vld [vmem:[%s254 + $0x4] sm:$0xf]
      %v257 = vld [vmem:[%s254 + $0x8] sm:$0x3]
      %v258 = vld [vmem:[%s221] sm:$0xc]
      %v259 = vld [vmem:[%s221 + $0x8] sm:$0xf]
      %v260 = vld [vmem:[%s246] sm:$0xc]
      %v261 = vld [vmem:[%s246 + $0x8] sm:$0xf]
      %v262 = vld [vmem:[%s221] sm:$0x8]
      %v263 = vld [vmem:[%s221 + $0xc] sm:$0x1]
      %v264 = vld [vmem:[%s246] sm:$0x8]
      %v265 = vld [vmem:[%s246 + $0xc] sm:$0x1]
      %v266 = vld [vmem:[%s250] sm:$0xc]
      %v267 = vld [vmem:[%s250 + $0x8] sm:$0xf]
      %v268 = vld [vmem:[%s254] sm:$0xc]
      %v269 = vld [vmem:[%s254 + $0x8] sm:$0xf]
      %v270 = vld [vmem:[%s250] sm:$0x8]
      %v271 = vld [vmem:[%s250 + $0xc] sm:$0x1]
      %v272 = vld [vmem:[%s254] sm:$0x8]
      %v273 = vld [vmem:[%s254 + $0xc] sm:$0x1]
      %v277 = vunpack.c.l.b16 %v243
      %v278 = vunpack.c.l.b16 %v244
      %v279 = vunpack.c.l.b16 %v245
      %v280 = vpack.c.b16 %v278, %v277
      %v281 = vpack.c.b16 %v279, %v279
      %v285 = vunpack.c.l.b16 %v247
      %v286 = vunpack.c.l.b16 %v248
      %v287 = vunpack.c.l.b16 %v249
      %v288 = vpack.c.b16 %v286, %v285
      %v289 = vpack.c.b16 %v287, %v287
      %290 = vrot.lane.b32.xlu0 %v288, 32
      %v291 = vpop.permute.xlu0 %290
      %292 = vrot.lane.b32.xlu0 %v289, 32
      %v293 = vpop.permute.xlu0 %292
      %vm294 = vsmask.f32 7424
      %v296 = vshrl.u32 %v280, 16
      %v298 = vshll.u32 %v280, 16
      %v300 = vrot.slane %v298, 1
      %v301 = vor.u32 %v296, %v300
      %v303 = vshll.u32 %v281, 16
      %v305 = vrot.slane %v303, 1
      %v306 = vsel %vm294, %v301, %v305
      %v307 = vshrl.u32 %v281, 16
      %v309 = vor.u32 %v307, %v305
      %310 = vrot.lane.b32.xlu0 %v306, 64
      %v311 = vpop.permute.xlu0 %310
      %312 = vrot.lane.b32.xlu0 %v309, 64
      %v313 = vpop.permute.xlu0 %312
      %v317 = vunpack.c.l.b16 %v251
      %v318 = vunpack.c.l.b16 %v252
      %v319 = vunpack.c.l.b16 %v253
      %v320 = vpack.c.b16 %v318, %v317
      %v321 = vpack.c.b16 %v319, %v319
      %322 = vrot.lane.b32.xlu0 %v320, 96
      %v323 = vpop.permute.xlu0 %322
      %324 = vrot.lane.b32.xlu0 %v321, 96
      %v325 = vpop.permute.xlu0 %324
      %v329 = vunpack.c.l.b16 %v255
      %v330 = vunpack.c.l.b16 %v256
      %v331 = vunpack.c.l.b16 %v257
      %v332 = vpack.c.b16 %v330, %v329
      %v333 = vpack.c.b16 %v331, %v331
      %v335 = vshrl.u32 %v320, 16
      %v337 = vshll.u32 %v320, 16
      %v339 = vrot.slane %v337, 1
      %v340 = vor.u32 %v335, %v339
      %v342 = vshll.u32 %v321, 16
      %v344 = vrot.slane %v342, 1
      %v345 = vsel %vm294, %v340, %v344
      %v346 = vshrl.u32 %v321, 16
      %v348 = vor.u32 %v346, %v344
      %349 = vrot.lane.b32.xlu0 %v345, 32
      %v350 = vpop.permute.xlu0 %349
      %351 = vrot.lane.b32.xlu0 %v348, 32
      %v352 = vpop.permute.xlu0 %351
      %v355 = vunpack.c.l.b16 %v258
      %v356 = vunpack.c.l.b16 %v259
      %v357 = vpack.c.b16 %v278, %v355
      %v358 = vpack.c.b16 %v356, %v356
      %vm359 = vsmask.f32 5376
      %v361 = vshrl.u32 %v357, 16
      %v363 = vrot.slane %v361, 2
      %v364 = vshll.u32 %v357, 16
      %v366 = vrot.slane %v364, 3
      %v367 = vor.u32 %v363, %v366
      %v369 = vshrl.u32 %v358, 16
      %v371 = vrot.slane %v369, 2
      %v372 = vshll.u32 %v358, 16
      %v374 = vrot.slane %v372, 3
      %v375 = vor.u32 %v371, %v374
      %v376 = vsel %vm359, %v367, %v375
      %377 = vrot.lane.b32.xlu0 %v376, 64
      %v378 = vpop.permute.xlu0 %377
      %379 = vrot.lane.b32.xlu0 %v375, 64
      %v380 = vpop.permute.xlu0 %379
      %v383 = vunpack.c.l.b16 %v260
      %v384 = vunpack.c.l.b16 %v261
      %v385 = vpack.c.b16 %v286, %v383
      %v386 = vpack.c.b16 %v384, %v384
      %v388 = vshrl.u32 %v385, 16
      %v390 = vrot.slane %v388, 2
      %v391 = vshll.u32 %v385, 16
      %v393 = vrot.slane %v391, 3
      %v394 = vor.u32 %v390, %v393
      %v396 = vshrl.u32 %v386, 16
      %v398 = vrot.slane %v396, 2
      %v399 = vshll.u32 %v386, 16
      %v401 = vrot.slane %v399, 3
      %v402 = vor.u32 %v398, %v401
      %v403 = vsel %vm359, %v394, %v402
      %404 = vrot.lane.b32.xlu0 %v403, 96
      %v405 = vpop.permute.xlu0 %404
      %406 = vrot.lane.b32.xlu0 %v402, 96
      %v407 = vpop.permute.xlu0 %406
      %v410 = vunpack.c.l.b16 %v262
      %v411 = vunpack.c.l.b16 %v263
      %v412 = vpack.c.b16 %v278, %v410
      %v413 = vpack.c.b16 %v411, %v356
      %vm414 = vcmask 1044480
      %v415 = vrot.slane %v412, 3
      %v416 = vrot.slane %v413, 3
      %v417 = vsel %vm414, %v415, %v416
      %vm418 = vcmask 261120
      %v420 = vsel %vm418, %v280, %v291
      %v422 = vsel %vm418, %v281, %v293
      %vm423 = vcmask 523264
      %v425 = vsel %vm423, %v420, %v311
      %v427 = vsel %vm423, %v422, %v313
      %vm428 = vcmask 785408
      %v430 = vsel %vm428, %v425, %v323
      %v433 = vsel %vm428, %v427, %v325
      %v437 = vsel %vm418, %v332, %v350
      %v440 = vsel %vm418, %v333, %v352
      %v442 = vsel %vm423, %v437, %v378
      %v444 = vsel %vm423, %v440, %v380
      %v446 = vsel %vm428, %v442, %v405
      %v449 = vsel %vm428, %v444, %v407
      %v451 = vld [vmem:[%s228] sm:$0xf]
      %v452 = vld [vmem:[%s228 + $0x4] sm:$0xf]
      %v453 = vld [vmem:[%s228 + $0x8] sm:$0xf]
      %v454 = vld [vmem:[%s228 + $0xc] sm:$0xf]
      %v455 = vld [vmem:[%s228 + $0x10] sm:$0xf]
      %v456 = vld [vmem:[%s228 + $0x14] sm:$0xf]
      %v457 = vld [vmem:[%s228 + $0x18] sm:$0xf]
      %v458 = vld [vmem:[%s228 + $0x1c] sm:$0xf]
      %v459 = vld [vmem:[%s228 + $0x20] sm:$0xf]
      %v460 = vld [vmem:[%s228 + $0x24] sm:$0xf]
      %v461 = vld [vmem:[%s228 + $0x28] sm:$0xf]
      %v462 = vld [vmem:[%s228 + $0x2c] sm:$0xf]
      %v463 = vld [vmem:[%s228 + $0x30] sm:$0xf]
      %v464 = vld [vmem:[%s228 + $0x34] sm:$0xf]
      %v465 = vld [vmem:[%s228 + $0x38] sm:$0xf]
      %v466 = vld [vmem:[%s228 + $0x3c] sm:$0xf]
      %v467 = vld [vmem:[%s228 + $0x40] sm:$0xf]
      %v468 = vld [vmem:[%s228 + $0x44] sm:$0xf]
      %v469 = vld [vmem:[%s228 + $0x48] sm:$0xf]
      %v470 = vld [vmem:[%s228 + $0x4c] sm:$0xf]
      %v471 = vld [vmem:[%s228 + $0x50] sm:$0xf]
      %v472 = vld [vmem:[%s228 + $0x54] sm:$0xf]
      %v473 = vld [vmem:[%s228 + $0x58] sm:$0xf]
      %v474 = vld [vmem:[%s228 + $0x5c] sm:$0xf]
      %v475 = vld [vmem:[%s228 + $0x60] sm:$0xf]
      %v476 = vld [vmem:[%s228 + $0x64] sm:$0xf]
      %v477 = vld [vmem:[%s228 + $0x68] sm:$0xf]
      %v478 = vld [vmem:[%s228 + $0x6c] sm:$0xf]
      %v479 = vld [vmem:[%s228 + $0x70] sm:$0xf]
      %v480 = vld [vmem:[%s228 + $0x74] sm:$0xf]
      %v481 = vld [vmem:[%s228 + $0x78] sm:$0xf]
      %v482 = vld [vmem:[%s228 + $0x7c] sm:$0xf]
      %v483 = vld [vmem:[%s228 + $0x80] sm:$0xf]
      %v484 = vld [vmem:[%s228 + $0x84] sm:$0xf]
      %v485 = vld [vmem:[%s228 + $0x88] sm:$0xf]
      %v486 = vld [vmem:[%s228 + $0x8c] sm:$0xf]
      %v488 = vlaneseq
      %v489 = vshrl.u32 %v488, 7
      %v490 = vsub.s32 0, %v489
      %v491 = vrot.slane %v242, %v490
      %v529 = vunpack.c.l.b16 %v451
      %v530 = vunpack.c.l.b16 %v452
      %v531 = vunpack.c.l.b16 %v453
      %v532 = vunpack.c.l.b16 %v454
      %v533 = vunpack.c.l.b16 %v455
      %v534 = vunpack.c.l.b16 %v456
      %v535 = vunpack.c.l.b16 %v457
      %v536 = vunpack.c.l.b16 %v458
      %v537 = vunpack.c.l.b16 %v459
      %v538 = vunpack.c.l.b16 %v460
      %v539 = vunpack.c.l.b16 %v461
      %v540 = vunpack.c.l.b16 %v462
      %v541 = vunpack.c.l.b16 %v463
      %v542 = vunpack.c.l.b16 %v464
      %v543 = vunpack.c.l.b16 %v465
      %v544 = vunpack.c.l.b16 %v466
      %v545 = vunpack.c.l.b16 %v467
      %v546 = vunpack.c.l.b16 %v468
      %v547 = vunpack.c.l.b16 %v469
      %v548 = vunpack.c.l.b16 %v470
      %v549 = vunpack.c.l.b16 %v471
      %v550 = vunpack.c.l.b16 %v472
      %v551 = vunpack.c.l.b16 %v473
      %v552 = vunpack.c.l.b16 %v474
      %v553 = vunpack.c.l.b16 %v475
      %v554 = vunpack.c.l.b16 %v476
      %v555 = vunpack.c.l.b16 %v477
      %v556 = vunpack.c.l.b16 %v478
      %v557 = vunpack.c.l.b16 %v479
      %v558 = vunpack.c.l.b16 %v480
      %v559 = vunpack.c.l.b16 %v481
      %v560 = vunpack.c.l.b16 %v482
      %v561 = vunpack.c.l.b16 %v483
      %v562 = vunpack.c.l.b16 %v484
      %v563 = vunpack.c.l.b16 %v485
      %v564 = vunpack.c.l.b16 %v486
      %v565 = vpack.c.b16 %v530, %v529
      %v566 = vpack.c.b16 %v532, %v531
      %v567 = vpack.c.b16 %v534, %v533
      %v568 = vpack.c.b16 %v536, %v535
      %v569 = vpack.c.b16 %v538, %v537
      %v570 = vpack.c.b16 %v540, %v539
      %v571 = vpack.c.b16 %v542, %v541
      %v572 = vpack.c.b16 %v544, %v543
      %v573 = vpack.c.b16 %v546, %v545
      %v574 = vpack.c.b16 %v548, %v547
      %v575 = vpack.c.b16 %v550, %v549
      %v576 = vpack.c.b16 %v552, %v551
      %v577 = vpack.c.b16 %v554, %v553
      %v578 = vpack.c.b16 %v556, %v555
      %v579 = vpack.c.b16 %v558, %v557
      %v580 = vpack.c.b16 %v560, %v559
      %v581 = vpack.c.b16 %v562, %v561
      %v582 = vpack.c.b16 %v564, %v563
      %v602 = vsel %vm418, %v417, 0
      %v605 = vsel %vm418, %v416, 0
      %607 = vmatprep.subr.bf16.mxu0 0
      %608 = vmatpush1.bf16.msra.mxu0 %v572
      %609 = vmatprep.subr.bf16.mxu0 0
      %610 = vmatpush1.bf16.msra.mxu0 %v571
      %611 = vmatprep.subr.bf16.mxu0 0
      %612 = vmatpush1.bf16.msra.mxu0 %v570
      %613 = vmatprep.subr.bf16.mxu0 0
      %614 = vmatpush1.bf16.msra.mxu0 %v569
      %615 = vmatprep.subr.bf16.mxu0 0
      %616 = vmatpush1.bf16.msra.mxu0 %v568
      %617 = vmatprep.subr.bf16.mxu0 0
      %618 = vmatpush1.bf16.msra.mxu0 %v567
      %619 = vmatprep.subr.bf16.mxu0 0
      %620 = vmatpush1.bf16.msra.mxu0 %v566
      %621 = vmatprep.subr.bf16.mxu0 0
      %622 = vmatpush1.bf16.msra.mxu0 %v565
      %623 = vmatprep.subr.bf16.mxu0 0
      %624 = vmatpush2.bf16.msra.mxu0 %v580
      %625 = vmatprep.subr.bf16.mxu0 0
      %626 = vmatpush2.bf16.msra.mxu0 %v579
      %627 = vmatprep.subr.bf16.mxu0 0
      %628 = vmatpush2.bf16.msra.mxu0 %v578
      %629 = vmatprep.subr.bf16.mxu0 0
      %630 = vmatpush2.bf16.msra.mxu0 %v577
      %631 = vmatprep.subr.bf16.mxu0 0
      %632 = vmatpush2.bf16.msra.mxu0 %v576
      %633 = vmatprep.subr.bf16.mxu0 0
      %634 = vmatpush2.bf16.msra.mxu0 %v575
      %635 = vmatprep.subr.bf16.mxu0 0
      %636 = vmatpush2.bf16.msra.mxu0 %v574
      %637 = vmatprep.subr.bf16.mxu0 0
      %638 = vmatpush2.bf16.msra.mxu0 %v573
      %639 = vmatprep.mubr.bf16.mxu0 %v446
      %640 = vmatmul.mubr.bf16.gmra.mxu0 %v430
      %v641 = vpop.f32.mrf.mxu0
      %v642 = vadd.f32 %v491, %v641
      %v643 = vpop.f32.mrf.mxu0
      %v644 = vpop.f32.mrf.mxu0
      %v645 = vadd.f32 %v491, %v644
      %v646 = vpop.f32.mrf.mxu0
      %647 = vmatprep.mubr.bf16.mxu0 %v449
      %648 = vmatmul.mubr.bf16.gmra.mxu0 %v433
      %v649 = vpop.f32.mrf.mxu0
      %v650 = vadd.f32 %v491, %v649
      %v651 = vpop.f32.mrf.mxu0
      %v652 = vpop.f32.mrf.mxu0
      %v653 = vpop.f32.mrf.mxu0
      %654 = vdwg.mxu0
      %655 = vmatprep.subr.bf16.mxu0 0
      %656 = vmatpush1.bf16.msra.mxu0 0
      %657 = vmatprep.subr.bf16.mxu0 0
      %658 = vmatpush1.bf16.msra.mxu0 0
      %659 = vmatprep.subr.bf16.mxu0 0
      %660 = vmatpush1.bf16.msra.mxu0 0
      %661 = vmatprep.subr.bf16.mxu0 0
      %662 = vmatpush1.bf16.msra.mxu0 0
      %663 = vmatprep.subr.bf16.mxu0 0
      %664 = vmatpush1.bf16.msra.mxu0 0
      %665 = vmatprep.subr.bf16.mxu0 0
      %666 = vmatpush1.bf16.msra.mxu0 0
      %667 = vmatprep.subr.bf16.mxu0 0
      %668 = vmatpush1.bf16.msra.mxu0 %v582
      %669 = vmatprep.subr.bf16.mxu0 0
      %670 = vmatpush1.bf16.msra.mxu0 %v581
      %671 = vmatprep.subr.bf16.mxu0 0
      %672 = vmatpush2.bf16.msra.mxu0 0
      %673 = vmatprep.subr.bf16.mxu0 0
      %674 = vmatpush2.bf16.msra.mxu0 0
      %675 = vmatprep.subr.bf16.mxu0 0
      %676 = vmatpush2.bf16.msra.mxu0 0
      %677 = vmatprep.subr.bf16.mxu0 0
      %678 = vmatpush2.bf16.msra.mxu0 0
      %679 = vmatprep.subr.bf16.mxu0 0
      %680 = vmatpush2.bf16.msra.mxu0 0
      %681 = vmatprep.subr.bf16.mxu0 0
      %682 = vmatpush2.bf16.msra.mxu0 0
      %683 = vmatprep.subr.bf16.mxu0 0
      %684 = vmatpush2.bf16.msra.mxu0 0
      %685 = vmatprep.subr.bf16.mxu0 0
      %686 = vmatpush2.bf16.msra.mxu0 0
      %687 = vmatprep.mubr.bf16.mxu0 0
      %688 = vmatmul.mubr.bf16.gmra.mxu0 %v602
      %v689 = vpop.f32.mrf.mxu0
      %v690 = vadd.f32 %v642, %v689
      %v691 = vpop.f32.mrf.mxu0
      %v692 = vpop.f32.mrf.mxu0
      %v693 = vadd.f32 %v645, %v692
      %v694 = vpop.f32.mrf.mxu0
      %695 = vmatprep.mubr.bf16.mxu0 0
      %696 = vmatmul.mubr.bf16.gmra.mxu0 %v605
      %v697 = vpop.f32.mrf.mxu0
      %v698 = vadd.f32 %v650, %v697
      %v699 = vpop.f32.mrf.mxu0
      %v700 = vpop.f32.mrf.mxu0
      %v701 = vpop.f32.mrf.mxu0
      %702 = vdwg.mxu0
      %v703 = vmax.f32 %v690, 0.0
      %v704 = vmax.f32 %v693, 0.0
      %v705 = vmax.f32 %v698, 0.0
      %706 = vrot.lane.b32.xlu0 %v306, 32
      %v707 = vpop.permute.xlu0 %706
      %708 = vrot.lane.b32.xlu0 %v309, 32
      %v709 = vpop.permute.xlu0 %708
      %v711 = vshrl.u32 %v288, 16
      %v713 = vshll.u32 %v288, 16
      %v715 = vrot.slane %v713, 1
      %v716 = vor.u32 %v711, %v715
      %v718 = vshll.u32 %v289, 16
      %v720 = vrot.slane %v718, 1
      %v721 = vsel %vm294, %v716, %v720
      %v722 = vshrl.u32 %v289, 16
      %v724 = vor.u32 %v722, %v720
      %725 = vrot.lane.b32.xlu0 %v721, 64
      %v726 = vpop.permute.xlu0 %725
      %727 = vrot.lane.b32.xlu0 %v724, 64
      %v728 = vpop.permute.xlu0 %727
      %729 = vrot.lane.b32.xlu0 %v332, 96
      %v730 = vpop.permute.xlu0 %729
      %731 = vrot.lane.b32.xlu0 %v333, 96
      %v732 = vpop.permute.xlu0 %731
      %v733 = vshrl.u32 %v332, 16
      %v735 = vshll.u32 %v332, 16
      %v737 = vrot.slane %v735, 1
      %v738 = vor.u32 %v733, %v737
      %v739 = vshll.u32 %v333, 16
      %v741 = vrot.slane %v739, 1
      %v742 = vsel %vm294, %v738, %v741
      %v743 = vshrl.u32 %v333, 16
      %v745 = vor.u32 %v743, %v741
      %746 = vrot.lane.b32.xlu0 %v742, 32
      %v747 = vpop.permute.xlu0 %746
      %748 = vrot.lane.b32.xlu0 %v745, 32
      %v749 = vpop.permute.xlu0 %748
      %750 = vrot.lane.b32.xlu0 %v403, 64
      %v751 = vpop.permute.xlu0 %750
      %752 = vrot.lane.b32.xlu0 %v402, 64
      %v753 = vpop.permute.xlu0 %752
      %754 = vrot.lane.b32.xlu0 %v417, 96
      %v755 = vpop.permute.xlu0 %754
      %756 = vrot.lane.b32.xlu0 %v416, 96
      %v757 = vpop.permute.xlu0 %756
      %v760 = vunpack.c.l.b16 %v264
      %v761 = vunpack.c.l.b16 %v265
      %v762 = vpack.c.b16 %v286, %v760
      %v763 = vpack.c.b16 %v761, %v384
      %v764 = vrot.slane %v762, 3
      %v765 = vrot.slane %v763, 3
      %v766 = vsel %vm414, %v764, %v765
      %v768 = vsel %vm418, %v288, %v707
      %v770 = vsel %vm418, %v289, %v709
      %v772 = vsel %vm423, %v768, %v726
      %v774 = vsel %vm423, %v770, %v728
      %v776 = vsel %vm428, %v772, %v730
      %v779 = vsel %vm428, %v774, %v732
      %v783 = vsel %vm418, %v345, %v747
      %v786 = vsel %vm418, %v348, %v749
      %v788 = vsel %vm423, %v783, %v751
      %v790 = vsel %vm423, %v786, %v753
      %v792 = vsel %vm428, %v788, %v755
      %v795 = vsel %vm428, %v790, %v757
      %v798 = vsel %vm418, %v766, 0
      %v801 = vsel %vm418, %v765, 0
      %803 = vmatprep.subr.bf16.mxu0 0
      %804 = vmatpush1.bf16.msra.mxu0 %v572
      %805 = vmatprep.subr.bf16.mxu0 0
      %806 = vmatpush1.bf16.msra.mxu0 %v571
      %807 = vmatprep.subr.bf16.mxu0 0
      %808 = vmatpush1.bf16.msra.mxu0 %v570
      %809 = vmatprep.subr.bf16.mxu0 0
      %810 = vmatpush1.bf16.msra.mxu0 %v569
      %811 = vmatprep.subr.bf16.mxu0 0
      %812 = vmatpush1.bf16.msra.mxu0 %v568
      %813 = vmatprep.subr.bf16.mxu0 0
      %814 = vmatpush1.bf16.msra.mxu0 %v567
      %815 = vmatprep.subr.bf16.mxu0 0
      %816 = vmatpush1.bf16.msra.mxu0 %v566
      %817 = vmatprep.subr.bf16.mxu0 0
      %818 = vmatpush1.bf16.msra.mxu0 %v565
      %819 = vmatprep.subr.bf16.mxu0 0
      %820 = vmatpush2.bf16.msra.mxu0 %v580
      %821 = vmatprep.subr.bf16.mxu0 0
      %822 = vmatpush2.bf16.msra.mxu0 %v579
      %823 = vmatprep.subr.bf16.mxu0 0
      %824 = vmatpush2.bf16.msra.mxu0 %v578
      %825 = vmatprep.subr.bf16.mxu0 0
      %826 = vmatpush2.bf16.msra.mxu0 %v577
      %827 = vmatprep.subr.bf16.mxu0 0
      %828 = vmatpush2.bf16.msra.mxu0 %v576
      %829 = vmatprep.subr.bf16.mxu0 0
      %830 = vmatpush2.bf16.msra.mxu0 %v575
      %831 = vmatprep.subr.bf16.mxu0 0
      %832 = vmatpush2.bf16.msra.mxu0 %v574
      %833 = vmatprep.subr.bf16.mxu0 0
      %834 = vmatpush2.bf16.msra.mxu0 %v573
      %835 = vmatprep.mubr.bf16.mxu0 %v792
      %836 = vmatmul.mubr.bf16.gmra.mxu0 %v776
      %v837 = vpop.f32.mrf.mxu0
      %v838 = vadd.f32 %v491, %v837
      %v839 = vpop.f32.mrf.mxu0
      %v840 = vpop.f32.mrf.mxu0
      %v841 = vadd.f32 %v491, %v840
      %v842 = vpop.f32.mrf.mxu0
      %843 = vmatprep.mubr.bf16.mxu0 %v795
      %844 = vmatmul.mubr.bf16.gmra.mxu0 %v779
      %v845 = vpop.f32.mrf.mxu0
      %v846 = vadd.f32 %v491, %v845
      %v847 = vpop.f32.mrf.mxu0
      %v848 = vpop.f32.mrf.mxu0
      %v849 = vpop.f32.mrf.mxu0
      %850 = vdwg.mxu0
      %851 = vmatprep.subr.bf16.mxu0 0
      %852 = vmatpush1.bf16.msra.mxu0 0
      %853 = vmatprep.subr.bf16.mxu0 0
      %854 = vmatpush1.bf16.msra.mxu0 0
      %855 = vmatprep.subr.bf16.mxu0 0
      %856 = vmatpush1.bf16.msra.mxu0 0
      %857 = vmatprep.subr.bf16.mxu0 0
      %858 = vmatpush1.bf16.msra.mxu0 0
      %859 = vmatprep.subr.bf16.mxu0 0
      %860 = vmatpush1.bf16.msra.mxu0 0
      %861 = vmatprep.subr.bf16.mxu0 0
      %862 = vmatpush1.bf16.msra.mxu0 0
      %863 = vmatprep.subr.bf16.mxu0 0
      %864 = vmatpush1.bf16.msra.mxu0 %v582
      %865 = vmatprep.subr.bf16.mxu0 0
      %866 = vmatpush1.bf16.msra.mxu0 %v581
      %867 = vmatprep.subr.bf16.mxu0 0
      %868 = vmatpush2.bf16.msra.mxu0 0
      %869 = vmatprep.subr.bf16.mxu0 0
      %870 = vmatpush2.bf16.msra.mxu0 0
      %871 = vmatprep.subr.bf16.mxu0 0
      %872 = vmatpush2.bf16.msra.mxu0 0
      %873 = vmatprep.subr.bf16.mxu0 0
      %874 = vmatpush2.bf16.msra.mxu0 0
      %875 = vmatprep.subr.bf16.mxu0 0
      %876 = vmatpush2.bf16.msra.mxu0 0
      %877 = vmatprep.subr.bf16.mxu0 0
      %878 = vmatpush2.bf16.msra.mxu0 0
      %879 = vmatprep.subr.bf16.mxu0 0
      %880 = vmatpush2.bf16.msra.mxu0 0
      %881 = vmatprep.subr.bf16.mxu0 0
      %882 = vmatpush2.bf16.msra.mxu0 0
      %883 = vmatprep.mubr.bf16.mxu0 0
      %884 = vmatmul.mubr.bf16.gmra.mxu0 %v798
      %v885 = vpop.f32.mrf.mxu0
      %v886 = vadd.f32 %v838, %v885
      %v887 = vpop.f32.mrf.mxu0
      %v888 = vpop.f32.mrf.mxu0
      %v889 = vadd.f32 %v841, %v888
      %v890 = vpop.f32.mrf.mxu0
      %891 = vmatprep.mubr.bf16.mxu0 0
      %892 = vmatmul.mubr.bf16.gmra.mxu0 %v801
      %v893 = vpop.f32.mrf.mxu0
      %v894 = vadd.f32 %v846, %v893
      %v895 = vpop.f32.mrf.mxu0
      %v896 = vpop.f32.mrf.mxu0
      %v897 = vpop.f32.mrf.mxu0
      %898 = vdwg.mxu0
      %v899 = vmax.f32 %v886, 0.0
      %v900 = vmax.f32 %v889, 0.0
      %v901 = vmax.f32 %v894, 0.0
      %v902 = vmax.f32 %v703, %v899
      %v903 = vmax.f32 %v704, %v900
      %v904 = vmax.f32 %v705, %v901
      %905 = vrot.lane.b32.xlu0 %v332, 32
      %v906 = vpop.permute.xlu0 %905
      %907 = vrot.lane.b32.xlu0 %v333, 32
      %v908 = vpop.permute.xlu0 %907
      %909 = vrot.lane.b32.xlu0 %v345, 64
      %v910 = vpop.permute.xlu0 %909
      %911 = vrot.lane.b32.xlu0 %v348, 64
      %v912 = vpop.permute.xlu0 %911
      %913 = vrot.lane.b32.xlu0 %v376, 96
      %v914 = vpop.permute.xlu0 %913
      %915 = vrot.lane.b32.xlu0 %v375, 96
      %v916 = vpop.permute.xlu0 %915
      %917 = vrot.lane.b32.xlu0 %v417, 32
      %v918 = vpop.permute.xlu0 %917
      %919 = vrot.lane.b32.xlu0 %v416, 32
      %v920 = vpop.permute.xlu0 %919
      %v923 = vunpack.c.l.b16 %v266
      %v924 = vunpack.c.l.b16 %v267
      %v925 = vpack.c.b16 %v318, %v923
      %v926 = vpack.c.b16 %v924, %v924
      %v928 = vshrl.u32 %v925, 16
      %v930 = vrot.slane %v928, 2
      %v931 = vshll.u32 %v925, 16
      %v933 = vrot.slane %v931, 3
      %v934 = vor.u32 %v930, %v933
      %v936 = vshrl.u32 %v926, 16
      %v938 = vrot.slane %v936, 2
      %v939 = vshll.u32 %v926, 16
      %v941 = vrot.slane %v939, 3
      %v942 = vor.u32 %v938, %v941
      %v943 = vsel %vm359, %v934, %v942
      %944 = vrot.lane.b32.xlu0 %v943, 64
      %v945 = vpop.permute.xlu0 %944
      %946 = vrot.lane.b32.xlu0 %v942, 64
      %v947 = vpop.permute.xlu0 %946
      %v950 = vunpack.c.l.b16 %v268
      %v951 = vunpack.c.l.b16 %v269
      %v952 = vpack.c.b16 %v330, %v950
      %v953 = vpack.c.b16 %v951, %v951
      %v955 = vshrl.u32 %v952, 16
      %v957 = vrot.slane %v955, 2
      %v958 = vshll.u32 %v952, 16
      %v960 = vrot.slane %v958, 3
      %v961 = vor.u32 %v957, %v960
      %v963 = vshrl.u32 %v953, 16
      %v965 = vrot.slane %v963, 2
      %v966 = vshll.u32 %v953, 16
      %v968 = vrot.slane %v966, 3
      %v969 = vor.u32 %v965, %v968
      %v970 = vsel %vm359, %v961, %v969
      %971 = vrot.lane.b32.xlu0 %v970, 96
      %v972 = vpop.permute.xlu0 %971
      %973 = vrot.lane.b32.xlu0 %v969, 96
      %v974 = vpop.permute.xlu0 %973
      %v977 = vunpack.c.l.b16 %v270
      %v978 = vunpack.c.l.b16 %v271
      %v979 = vpack.c.b16 %v318, %v977
      %v980 = vpack.c.b16 %v978, %v924
      %v981 = vrot.slane %v979, 3
      %v982 = vrot.slane %v980, 3
      %v983 = vsel %vm414, %v981, %v982
      %v985 = vsel %vm418, %v320, %v906
      %v987 = vsel %vm418, %v321, %v908
      %v989 = vsel %vm423, %v985, %v910
      %v991 = vsel %vm423, %v987, %v912
      %v993 = vsel %vm428, %v989, %v914
      %v996 = vsel %vm428, %v991, %v916
      %v1000 = vsel %vm418, %v403, %v918
      %v1003 = vsel %vm418, %v402, %v920
      %v1005 = vsel %vm423, %v1000, %v945
      %v1007 = vsel %vm423, %v1003, %v947
      %v1009 = vsel %vm428, %v1005, %v972
      %v1012 = vsel %vm428, %v1007, %v974
      %v1015 = vsel %vm418, %v983, 0
      %v1018 = vsel %vm418, %v982, 0
      %1020 = vmatprep.subr.bf16.mxu0 0
      %1021 = vmatpush1.bf16.msra.mxu0 %v572
      %1022 = vmatprep.subr.bf16.mxu0 0
      %1023 = vmatpush1.bf16.msra.mxu0 %v571
      %1024 = vmatprep.subr.bf16.mxu0 0
      %1025 = vmatpush1.bf16.msra.mxu0 %v570
      %1026 = vmatprep.subr.bf16.mxu0 0
      %1027 = vmatpush1.bf16.msra.mxu0 %v569
      %1028 = vmatprep.subr.bf16.mxu0 0
      %1029 = vmatpush1.bf16.msra.mxu0 %v568
      %1030 = vmatprep.subr.bf16.mxu0 0
      %1031 = vmatpush1.bf16.msra.mxu0 %v567
      %1032 = vmatprep.subr.bf16.mxu0 0
      %1033 = vmatpush1.bf16.msra.mxu0 %v566
      %1034 = vmatprep.subr.bf16.mxu0 0
      %1035 = vmatpush1.bf16.msra.mxu0 %v565
      %1036 = vmatprep.subr.bf16.mxu0 0
      %1037 = vmatpush2.bf16.msra.mxu0 %v580
      %1038 = vmatprep.subr.bf16.mxu0 0
      %1039 = vmatpush2.bf16.msra.mxu0 %v579
      %1040 = vmatprep.subr.bf16.mxu0 0
      %1041 = vmatpush2.bf16.msra.mxu0 %v578
      %1042 = vmatprep.subr.bf16.mxu0 0
      %1043 = vmatpush2.bf16.msra.mxu0 %v577
      %1044 = vmatprep.subr.bf16.mxu0 0
      %1045 = vmatpush2.bf16.msra.mxu0 %v576
      %1046 = vmatprep.subr.bf16.mxu0 0
      %1047 = vmatpush2.bf16.msra.mxu0 %v575
      %1048 = vmatprep.subr.bf16.mxu0 0
      %1049 = vmatpush2.bf16.msra.mxu0 %v574
      %1050 = vmatprep.subr.bf16.mxu0 0
      %1051 = vmatpush2.bf16.msra.mxu0 %v573
      %1052 = vmatprep.mubr.bf16.mxu0 %v1009
      %1053 = vmatmul.mubr.bf16.gmra.mxu0 %v993
      %v1054 = vpop.f32.mrf.mxu0
      %v1055 = vadd.f32 %v491, %v1054
      %v1056 = vpop.f32.mrf.mxu0
      %v1057 = vpop.f32.mrf.mxu0
      %v1058 = vadd.f32 %v491, %v1057
      %v1059 = vpop.f32.mrf.mxu0
      %1060 = vmatprep.mubr.bf16.mxu0 %v1012
      %1061 = vmatmul.mubr.bf16.gmra.mxu0 %v996
      %v1062 = vpop.f32.mrf.mxu0
      %v1063 = vadd.f32 %v491, %v1062
      %v1064 = vpop.f32.mrf.mxu0
      %v1065 = vpop.f32.mrf.mxu0
      %v1066 = vpop.f32.mrf.mxu0
      %1067 = vdwg.mxu0
      %1068 = vmatprep.subr.bf16.mxu0 0
      %1069 = vmatpush1.bf16.msra.mxu0 0
      %1070 = vmatprep.subr.bf16.mxu0 0
      %1071 = vmatpush1.bf16.msra.mxu0 0
      %1072 = vmatprep.subr.bf16.mxu0 0
      %1073 = vmatpush1.bf16.msra.mxu0 0
      %1074 = vmatprep.subr.bf16.mxu0 0
      %1075 = vmatpush1.bf16.msra.mxu0 0
      %1076 = vmatprep.subr.bf16.mxu0 0
      %1077 = vmatpush1.bf16.msra.mxu0 0
      %1078 = vmatprep.subr.bf16.mxu0 0
      %1079 = vmatpush1.bf16.msra.mxu0 0
      %1080 = vmatprep.subr.bf16.mxu0 0
      %1081 = vmatpush1.bf16.msra.mxu0 %v582
      %1082 = vmatprep.subr.bf16.mxu0 0
      %1083 = vmatpush1.bf16.msra.mxu0 %v581
      %1084 = vmatprep.subr.bf16.mxu0 0
      %1085 = vmatpush2.bf16.msra.mxu0 0
      %1086 = vmatprep.subr.bf16.mxu0 0
      %1087 = vmatpush2.bf16.msra.mxu0 0
      %1088 = vmatprep.subr.bf16.mxu0 0
      %1089 = vmatpush2.bf16.msra.mxu0 0
      %1090 = vmatprep.subr.bf16.mxu0 0
      %1091 = vmatpush2.bf16.msra.mxu0 0
      %1092 = vmatprep.subr.bf16.mxu0 0
      %1093 = vmatpush2.bf16.msra.mxu0 0
      %1094 = vmatprep.subr.bf16.mxu0 0
      %1095 = vmatpush2.bf16.msra.mxu0 0
      %1096 = vmatprep.subr.bf16.mxu0 0
      %1097 = vmatpush2.bf16.msra.mxu0 0
      %1098 = vmatprep.subr.bf16.mxu0 0
      %1099 = vmatpush2.bf16.msra.mxu0 0
      %1100 = vmatprep.mubr.bf16.mxu0 0
      %1101 = vmatmul.mubr.bf16.gmra.mxu0 %v1015
      %v1102 = vpop.f32.mrf.mxu0
      %v1103 = vadd.f32 %v1055, %v1102
      %v1104 = vpop.f32.mrf.mxu0
      %v1105 = vpop.f32.mrf.mxu0
      %v1106 = vadd.f32 %v1058, %v1105
      %v1107 = vpop.f32.mrf.mxu0
      %1108 = vmatprep.mubr.bf16.mxu0 0
      %1109 = vmatmul.mubr.bf16.gmra.mxu0 %v1018
      %v1110 = vpop.f32.mrf.mxu0
      %v1111 = vadd.f32 %v1063, %v1110
      %v1112 = vpop.f32.mrf.mxu0
      %v1113 = vpop.f32.mrf.mxu0
      %v1114 = vpop.f32.mrf.mxu0
      %1115 = vdwg.mxu0
      %v1116 = vmax.f32 %v1103, 0.0
      %v1117 = vmax.f32 %v1106, 0.0
      %v1118 = vmax.f32 %v1111, 0.0
      %v1119 = vmax.f32 %v902, %v1116
      %v1120 = vmax.f32 %v903, %v1117
      %v1121 = vmax.f32 %v904, %v1118
      %1122 = vrot.lane.b32.xlu0 %v742, 64
      %v1123 = vpop.permute.xlu0 %1122
      %1124 = vrot.lane.b32.xlu0 %v745, 64
      %v1125 = vpop.permute.xlu0 %1124
      %1126 = vrot.lane.b32.xlu0 %v766, 32
      %v1127 = vpop.permute.xlu0 %1126
      %1128 = vrot.lane.b32.xlu0 %v765, 32
      %v1129 = vpop.permute.xlu0 %1128
      %1130 = vrot.lane.b32.xlu0 %v970, 64
      %v1131 = vpop.permute.xlu0 %1130
      %1132 = vrot.lane.b32.xlu0 %v969, 64
      %v1133 = vpop.permute.xlu0 %1132
      %1134 = vrot.lane.b32.xlu0 %v983, 96
      %v1135 = vpop.permute.xlu0 %1134
      %1136 = vrot.lane.b32.xlu0 %v982, 96
      %v1137 = vpop.permute.xlu0 %1136
      %v1140 = vunpack.c.l.b16 %v272
      %v1141 = vunpack.c.l.b16 %v273
      %v1142 = vpack.c.b16 %v330, %v1140
      %v1143 = vpack.c.b16 %v1141, %v951
      %v1144 = vrot.slane %v1142, 3
      %v1145 = vrot.slane %v1143, 3
      %v1146 = vsel %vm414, %v1144, %v1145
      %v1148 = vsel %vm423, %v437, %v1123
      %v1150 = vsel %vm423, %v440, %v1125
      %v1151 = vsel %vm428, %v1148, %v405
      %v1153 = vsel %vm428, %v1150, %v407
      %v1156 = vsel %vm418, %v417, %v1127
      %v1158 = vsel %vm418, %v416, %v1129
      %v1160 = vsel %vm423, %v1156, %v1131
      %v1162 = vsel %vm423, %v1158, %v1133
      %v1164 = vsel %vm428, %v1160, %v1135
      %v1167 = vsel %vm428, %v1162, %v1137
      %v1170 = vsel %vm418, %v1146, 0
      %v1173 = vsel %vm418, %v1145, 0
      %1175 = vmatprep.subr.bf16.mxu0 0
      %1176 = vmatpush1.bf16.msra.mxu0 %v572
      %1177 = vmatprep.subr.bf16.mxu0 0
      %1178 = vmatpush1.bf16.msra.mxu0 %v571
      %1179 = vmatprep.subr.bf16.mxu0 0
      %1180 = vmatpush1.bf16.msra.mxu0 %v570
      %1181 = vmatprep.subr.bf16.mxu0 0
      %1182 = vmatpush1.bf16.msra.mxu0 %v569
      %1183 = vmatprep.subr.bf16.mxu0 0
      %1184 = vmatpush1.bf16.msra.mxu0 %v568
      %1185 = vmatprep.subr.bf16.mxu0 0
      %1186 = vmatpush1.bf16.msra.mxu0 %v567
      %1187 = vmatprep.subr.bf16.mxu0 0
      %1188 = vmatpush1.bf16.msra.mxu0 %v566
      %1189 = vmatprep.subr.bf16.mxu0 0
      %1190 = vmatpush1.bf16.msra.mxu0 %v565
      %1191 = vmatprep.subr.bf16.mxu0 0
      %1192 = vmatpush2.bf16.msra.mxu0 %v580
      %1193 = vmatprep.subr.bf16.mxu0 0
      %1194 = vmatpush2.bf16.msra.mxu0 %v579
      %1195 = vmatprep.subr.bf16.mxu0 0
      %1196 = vmatpush2.bf16.msra.mxu0 %v578
      %1197 = vmatprep.subr.bf16.mxu0 0
      %1198 = vmatpush2.bf16.msra.mxu0 %v577
      %1199 = vmatprep.subr.bf16.mxu0 0
      %1200 = vmatpush2.bf16.msra.mxu0 %v576
      %1201 = vmatprep.subr.bf16.mxu0 0
      %1202 = vmatpush2.bf16.msra.mxu0 %v575
      %1203 = vmatprep.subr.bf16.mxu0 0
      %1204 = vmatpush2.bf16.msra.mxu0 %v574
      %1205 = vmatprep.subr.bf16.mxu0 0
      %1206 = vmatpush2.bf16.msra.mxu0 %v573
      %1207 = vmatprep.mubr.bf16.mxu0 %v1164
      %1208 = vmatmul.mubr.bf16.gmra.mxu0 %v1151
      %v1209 = vpop.f32.mrf.mxu0
      %v1210 = vadd.f32 %v491, %v1209
      %v1211 = vpop.f32.mrf.mxu0
      %v1212 = vpop.f32.mrf.mxu0
      %v1213 = vadd.f32 %v491, %v1212
      %v1214 = vpop.f32.mrf.mxu0
      %1215 = vmatprep.mubr.bf16.mxu0 %v1167
      %1216 = vmatmul.mubr.bf16.gmra.mxu0 %v1153
      %v1217 = vpop.f32.mrf.mxu0
      %v1218 = vadd.f32 %v491, %v1217
      %v1219 = vpop.f32.mrf.mxu0
      %v1220 = vpop.f32.mrf.mxu0
      %v1221 = vpop.f32.mrf.mxu0
      %1222 = vdwg.mxu0
      %1223 = vmatprep.subr.bf16.mxu0 0
      %1224 = vmatpush1.bf16.msra.mxu0 0
      %1225 = vmatprep.subr.bf16.mxu0 0
      %1226 = vmatpush1.bf16.msra.mxu0 0
      %1227 = vmatprep.subr.bf16.mxu0 0
      %1228 = vmatpush1.bf16.msra.mxu0 0
      %1229 = vmatprep.subr.bf16.mxu0 0
      %1230 = vmatpush1.bf16.msra.mxu0 0
      %1231 = vmatprep.subr.bf16.mxu0 0
      %1232 = vmatpush1.bf16.msra.mxu0 0
      %1233 = vmatprep.subr.bf16.mxu0 0
      %1234 = vmatpush1.bf16.msra.mxu0 0
      %1235 = vmatprep.subr.bf16.mxu0 0
      %1236 = vmatpush1.bf16.msra.mxu0 %v582
      %1237 = vmatprep.subr.bf16.mxu0 0
      %1238 = vmatpush1.bf16.msra.mxu0 %v581
      %1239 = vmatprep.subr.bf16.mxu0 0
      %1240 = vmatpush2.bf16.msra.mxu0 0
      %1241 = vmatprep.subr.bf16.mxu0 0
      %1242 = vmatpush2.bf16.msra.mxu0 0
      %1243 = vmatprep.subr.bf16.mxu0 0
      %1244 = vmatpush2.bf16.msra.mxu0 0
      %1245 = vmatprep.subr.bf16.mxu0 0
      %1246 = vmatpush2.bf16.msra.mxu0 0
      %1247 = vmatprep.subr.bf16.mxu0 0
      %1248 = vmatpush2.bf16.msra.mxu0 0
      %1249 = vmatprep.subr.bf16.mxu0 0
      %1250 = vmatpush2.bf16.msra.mxu0 0
      %1251 = vmatprep.subr.bf16.mxu0 0
      %1252 = vmatpush2.bf16.msra.mxu0 0
      %1253 = vmatprep.subr.bf16.mxu0 0
      %1254 = vmatpush2.bf16.msra.mxu0 0
      %1255 = vmatprep.mubr.bf16.mxu0 0
      %1256 = vmatmul.mubr.bf16.gmra.mxu0 %v1170
      %v1257 = vpop.f32.mrf.mxu0
      %v1258 = vadd.f32 %v1210, %v1257
      %v1259 = vpop.f32.mrf.mxu0
      %v1260 = vpop.f32.mrf.mxu0
      %v1261 = vadd.f32 %v1213, %v1260
      %v1262 = vpop.f32.mrf.mxu0
      %1263 = vmatprep.mubr.bf16.mxu0 0
      %1264 = vmatmul.mubr.bf16.gmra.mxu0 %v1173
      %v1265 = vpop.f32.mrf.mxu0
      %v1266 = vadd.f32 %v1218, %v1265
      %v1267 = vpop.f32.mrf.mxu0
      %v1268 = vpop.f32.mrf.mxu0
      %v1269 = vpop.f32.mrf.mxu0
      %1270 = vdwg.mxu0
      %v1271 = vmax.f32 %v1258, 0.0
      %v1272 = vmax.f32 %v1261, 0.0
      %v1273 = vmax.f32 %v1266, 0.0
      %v1274 = vmax.f32 %v1119, %v1271
      %v1275 = vmax.f32 %v1120, %v1272
      %v1276 = vmax.f32 %v1121, %v1273
      %v1277 = vpack.c.bf16 %v1275, %v1274
      %v1278 = vpack.c.bf16 %v1276, %v1276
      %v1281 = vunpack.c.l.b16 %v1277
      %v1282 = vunpack.c.h.b16 %v1277
      %v1283 = vunpack.c.l.b16 %v1278
      %v1284 = vpack.c.b16 %v1281, %v1281
      %v1285 = vpack.c.b16 %v1282, %v1282
      %v1286 = vpack.c.b16 %v1283, %v1283
      %vm1290 = vcmask 519168
      %1291 = vst.msk [vmem:[%s238] sm:$0xf] %vm1290, %v1284
      %1292 = vst.msk [vmem:[%s238 + $0x4] sm:$0xf] %vm1290, %v1285
      %vm1293 = vcmask 517120
      %vm1294 = vsmask.f32 1280
      %vm1295 = vmand %vm1293, %vm1294
      %v1296 = vld [vmem:[%s238 + $0x8] sm:$0x3]
      %v1297 = vsel %vm1295, %v1286, %v1296
      %1298 = vst [vmem:[%s238 + $0x8] sm:$0x3] %v1297
      %vm1299 = vcmask 517121
      %vm1300 = vsmask.f32 7942
      %vm1301 = vmand %vm1299, %vm1300
      %v1302 = vld [vmem:[%s238 + $0x8] sm:$0x2]
      %v1303 = vsel %vm1301, 0, %v1302
      %1304 = vst [vmem:[%s238 + $0x8] sm:$0x2] %v1303
      %s1305 = smul.u32 %s18, 2
      %s1306 = sadd.s32 %s1305, %s19
      %p1307 = scmp.lt.s32.totalorder %s1306, 3
      %s1308 = scalar_select %p1307, %s1306, 3
      %s1309 = smul.addr %s1308, 3
      %s1310 = smul.addr %s1309, 4
      %s1311 = scalar_lea.vmem %s3, %s1310
      // Predicated region
      $region33: #{image_mask_net.4} parent=31 // pred_check
        %p1312 = pneg %p130
      $region34: #{image_mask_net.4} parent=31 // pred_check_branch
        %1314 = sbr.rel (%p1312) target = $region36
      $region35: #{image_mask_net.4} parent=31 // pred_region
        %s1315 = smul.u32 %s18, 2
        %s1316 = sadd.s32 %s1315, %s19
      $region36: #{image_mask_net.4} parent=31 // pred_fallthru
        _
    $region32: #{image_mask_net.4} parent=5 // pred_fallthru
      _
    %p1317 = scmp.le.s32.totalorder 2, %s9
    // Predicated region
    $region37: #{image_mask_net.4} parent=5 // pred_check
      %p1318 = pneg %p1317
    $region38: #{image_mask_net.4} parent=5 // pred_check_branch
      %1320 = sbr.rel (%p1318) target = $region40
    $region39: #{image_mask_net.4} parent=5 // pred_region
      %s1321 = ssub.s32 %s9, 2
      // Predicated region
      $region41: #{image_mask_net.4} parent=39 // pred_check
        %p1322 = pneg %p136
      $region42: #{image_mask_net.4} parent=39 // pred_check_branch
        %1324 = sbr.rel (%p1322) target = $region44
      $region43: #{image_mask_net.4} parent=39 // pred_region
        %s1325 = smul.u32 %s20, 2
        %s1326 = sadd.s32 %s1325, %s21
        %p1327 = scmp.lt.s32.totalorder %s1326, 3
        %s1328 = scalar_select %p1327, %s1326, 3
        %s1329 = smul.addr %s1328, 3
        %s1330 = smul.addr %s1329, 4
        %s1331 = scalar_lea.vmem %s3, %s1330
      $region44: #{image_mask_net.4} parent=39 // pred_fallthru
        _
    $region40: #{image_mask_net.4} parent=5 // pred_fallthru
      _
  $region6: #{image_mask_net.4} parent=0 // loop_footer
    %s13 = sadd.s32 1, %s9
  $region7: #{image_mask_net.4} parent=0 // loop_footer_branch
    %8 = sbr.rel target = $region3
  $region8: #{image_mask_net.4} parent=0 // loop_exit
    _

// kernel: image_mask_net.3
$region0: #{image_mask_net.3}
  #allocation0 [shape = 'u32[]', space=smem, size = 0x4, offset = 0x4, fixed_abs, tag = 'smem constant byte address 0x4 - core index']
  #allocation1 [shape = 'u32[144,128]{1,0:T(1,128)}', space=vmem, size = 0x12000, scoped, tag = 'internal scratch']
  %s0 = inlined_call_operand.vmem [shape: bf16[4,4,81,3], index: 0, kind: input, shape index: {}]
  %s1 = inlined_call_operand.vmem [shape: bf16[2,9,3,32], index: 1, kind: input, shape index: {}]
  %s2 = inlined_call_operand.vmem [shape: f32[2,1,32], index: 2, kind: input, shape index: {}]
  %s3 = inlined_call_operand.vmem [shape: bf16[4,72,32], index: 3, kind: output, shape index: {}]
  %s4 = sld [smem:[#allocation0]]
  $region45: #{image_mask_net.3} parent=0
    _
  %s6 = ssub.s32 1, %s4
  %s7 = scalar_select 0, %s6, %s4
  loop: start=0, step=1, limit=6
  $region2: #{image_mask_net.3} parent=0 // loop_pre_header
    _
  $region3: #{image_mask_net.3} parent=0 // loop_header
    %s9 = sphi 0, %s13
    %p10 = scmp.ge.s32.totalorder %s9, 6
    %s16 = sphi 0, %s28
    %s17 = sphi 0, %s24
    %s18 = sphi 0, %s16
    %s19 = sphi 0, %s17
    %s20 = sphi 0, %s18
    %s21 = sphi 0, %s19
    %s35 = sphi 0, %s37
    %s38 = sphi 0, %s35
    %s39 = sphi 0, %s38
    %s55 = sphi 0, %s39
    %s61 = sphi 0, %s63
    %s64 = sphi 0, %s61
    %s65 = sphi 0, %s64
    %s81 = sphi 0, %s65
    %s87 = sphi 0, %s89
    %s90 = sphi 0, %s87
    %s91 = sphi 0, %s90
    %s107 = sphi 0, %s91
    %s117 = sphi 0, %s119
    %s120 = sphi 0, %s117
    %s121 = sphi 0, %s120
    %s137 = sphi 0, %s121
  $region4: #{image_mask_net.3} parent=0 // loop_header_branch
    %12 = sbr.rel (%p10) target = $region8
  $region5: #{image_mask_net.3} parent=0 // loop_body
    %s14 = ssub.s32 %s9, 1
    %s15 = ssub.s32 %s9, 2
    %s22 = sadd.s32 1, %s17
    %p23 = scmp.ge.s32.totalorder %s22, 2
    %s24 = scalar_select %p23, 0, %s22
    %s25 = sadd.s32 1, %s16
    %s26 = scalar_select %p23, %s25, %s16
    %p27 = scmp.ge.s32.totalorder %s26, 2
    %s28 = scalar_select %p27, 0, %s26
    %s29 = smul.u32 %s16, 2
    %s30 = sadd.s32 %s29, %s17
    %s31 = smul.u32 %s28, 2
    %s32 = sadd.s32 %s31, %s24
    %s33 = ssub.s32 %s30, %s32
    %p34 = scmp.eq.s32.totalorder %s33, 0
    %s36 = sadd.s32 %s35, 1
    %s37 = scalar_select %p34, %s35, %s36
    %p40 = pneg %p34
    %p41 = scmp.eq.s32.totalorder %s9, 3
    %p42 = por %p40, %p41
    %p43 = scmp.ne.s32.totalorder %s35, %s38
    %p44 = scmp.eq.s32.totalorder %s9, 0
    %p45 = por %p43, %p44
    %p46 = scmp.ne.s32.totalorder %s35, %s38
    %p47 = scmp.eq.s32.totalorder %s14, 3
    %p48 = por %p46, %p47
    %p49 = scmp.ne.s32.totalorder %s38, %s39
    %p50 = scmp.eq.s32.totalorder %s14, 0
    %p51 = por %p49, %p50
    %p52 = scmp.ne.s32.totalorder %s38, %s39
    %p53 = scmp.eq.s32.totalorder %s15, 3
    %p54 = por %p52, %p53
    %p56 = scmp.ne.s32.totalorder %s39, %s55
    %p57 = scmp.eq.s32.totalorder %s15, 0
    %p58 = por %p56, %p57
    %s59 = ssub.s32 %s16, %s28
    %p60 = scmp.eq.s32.totalorder %s59, 0
    %s62 = sadd.s32 %s61, 1
    %s63 = scalar_select %p60, %s61, %s62
    %p66 = pneg %p60
    %p67 = scmp.eq.s32.totalorder %s9, 3
    %p68 = por %p66, %p67
    %p69 = scmp.ne.s32.totalorder %s61, %s64
    %p70 = scmp.eq.s32.totalorder %s9, 0
    %p71 = por %p69, %p70
    %p72 = scmp.ne.s32.totalorder %s61, %s64
    %p73 = scmp.eq.s32.totalorder %s14, 3
    %p74 = por %p72, %p73
    %p75 = scmp.ne.s32.totalorder %s64, %s65
    %p76 = scmp.eq.s32.totalorder %s14, 0
    %p77 = por %p75, %p76
    %p78 = scmp.ne.s32.totalorder %s64, %s65
    %p79 = scmp.eq.s32.totalorder %s15, 3
    %p80 = por %p78, %p79
    %p82 = scmp.ne.s32.totalorder %s65, %s81
    %p83 = scmp.eq.s32.totalorder %s15, 0
    %p84 = por %p82, %p83
    %s85 = ssub.s32 %s16, %s28
    %p86 = scmp.eq.s32.totalorder %s85, 0
    %s88 = sadd.s32 %s87, 1
    %s89 = scalar_select %p86, %s87, %s88
    %p92 = pneg %p86
    %p93 = scmp.eq.s32.totalorder %s9, 3
    %p94 = por %p92, %p93
    %p95 = scmp.ne.s32.totalorder %s87, %s90
    %p96 = scmp.eq.s32.totalorder %s9, 0
    %p97 = por %p95, %p96
    %p98 = scmp.ne.s32.totalorder %s87, %s90
    %p99 = scmp.eq.s32.totalorder %s14, 3
    %p100 = por %p98, %p99
    %p101 = scmp.ne.s32.totalorder %s90, %s91
    %p102 = scmp.eq.s32.totalorder %s14, 0
    %p103 = por %p101, %p102
    %p104 = scmp.ne.s32.totalorder %s90, %s91
    %p105 = scmp.eq.s32.totalorder %s15, 3
    %p106 = por %p104, %p105
    %p108 = scmp.ne.s32.totalorder %s91, %s107
    %p109 = scmp.eq.s32.totalorder %s15, 0
    %p110 = por %p108, %p109
    %s111 = smul.u32 %s16, 2
    %s112 = sadd.s32 %s111, %s17
    %s113 = smul.u32 %s28, 2
    %s114 = sadd.s32 %s113, %s24
    %s115 = ssub.s32 %s112, %s114
    %p116 = scmp.eq.s32.totalorder %s115, 0
    %s118 = sadd.s32 %s117, 1
    %s119 = scalar_select %p116, %s117, %s118
    %p122 = pneg %p116
    %p123 = scmp.eq.s32.totalorder %s9, 3
    %p124 = por %p122, %p123
    %p125 = scmp.ne.s32.totalorder %s117, %s120
    %p126 = scmp.eq.s32.totalorder %s9, 0
    %p127 = por %p125, %p126
    %p128 = scmp.ne.s32.totalorder %s117, %s120
    %p129 = scmp.eq.s32.totalorder %s14, 3
    %p130 = por %p128, %p129
    %p131 = scmp.ne.s32.totalorder %s120, %s121
    %p132 = scmp.eq.s32.totalorder %s14, 0
    %p133 = por %p131, %p132
    %p134 = scmp.ne.s32.totalorder %s120, %s121
    %p135 = scmp.eq.s32.totalorder %s15, 3
    %p136 = por %p134, %p135
    %p138 = scmp.ne.s32.totalorder %s121, %s137
    %p139 = scmp.eq.s32.totalorder %s15, 0
    %p140 = por %p138, %p139
    %p141 = scmp.le.s32.totalorder 1, %s9
    %p142 = scmp.lt.s32.totalorder %s9, 5
    %p143 = pnand %p141, %p142
    %p144 = pneg %p143
    // Predicated region
    $region9: #{image_mask_net.3} parent=5 // pred_check
      _
    $region10: #{image_mask_net.3} parent=5 // pred_check_branch
      %146 = sbr.rel (%p143) target = $region12
    $region11: #{image_mask_net.3} parent=5 // pred_region
      %s147 = ssub.s32 %s9, 1
    $region12: #{image_mask_net.3} parent=5 // pred_fallthru
      _
    %p148 = scmp.lt.s32.totalorder %s9, 4
    // Predicated region
    $region13: #{image_mask_net.3} parent=5 // pred_check
      %p149 = pneg %p148
    $region14: #{image_mask_net.3} parent=5 // pred_check_branch
      %151 = sbr.rel (%p149) target = $region16
    $region15: #{image_mask_net.3} parent=5 // pred_region
      // Predicated region
      $region17: #{image_mask_net.3} parent=15 // pred_check
        %p152 = pneg %p45
      $region18: #{image_mask_net.3} parent=15 // pred_check_branch
        %154 = sbr.rel (%p152) target = $region20
      $region19: #{image_mask_net.3} parent=15 // pred_region
        %s155 = smul.u32 %s16, 2
        %s156 = sadd.s32 %s155, %s17
        %p157 = scmp.lt.s32.totalorder %s156, 3
        %s158 = scalar_select %p157, %s156, 3
        %s159 = smul.addr %s158, 44
        %s160 = smul.addr %s159, 4
        %s161 = scalar_lea.vmem %s0, %s160
        %s162 = smul.u32 %s16, 2
        %s163 = sadd.s32 %s162, %s17
      $region20: #{image_mask_net.3} parent=15 // pred_fallthru
        _
      // Predicated region
      $region21: #{image_mask_net.3} parent=15 // pred_check
        %p164 = pneg %p71
      $region22: #{image_mask_net.3} parent=15 // pred_check_branch
        %166 = sbr.rel (%p164) target = $region24
      $region23: #{image_mask_net.3} parent=15 // pred_region
        %p167 = scmp.lt.s32.totalorder %s16, 1
        %s168 = scalar_select %p167, %s16, 1
        %s169 = smul.addr %s168, 9
        %s170 = smul.addr %s169, 2
        %s171 = scalar_lea.vmem %s1, %s170
      $region24: #{image_mask_net.3} parent=15 // pred_fallthru
        _
      // Predicated region
      $region25: #{image_mask_net.3} parent=15 // pred_check
        %p172 = pneg %p97
      $region26: #{image_mask_net.3} parent=15 // pred_check_branch
        %174 = sbr.rel (%p172) target = $region28
      $region27: #{image_mask_net.3} parent=15 // pred_region
        %p175 = scmp.lt.s32.totalorder %s16, 1
        %s176 = scalar_select %p175, %s16, 1
        %s177 = scalar_lea.vmem %s2, %s176
      $region28: #{image_mask_net.3} parent=15 // pred_fallthru
        _
    $region16: #{image_mask_net.3} parent=5 // pred_fallthru
      _
    %p178 = scmp.le.s32.totalorder 1, %s9
    %p179 = scmp.lt.s32.totalorder %s9, 5
    %p180 = pnand %p178, %p179
    %p181 = pneg %p180
    // Predicated region
    $region29: #{image_mask_net.3} parent=5 // pred_check
      _
    $region30: #{image_mask_net.3} parent=5 // pred_check_branch
      %183 = sbr.rel (%p180) target = $region32
    $region31: #{image_mask_net.3} parent=5 // pred_region
      %s184 = ssub.s32 %s9, 1
      %s185 = smul.u32 %s18, 2
      %s186 = sadd.s32 %s185, %s19
      %p187 = scmp.lt.s32.totalorder %s186, 3
      %s188 = scalar_select %p187, %s186, 3
      %s189 = smul.addr %s188, 44
      %s190 = smul.addr %s189, 4
      %s191 = scalar_lea.vmem %s0, %s190
      %p192 = pneg %p51
      %p193 = pneg %p48
      %p194 = scmp.lt.s32.totalorder %s18, 1
      %s195 = scalar_select %p194, %s18, 1
      %s196 = smul.addr %s195, 9
      %s197 = smul.addr %s196, 2
      %s198 = scalar_lea.vmem %s1, %s197
      %p199 = pneg %p77
      %p200 = pneg %p74
      %p201 = scmp.lt.s32.totalorder %s18, 1
      %s202 = scalar_select %p201, %s18, 1
      %s203 = scalar_lea.vmem %s2, %s202
      %p204 = pneg %p103
      %p205 = pneg %p100
      %p206 = pneg %p133
      %p207 = pneg %p130
      %s208 = smul.u32 %s18, 2
      %s209 = sadd.s32 %s208, %s19
      %p210 = scmp.lt.s32.totalorder %s209, 3
      %s211 = scalar_select %p210, %s209, 3
      %s212 = smul.addr %s211, 9
      %s213 = smul.addr %s212, 4
      %s214 = scalar_lea.vmem %s3, %s213
      %s215 = smul.u32 %s18, 2
      %s216 = sadd.s32 %s215, %s19
      %p217 = scmp.lt.s32.totalorder %s216, 3
      %s218 = scalar_select %p217, %s216, 3
      %s219 = smul.addr %s218, 44
      %s220 = smul.addr %s219, 4
      %s221 = scalar_lea.vmem %s0, %s220
      %s222 = smul.u32 %s18, 2
      %s223 = sadd.s32 %s222, %s19
      %p224 = scmp.lt.s32.totalorder %s18, 1
      %s225 = scalar_select %p224, %s18, 1
      %s226 = smul.addr %s225, 9
      %s227 = smul.addr %s226, 2
      %s228 = scalar_lea.vmem %s1, %s227
      %p229 = scmp.lt.s32.totalorder %s18, 1
      %s230 = scalar_select %p229, %s18, 1
      %s231 = scalar_lea.vmem %s2, %s230
      %s232 = smul.u32 %s18, 2
      %s233 = sadd.s32 %s232, %s19
      %p234 = scmp.lt.s32.totalorder %s233, 3
      %s235 = scalar_select %p234, %s233, 3
      %s236 = smul.addr %s235, 9
      %s237 = smul.addr %s236, 4
      %s238 = scalar_lea.vmem %s3, %s237
      %s239 = smul.u32 %s18, 2
      %s240 = sadd.s32 %s239, %s19
      %v242 = vld [vmem:[%s231] sm:$0x1]
      %v243 = vld [vmem:[%s221] sm:$0xf]
      %v244 = vld [vmem:[%s221 + $0x4] sm:$0xf]
      %v245 = vld [vmem:[%s221 + $0x8] sm:$0xf]
      %v246 = vld [vmem:[%s221 + $0xc] sm:$0xf]
      %v247 = vld [vmem:[%s221 + $0x10] sm:$0xf]
      %v248 = vld [vmem:[%s221 + $0x14] sm:$0xf]
      %v249 = vld [vmem:[%s221 + $0x18] sm:$0xf]
      %v250 = vld [vmem:[%s221 + $0x1c] sm:$0xf]
      %v251 = vld [vmem:[%s221 + $0x20] sm:$0xf]
      %s252 = scalar_lea.vmem %s221, 44
      %v253 = vld [vmem:[%s252] sm:$0xf]
      %v254 = vld [vmem:[%s252 + $0x4] sm:$0xf]
      %v255 = vld [vmem:[%s252 + $0x8] sm:$0xf]
      %v256 = vld [vmem:[%s252 + $0xc] sm:$0xf]
      %v257 = vld [vmem:[%s252 + $0x10] sm:$0xf]
      %v258 = vld [vmem:[%s252 + $0x14] sm:$0xf]
      %v259 = vld [vmem:[%s252 + $0x18] sm:$0xf]
      %v260 = vld [vmem:[%s252 + $0x1c] sm:$0xf]
      %v261 = vld [vmem:[%s252 + $0x20] sm:$0xf]
      %s262 = scalar_lea.vmem %s221, 88
      %v263 = vld [vmem:[%s262] sm:$0xf]
      %v264 = vld [vmem:[%s262 + $0x4] sm:$0xf]
      %v265 = vld [vmem:[%s262 + $0x8] sm:$0xf]
      %v266 = vld [vmem:[%s262 + $0xc] sm:$0xf]
      %v267 = vld [vmem:[%s262 + $0x10] sm:$0xf]
      %v268 = vld [vmem:[%s262 + $0x14] sm:$0xf]
      %v269 = vld [vmem:[%s262 + $0x18] sm:$0xf]
      %v270 = vld [vmem:[%s262 + $0x1c] sm:$0xf]
      %v271 = vld [vmem:[%s262 + $0x20] sm:$0xf]
      %s272 = scalar_lea.vmem %s221, 132
      %v273 = vld [vmem:[%s272] sm:$0xf]
      %v274 = vld [vmem:[%s272 + $0x4] sm:$0xf]
      %v275 = vld [vmem:[%s272 + $0x8] sm:$0xf]
      %v276 = vld [vmem:[%s272 + $0xc] sm:$0xf]
      %v277 = vld [vmem:[%s272 + $0x10] sm:$0xf]
      %v278 = vld [vmem:[%s272 + $0x14] sm:$0xf]
      %v279 = vld [vmem:[%s272 + $0x18] sm:$0xf]
      %v280 = vld [vmem:[%s272 + $0x1c] sm:$0xf]
      %v281 = vld [vmem:[%s272 + $0x20] sm:$0xf]
      %v282 = vld [vmem:[%s221 + $0x24] sm:$0xf]
      %v283 = vld [vmem:[%s252 + $0x24] sm:$0xf]
      %v284 = vld [vmem:[%s221 + $0x4] sm:$0xe]
      %v285 = vld [vmem:[%s221 + $0x28] sm:$0x1]
      %v286 = vld [vmem:[%s252 + $0x4] sm:$0xe]
      %v287 = vld [vmem:[%s252 + $0x28] sm:$0x1]
      %v288 = vld [vmem:[%s262 + $0x24] sm:$0xf]
      %v289 = vld [vmem:[%s272 + $0x24] sm:$0xf]
      %v290 = vld [vmem:[%s262 + $0x4] sm:$0xe]
      %v291 = vld [vmem:[%s262 + $0x28] sm:$0x1]
      %v292 = vld [vmem:[%s272 + $0x4] sm:$0xe]
      %v293 = vld [vmem:[%s272 + $0x28] sm:$0x1]
      %v294 = vld [vmem:[%s228] sm:$0x3]
      %s295 = scalar_lea.vmem %s228, 2
      %v296 = vld [vmem:[%s295] sm:$0x3]
      %v306 = vunpack.c.l.b16 %v253
      %v307 = vunpack.c.l.b16 %v254
      %v308 = vunpack.c.l.b16 %v255
      %v309 = vunpack.c.l.b16 %v256
      %v310 = vunpack.c.l.b16 %v257
      %v311 = vunpack.c.l.b16 %v258
      %v312 = vunpack.c.l.b16 %v259
      %v313 = vunpack.c.l.b16 %v260
      %v314 = vunpack.c.l.b16 %v261
      %v315 = vpack.c.b16 %v307, %v306
      %v316 = vpack.c.b16 %v309, %v308
      %v317 = vpack.c.b16 %v311, %v310
      %v318 = vpack.c.b16 %v313, %v312
      %v319 = vpack.c.b16 %v314, %v314
      %vm320 = vcmask 23552
      %v322 = vsel %vm320, %v315, 0
      %v325 = vsel %vm320, %v316, 0
      %v328 = vsel %vm320, %v317, 0
      %v331 = vsel %vm320, %v318, 0
      %v334 = vsel %vm320, %v319, 0
      %vm336 = vcmask 1040384
      %vm337 = vcmask 1041408
      %v338 = vsel %vm336, 4294967295, 65535
      %v339 = vsel %vm337, %v338, 0
      %v341 = vand.u32 %v296, %v339
      %343 = vmatprep.subr.bf16.mxu0 0
      %344 = vmatpush1.bf16.msra.mxu0 0
      %345 = vmatprep.subr.bf16.mxu0 0
      %346 = vmatpush1.bf16.msra.mxu0 0
      %347 = vmatprep.subr.bf16.mxu0 0
      %348 = vmatpush1.bf16.msra.mxu0 0
      %349 = vmatprep.subr.bf16.mxu0 0
      %350 = vmatpush1.bf16.msra.mxu0 0
      %351 = vmatprep.subr.bf16.mxu0 0
      %352 = vmatpush1.bf16.msra.mxu0 0
      %353 = vmatprep.subr.bf16.mxu0 0
      %354 = vmatpush1.bf16.msra.mxu0 0
      %355 = vmatprep.subr.bf16.mxu0 0
      %356 = vmatpush1.bf16.msra.mxu0 0
      %357 = vmatprep.subr.bf16.mxu0 0
      %358 = vmatpush1.bf16.msra.mxu0 %v341
      %359 = vmatprep.subr.bf16.mxu0 0
      %360 = vmatpush2.bf16.msra.mxu0 0
      %361 = vmatprep.subr.bf16.mxu0 0
      %362 = vmatpush2.bf16.msra.mxu0 0
      %363 = vmatprep.subr.bf16.mxu0 0
      %364 = vmatpush2.bf16.msra.mxu0 0
      %365 = vmatprep.subr.bf16.mxu0 0
      %366 = vmatpush2.bf16.msra.mxu0 0
      %367 = vmatprep.subr.bf16.mxu0 0
      %368 = vmatpush2.bf16.msra.mxu0 0
      %369 = vmatprep.subr.bf16.mxu0 0
      %370 = vmatpush2.bf16.msra.mxu0 0
      %371 = vmatprep.subr.bf16.mxu0 0
      %372 = vmatpush2.bf16.msra.mxu0 0
      %373 = vmatprep.subr.bf16.mxu0 0
      %374 = vmatpush2.bf16.msra.mxu0 0
      %375 = vmatprep.mubr.bf16.mxu0 0
      %376 = vmatmul.mubr.bf16.gmra.mxu0 %v322
      %v377 = vpop.f32.mrf.mxu0
      %v378 = vadd.f32 0.0, %v377
      %v379 = vpop.f32.mrf.mxu0
      %v380 = vpop.f32.mrf.mxu0
      %v381 = vadd.f32 0.0, %v380
      %v382 = vpop.f32.mrf.mxu0
      %383 = vmatprep.mubr.bf16.mxu0 0
      %384 = vmatmul.mubr.bf16.gmra.mxu0 %v325
      %v385 = vpop.f32.mrf.mxu0
      %v386 = vadd.f32 0.0, %v385
      %v387 = vpop.f32.mrf.mxu0
      %v388 = vpop.f32.mrf.mxu0
      %v389 = vadd.f32 0.0, %v388
      %v390 = vpop.f32.mrf.mxu0
      %391 = vmatprep.mubr.bf16.mxu0 0
      %392 = vmatmul.mubr.bf16.gmra.mxu0 %v328
      %v393 = vpop.f32.mrf.mxu0
      %v394 = vadd.f32 0.0, %v393
      %v395 = vpop.f32.mrf.mxu0
      %v396 = vpop.f32.mrf.mxu0
      %v397 = vadd.f32 0.0, %v396
      %v398 = vpop.f32.mrf.mxu0
      %399 = vmatprep.mubr.bf16.mxu0 0
      %400 = vmatmul.mubr.bf16.gmra.mxu0 %v331
      %v401 = vpop.f32.mrf.mxu0
      %v402 = vadd.f32 0.0, %v401
      %v403 = vpop.f32.mrf.mxu0
      %v404 = vpop.f32.mrf.mxu0
      %v405 = vadd.f32 0.0, %v404
      %v406 = vpop.f32.mrf.mxu0
      %407 = vmatprep.mubr.bf16.mxu0 0
      %408 = vmatmul.mubr.bf16.gmra.mxu0 %v334
      %v409 = vpop.f32.mrf.mxu0
      %v410 = vadd.f32 0.0, %v409
      %v411 = vpop.f32.mrf.mxu0
      %v412 = vpop.f32.mrf.mxu0
      %v413 = vpop.f32.mrf.mxu0
      %414 = vdwg.mxu0
      %v424 = vunpack.c.l.b16 %v243
      %v425 = vunpack.c.l.b16 %v244
      %v426 = vunpack.c.l.b16 %v245
      %v427 = vunpack.c.l.b16 %v246
      %v428 = vunpack.c.l.b16 %v247
      %v429 = vunpack.c.l.b16 %v248
      %v430 = vunpack.c.l.b16 %v249
      %v431 = vunpack.c.l.b16 %v250
      %v432 = vunpack.c.l.b16 %v251
      %v433 = vpack.c.b16 %v425, %v424
      %v434 = vpack.c.b16 %v427, %v426
      %v435 = vpack.c.b16 %v429, %v428
      %v436 = vpack.c.b16 %v431, %v430
      %v437 = vpack.c.b16 %v432, %v432
      %v439 = vsel %vm320, %v433, 0
      %v442 = vsel %vm320, %v434, 0
      %v445 = vsel %vm320, %v435, 0
      %v448 = vsel %vm320, %v436, 0
      %v451 = vsel %vm320, %v437, 0
      %v454 = vand.u32 %v294, %v339
      %456 = vmatprep.subr.bf16.mxu0 0
      %457 = vmatpush1.bf16.msra.mxu0 0
      %458 = vmatprep.subr.bf16.mxu0 0
      %459 = vmatpush1.bf16.msra.mxu0 0
      %460 = vmatprep.subr.bf16.mxu0 0
      %461 = vmatpush1.bf16.msra.mxu0 0
      %462 = vmatprep.subr.bf16.mxu0 0
      %463 = vmatpush1.bf16.msra.mxu0 0
      %464 = vmatprep.subr.bf16.mxu0 0
      %465 = vmatpush1.bf16.msra.mxu0 0
      %466 = vmatprep.subr.bf16.mxu0 0
      %467 = vmatpush1.bf16.msra.mxu0 0
      %468 = vmatprep.subr.bf16.mxu0 0
      %469 = vmatpush1.bf16.msra.mxu0 0
      %470 = vmatprep.subr.bf16.mxu0 0
      %471 = vmatpush1.bf16.msra.mxu0 %v454
      %472 = vmatprep.subr.bf16.mxu0 0
      %473 = vmatpush2.bf16.msra.mxu0 0
      %474 = vmatprep.subr.bf16.mxu0 0
      %475 = vmatpush2.bf16.msra.mxu0 0
      %476 = vmatprep.subr.bf16.mxu0 0
      %477 = vmatpush2.bf16.msra.mxu0 0
      %478 = vmatprep.subr.bf16.mxu0 0
      %479 = vmatpush2.bf16.msra.mxu0 0
      %480 = vmatprep.subr.bf16.mxu0 0
      %481 = vmatpush2.bf16.msra.mxu0 0
      %482 = vmatprep.subr.bf16.mxu0 0
      %483 = vmatpush2.bf16.msra.mxu0 0
      %484 = vmatprep.subr.bf16.mxu0 0
      %485 = vmatpush2.bf16.msra.mxu0 0
      %486 = vmatprep.subr.bf16.mxu0 0
      %487 = vmatpush2.bf16.msra.mxu0 0
      %488 = vmatprep.mubr.bf16.mxu0 0
      %489 = vmatmul.mubr.bf16.gmra.mxu0 %v439
      %v490 = vpop.f32.mrf.mxu0
      %v491 = vadd.f32 %v378, %v490
      %v492 = vpop.f32.mrf.mxu0
      %v493 = vpop.f32.mrf.mxu0
      %v494 = vadd.f32 %v381, %v493
      %v495 = vpop.f32.mrf.mxu0
      %496 = vmatprep.mubr.bf16.mxu0 0
      %497 = vmatmul.mubr.bf16.gmra.mxu0 %v442
      %v498 = vpop.f32.mrf.mxu0
      %v499 = vadd.f32 %v386, %v498
      %v500 = vpop.f32.mrf.mxu0
      %v501 = vpop.f32.mrf.mxu0
      %v502 = vadd.f32 %v389, %v501
      %v503 = vpop.f32.mrf.mxu0
      %504 = vmatprep.mubr.bf16.mxu0 0
      %505 = vmatmul.mubr.bf16.gmra.mxu0 %v445
      %v506 = vpop.f32.mrf.mxu0
      %v507 = vadd.f32 %v394, %v506
      %v508 = vpop.f32.mrf.mxu0
      %v509 = vpop.f32.mrf.mxu0
      %v510 = vadd.f32 %v397, %v509
      %v511 = vpop.f32.mrf.mxu0
      %512 = vmatprep.mubr.bf16.mxu0 0
      %513 = vmatmul.mubr.bf16.gmra.mxu0 %v448
      %v514 = vpop.f32.mrf.mxu0
      %v515 = vadd.f32 %v402, %v514
      %v516 = vpop.f32.mrf.mxu0
      %v517 = vpop.f32.mrf.mxu0
      %v518 = vadd.f32 %v405, %v517
      %v519 = vpop.f32.mrf.mxu0
      %520 = vmatprep.mubr.bf16.mxu0 0
      %521 = vmatmul.mubr.bf16.gmra.mxu0 %v451
      %v522 = vpop.f32.mrf.mxu0
      %v523 = vadd.f32 %v410, %v522
      %v524 = vpop.f32.mrf.mxu0
      %v525 = vpop.f32.mrf.mxu0
      %v526 = vpop.f32.mrf.mxu0
      %527 = vdwg.mxu0
      %s528 = scalar_lea.vmem %s228, 4
      %v529 = vld [vmem:[%s528] sm:$0x3]
      %vm530 = vsmask.f32 7424
      %v531 = vshrl.u32 %v433, 16
      %v533 = vshll.u32 %v433, 16
      %v535 = vrot.slane %v533, 1
      %v536 = vor.u32 %v531, %v535
      %v537 = vshll.u32 %v434, 16
      %v539 = vrot.slane %v537, 1
      %v540 = vsel %vm530, %v536, %v539
      %v541 = vshrl.u32 %v434, 16
      %v543 = vor.u32 %v541, %v539
      %v544 = vshll.u32 %v435, 16
      %v546 = vrot.slane %v544, 1
      %v547 = vsel %vm530, %v543, %v546
      %v548 = vshrl.u32 %v435, 16
      %v550 = vor.u32 %v548, %v546
      %v551 = vshll.u32 %v436, 16
      %v553 = vrot.slane %v551, 1
      %v554 = vsel %vm530, %v550, %v553
      %v555 = vshrl.u32 %v436, 16
      %v557 = vor.u32 %v555, %v553
      %v558 = vshll.u32 %v437, 16
      %v560 = vrot.slane %v558, 1
      %v561 = vsel %vm530, %v557, %v560
      %v562 = vshrl.u32 %v437, 16
      %v564 = vor.u32 %v562, %v560
      %v566 = vsel %vm320, %v540, 0
      %v569 = vsel %vm320, %v547, 0
      %v572 = vsel %vm320, %v554, 0
      %v575 = vsel %vm320, %v561, 0
      %v578 = vsel %vm320, %v564, 0
      %v581 = vand.u32 %v529, %v339
      %583 = vmatprep.subr.bf16.mxu0 0
      %584 = vmatpush1.bf16.msra.mxu0 0
      %585 = vmatprep.subr.bf16.mxu0 0
      %586 = vmatpush1.bf16.msra.mxu0 0
      %587 = vmatprep.subr.bf16.mxu0 0
      %588 = vmatpush1.bf16.msra.mxu0 0
      %589 = vmatprep.subr.bf16.mxu0 0
      %590 = vmatpush1.bf16.msra.mxu0 0
      %591 = vmatprep.subr.bf16.mxu0 0
      %592 = vmatpush1.bf16.msra.mxu0 0
      %593 = vmatprep.subr.bf16.mxu0 0
      %594 = vmatpush1.bf16.msra.mxu0 0
      %595 = vmatprep.subr.bf16.mxu0 0
      %596 = vmatpush1.bf16.msra.mxu0 0
      %597 = vmatprep.subr.bf16.mxu0 0
      %598 = vmatpush1.bf16.msra.mxu0 %v581
      %599 = vmatprep.subr.bf16.mxu0 0
      %600 = vmatpush2.bf16.msra.mxu0 0
      %601 = vmatprep.subr.bf16.mxu0 0
      %602 = vmatpush2.bf16.msra.mxu0 0
      %603 = vmatprep.subr.bf16.mxu0 0
      %604 = vmatpush2.bf16.msra.mxu0 0
      %605 = vmatprep.subr.bf16.mxu0 0
      %606 = vmatpush2.bf16.msra.mxu0 0
      %607 = vmatprep.subr.bf16.mxu0 0
      %608 = vmatpush2.bf16.msra.mxu0 0
      %609 = vmatprep.subr.bf16.mxu0 0
      %610 = vmatpush2.bf16.msra.mxu0 0
      %611 = vmatprep.subr.bf16.mxu0 0
      %612 = vmatpush2.bf16.msra.mxu0 0
      %613 = vmatprep.subr.bf16.mxu0 0
      %614 = vmatpush2.bf16.msra.mxu0 0
      %615 = vmatprep.mubr.bf16.mxu0 0
      %616 = vmatmul.mubr.bf16.gmra.mxu0 %v566
      %v617 = vpop.f32.mrf.mxu0
      %v618 = vadd.f32 0.0, %v617
      %v619 = vpop.f32.mrf.mxu0
      %v620 = vpop.f32.mrf.mxu0
      %v621 = vadd.f32 0.0, %v620
      %v622 = vpop.f32.mrf.mxu0
      %623 = vmatprep.mubr.bf16.mxu0 0
      %624 = vmatmul.mubr.bf16.gmra.mxu0 %v569
      %v625 = vpop.f32.mrf.mxu0
      %v626 = vadd.f32 0.0, %v625
      %v627 = vpop.f32.mrf.mxu0
      %v628 = vpop.f32.mrf.mxu0
      %v629 = vadd.f32 0.0, %v628
      %v630 = vpop.f32.mrf.mxu0
      %631 = vmatprep.mubr.bf16.mxu0 0
      %632 = vmatmul.mubr.bf16.gmra.mxu0 %v572
      %v633 = vpop.f32.mrf.mxu0
      %v634 = vadd.f32 0.0, %v633
      %v635 = vpop.f32.mrf.mxu0
      %v636 = vpop.f32.mrf.mxu0
      %v637 = vadd.f32 0.0, %v636
      %v638 = vpop.f32.mrf.mxu0
      %639 = vmatprep.mubr.bf16.mxu0 0
      %640 = vmatmul.mubr.bf16.gmra.mxu0 %v575
      %v641 = vpop.f32.mrf.mxu0
      %v642 = vadd.f32 0.0, %v641
      %v643 = vpop.f32.mrf.mxu0
      %v644 = vpop.f32.mrf.mxu0
      %v645 = vadd.f32 0.0, %v644
      %v646 = vpop.f32.mrf.mxu0
      %647 = vmatprep.mubr.bf16.mxu0 0
      %648 = vmatmul.mubr.bf16.gmra.mxu0 %v578
      %v649 = vpop.f32.mrf.mxu0
      %v650 = vadd.f32 0.0, %v649
      %v651 = vpop.f32.mrf.mxu0
      %v652 = vpop.f32.mrf.mxu0
      %v653 = vpop.f32.mrf.mxu0
      %654 = vdwg.mxu0
      %v655 = vadd.f32 %v491, %v618
      %v656 = vadd.f32 %v494, %v621
      %v657 = vadd.f32 %v499, %v626
      %v658 = vadd.f32 %v502, %v629
      %v659 = vadd.f32 %v507, %v634
      %v660 = vadd.f32 %v510, %v637
      %v661 = vadd.f32 %v515, %v642
      %v662 = vadd.f32 %v518, %v645
      %v663 = vadd.f32 %v523, %v650
      %s664 = scalar_lea.vmem %s228, 6
      %v665 = vld [vmem:[%s664] sm:$0x3]
      %v675 = vunpack.c.l.b16 %v263
      %v676 = vunpack.c.l.b16 %v264
      %v677 = vunpack.c.l.b16 %v265
      %v678 = vunpack.c.l.b16 %v266
      %v679 = vunpack.c.l.b16 %v267
      %v680 = vunpack.c.l.b16 %v268
      %v681 = vunpack.c.l.b16 %v269
      %v682 = vunpack.c.l.b16 %v270
      %v683 = vunpack.c.l.b16 %v271
      %v684 = vpack.c.b16 %v676, %v675
      %v685 = vpack.c.b16 %v678, %v677
      %v686 = vpack.c.b16 %v680, %v679
      %v687 = vpack.c.b16 %v682, %v681
      %v688 = vpack.c.b16 %v683, %v683
      %v690 = vsel %vm320, %v684, 0
      %v693 = vsel %vm320, %v685, 0
      %v696 = vsel %vm320, %v686, 0
      %v699 = vsel %vm320, %v687, 0
      %v702 = vsel %vm320, %v688, 0
      %v705 = vand.u32 %v665, %v339
      %707 = vmatprep.subr.bf16.mxu0 0
      %708 = vmatpush1.bf16.msra.mxu0 0
      %709 = vmatprep.subr.bf16.mxu0 0
      %710 = vmatpush1.bf16.msra.mxu0 0
      %711 = vmatprep.subr.bf16.mxu0 0
      %712 = vmatpush1.bf16.msra.mxu0 0
      %713 = vmatprep.subr.bf16.mxu0 0
      %714 = vmatpush1.bf16.msra.mxu0 0
      %715 = vmatprep.subr.bf16.mxu0 0
      %716 = vmatpush1.bf16.msra.mxu0 0
      %717 = vmatprep.subr.bf16.mxu0 0
      %718 = vmatpush1.bf16.msra.mxu0 0
      %719 = vmatprep.subr.bf16.mxu0 0
      %720 = vmatpush1.bf16.msra.mxu0 0
      %721 = vmatprep.subr.bf16.mxu0 0
      %722 = vmatpush1.bf16.msra.mxu0 %v705
      %723 = vmatprep.subr.bf16.mxu0 0
      %724 = vmatpush2.bf16.msra.mxu0 0
      %725 = vmatprep.subr.bf16.mxu0 0
      %726 = vmatpush2.bf16.msra.mxu0 0
      %727 = vmatprep.subr.bf16.mxu0 0
      %728 = vmatpush2.bf16.msra.mxu0 0
      %729 = vmatprep.subr.bf16.mxu0 0
      %730 = vmatpush2.bf16.msra.mxu0 0
      %731 = vmatprep.subr.bf16.mxu0 0
      %732 = vmatpush2.bf16.msra.mxu0 0
      %733 = vmatprep.subr.bf16.mxu0 0
      %734 = vmatpush2.bf16.msra.mxu0 0
      %735 = vmatprep.subr.bf16.mxu0 0
      %736 = vmatpush2.bf16.msra.mxu0 0
      %737 = vmatprep.subr.bf16.mxu0 0
      %738 = vmatpush2.bf16.msra.mxu0 0
      %739 = vmatprep.mubr.bf16.mxu0 0
      %740 = vmatmul.mubr.bf16.gmra.mxu0 %v690
      %v741 = vpop.f32.mrf.mxu0
      %v742 = vadd.f32 0.0, %v741
      %v743 = vpop.f32.mrf.mxu0
      %v744 = vpop.f32.mrf.mxu0
      %v745 = vadd.f32 0.0, %v744
      %v746 = vpop.f32.mrf.mxu0
      %747 = vmatprep.mubr.bf16.mxu0 0
      %748 = vmatmul.mubr.bf16.gmra.mxu0 %v693
      %v749 = vpop.f32.mrf.mxu0
      %v750 = vadd.f32 0.0, %v749
      %v751 = vpop.f32.mrf.mxu0
      %v752 = vpop.f32.mrf.mxu0
      %v753 = vadd.f32 0.0, %v752
      %v754 = vpop.f32.mrf.mxu0
      %755 = vmatprep.mubr.bf16.mxu0 0
      %756 = vmatmul.mubr.bf16.gmra.mxu0 %v696
      %v757 = vpop.f32.mrf.mxu0
      %v758 = vadd.f32 0.0, %v757
      %v759 = vpop.f32.mrf.mxu0
      %v760 = vpop.f32.mrf.mxu0
      %v761 = vadd.f32 0.0, %v760
      %v762 = vpop.f32.mrf.mxu0
      %763 = vmatprep.mubr.bf16.mxu0 0
      %764 = vmatmul.mubr.bf16.gmra.mxu0 %v699
      %v765 = vpop.f32.mrf.mxu0
      %v766 = vadd.f32 0.0, %v765
      %v767 = vpop.f32.mrf.mxu0
      %v768 = vpop.f32.mrf.mxu0
      %v769 = vadd.f32 0.0, %v768
      %v770 = vpop.f32.mrf.mxu0
      %771 = vmatprep.mubr.bf16.mxu0 0
      %772 = vmatmul.mubr.bf16.gmra.mxu0 %v702
      %v773 = vpop.f32.mrf.mxu0
      %v774 = vadd.f32 0.0, %v773
      %v775 = vpop.f32.mrf.mxu0
      %v776 = vpop.f32.mrf.mxu0
      %v777 = vpop.f32.mrf.mxu0
      %778 = vdwg.mxu0
      %v779 = vadd.f32 %v655, %v742
      %v780 = vadd.f32 %v656, %v745
      %v781 = vadd.f32 %v657, %v750
      %v782 = vadd.f32 %v658, %v753
      %v783 = vadd.f32 %v659, %v758
      %v784 = vadd.f32 %v660, %v761
      %v785 = vadd.f32 %v661, %v766
      %v786 = vadd.f32 %v662, %v769
      %v787 = vadd.f32 %v663, %v774
      %s788 = scalar_lea.vmem %s228, 8
      %v789 = vld [vmem:[%s788] sm:$0x3]
      %v799 = vunpack.c.l.b16 %v273
      %v800 = vunpack.c.l.b16 %v274
      %v801 = vunpack.c.l.b16 %v275
      %v802 = vunpack.c.l.b16 %v276
      %v803 = vunpack.c.l.b16 %v277
      %v804 = vunpack.c.l.b16 %v278
      %v805 = vunpack.c.l.b16 %v279
      %v806 = vunpack.c.l.b16 %v280
      %v807 = vunpack.c.l.b16 %v281
      %v808 = vpack.c.b16 %v800, %v799
      %v809 = vpack.c.b16 %v802, %v801
      %v810 = vpack.c.b16 %v804, %v803
      %v811 = vpack.c.b16 %v806, %v805
      %v812 = vpack.c.b16 %v807, %v807
      %v814 = vsel %vm320, %v808, 0
      %v817 = vsel %vm320, %v809, 0
      %v820 = vsel %vm320, %v810, 0
      %v823 = vsel %vm320, %v811, 0
      %v826 = vsel %vm320, %v812, 0
      %v829 = vand.u32 %v789, %v339
      %831 = vmatprep.subr.bf16.mxu0 0
      %832 = vmatpush1.bf16.msra.mxu0 0
      %833 = vmatprep.subr.bf16.mxu0 0
      %834 = vmatpush1.bf16.msra.mxu0 0
      %835 = vmatprep.subr.bf16.mxu0 0
      %836 = vmatpush1.bf16.msra.mxu0 0
      %837 = vmatprep.subr.bf16.mxu0 0
      %838 = vmatpush1.bf16.msra.mxu0 0
      %839 = vmatprep.subr.bf16.mxu0 0
      %840 = vmatpush1.bf16.msra.mxu0 0
      %841 = vmatprep.subr.bf16.mxu0 0
      %842 = vmatpush1.bf16.msra.mxu0 0
      %843 = vmatprep.subr.bf16.mxu0 0
      %844 = vmatpush1.bf16.msra.mxu0 0
      %845 = vmatprep.subr.bf16.mxu0 0
      %846 = vmatpush1.bf16.msra.mxu0 %v829
      %847 = vmatprep.subr.bf16.mxu0 0
      %848 = vmatpush2.bf16.msra.mxu0 0
      %849 = vmatprep.subr.bf16.mxu0 0
      %850 = vmatpush2.bf16.msra.mxu0 0
      %851 = vmatprep.subr.bf16.mxu0 0
      %852 = vmatpush2.bf16.msra.mxu0 0
      %853 = vmatprep.subr.bf16.mxu0 0
      %854 = vmatpush2.bf16.msra.mxu0 0
      %855 = vmatprep.subr.bf16.mxu0 0
      %856 = vmatpush2.bf16.msra.mxu0 0
      %857 = vmatprep.subr.bf16.mxu0 0
      %858 = vmatpush2.bf16.msra.mxu0 0
      %859 = vmatprep.subr.bf16.mxu0 0
      %860 = vmatpush2.bf16.msra.mxu0 0
      %861 = vmatprep.subr.bf16.mxu0 0
      %862 = vmatpush2.bf16.msra.mxu0 0
      %863 = vmatprep.mubr.bf16.mxu0 0
      %864 = vmatmul.mubr.bf16.gmra.mxu0 %v814
      %v865 = vpop.f32.mrf.mxu0
      %v866 = vadd.f32 0.0, %v865
      %v867 = vpop.f32.mrf.mxu0
      %v868 = vpop.f32.mrf.mxu0
      %v869 = vadd.f32 0.0, %v868
      %v870 = vpop.f32.mrf.mxu0
      %871 = vmatprep.mubr.bf16.mxu0 0
      %872 = vmatmul.mubr.bf16.gmra.mxu0 %v817
      %v873 = vpop.f32.mrf.mxu0
      %v874 = vadd.f32 0.0, %v873
      %v875 = vpop.f32.mrf.mxu0
      %v876 = vpop.f32.mrf.mxu0
      %v877 = vadd.f32 0.0, %v876
      %v878 = vpop.f32.mrf.mxu0
      %879 = vmatprep.mubr.bf16.mxu0 0
      %880 = vmatmul.mubr.bf16.gmra.mxu0 %v820
      %v881 = vpop.f32.mrf.mxu0
      %v882 = vadd.f32 0.0, %v881
      %v883 = vpop.f32.mrf.mxu0
      %v884 = vpop.f32.mrf.mxu0
      %v885 = vadd.f32 0.0, %v884
      %v886 = vpop.f32.mrf.mxu0
      %887 = vmatprep.mubr.bf16.mxu0 0
      %888 = vmatmul.mubr.bf16.gmra.mxu0 %v823
      %v889 = vpop.f32.mrf.mxu0
      %v890 = vadd.f32 0.0, %v889
      %v891 = vpop.f32.mrf.mxu0
      %v892 = vpop.f32.mrf.mxu0
      %v893 = vadd.f32 0.0, %v892
      %v894 = vpop.f32.mrf.mxu0
      %895 = vmatprep.mubr.bf16.mxu0 0
      %896 = vmatmul.mubr.bf16.gmra.mxu0 %v826
      %v897 = vpop.f32.mrf.mxu0
      %v898 = vadd.f32 0.0, %v897
      %v899 = vpop.f32.mrf.mxu0
      %v900 = vpop.f32.mrf.mxu0
      %v901 = vpop.f32.mrf.mxu0
      %902 = vdwg.mxu0
      %v903 = vadd.f32 %v779, %v866
      %v904 = vadd.f32 %v780, %v869
      %v905 = vadd.f32 %v781, %v874
      %v906 = vadd.f32 %v782, %v877
      %v907 = vadd.f32 %v783, %v882
      %v908 = vadd.f32 %v784, %v885
      %v909 = vadd.f32 %v785, %v890
      %v910 = vadd.f32 %v786, %v893
      %v911 = vadd.f32 %v787, %v898
      %s912 = scalar_lea.vmem %s228, 10
      %v913 = vld [vmem:[%s912] sm:$0x3]
      %v914 = vshrl.u32 %v684, 16
      %v916 = vshll.u32 %v684, 16
      %v918 = vrot.slane %v916, 1
      %v919 = vor.u32 %v914, %v918
      %v920 = vshll.u32 %v685, 16
      %v922 = vrot.slane %v920, 1
      %v923 = vsel %vm530, %v919, %v922
      %v924 = vshrl.u32 %v685, 16
      %v926 = vor.u32 %v924, %v922
      %v927 = vshll.u32 %v686, 16
      %v929 = vrot.slane %v927, 1
      %v930 = vsel %vm530, %v926, %v929
      %v931 = vshrl.u32 %v686, 16
      %v933 = vor.u32 %v931, %v929
      %v934 = vshll.u32 %v687, 16
      %v936 = vrot.slane %v934, 1
      %v937 = vsel %vm530, %v933, %v936
      %v938 = vshrl.u32 %v687, 16
      %v940 = vor.u32 %v938, %v936
      %v941 = vshll.u32 %v688, 16
      %v943 = vrot.slane %v941, 1
      %v944 = vsel %vm530, %v940, %v943
      %v945 = vshrl.u32 %v688, 16
      %v947 = vor.u32 %v945, %v943
      %v949 = vsel %vm320, %v923, 0
      %v952 = vsel %vm320, %v930, 0
      %v955 = vsel %vm320, %v937, 0
      %v958 = vsel %vm320, %v944, 0
      %v961 = vsel %vm320, %v947, 0
      %v964 = vand.u32 %v913, %v339
      %966 = vmatprep.subr.bf16.mxu0 0
      %967 = vmatpush1.bf16.msra.mxu0 0
      %968 = vmatprep.subr.bf16.mxu0 0
      %969 = vmatpush1.bf16.msra.mxu0 0
      %970 = vmatprep.subr.bf16.mxu0 0
      %971 = vmatpush1.bf16.msra.mxu0 0
      %972 = vmatprep.subr.bf16.mxu0 0
      %973 = vmatpush1.bf16.msra.mxu0 0
      %974 = vmatprep.subr.bf16.mxu0 0
      %975 = vmatpush1.bf16.msra.mxu0 0
      %976 = vmatprep.subr.bf16.mxu0 0
      %977 = vmatpush1.bf16.msra.mxu0 0
      %978 = vmatprep.subr.bf16.mxu0 0
      %979 = vmatpush1.bf16.msra.mxu0 0
      %980 = vmatprep.subr.bf16.mxu0 0
      %981 = vmatpush1.bf16.msra.mxu0 %v964
      %982 = vmatprep.subr.bf16.mxu0 0
      %983 = vmatpush2.bf16.msra.mxu0 0
      %984 = vmatprep.subr.bf16.mxu0 0
      %985 = vmatpush2.bf16.msra.mxu0 0
      %986 = vmatprep.subr.bf16.mxu0 0
      %987 = vmatpush2.bf16.msra.mxu0 0
      %988 = vmatprep.subr.bf16.mxu0 0
      %989 = vmatpush2.bf16.msra.mxu0 0
      %990 = vmatprep.subr.bf16.mxu0 0
      %991 = vmatpush2.bf16.msra.mxu0 0
      %992 = vmatprep.subr.bf16.mxu0 0
      %993 = vmatpush2.bf16.msra.mxu0 0
      %994 = vmatprep.subr.bf16.mxu0 0
      %995 = vmatpush2.bf16.msra.mxu0 0
      %996 = vmatprep.subr.bf16.mxu0 0
      %997 = vmatpush2.bf16.msra.mxu0 0
      %998 = vmatprep.mubr.bf16.mxu0 0
      %999 = vmatmul.mubr.bf16.gmra.mxu0 %v949
      %v1000 = vpop.f32.mrf.mxu0
      %v1001 = vadd.f32 0.0, %v1000
      %v1002 = vpop.f32.mrf.mxu0
      %v1003 = vpop.f32.mrf.mxu0
      %v1004 = vadd.f32 0.0, %v1003
      %v1005 = vpop.f32.mrf.mxu0
      %1006 = vmatprep.mubr.bf16.mxu0 0
      %1007 = vmatmul.mubr.bf16.gmra.mxu0 %v952
      %v1008 = vpop.f32.mrf.mxu0
      %v1009 = vadd.f32 0.0, %v1008
      %v1010 = vpop.f32.mrf.mxu0
      %v1011 = vpop.f32.mrf.mxu0
      %v1012 = vadd.f32 0.0, %v1011
      %v1013 = vpop.f32.mrf.mxu0
      %1014 = vmatprep.mubr.bf16.mxu0 0
      %1015 = vmatmul.mubr.bf16.gmra.mxu0 %v955
      %v1016 = vpop.f32.mrf.mxu0
      %v1017 = vadd.f32 0.0, %v1016
      %v1018 = vpop.f32.mrf.mxu0
      %v1019 = vpop.f32.mrf.mxu0
      %v1020 = vadd.f32 0.0, %v1019
      %v1021 = vpop.f32.mrf.mxu0
      %1022 = vmatprep.mubr.bf16.mxu0 0
      %1023 = vmatmul.mubr.bf16.gmra.mxu0 %v958
      %v1024 = vpop.f32.mrf.mxu0
      %v1025 = vadd.f32 0.0, %v1024
      %v1026 = vpop.f32.mrf.mxu0
      %v1027 = vpop.f32.mrf.mxu0
      %v1028 = vadd.f32 0.0, %v1027
      %v1029 = vpop.f32.mrf.mxu0
      %1030 = vmatprep.mubr.bf16.mxu0 0
      %1031 = vmatmul.mubr.bf16.gmra.mxu0 %v961
      %v1032 = vpop.f32.mrf.mxu0
      %v1033 = vadd.f32 0.0, %v1032
      %v1034 = vpop.f32.mrf.mxu0
      %v1035 = vpop.f32.mrf.mxu0
      %v1036 = vpop.f32.mrf.mxu0
      %1037 = vdwg.mxu0
      %v1038 = vadd.f32 %v903, %v1001
      %v1039 = vadd.f32 %v904, %v1004
      %v1040 = vadd.f32 %v905, %v1009
      %v1041 = vadd.f32 %v906, %v1012
      %v1042 = vadd.f32 %v907, %v1017
      %v1043 = vadd.f32 %v908, %v1020
      %v1044 = vadd.f32 %v909, %v1025
      %v1045 = vadd.f32 %v910, %v1028
      %v1046 = vadd.f32 %v911, %v1033
      %s1047 = scalar_lea.vmem %s228, 12
      %v1048 = vld [vmem:[%s1047] sm:$0x3]
      %v1050 = vunpack.c.l.b16 %v282
      %v1051 = vpack.c.b16 %v426, %v425
      %v1052 = vpack.c.b16 %v428, %v427
      %v1053 = vpack.c.b16 %v430, %v429
      %v1054 = vpack.c.b16 %v432, %v431
      %v1055 = vpack.c.b16 %v1050, %v1050
      %v1057 = vshrl.u32 %v1051, 16
      %v1059 = vshll.u32 %v1051, 16
      %v1061 = vrot.slane %v1059, 1
      %v1062 = vor.u32 %v1057, %v1061
      %v1064 = vshll.u32 %v1052, 16
      %v1066 = vrot.slane %v1064, 1
      %v1067 = vsel %vm530, %v1062, %v1066
      %v1068 = vshrl.u32 %v1052, 16
      %v1070 = vor.u32 %v1068, %v1066
      %v1072 = vshll.u32 %v1053, 16
      %v1074 = vrot.slane %v1072, 1
      %v1075 = vsel %vm530, %v1070, %v1074
      %v1076 = vshrl.u32 %v1053, 16
      %v1078 = vor.u32 %v1076, %v1074
      %v1080 = vshll.u32 %v1054, 16
      %v1082 = vrot.slane %v1080, 1
      %v1083 = vsel %vm530, %v1078, %v1082
      %v1084 = vshrl.u32 %v1054, 16
      %v1086 = vor.u32 %v1084, %v1082
      %v1088 = vshll.u32 %v1055, 16
      %v1090 = vrot.slane %v1088, 1
      %v1091 = vsel %vm530, %v1086, %v1090
      %v1092 = vshrl.u32 %v1055, 16
      %v1094 = vor.u32 %v1092, %v1090
      %v1096 = vsel %vm320, %v1067, 0
      %v1099 = vsel %vm320, %v1075, 0
      %v1102 = vsel %vm320, %v1083, 0
      %v1105 = vsel %vm320, %v1091, 0
      %v1108 = vsel %vm320, %v1094, 0
      %v1111 = vand.u32 %v1048, %v339
      %1113 = vmatprep.subr.bf16.mxu0 0
      %1114 = vmatpush1.bf16.msra.mxu0 0
      %1115 = vmatprep.subr.bf16.mxu0 0
      %1116 = vmatpush1.bf16.msra.mxu0 0
      %1117 = vmatprep.subr.bf16.mxu0 0
      %1118 = vmatpush1.bf16.msra.mxu0 0
      %1119 = vmatprep.subr.bf16.mxu0 0
      %1120 = vmatpush1.bf16.msra.mxu0 0
      %1121 = vmatprep.subr.bf16.mxu0 0
      %1122 = vmatpush1.bf16.msra.mxu0 0
      %1123 = vmatprep.subr.bf16.mxu0 0
      %1124 = vmatpush1.bf16.msra.mxu0 0
      %1125 = vmatprep.subr.bf16.mxu0 0
      %1126 = vmatpush1.bf16.msra.mxu0 0
      %1127 = vmatprep.subr.bf16.mxu0 0
      %1128 = vmatpush1.bf16.msra.mxu0 %v1111
      %1129 = vmatprep.subr.bf16.mxu0 0
      %1130 = vmatpush2.bf16.msra.mxu0 0
      %1131 = vmatprep.subr.bf16.mxu0 0
      %1132 = vmatpush2.bf16.msra.mxu0 0
      %1133 = vmatprep.subr.bf16.mxu0 0
      %1134 = vmatpush2.bf16.msra.mxu0 0
      %1135 = vmatprep.subr.bf16.mxu0 0
      %1136 = vmatpush2.bf16.msra.mxu0 0
      %1137 = vmatprep.subr.bf16.mxu0 0
      %1138 = vmatpush2.bf16.msra.mxu0 0
      %1139 = vmatprep.subr.bf16.mxu0 0
      %1140 = vmatpush2.bf16.msra.mxu0 0
      %1141 = vmatprep.subr.bf16.mxu0 0
      %1142 = vmatpush2.bf16.msra.mxu0 0
      %1143 = vmatprep.subr.bf16.mxu0 0
      %1144 = vmatpush2.bf16.msra.mxu0 0
      %1145 = vmatprep.mubr.bf16.mxu0 0
      %1146 = vmatmul.mubr.bf16.gmra.mxu0 %v1096
      %v1147 = vpop.f32.mrf.mxu0
      %v1148 = vadd.f32 0.0, %v1147
      %v1149 = vpop.f32.mrf.mxu0
      %v1150 = vpop.f32.mrf.mxu0
      %v1151 = vadd.f32 0.0, %v1150
      %v1152 = vpop.f32.mrf.mxu0
      %1153 = vmatprep.mubr.bf16.mxu0 0
      %1154 = vmatmul.mubr.bf16.gmra.mxu0 %v1099
      %v1155 = vpop.f32.mrf.mxu0
      %v1156 = vadd.f32 0.0, %v1155
      %v1157 = vpop.f32.mrf.mxu0
      %v1158 = vpop.f32.mrf.mxu0
      %v1159 = vadd.f32 0.0, %v1158
      %v1160 = vpop.f32.mrf.mxu0
      %1161 = vmatprep.mubr.bf16.mxu0 0
      %1162 = vmatmul.mubr.bf16.gmra.mxu0 %v1102
      %v1163 = vpop.f32.mrf.mxu0
      %v1164 = vadd.f32 0.0, %v1163
      %v1165 = vpop.f32.mrf.mxu0
      %v1166 = vpop.f32.mrf.mxu0
      %v1167 = vadd.f32 0.0, %v1166
      %v1168 = vpop.f32.mrf.mxu0
      %1169 = vmatprep.mubr.bf16.mxu0 0
      %1170 = vmatmul.mubr.bf16.gmra.mxu0 %v1105
      %v1171 = vpop.f32.mrf.mxu0
      %v1172 = vadd.f32 0.0, %v1171
      %v1173 = vpop.f32.mrf.mxu0
      %v1174 = vpop.f32.mrf.mxu0
      %v1175 = vadd.f32 0.0, %v1174
      %v1176 = vpop.f32.mrf.mxu0
      %1177 = vmatprep.mubr.bf16.mxu0 0
      %1178 = vmatmul.mubr.bf16.gmra.mxu0 %v1108
      %v1179 = vpop.f32.mrf.mxu0
      %v1180 = vadd.f32 0.0, %v1179
      %v1181 = vpop.f32.mrf.mxu0
      %v1182 = vpop.f32.mrf.mxu0
      %v1183 = vpop.f32.mrf.mxu0
      %1184 = vdwg.mxu0
      %v1185 = vadd.f32 %v1038, %v1148
      %v1186 = vadd.f32 %v1039, %v1151
      %v1187 = vadd.f32 %v1040, %v1156
      %v1188 = vadd.f32 %v1041, %v1159
      %v1189 = vadd.f32 %v1042, %v1164
      %v1190 = vadd.f32 %v1043, %v1167
      %v1191 = vadd.f32 %v1044, %v1172
      %v1192 = vadd.f32 %v1045, %v1175
      %v1193 = vadd.f32 %v1046, %v1180
      %s1194 = scalar_lea.vmem %s228, 14
      %v1195 = vld [vmem:[%s1194] sm:$0x3]
      %v1197 = vunpack.c.l.b16 %v283
      %v1198 = vpack.c.b16 %v308, %v307
      %v1199 = vpack.c.b16 %v310, %v309
      %v1200 = vpack.c.b16 %v312, %v311
      %v1201 = vpack.c.b16 %v314, %v313
      %v1202 = vpack.c.b16 %v1197, %v1197
      %v1204 = vshrl.u32 %v1198, 16
      %v1206 = vshll.u32 %v1198, 16
      %v1208 = vrot.slane %v1206, 1
      %v1209 = vor.u32 %v1204, %v1208
      %v1211 = vshll.u32 %v1199, 16
      %v1213 = vrot.slane %v1211, 1
      %v1214 = vsel %vm530, %v1209, %v1213
      %v1215 = vshrl.u32 %v1199, 16
      %v1217 = vor.u32 %v1215, %v1213
      %v1219 = vshll.u32 %v1200, 16
      %v1221 = vrot.slane %v1219, 1
      %v1222 = vsel %vm530, %v1217, %v1221
      %v1223 = vshrl.u32 %v1200, 16
      %v1225 = vor.u32 %v1223, %v1221
      %v1227 = vshll.u32 %v1201, 16
      %v1229 = vrot.slane %v1227, 1
      %v1230 = vsel %vm530, %v1225, %v1229
      %v1231 = vshrl.u32 %v1201, 16
      %v1233 = vor.u32 %v1231, %v1229
      %v1235 = vshll.u32 %v1202, 16
      %v1237 = vrot.slane %v1235, 1
      %v1238 = vsel %vm530, %v1233, %v1237
      %v1239 = vshrl.u32 %v1202, 16
      %v1241 = vor.u32 %v1239, %v1237
      %v1243 = vsel %vm320, %v1214, 0
      %v1246 = vsel %vm320, %v1222, 0
      %v1249 = vsel %vm320, %v1230, 0
      %v1252 = vsel %vm320, %v1238, 0
      %v1255 = vsel %vm320, %v1241, 0
      %v1258 = vand.u32 %v1195, %v339
      %1260 = vmatprep.subr.bf16.mxu0 0
      %1261 = vmatpush1.bf16.msra.mxu0 0
      %1262 = vmatprep.subr.bf16.mxu0 0
      %1263 = vmatpush1.bf16.msra.mxu0 0
      %1264 = vmatprep.subr.bf16.mxu0 0
      %1265 = vmatpush1.bf16.msra.mxu0 0
      %1266 = vmatprep.subr.bf16.mxu0 0
      %1267 = vmatpush1.bf16.msra.mxu0 0
      %1268 = vmatprep.subr.bf16.mxu0 0
      %1269 = vmatpush1.bf16.msra.mxu0 0
      %1270 = vmatprep.subr.bf16.mxu0 0
      %1271 = vmatpush1.bf16.msra.mxu0 0
      %1272 = vmatprep.subr.bf16.mxu0 0
      %1273 = vmatpush1.bf16.msra.mxu0 0
      %1274 = vmatprep.subr.bf16.mxu0 0
      %1275 = vmatpush1.bf16.msra.mxu0 %v1258
      %1276 = vmatprep.subr.bf16.mxu0 0
      %1277 = vmatpush2.bf16.msra.mxu0 0
      %1278 = vmatprep.subr.bf16.mxu0 0
      %1279 = vmatpush2.bf16.msra.mxu0 0
      %1280 = vmatprep.subr.bf16.mxu0 0
      %1281 = vmatpush2.bf16.msra.mxu0 0
      %1282 = vmatprep.subr.bf16.mxu0 0
      %1283 = vmatpush2.bf16.msra.mxu0 0
      %1284 = vmatprep.subr.bf16.mxu0 0
      %1285 = vmatpush2.bf16.msra.mxu0 0
      %1286 = vmatprep.subr.bf16.mxu0 0
      %1287 = vmatpush2.bf16.msra.mxu0 0
      %1288 = vmatprep.subr.bf16.mxu0 0
      %1289 = vmatpush2.bf16.msra.mxu0 0
      %1290 = vmatprep.subr.bf16.mxu0 0
      %1291 = vmatpush2.bf16.msra.mxu0 0
      %1292 = vmatprep.mubr.bf16.mxu0 0
      %1293 = vmatmul.mubr.bf16.gmra.mxu0 %v1243
      %v1294 = vpop.f32.mrf.mxu0
      %v1295 = vadd.f32 0.0, %v1294
      %v1296 = vpop.f32.mrf.mxu0
      %v1297 = vpop.f32.mrf.mxu0
      %v1298 = vadd.f32 0.0, %v1297
      %v1299 = vpop.f32.mrf.mxu0
      %1300 = vmatprep.mubr.bf16.mxu0 0
      %1301 = vmatmul.mubr.bf16.gmra.mxu0 %v1246
      %v1302 = vpop.f32.mrf.mxu0
      %v1303 = vadd.f32 0.0, %v1302
      %v1304 = vpop.f32.mrf.mxu0
      %v1305 = vpop.f32.mrf.mxu0
      %v1306 = vadd.f32 0.0, %v1305
      %v1307 = vpop.f32.mrf.mxu0
      %1308 = vmatprep.mubr.bf16.mxu0 0
      %1309 = vmatmul.mubr.bf16.gmra.mxu0 %v1249
      %v1310 = vpop.f32.mrf.mxu0
      %v1311 = vadd.f32 0.0, %v1310
      %v1312 = vpop.f32.mrf.mxu0
      %v1313 = vpop.f32.mrf.mxu0
      %v1314 = vadd.f32 0.0, %v1313
      %v1315 = vpop.f32.mrf.mxu0
      %1316 = vmatprep.mubr.bf16.mxu0 0
      %1317 = vmatmul.mubr.bf16.gmra.mxu0 %v1252
      %v1318 = vpop.f32.mrf.mxu0
      %v1319 = vadd.f32 0.0, %v1318
      %v1320 = vpop.f32.mrf.mxu0
      %v1321 = vpop.f32.mrf.mxu0
      %v1322 = vadd.f32 0.0, %v1321
      %v1323 = vpop.f32.mrf.mxu0
      %1324 = vmatprep.mubr.bf16.mxu0 0
      %1325 = vmatmul.mubr.bf16.gmra.mxu0 %v1255
      %v1326 = vpop.f32.mrf.mxu0
      %v1327 = vadd.f32 0.0, %v1326
      %v1328 = vpop.f32.mrf.mxu0
      %v1329 = vpop.f32.mrf.mxu0
      %v1330 = vpop.f32.mrf.mxu0
      %1331 = vdwg.mxu0
      %v1332 = vadd.f32 %v1185, %v1295
      %v1333 = vadd.f32 %v1186, %v1298
      %v1334 = vadd.f32 %v1187, %v1303
      %v1335 = vadd.f32 %v1188, %v1306
      %v1336 = vadd.f32 %v1189, %v1311
      %v1337 = vadd.f32 %v1190, %v1314
      %v1338 = vadd.f32 %v1191, %v1319
      %v1339 = vadd.f32 %v1192, %v1322
      %v1340 = vadd.f32 %v1193, %v1327
      %s1341 = scalar_lea.vmem %s228, 16
      %v1342 = vld [vmem:[%s1341] sm:$0x3]
      %v1345 = vunpack.c.l.b16 %v284
      %v1346 = vunpack.c.l.b16 %v285
      %v1347 = vpack.c.b16 %v426, %v1345
      %v1348 = vpack.c.b16 %v1346, %v1050
      %vm1349 = vcmask 1046528
      %v1350 = vrot.slane %v1347, 1
      %v1351 = vrot.slane %v1052, 1
      %v1352 = vsel %vm1349, %v1350, %v1351
      %v1353 = vrot.slane %v1053, 1
      %v1354 = vsel %vm1349, %v1351, %v1353
      %v1355 = vrot.slane %v1054, 1
      %v1356 = vsel %vm1349, %v1353, %v1355
      %v1357 = vrot.slane %v1348, 1
      %v1358 = vsel %vm1349, %v1355, %v1357
      %v1360 = vsel %vm320, %v1352, 0
      %v1363 = vsel %vm320, %v1354, 0
      %v1366 = vsel %vm320, %v1356, 0
      %v1369 = vsel %vm320, %v1358, 0
      %v1372 = vsel %vm320, %v1357, 0
      %v1375 = vand.u32 %v1342, %v339
      %1377 = vmatprep.subr.bf16.mxu0 0
      %1378 = vmatpush1.bf16.msra.mxu0 0
      %1379 = vmatprep.subr.bf16.mxu0 0
      %1380 = vmatpush1.bf16.msra.mxu0 0
      %1381 = vmatprep.subr.bf16.mxu0 0
      %1382 = vmatpush1.bf16.msra.mxu0 0
      %1383 = vmatprep.subr.bf16.mxu0 0
      %1384 = vmatpush1.bf16.msra.mxu0 0
      %1385 = vmatprep.subr.bf16.mxu0 0
      %1386 = vmatpush1.bf16.msra.mxu0 0
      %1387 = vmatprep.subr.bf16.mxu0 0
      %1388 = vmatpush1.bf16.msra.mxu0 0
      %1389 = vmatprep.subr.bf16.mxu0 0
      %1390 = vmatpush1.bf16.msra.mxu0 0
      %1391 = vmatprep.subr.bf16.mxu0 0
      %1392 = vmatpush1.bf16.msra.mxu0 %v1375
      %1393 = vmatprep.subr.bf16.mxu0 0
      %1394 = vmatpush2.bf16.msra.mxu0 0
      %1395 = vmatprep.subr.bf16.mxu0 0
      %1396 = vmatpush2.bf16.msra.mxu0 0
      %1397 = vmatprep.subr.bf16.mxu0 0
      %1398 = vmatpush2.bf16.msra.mxu0 0
      %1399 = vmatprep.subr.bf16.mxu0 0
      %1400 = vmatpush2.bf16.msra.mxu0 0
      %1401 = vmatprep.subr.bf16.mxu0 0
      %1402 = vmatpush2.bf16.msra.mxu0 0
      %1403 = vmatprep.subr.bf16.mxu0 0
      %1404 = vmatpush2.bf16.msra.mxu0 0
      %1405 = vmatprep.subr.bf16.mxu0 0
      %1406 = vmatpush2.bf16.msra.mxu0 0
      %1407 = vmatprep.subr.bf16.mxu0 0
      %1408 = vmatpush2.bf16.msra.mxu0 0
      %1409 = vmatprep.mubr.bf16.mxu0 0
      %1410 = vmatmul.mubr.bf16.gmra.mxu0 %v1360
      %v1411 = vpop.f32.mrf.mxu0
      %v1412 = vadd.f32 0.0, %v1411
      %v1413 = vpop.f32.mrf.mxu0
      %v1414 = vpop.f32.mrf.mxu0
      %v1415 = vadd.f32 0.0, %v1414
      %v1416 = vpop.f32.mrf.mxu0
      %1417 = vmatprep.mubr.bf16.mxu0 0
      %1418 = vmatmul.mubr.bf16.gmra.mxu0 %v1363
      %v1419 = vpop.f32.mrf.mxu0
      %v1420 = vadd.f32 0.0, %v1419
      %v1421 = vpop.f32.mrf.mxu0
      %v1422 = vpop.f32.mrf.mxu0
      %v1423 = vadd.f32 0.0, %v1422
      %v1424 = vpop.f32.mrf.mxu0
      %1425 = vmatprep.mubr.bf16.mxu0 0
      %1426 = vmatmul.mubr.bf16.gmra.mxu0 %v1366
      %v1427 = vpop.f32.mrf.mxu0
      %v1428 = vadd.f32 0.0, %v1427
      %v1429 = vpop.f32.mrf.mxu0
      %v1430 = vpop.f32.mrf.mxu0
      %v1431 = vadd.f32 0.0, %v1430
      %v1432 = vpop.f32.mrf.mxu0
      %1433 = vmatprep.mubr.bf16.mxu0 0
      %1434 = vmatmul.mubr.bf16.gmra.mxu0 %v1369
      %v1435 = vpop.f32.mrf.mxu0
      %v1436 = vadd.f32 0.0, %v1435
      %v1437 = vpop.f32.mrf.mxu0
      %v1438 = vpop.f32.mrf.mxu0
      %v1439 = vadd.f32 0.0, %v1438
      %v1440 = vpop.f32.mrf.mxu0
      %1441 = vmatprep.mubr.bf16.mxu0 0
      %1442 = vmatmul.mubr.bf16.gmra.mxu0 %v1372
      %v1443 = vpop.f32.mrf.mxu0
      %v1444 = vadd.f32 0.0, %v1443
      %v1445 = vpop.f32.mrf.mxu0
      %v1446 = vpop.f32.mrf.mxu0
      %v1447 = vpop.f32.mrf.mxu0
      %1448 = vdwg.mxu0
      %v1449 = vadd.f32 %v1332, %v1412
      %v1450 = vadd.f32 %v1333, %v1415
      %v1451 = vadd.f32 %v1334, %v1420
      %v1452 = vadd.f32 %v1335, %v1423
      %v1453 = vadd.f32 %v1336, %v1428
      %v1454 = vadd.f32 %v1337, %v1431
      %v1455 = vadd.f32 %v1338, %v1436
      %v1456 = vadd.f32 %v1339, %v1439
      %v1457 = vadd.f32 %v1340, %v1444
      %v1459 = vlaneseq
      %v1460 = vshrl.u32 %v1459, 7
      %v1461 = vsub.s32 0, %v1460
      %v1462 = vrot.slane %v242, %v1461
      %v1464 = vadd.f32 %v1449, %v1462
      %v1465 = vadd.f32 %v1450, %v1462
      %v1466 = vadd.f32 %v1451, %v1462
      %v1467 = vadd.f32 %v1452, %v1462
      %v1468 = vadd.f32 %v1453, %v1462
      %v1469 = vadd.f32 %v1454, %v1462
      %v1470 = vadd.f32 %v1455, %v1462
      %v1471 = vadd.f32 %v1456, %v1462
      %v1472 = vadd.f32 %v1457, %v1462
      %v1473 = vmax.f32 %v1464, 0.0
      %v1474 = vmax.f32 %v1465, 0.0
      %v1475 = vmax.f32 %v1466, 0.0
      %v1476 = vmax.f32 %v1467, 0.0
      %v1477 = vmax.f32 %v1468, 0.0
      %v1478 = vmax.f32 %v1469, 0.0
      %v1479 = vmax.f32 %v1470, 0.0
      %v1480 = vmax.f32 %v1471, 0.0
      %v1481 = vmax.f32 %v1472, 0.0
      %1482 = vmatprep.subr.bf16.mxu0 0
      %1483 = vmatpush1.bf16.msra.mxu0 0
      %1484 = vmatprep.subr.bf16.mxu0 0
      %1485 = vmatpush1.bf16.msra.mxu0 0
      %1486 = vmatprep.subr.bf16.mxu0 0
      %1487 = vmatpush1.bf16.msra.mxu0 0
      %1488 = vmatprep.subr.bf16.mxu0 0
      %1489 = vmatpush1.bf16.msra.mxu0 0
      %1490 = vmatprep.subr.bf16.mxu0 0
      %1491 = vmatpush1.bf16.msra.mxu0 0
      %1492 = vmatprep.subr.bf16.mxu0 0
      %1493 = vmatpush1.bf16.msra.mxu0 0
      %1494 = vmatprep.subr.bf16.mxu0 0
      %1495 = vmatpush1.bf16.msra.mxu0 0
      %1496 = vmatprep.subr.bf16.mxu0 0
      %1497 = vmatpush1.bf16.msra.mxu0 %v341
      %1498 = vmatprep.subr.bf16.mxu0 0
      %1499 = vmatpush2.bf16.msra.mxu0 0
      %1500 = vmatprep.subr.bf16.mxu0 0
      %1501 = vmatpush2.bf16.msra.mxu0 0
      %1502 = vmatprep.subr.bf16.mxu0 0
      %1503 = vmatpush2.bf16.msra.mxu0 0
      %1504 = vmatprep.subr.bf16.mxu0 0
      %1505 = vmatpush2.bf16.msra.mxu0 0
      %1506 = vmatprep.subr.bf16.mxu0 0
      %1507 = vmatpush2.bf16.msra.mxu0 0
      %1508 = vmatprep.subr.bf16.mxu0 0
      %1509 = vmatpush2.bf16.msra.mxu0 0
      %1510 = vmatprep.subr.bf16.mxu0 0
      %1511 = vmatpush2.bf16.msra.mxu0 0
      %1512 = vmatprep.subr.bf16.mxu0 0
      %1513 = vmatpush2.bf16.msra.mxu0 0
      %1514 = vmatprep.mubr.bf16.mxu0 0
      %1515 = vmatmul.mubr.bf16.gmra.mxu0 %v566
      %v1516 = vpop.f32.mrf.mxu0
      %v1517 = vadd.f32 0.0, %v1516
      %v1518 = vpop.f32.mrf.mxu0
      %v1519 = vpop.f32.mrf.mxu0
      %v1520 = vadd.f32 0.0, %v1519
      %v1521 = vpop.f32.mrf.mxu0
      %1522 = vmatprep.mubr.bf16.mxu0 0
      %1523 = vmatmul.mubr.bf16.gmra.mxu0 %v569
      %v1524 = vpop.f32.mrf.mxu0
      %v1525 = vadd.f32 0.0, %v1524
      %v1526 = vpop.f32.mrf.mxu0
      %v1527 = vpop.f32.mrf.mxu0
      %v1528 = vadd.f32 0.0, %v1527
      %v1529 = vpop.f32.mrf.mxu0
      %1530 = vmatprep.mubr.bf16.mxu0 0
      %1531 = vmatmul.mubr.bf16.gmra.mxu0 %v572
      %v1532 = vpop.f32.mrf.mxu0
      %v1533 = vadd.f32 0.0, %v1532
      %v1534 = vpop.f32.mrf.mxu0
      %v1535 = vpop.f32.mrf.mxu0
      %v1536 = vadd.f32 0.0, %v1535
      %v1537 = vpop.f32.mrf.mxu0
      %1538 = vmatprep.mubr.bf16.mxu0 0
      %1539 = vmatmul.mubr.bf16.gmra.mxu0 %v575
      %v1540 = vpop.f32.mrf.mxu0
      %v1541 = vadd.f32 0.0, %v1540
      %v1542 = vpop.f32.mrf.mxu0
      %v1543 = vpop.f32.mrf.mxu0
      %v1544 = vadd.f32 0.0, %v1543
      %v1545 = vpop.f32.mrf.mxu0
      %1546 = vmatprep.mubr.bf16.mxu0 0
      %1547 = vmatmul.mubr.bf16.gmra.mxu0 %v578
      %v1548 = vpop.f32.mrf.mxu0
      %v1549 = vadd.f32 0.0, %v1548
      %v1550 = vpop.f32.mrf.mxu0
      %v1551 = vpop.f32.mrf.mxu0
      %v1552 = vpop.f32.mrf.mxu0
      %1553 = vdwg.mxu0
      %1554 = vmatprep.subr.bf16.mxu0 0
      %1555 = vmatpush1.bf16.msra.mxu0 0
      %1556 = vmatprep.subr.bf16.mxu0 0
      %1557 = vmatpush1.bf16.msra.mxu0 0
      %1558 = vmatprep.subr.bf16.mxu0 0
      %1559 = vmatpush1.bf16.msra.mxu0 0
      %1560 = vmatprep.subr.bf16.mxu0 0
      %1561 = vmatpush1.bf16.msra.mxu0 0
      %1562 = vmatprep.subr.bf16.mxu0 0
      %1563 = vmatpush1.bf16.msra.mxu0 0
      %1564 = vmatprep.subr.bf16.mxu0 0
      %1565 = vmatpush1.bf16.msra.mxu0 0
      %1566 = vmatprep.subr.bf16.mxu0 0
      %1567 = vmatpush1.bf16.msra.mxu0 0
      %1568 = vmatprep.subr.bf16.mxu0 0
      %1569 = vmatpush1.bf16.msra.mxu0 %v454
      %1570 = vmatprep.subr.bf16.mxu0 0
      %1571 = vmatpush2.bf16.msra.mxu0 0
      %1572 = vmatprep.subr.bf16.mxu0 0
      %1573 = vmatpush2.bf16.msra.mxu0 0
      %1574 = vmatprep.subr.bf16.mxu0 0
      %1575 = vmatpush2.bf16.msra.mxu0 0
      %1576 = vmatprep.subr.bf16.mxu0 0
      %1577 = vmatpush2.bf16.msra.mxu0 0
      %1578 = vmatprep.subr.bf16.mxu0 0
      %1579 = vmatpush2.bf16.msra.mxu0 0
      %1580 = vmatprep.subr.bf16.mxu0 0
      %1581 = vmatpush2.bf16.msra.mxu0 0
      %1582 = vmatprep.subr.bf16.mxu0 0
      %1583 = vmatpush2.bf16.msra.mxu0 0
      %1584 = vmatprep.subr.bf16.mxu0 0
      %1585 = vmatpush2.bf16.msra.mxu0 0
      %1586 = vmatprep.mubr.bf16.mxu0 0
      %1587 = vmatmul.mubr.bf16.gmra.mxu0 %v322
      %v1588 = vpop.f32.mrf.mxu0
      %v1589 = vadd.f32 %v1517, %v1588
      %v1590 = vpop.f32.mrf.mxu0
      %v1591 = vpop.f32.mrf.mxu0
      %v1592 = vadd.f32 %v1520, %v1591
      %v1593 = vpop.f32.mrf.mxu0
      %1594 = vmatprep.mubr.bf16.mxu0 0
      %1595 = vmatmul.mubr.bf16.gmra.mxu0 %v325
      %v1596 = vpop.f32.mrf.mxu0
      %v1597 = vadd.f32 %v1525, %v1596
      %v1598 = vpop.f32.mrf.mxu0
      %v1599 = vpop.f32.mrf.mxu0
      %v1600 = vadd.f32 %v1528, %v1599
      %v1601 = vpop.f32.mrf.mxu0
      %1602 = vmatprep.mubr.bf16.mxu0 0
      %1603 = vmatmul.mubr.bf16.gmra.mxu0 %v328
      %v1604 = vpop.f32.mrf.mxu0
      %v1605 = vadd.f32 %v1533, %v1604
      %v1606 = vpop.f32.mrf.mxu0
      %v1607 = vpop.f32.mrf.mxu0
      %v1608 = vadd.f32 %v1536, %v1607
      %v1609 = vpop.f32.mrf.mxu0
      %1610 = vmatprep.mubr.bf16.mxu0 0
      %1611 = vmatmul.mubr.bf16.gmra.mxu0 %v331
      %v1612 = vpop.f32.mrf.mxu0
      %v1613 = vadd.f32 %v1541, %v1612
      %v1614 = vpop.f32.mrf.mxu0
      %v1615 = vpop.f32.mrf.mxu0
      %v1616 = vadd.f32 %v1544, %v1615
      %v1617 = vpop.f32.mrf.mxu0
      %1618 = vmatprep.mubr.bf16.mxu0 0
      %1619 = vmatmul.mubr.bf16.gmra.mxu0 %v334
      %v1620 = vpop.f32.mrf.mxu0
      %v1621 = vadd.f32 %v1549, %v1620
      %v1622 = vpop.f32.mrf.mxu0
      %v1623 = vpop.f32.mrf.mxu0
      %v1624 = vpop.f32.mrf.mxu0
      %1625 = vdwg.mxu0
      %v1626 = vshrl.u32 %v315, 16
      %v1628 = vshll.u32 %v315, 16
      %v1630 = vrot.slane %v1628, 1
      %v1631 = vor.u32 %v1626, %v1630
      %v1632 = vshll.u32 %v316, 16
      %v1634 = vrot.slane %v1632, 1
      %v1635 = vsel %vm530, %v1631, %v1634
      %v1636 = vshrl.u32 %v316, 16
      %v1638 = vor.u32 %v1636, %v1634
      %v1639 = vshll.u32 %v317, 16
      %v1641 = vrot.slane %v1639, 1
      %v1642 = vsel %vm530, %v1638, %v1641
      %v1643 = vshrl.u32 %v317, 16
      %v1645 = vor.u32 %v1643, %v1641
      %v1646 = vshll.u32 %v318, 16
      %v1648 = vrot.slane %v1646, 1
      %v1649 = vsel %vm530, %v1645, %v1648
      %v1650 = vshrl.u32 %v318, 16
      %v1652 = vor.u32 %v1650, %v1648
      %v1653 = vshll.u32 %v319, 16
      %v1655 = vrot.slane %v1653, 1
      %v1656 = vsel %vm530, %v1652, %v1655
      %v1657 = vshrl.u32 %v319, 16
      %v1659 = vor.u32 %v1657, %v1655
      %v1661 = vsel %vm320, %v1635, 0
      %v1664 = vsel %vm320, %v1642, 0
      %v1667 = vsel %vm320, %v1649, 0
      %v1670 = vsel %vm320, %v1656, 0
      %v1673 = vsel %vm320, %v1659, 0
      %1675 = vmatprep.subr.bf16.mxu0 0
      %1676 = vmatpush1.bf16.msra.mxu0 0
      %1677 = vmatprep.subr.bf16.mxu0 0
      %1678 = vmatpush1.bf16.msra.mxu0 0
      %1679 = vmatprep.subr.bf16.mxu0 0
      %1680 = vmatpush1.bf16.msra.mxu0 0
      %1681 = vmatprep.subr.bf16.mxu0 0
      %1682 = vmatpush1.bf16.msra.mxu0 0
      %1683 = vmatprep.subr.bf16.mxu0 0
      %1684 = vmatpush1.bf16.msra.mxu0 0
      %1685 = vmatprep.subr.bf16.mxu0 0
      %1686 = vmatpush1.bf16.msra.mxu0 0
      %1687 = vmatprep.subr.bf16.mxu0 0
      %1688 = vmatpush1.bf16.msra.mxu0 0
      %1689 = vmatprep.subr.bf16.mxu0 0
      %1690 = vmatpush1.bf16.msra.mxu0 %v581
      %1691 = vmatprep.subr.bf16.mxu0 0
      %1692 = vmatpush2.bf16.msra.mxu0 0
      %1693 = vmatprep.subr.bf16.mxu0 0
      %1694 = vmatpush2.bf16.msra.mxu0 0
      %1695 = vmatprep.subr.bf16.mxu0 0
      %1696 = vmatpush2.bf16.msra.mxu0 0
      %1697 = vmatprep.subr.bf16.mxu0 0
      %1698 = vmatpush2.bf16.msra.mxu0 0
      %1699 = vmatprep.subr.bf16.mxu0 0
      %1700 = vmatpush2.bf16.msra.mxu0 0
      %1701 = vmatprep.subr.bf16.mxu0 0
      %1702 = vmatpush2.bf16.msra.mxu0 0
      %1703 = vmatprep.subr.bf16.mxu0 0
      %1704 = vmatpush2.bf16.msra.mxu0 0
      %1705 = vmatprep.subr.bf16.mxu0 0
      %1706 = vmatpush2.bf16.msra.mxu0 0
      %1707 = vmatprep.mubr.bf16.mxu0 0
      %1708 = vmatmul.mubr.bf16.gmra.mxu0 %v1661
      %v1709 = vpop.f32.mrf.mxu0
      %v1710 = vadd.f32 0.0, %v1709
      %v1711 = vpop.f32.mrf.mxu0
      %v1712 = vpop.f32.mrf.mxu0
      %v1713 = vadd.f32 0.0, %v1712
      %v1714 = vpop.f32.mrf.mxu0
      %1715 = vmatprep.mubr.bf16.mxu0 0
      %1716 = vmatmul.mubr.bf16.gmra.mxu0 %v1664
      %v1717 = vpop.f32.mrf.mxu0
      %v1718 = vadd.f32 0.0, %v1717
      %v1719 = vpop.f32.mrf.mxu0
      %v1720 = vpop.f32.mrf.mxu0
      %v1721 = vadd.f32 0.0, %v1720
      %v1722 = vpop.f32.mrf.mxu0
      %1723 = vmatprep.mubr.bf16.mxu0 0
      %1724 = vmatmul.mubr.bf16.gmra.mxu0 %v1667
      %v1725 = vpop.f32.mrf.mxu0
      %v1726 = vadd.f32 0.0, %v1725
      %v1727 = vpop.f32.mrf.mxu0
      %v1728 = vpop.f32.mrf.mxu0
      %v1729 = vadd.f32 0.0, %v1728
      %v1730 = vpop.f32.mrf.mxu0
      %1731 = vmatprep.mubr.bf16.mxu0 0
      %1732 = vmatmul.mubr.bf16.gmra.mxu0 %v1670
      %v1733 = vpop.f32.mrf.mxu0
      %v1734 = vadd.f32 0.0, %v1733
      %v1735 = vpop.f32.mrf.mxu0
      %v1736 = vpop.f32.mrf.mxu0
      %v1737 = vadd.f32 0.0, %v1736
      %v1738 = vpop.f32.mrf.mxu0
      %1739 = vmatprep.mubr.bf16.mxu0 0
      %1740 = vmatmul.mubr.bf16.gmra.mxu0 %v1673
      %v1741 = vpop.f32.mrf.mxu0
      %v1742 = vadd.f32 0.0, %v1741
      %v1743 = vpop.f32.mrf.mxu0
      %v1744 = vpop.f32.mrf.mxu0
      %v1745 = vpop.f32.mrf.mxu0
      %1746 = vdwg.mxu0
      %v1747 = vadd.f32 %v1589, %v1710
      %v1748 = vadd.f32 %v1592, %v1713
      %v1749 = vadd.f32 %v1597, %v1718
      %v1750 = vadd.f32 %v1600, %v1721
      %v1751 = vadd.f32 %v1605, %v1726
      %v1752 = vadd.f32 %v1608, %v1729
      %v1753 = vadd.f32 %v1613, %v1734
      %v1754 = vadd.f32 %v1616, %v1737
      %v1755 = vadd.f32 %v1621, %v1742
      %1756 = vmatprep.subr.bf16.mxu0 0
      %1757 = vmatpush1.bf16.msra.mxu0 0
      %1758 = vmatprep.subr.bf16.mxu0 0
      %1759 = vmatpush1.bf16.msra.mxu0 0
      %1760 = vmatprep.subr.bf16.mxu0 0
      %1761 = vmatpush1.bf16.msra.mxu0 0
      %1762 = vmatprep.subr.bf16.mxu0 0
      %1763 = vmatpush1.bf16.msra.mxu0 0
      %1764 = vmatprep.subr.bf16.mxu0 0
      %1765 = vmatpush1.bf16.msra.mxu0 0
      %1766 = vmatprep.subr.bf16.mxu0 0
      %1767 = vmatpush1.bf16.msra.mxu0 0
      %1768 = vmatprep.subr.bf16.mxu0 0
      %1769 = vmatpush1.bf16.msra.mxu0 0
      %1770 = vmatprep.subr.bf16.mxu0 0
      %1771 = vmatpush1.bf16.msra.mxu0 %v705
      %1772 = vmatprep.subr.bf16.mxu0 0
      %1773 = vmatpush2.bf16.msra.mxu0 0
      %1774 = vmatprep.subr.bf16.mxu0 0
      %1775 = vmatpush2.bf16.msra.mxu0 0
      %1776 = vmatprep.subr.bf16.mxu0 0
      %1777 = vmatpush2.bf16.msra.mxu0 0
      %1778 = vmatprep.subr.bf16.mxu0 0
      %1779 = vmatpush2.bf16.msra.mxu0 0
      %1780 = vmatprep.subr.bf16.mxu0 0
      %1781 = vmatpush2.bf16.msra.mxu0 0
      %1782 = vmatprep.subr.bf16.mxu0 0
      %1783 = vmatpush2.bf16.msra.mxu0 0
      %1784 = vmatprep.subr.bf16.mxu0 0
      %1785 = vmatpush2.bf16.msra.mxu0 0
      %1786 = vmatprep.subr.bf16.mxu0 0
      %1787 = vmatpush2.bf16.msra.mxu0 0
      %1788 = vmatprep.mubr.bf16.mxu0 0
      %1789 = vmatmul.mubr.bf16.gmra.mxu0 %v814
      %v1790 = vpop.f32.mrf.mxu0
      %v1791 = vadd.f32 0.0, %v1790
      %v1792 = vpop.f32.mrf.mxu0
      %v1793 = vpop.f32.mrf.mxu0
      %v1794 = vadd.f32 0.0, %v1793
      %v1795 = vpop.f32.mrf.mxu0
      %1796 = vmatprep.mubr.bf16.mxu0 0
      %1797 = vmatmul.mubr.bf16.gmra.mxu0 %v817
      %v1798 = vpop.f32.mrf.mxu0
      %v1799 = vadd.f32 0.0, %v1798
      %v1800 = vpop.f32.mrf.mxu0
      %v1801 = vpop.f32.mrf.mxu0
      %v1802 = vadd.f32 0.0, %v1801
      %v1803 = vpop.f32.mrf.mxu0
      %1804 = vmatprep.mubr.bf16.mxu0 0
      %1805 = vmatmul.mubr.bf16.gmra.mxu0 %v820
      %v1806 = vpop.f32.mrf.mxu0
      %v1807 = vadd.f32 0.0, %v1806
      %v1808 = vpop.f32.mrf.mxu0
      %v1809 = vpop.f32.mrf.mxu0
      %v1810 = vadd.f32 0.0, %v1809
      %v1811 = vpop.f32.mrf.mxu0
      %1812 = vmatprep.mubr.bf16.mxu0 0
      %1813 = vmatmul.mubr.bf16.gmra.mxu0 %v823
      %v1814 = vpop.f32.mrf.mxu0
      %v1815 = vadd.f32 0.0, %v1814
      %v1816 = vpop.f32.mrf.mxu0
      %v1817 = vpop.f32.mrf.mxu0
      %v1818 = vadd.f32 0.0, %v1817
      %v1819 = vpop.f32.mrf.mxu0
      %1820 = vmatprep.mubr.bf16.mxu0 0
      %1821 = vmatmul.mubr.bf16.gmra.mxu0 %v826
      %v1822 = vpop.f32.mrf.mxu0
      %v1823 = vadd.f32 0.0, %v1822
      %v1824 = vpop.f32.mrf.mxu0
      %v1825 = vpop.f32.mrf.mxu0
      %v1826 = vpop.f32.mrf.mxu0
      %1827 = vdwg.mxu0
      %v1828 = vadd.f32 %v1747, %v1791
      %v1829 = vadd.f32 %v1748, %v1794
      %v1830 = vadd.f32 %v1749, %v1799
      %v1831 = vadd.f32 %v1750, %v1802
      %v1832 = vadd.f32 %v1751, %v1807
      %v1833 = vadd.f32 %v1752, %v1810
      %v1834 = vadd.f32 %v1753, %v1815
      %v1835 = vadd.f32 %v1754, %v1818
      %v1836 = vadd.f32 %v1755, %v1823
      %1837 = vmatprep.subr.bf16.mxu0 0
      %1838 = vmatpush1.bf16.msra.mxu0 0
      %1839 = vmatprep.subr.bf16.mxu0 0
      %1840 = vmatpush1.bf16.msra.mxu0 0
      %1841 = vmatprep.subr.bf16.mxu0 0
      %1842 = vmatpush1.bf16.msra.mxu0 0
      %1843 = vmatprep.subr.bf16.mxu0 0
      %1844 = vmatpush1.bf16.msra.mxu0 0
      %1845 = vmatprep.subr.bf16.mxu0 0
      %1846 = vmatpush1.bf16.msra.mxu0 0
      %1847 = vmatprep.subr.bf16.mxu0 0
      %1848 = vmatpush1.bf16.msra.mxu0 0
      %1849 = vmatprep.subr.bf16.mxu0 0
      %1850 = vmatpush1.bf16.msra.mxu0 0
      %1851 = vmatprep.subr.bf16.mxu0 0
      %1852 = vmatpush1.bf16.msra.mxu0 %v829
      %1853 = vmatprep.subr.bf16.mxu0 0
      %1854 = vmatpush2.bf16.msra.mxu0 0
      %1855 = vmatprep.subr.bf16.mxu0 0
      %1856 = vmatpush2.bf16.msra.mxu0 0
      %1857 = vmatprep.subr.bf16.mxu0 0
      %1858 = vmatpush2.bf16.msra.mxu0 0
      %1859 = vmatprep.subr.bf16.mxu0 0
      %1860 = vmatpush2.bf16.msra.mxu0 0
      %1861 = vmatprep.subr.bf16.mxu0 0
      %1862 = vmatpush2.bf16.msra.mxu0 0
      %1863 = vmatprep.subr.bf16.mxu0 0
      %1864 = vmatpush2.bf16.msra.mxu0 0
      %1865 = vmatprep.subr.bf16.mxu0 0
      %1866 = vmatpush2.bf16.msra.mxu0 0
      %1867 = vmatprep.subr.bf16.mxu0 0
      %1868 = vmatpush2.bf16.msra.mxu0 0
      %1869 = vmatprep.mubr.bf16.mxu0 0
      %1870 = vmatmul.mubr.bf16.gmra.mxu0 %v949
      %v1871 = vpop.f32.mrf.mxu0
      %v1872 = vadd.f32 0.0, %v1871
      %v1873 = vpop.f32.mrf.mxu0
      %v1874 = vpop.f32.mrf.mxu0
      %v1875 = vadd.f32 0.0, %v1874
      %v1876 = vpop.f32.mrf.mxu0
      %1877 = vmatprep.mubr.bf16.mxu0 0
      %1878 = vmatmul.mubr.bf16.gmra.mxu0 %v952
      %v1879 = vpop.f32.mrf.mxu0
      %v1880 = vadd.f32 0.0, %v1879
      %v1881 = vpop.f32.mrf.mxu0
      %v1882 = vpop.f32.mrf.mxu0
      %v1883 = vadd.f32 0.0, %v1882
      %v1884 = vpop.f32.mrf.mxu0
      %1885 = vmatprep.mubr.bf16.mxu0 0
      %1886 = vmatmul.mubr.bf16.gmra.mxu0 %v955
      %v1887 = vpop.f32.mrf.mxu0
      %v1888 = vadd.f32 0.0, %v1887
      %v1889 = vpop.f32.mrf.mxu0
      %v1890 = vpop.f32.mrf.mxu0
      %v1891 = vadd.f32 0.0, %v1890
      %v1892 = vpop.f32.mrf.mxu0
      %1893 = vmatprep.mubr.bf16.mxu0 0
      %1894 = vmatmul.mubr.bf16.gmra.mxu0 %v958
      %v1895 = vpop.f32.mrf.mxu0
      %v1896 = vadd.f32 0.0, %v1895
      %v1897 = vpop.f32.mrf.mxu0
      %v1898 = vpop.f32.mrf.mxu0
      %v1899 = vadd.f32 0.0, %v1898
      %v1900 = vpop.f32.mrf.mxu0
      %1901 = vmatprep.mubr.bf16.mxu0 0
      %1902 = vmatmul.mubr.bf16.gmra.mxu0 %v961
      %v1903 = vpop.f32.mrf.mxu0
      %v1904 = vadd.f32 0.0, %v1903
      %v1905 = vpop.f32.mrf.mxu0
      %v1906 = vpop.f32.mrf.mxu0
      %v1907 = vpop.f32.mrf.mxu0
      %1908 = vdwg.mxu0
      %v1909 = vadd.f32 %v1828, %v1872
      %v1910 = vadd.f32 %v1829, %v1875
      %v1911 = vadd.f32 %v1830, %v1880
      %v1912 = vadd.f32 %v1831, %v1883
      %v1913 = vadd.f32 %v1832, %v1888
      %v1914 = vadd.f32 %v1833, %v1891
      %v1915 = vadd.f32 %v1834, %v1896
      %v1916 = vadd.f32 %v1835, %v1899
      %v1917 = vadd.f32 %v1836, %v1904
      %v1918 = vshrl.u32 %v808, 16
      %v1920 = vshll.u32 %v808, 16
      %v1922 = vrot.slane %v1920, 1
      %v1923 = vor.u32 %v1918, %v1922
      %v1924 = vshll.u32 %v809, 16
      %v1926 = vrot.slane %v1924, 1
      %v1927 = vsel %vm530, %v1923, %v1926
      %v1928 = vshrl.u32 %v809, 16
      %v1930 = vor.u32 %v1928, %v1926
      %v1931 = vshll.u32 %v810, 16
      %v1933 = vrot.slane %v1931, 1
      %v1934 = vsel %vm530, %v1930, %v1933
      %v1935 = vshrl.u32 %v810, 16
      %v1937 = vor.u32 %v1935, %v1933
      %v1938 = vshll.u32 %v811, 16
      %v1940 = vrot.slane %v1938, 1
      %v1941 = vsel %vm530, %v1937, %v1940
      %v1942 = vshrl.u32 %v811, 16
      %v1944 = vor.u32 %v1942, %v1940
      %v1945 = vshll.u32 %v812, 16
      %v1947 = vrot.slane %v1945, 1
      %v1948 = vsel %vm530, %v1944, %v1947
      %v1949 = vshrl.u32 %v812, 16
      %v1951 = vor.u32 %v1949, %v1947
      %v1953 = vsel %vm320, %v1927, 0
      %v1956 = vsel %vm320, %v1934, 0
      %v1959 = vsel %vm320, %v1941, 0
      %v1962 = vsel %vm320, %v1948, 0
      %v1965 = vsel %vm320, %v1951, 0
      %1967 = vmatprep.subr.bf16.mxu0 0
      %1968 = vmatpush1.bf16.msra.mxu0 0
      %1969 = vmatprep.subr.bf16.mxu0 0
      %1970 = vmatpush1.bf16.msra.mxu0 0
      %1971 = vmatprep.subr.bf16.mxu0 0
      %1972 = vmatpush1.bf16.msra.mxu0 0
      %1973 = vmatprep.subr.bf16.mxu0 0
      %1974 = vmatpush1.bf16.msra.mxu0 0
      %1975 = vmatprep.subr.bf16.mxu0 0
      %1976 = vmatpush1.bf16.msra.mxu0 0
      %1977 = vmatprep.subr.bf16.mxu0 0
      %1978 = vmatpush1.bf16.msra.mxu0 0
      %1979 = vmatprep.subr.bf16.mxu0 0
      %1980 = vmatpush1.bf16.msra.mxu0 0
      %1981 = vmatprep.subr.bf16.mxu0 0
      %1982 = vmatpush1.bf16.msra.mxu0 %v964
      %1983 = vmatprep.subr.bf16.mxu0 0
      %1984 = vmatpush2.bf16.msra.mxu0 0
      %1985 = vmatprep.subr.bf16.mxu0 0
      %1986 = vmatpush2.bf16.msra.mxu0 0
      %1987 = vmatprep.subr.bf16.mxu0 0
      %1988 = vmatpush2.bf16.msra.mxu0 0
      %1989 = vmatprep.subr.bf16.mxu0 0
      %1990 = vmatpush2.bf16.msra.mxu0 0
      %1991 = vmatprep.subr.bf16.mxu0 0
      %1992 = vmatpush2.bf16.msra.mxu0 0
      %1993 = vmatprep.subr.bf16.mxu0 0
      %1994 = vmatpush2.bf16.msra.mxu0 0
      %1995 = vmatprep.subr.bf16.mxu0 0
      %1996 = vmatpush2.bf16.msra.mxu0 0
      %1997 = vmatprep.subr.bf16.mxu0 0
      %1998 = vmatpush2.bf16.msra.mxu0 0
      %1999 = vmatprep.mubr.bf16.mxu0 0
      %2000 = vmatmul.mubr.bf16.gmra.mxu0 %v1953
      %v2001 = vpop.f32.mrf.mxu0
      %v2002 = vadd.f32 0.0, %v2001
      %v2003 = vpop.f32.mrf.mxu0
      %v2004 = vpop.f32.mrf.mxu0
      %v2005 = vadd.f32 0.0, %v2004
      %v2006 = vpop.f32.mrf.mxu0
      %2007 = vmatprep.mubr.bf16.mxu0 0
      %2008 = vmatmul.mubr.bf16.gmra.mxu0 %v1956
      %v2009 = vpop.f32.mrf.mxu0
      %v2010 = vadd.f32 0.0, %v2009
      %v2011 = vpop.f32.mrf.mxu0
      %v2012 = vpop.f32.mrf.mxu0
      %v2013 = vadd.f32 0.0, %v2012
      %v2014 = vpop.f32.mrf.mxu0
      %2015 = vmatprep.mubr.bf16.mxu0 0
      %2016 = vmatmul.mubr.bf16.gmra.mxu0 %v1959
      %v2017 = vpop.f32.mrf.mxu0
      %v2018 = vadd.f32 0.0, %v2017
      %v2019 = vpop.f32.mrf.mxu0
      %v2020 = vpop.f32.mrf.mxu0
      %v2021 = vadd.f32 0.0, %v2020
      %v2022 = vpop.f32.mrf.mxu0
      %2023 = vmatprep.mubr.bf16.mxu0 0
      %2024 = vmatmul.mubr.bf16.gmra.mxu0 %v1962
      %v2025 = vpop.f32.mrf.mxu0
      %v2026 = vadd.f32 0.0, %v2025
      %v2027 = vpop.f32.mrf.mxu0
      %v2028 = vpop.f32.mrf.mxu0
      %v2029 = vadd.f32 0.0, %v2028
      %v2030 = vpop.f32.mrf.mxu0
      %2031 = vmatprep.mubr.bf16.mxu0 0
      %2032 = vmatmul.mubr.bf16.gmra.mxu0 %v1965
      %v2033 = vpop.f32.mrf.mxu0
      %v2034 = vadd.f32 0.0, %v2033
      %v2035 = vpop.f32.mrf.mxu0
      %v2036 = vpop.f32.mrf.mxu0
      %v2037 = vpop.f32.mrf.mxu0
      %2038 = vdwg.mxu0
      %v2039 = vadd.f32 %v1909, %v2002
      %v2040 = vadd.f32 %v1910, %v2005
      %v2041 = vadd.f32 %v1911, %v2010
      %v2042 = vadd.f32 %v1912, %v2013
      %v2043 = vadd.f32 %v1913, %v2018
      %v2044 = vadd.f32 %v1914, %v2021
      %v2045 = vadd.f32 %v1915, %v2026
      %v2046 = vadd.f32 %v1916, %v2029
      %v2047 = vadd.f32 %v1917, %v2034
      %2048 = vmatprep.subr.bf16.mxu0 0
      %2049 = vmatpush1.bf16.msra.mxu0 0
      %2050 = vmatprep.subr.bf16.mxu0 0
      %2051 = vmatpush1.bf16.msra.mxu0 0
      %2052 = vmatprep.subr.bf16.mxu0 0
      %2053 = vmatpush1.bf16.msra.mxu0 0
      %2054 = vmatprep.subr.bf16.mxu0 0
      %2055 = vmatpush1.bf16.msra.mxu0 0
      %2056 = vmatprep.subr.bf16.mxu0 0
      %2057 = vmatpush1.bf16.msra.mxu0 0
      %2058 = vmatprep.subr.bf16.mxu0 0
      %2059 = vmatpush1.bf16.msra.mxu0 0
      %2060 = vmatprep.subr.bf16.mxu0 0
      %2061 = vmatpush1.bf16.msra.mxu0 0
      %2062 = vmatprep.subr.bf16.mxu0 0
      %2063 = vmatpush1.bf16.msra.mxu0 %v1111
      %2064 = vmatprep.subr.bf16.mxu0 0
      %2065 = vmatpush2.bf16.msra.mxu0 0
      %2066 = vmatprep.subr.bf16.mxu0 0
      %2067 = vmatpush2.bf16.msra.mxu0 0
      %2068 = vmatprep.subr.bf16.mxu0 0
      %2069 = vmatpush2.bf16.msra.mxu0 0
      %2070 = vmatprep.subr.bf16.mxu0 0
      %2071 = vmatpush2.bf16.msra.mxu0 0
      %2072 = vmatprep.subr.bf16.mxu0 0
      %2073 = vmatpush2.bf16.msra.mxu0 0
      %2074 = vmatprep.subr.bf16.mxu0 0
      %2075 = vmatpush2.bf16.msra.mxu0 0
      %2076 = vmatprep.subr.bf16.mxu0 0
      %2077 = vmatpush2.bf16.msra.mxu0 0
      %2078 = vmatprep.subr.bf16.mxu0 0
      %2079 = vmatpush2.bf16.msra.mxu0 0
      %2080 = vmatprep.mubr.bf16.mxu0 0
      %2081 = vmatmul.mubr.bf16.gmra.mxu0 %v1243
      %v2082 = vpop.f32.mrf.mxu0
      %v2083 = vadd.f32 0.0, %v2082
      %v2084 = vpop.f32.mrf.mxu0
      %v2085 = vpop.f32.mrf.mxu0
      %v2086 = vadd.f32 0.0, %v2085
      %v2087 = vpop.f32.mrf.mxu0
      %2088 = vmatprep.mubr.bf16.mxu0 0
      %2089 = vmatmul.mubr.bf16.gmra.mxu0 %v1246
      %v2090 = vpop.f32.mrf.mxu0
      %v2091 = vadd.f32 0.0, %v2090
      %v2092 = vpop.f32.mrf.mxu0
      %v2093 = vpop.f32.mrf.mxu0
      %v2094 = vadd.f32 0.0, %v2093
      %v2095 = vpop.f32.mrf.mxu0
      %2096 = vmatprep.mubr.bf16.mxu0 0
      %2097 = vmatmul.mubr.bf16.gmra.mxu0 %v1249
      %v2098 = vpop.f32.mrf.mxu0
      %v2099 = vadd.f32 0.0, %v2098
      %v2100 = vpop.f32.mrf.mxu0
      %v2101 = vpop.f32.mrf.mxu0
      %v2102 = vadd.f32 0.0, %v2101
      %v2103 = vpop.f32.mrf.mxu0
      %2104 = vmatprep.mubr.bf16.mxu0 0
      %2105 = vmatmul.mubr.bf16.gmra.mxu0 %v1252
      %v2106 = vpop.f32.mrf.mxu0
      %v2107 = vadd.f32 0.0, %v2106
      %v2108 = vpop.f32.mrf.mxu0
      %v2109 = vpop.f32.mrf.mxu0
      %v2110 = vadd.f32 0.0, %v2109
      %v2111 = vpop.f32.mrf.mxu0
      %2112 = vmatprep.mubr.bf16.mxu0 0
      %2113 = vmatmul.mubr.bf16.gmra.mxu0 %v1255
      %v2114 = vpop.f32.mrf.mxu0
      %v2115 = vadd.f32 0.0, %v2114
      %v2116 = vpop.f32.mrf.mxu0
      %v2117 = vpop.f32.mrf.mxu0
      %v2118 = vpop.f32.mrf.mxu0
      %2119 = vdwg.mxu0
      %v2120 = vadd.f32 %v2039, %v2083
      %v2121 = vadd.f32 %v2040, %v2086
      %v2122 = vadd.f32 %v2041, %v2091
      %v2123 = vadd.f32 %v2042, %v2094
      %v2124 = vadd.f32 %v2043, %v2099
      %v2125 = vadd.f32 %v2044, %v2102
      %v2126 = vadd.f32 %v2045, %v2107
      %v2127 = vadd.f32 %v2046, %v2110
      %v2128 = vadd.f32 %v2047, %v2115
      %2129 = vmatprep.subr.bf16.mxu0 0
      %2130 = vmatpush1.bf16.msra.mxu0 0
      %2131 = vmatprep.subr.bf16.mxu0 0
      %2132 = vmatpush1.bf16.msra.mxu0 0
      %2133 = vmatprep.subr.bf16.mxu0 0
      %2134 = vmatpush1.bf16.msra.mxu0 0
      %2135 = vmatprep.subr.bf16.mxu0 0
      %2136 = vmatpush1.bf16.msra.mxu0 0
      %2137 = vmatprep.subr.bf16.mxu0 0
      %2138 = vmatpush1.bf16.msra.mxu0 0
      %2139 = vmatprep.subr.bf16.mxu0 0
      %2140 = vmatpush1.bf16.msra.mxu0 0
      %2141 = vmatprep.subr.bf16.mxu0 0
      %2142 = vmatpush1.bf16.msra.mxu0 0
      %2143 = vmatprep.subr.bf16.mxu0 0
      %2144 = vmatpush1.bf16.msra.mxu0 %v1258
      %2145 = vmatprep.subr.bf16.mxu0 0
      %2146 = vmatpush2.bf16.msra.mxu0 0
      %2147 = vmatprep.subr.bf16.mxu0 0
      %2148 = vmatpush2.bf16.msra.mxu0 0
      %2149 = vmatprep.subr.bf16.mxu0 0
      %2150 = vmatpush2.bf16.msra.mxu0 0
      %2151 = vmatprep.subr.bf16.mxu0 0
      %2152 = vmatpush2.bf16.msra.mxu0 0
      %2153 = vmatprep.subr.bf16.mxu0 0
      %2154 = vmatpush2.bf16.msra.mxu0 0
      %2155 = vmatprep.subr.bf16.mxu0 0
      %2156 = vmatpush2.bf16.msra.mxu0 0
      %2157 = vmatprep.subr.bf16.mxu0 0
      %2158 = vmatpush2.bf16.msra.mxu0 0
      %2159 = vmatprep.subr.bf16.mxu0 0
      %2160 = vmatpush2.bf16.msra.mxu0 0
      %2161 = vmatprep.mubr.bf16.mxu0 0
      %2162 = vmatmul.mubr.bf16.gmra.mxu0 %v1360
      %v2163 = vpop.f32.mrf.mxu0
      %v2164 = vadd.f32 0.0, %v2163
      %v2165 = vpop.f32.mrf.mxu0
      %v2166 = vpop.f32.mrf.mxu0
      %v2167 = vadd.f32 0.0, %v2166
      %v2168 = vpop.f32.mrf.mxu0
      %2169 = vmatprep.mubr.bf16.mxu0 0
      %2170 = vmatmul.mubr.bf16.gmra.mxu0 %v1363
      %v2171 = vpop.f32.mrf.mxu0
      %v2172 = vadd.f32 0.0, %v2171
      %v2173 = vpop.f32.mrf.mxu0
      %v2174 = vpop.f32.mrf.mxu0
      %v2175 = vadd.f32 0.0, %v2174
      %v2176 = vpop.f32.mrf.mxu0
      %2177 = vmatprep.mubr.bf16.mxu0 0
      %2178 = vmatmul.mubr.bf16.gmra.mxu0 %v1366
      %v2179 = vpop.f32.mrf.mxu0
      %v2180 = vadd.f32 0.0, %v2179
      %v2181 = vpop.f32.mrf.mxu0
      %v2182 = vpop.f32.mrf.mxu0
      %v2183 = vadd.f32 0.0, %v2182
      %v2184 = vpop.f32.mrf.mxu0
      %2185 = vmatprep.mubr.bf16.mxu0 0
      %2186 = vmatmul.mubr.bf16.gmra.mxu0 %v1369
      %v2187 = vpop.f32.mrf.mxu0
      %v2188 = vadd.f32 0.0, %v2187
      %v2189 = vpop.f32.mrf.mxu0
      %v2190 = vpop.f32.mrf.mxu0
      %v2191 = vadd.f32 0.0, %v2190
      %v2192 = vpop.f32.mrf.mxu0
      %2193 = vmatprep.mubr.bf16.mxu0 0
      %2194 = vmatmul.mubr.bf16.gmra.mxu0 %v1372
      %v2195 = vpop.f32.mrf.mxu0
      %v2196 = vadd.f32 0.0, %v2195
      %v2197 = vpop.f32.mrf.mxu0
      %v2198 = vpop.f32.mrf.mxu0
      %v2199 = vpop.f32.mrf.mxu0
      %2200 = vdwg.mxu0
      %v2201 = vadd.f32 %v2120, %v2164
      %v2202 = vadd.f32 %v2121, %v2167
      %v2203 = vadd.f32 %v2122, %v2172
      %v2204 = vadd.f32 %v2123, %v2175
      %v2205 = vadd.f32 %v2124, %v2180
      %v2206 = vadd.f32 %v2125, %v2183
      %v2207 = vadd.f32 %v2126, %v2188
      %v2208 = vadd.f32 %v2127, %v2191
      %v2209 = vadd.f32 %v2128, %v2196
      %v2212 = vunpack.c.l.b16 %v286
      %v2213 = vunpack.c.l.b16 %v287
      %v2214 = vpack.c.b16 %v308, %v2212
      %v2215 = vpack.c.b16 %v2213, %v1197
      %v2216 = vrot.slane %v2214, 1
      %v2217 = vrot.slane %v1199, 1
      %v2218 = vsel %vm1349, %v2216, %v2217
      %v2219 = vrot.slane %v1200, 1
      %v2220 = vsel %vm1349, %v2217, %v2219
      %v2221 = vrot.slane %v1201, 1
      %v2222 = vsel %vm1349, %v2219, %v2221
      %v2223 = vrot.slane %v2215, 1
      %v2224 = vsel %vm1349, %v2221, %v2223
      %v2226 = vsel %vm320, %v2218, 0
      %v2229 = vsel %vm320, %v2220, 0
      %v2232 = vsel %vm320, %v2222, 0
      %v2235 = vsel %vm320, %v2224, 0
      %v2238 = vsel %vm320, %v2223, 0
      %2240 = vmatprep.subr.bf16.mxu0 0
      %2241 = vmatpush1.bf16.msra.mxu0 0
      %2242 = vmatprep.subr.bf16.mxu0 0
      %2243 = vmatpush1.bf16.msra.mxu0 0
      %2244 = vmatprep.subr.bf16.mxu0 0
      %2245 = vmatpush1.bf16.msra.mxu0 0
      %2246 = vmatprep.subr.bf16.mxu0 0
      %2247 = vmatpush1.bf16.msra.mxu0 0
      %2248 = vmatprep.subr.bf16.mxu0 0
      %2249 = vmatpush1.bf16.msra.mxu0 0
      %2250 = vmatprep.subr.bf16.mxu0 0
      %2251 = vmatpush1.bf16.msra.mxu0 0
      %2252 = vmatprep.subr.bf16.mxu0 0
      %2253 = vmatpush1.bf16.msra.mxu0 0
      %2254 = vmatprep.subr.bf16.mxu0 0
      %2255 = vmatpush1.bf16.msra.mxu0 %v1375
      %2256 = vmatprep.subr.bf16.mxu0 0
      %2257 = vmatpush2.bf16.msra.mxu0 0
      %2258 = vmatprep.subr.bf16.mxu0 0
      %2259 = vmatpush2.bf16.msra.mxu0 0
      %2260 = vmatprep.subr.bf16.mxu0 0
      %2261 = vmatpush2.bf16.msra.mxu0 0
      %2262 = vmatprep.subr.bf16.mxu0 0
      %2263 = vmatpush2.bf16.msra.mxu0 0
      %2264 = vmatprep.subr.bf16.mxu0 0
      %2265 = vmatpush2.bf16.msra.mxu0 0
      %2266 = vmatprep.subr.bf16.mxu0 0
      %2267 = vmatpush2.bf16.msra.mxu0 0
      %2268 = vmatprep.subr.bf16.mxu0 0
      %2269 = vmatpush2.bf16.msra.mxu0 0
      %2270 = vmatprep.subr.bf16.mxu0 0
      %2271 = vmatpush2.bf16.msra.mxu0 0
      %2272 = vmatprep.mubr.bf16.mxu0 0
      %2273 = vmatmul.mubr.bf16.gmra.mxu0 %v2226
      %v2274 = vpop.f32.mrf.mxu0
      %v2275 = vadd.f32 0.0, %v2274
      %v2276 = vpop.f32.mrf.mxu0
      %v2277 = vpop.f32.mrf.mxu0
      %v2278 = vadd.f32 0.0, %v2277
      %v2279 = vpop.f32.mrf.mxu0
      %2280 = vmatprep.mubr.bf16.mxu0 0
      %2281 = vmatmul.mubr.bf16.gmra.mxu0 %v2229
      %v2282 = vpop.f32.mrf.mxu0
      %v2283 = vadd.f32 0.0, %v2282
      %v2284 = vpop.f32.mrf.mxu0
      %v2285 = vpop.f32.mrf.mxu0
      %v2286 = vadd.f32 0.0, %v2285
      %v2287 = vpop.f32.mrf.mxu0
      %2288 = vmatprep.mubr.bf16.mxu0 0
      %2289 = vmatmul.mubr.bf16.gmra.mxu0 %v2232
      %v2290 = vpop.f32.mrf.mxu0
      %v2291 = vadd.f32 0.0, %v2290
      %v2292 = vpop.f32.mrf.mxu0
      %v2293 = vpop.f32.mrf.mxu0
      %v2294 = vadd.f32 0.0, %v2293
      %v2295 = vpop.f32.mrf.mxu0
      %2296 = vmatprep.mubr.bf16.mxu0 0
      %2297 = vmatmul.mubr.bf16.gmra.mxu0 %v2235
      %v2298 = vpop.f32.mrf.mxu0
      %v2299 = vadd.f32 0.0, %v2298
      %v2300 = vpop.f32.mrf.mxu0
      %v2301 = vpop.f32.mrf.mxu0
      %v2302 = vadd.f32 0.0, %v2301
      %v2303 = vpop.f32.mrf.mxu0
      %2304 = vmatprep.mubr.bf16.mxu0 0
      %2305 = vmatmul.mubr.bf16.gmra.mxu0 %v2238
      %v2306 = vpop.f32.mrf.mxu0
      %v2307 = vadd.f32 0.0, %v2306
      %v2308 = vpop.f32.mrf.mxu0
      %v2309 = vpop.f32.mrf.mxu0
      %v2310 = vpop.f32.mrf.mxu0
      %2311 = vdwg.mxu0
      %v2312 = vadd.f32 %v2201, %v2275
      %v2313 = vadd.f32 %v2202, %v2278
      %v2314 = vadd.f32 %v2203, %v2283
      %v2315 = vadd.f32 %v2204, %v2286
      %v2316 = vadd.f32 %v2205, %v2291
      %v2317 = vadd.f32 %v2206, %v2294
      %v2318 = vadd.f32 %v2207, %v2299
      %v2319 = vadd.f32 %v2208, %v2302
      %v2320 = vadd.f32 %v2209, %v2307
      %v2321 = vadd.f32 %v2312, %v1462
      %v2322 = vadd.f32 %v2313, %v1462
      %v2323 = vadd.f32 %v2314, %v1462
      %v2324 = vadd.f32 %v2315, %v1462
      %v2325 = vadd.f32 %v2316, %v1462
      %v2326 = vadd.f32 %v2317, %v1462
      %v2327 = vadd.f32 %v2318, %v1462
      %v2328 = vadd.f32 %v2319, %v1462
      %v2329 = vadd.f32 %v2320, %v1462
      %v2330 = vmax.f32 %v2321, 0.0
      %v2331 = vmax.f32 %v2322, 0.0
      %v2332 = vmax.f32 %v2323, 0.0
      %v2333 = vmax.f32 %v2324, 0.0
      %v2334 = vmax.f32 %v2325, 0.0
      %v2335 = vmax.f32 %v2326, 0.0
      %v2336 = vmax.f32 %v2327, 0.0
      %v2337 = vmax.f32 %v2328, 0.0
      %v2338 = vmax.f32 %v2329, 0.0
      %v2339 = vmax.f32 %v1473, %v2330
      %v2340 = vmax.f32 %v1474, %v2331
      %v2341 = vmax.f32 %v1475, %v2332
      %v2342 = vmax.f32 %v1476, %v2333
      %v2343 = vmax.f32 %v1477, %v2334
      %v2344 = vmax.f32 %v1478, %v2335
      %v2345 = vmax.f32 %v1479, %v2336
      %v2346 = vmax.f32 %v1480, %v2337
      %v2347 = vmax.f32 %v1481, %v2338
      %2348 = vmatprep.subr.bf16.mxu0 0
      %2349 = vmatpush1.bf16.msra.mxu0 0
      %2350 = vmatprep.subr.bf16.mxu0 0
      %2351 = vmatpush1.bf16.msra.mxu0 0
      %2352 = vmatprep.subr.bf16.mxu0 0
      %2353 = vmatpush1.bf16.msra.mxu0 0
      %2354 = vmatprep.subr.bf16.mxu0 0
      %2355 = vmatpush1.bf16.msra.mxu0 0
      %2356 = vmatprep.subr.bf16.mxu0 0
      %2357 = vmatpush1.bf16.msra.mxu0 0
      %2358 = vmatprep.subr.bf16.mxu0 0
      %2359 = vmatpush1.bf16.msra.mxu0 0
      %2360 = vmatprep.subr.bf16.mxu0 0
      %2361 = vmatpush1.bf16.msra.mxu0 0
      %2362 = vmatprep.subr.bf16.mxu0 0
      %2363 = vmatpush1.bf16.msra.mxu0 %v341
      %2364 = vmatprep.subr.bf16.mxu0 0
      %2365 = vmatpush2.bf16.msra.mxu0 0
      %2366 = vmatprep.subr.bf16.mxu0 0
      %2367 = vmatpush2.bf16.msra.mxu0 0
      %2368 = vmatprep.subr.bf16.mxu0 0
      %2369 = vmatpush2.bf16.msra.mxu0 0
      %2370 = vmatprep.subr.bf16.mxu0 0
      %2371 = vmatpush2.bf16.msra.mxu0 0
      %2372 = vmatprep.subr.bf16.mxu0 0
      %2373 = vmatpush2.bf16.msra.mxu0 0
      %2374 = vmatprep.subr.bf16.mxu0 0
      %2375 = vmatpush2.bf16.msra.mxu0 0
      %2376 = vmatprep.subr.bf16.mxu0 0
      %2377 = vmatpush2.bf16.msra.mxu0 0
      %2378 = vmatprep.subr.bf16.mxu0 0
      %2379 = vmatpush2.bf16.msra.mxu0 0
      %2380 = vmatprep.mubr.bf16.mxu0 0
      %2381 = vmatmul.mubr.bf16.gmra.mxu0 %v814
      %v2382 = vpop.f32.mrf.mxu0
      %v2383 = vadd.f32 0.0, %v2382
      %v2384 = vpop.f32.mrf.mxu0
      %v2385 = vpop.f32.mrf.mxu0
      %v2386 = vadd.f32 0.0, %v2385
      %v2387 = vpop.f32.mrf.mxu0
      %2388 = vmatprep.mubr.bf16.mxu0 0
      %2389 = vmatmul.mubr.bf16.gmra.mxu0 %v817
      %v2390 = vpop.f32.mrf.mxu0
      %v2391 = vadd.f32 0.0, %v2390
      %v2392 = vpop.f32.mrf.mxu0
      %v2393 = vpop.f32.mrf.mxu0
      %v2394 = vadd.f32 0.0, %v2393
      %v2395 = vpop.f32.mrf.mxu0
      %2396 = vmatprep.mubr.bf16.mxu0 0
      %2397 = vmatmul.mubr.bf16.gmra.mxu0 %v820
      %v2398 = vpop.f32.mrf.mxu0
      %v2399 = vadd.f32 0.0, %v2398
      %v2400 = vpop.f32.mrf.mxu0
      %v2401 = vpop.f32.mrf.mxu0
      %v2402 = vadd.f32 0.0, %v2401
      %v2403 = vpop.f32.mrf.mxu0
      %2404 = vmatprep.mubr.bf16.mxu0 0
      %2405 = vmatmul.mubr.bf16.gmra.mxu0 %v823
      %v2406 = vpop.f32.mrf.mxu0
      %v2407 = vadd.f32 0.0, %v2406
      %v2408 = vpop.f32.mrf.mxu0
      %v2409 = vpop.f32.mrf.mxu0
      %v2410 = vadd.f32 0.0, %v2409
      %v2411 = vpop.f32.mrf.mxu0
      %2412 = vmatprep.mubr.bf16.mxu0 0
      %2413 = vmatmul.mubr.bf16.gmra.mxu0 %v826
      %v2414 = vpop.f32.mrf.mxu0
      %v2415 = vadd.f32 0.0, %v2414
      %v2416 = vpop.f32.mrf.mxu0
      %v2417 = vpop.f32.mrf.mxu0
      %v2418 = vpop.f32.mrf.mxu0
      %2419 = vdwg.mxu0
      %2420 = vmatprep.subr.bf16.mxu0 0
      %2421 = vmatpush1.bf16.msra.mxu0 0
      %2422 = vmatprep.subr.bf16.mxu0 0
      %2423 = vmatpush1.bf16.msra.mxu0 0
      %2424 = vmatprep.subr.bf16.mxu0 0
      %2425 = vmatpush1.bf16.msra.mxu0 0
      %2426 = vmatprep.subr.bf16.mxu0 0
      %2427 = vmatpush1.bf16.msra.mxu0 0
      %2428 = vmatprep.subr.bf16.mxu0 0
      %2429 = vmatpush1.bf16.msra.mxu0 0
      %2430 = vmatprep.subr.bf16.mxu0 0
      %2431 = vmatpush1.bf16.msra.mxu0 0
      %2432 = vmatprep.subr.bf16.mxu0 0
      %2433 = vmatpush1.bf16.msra.mxu0 0
      %2434 = vmatprep.subr.bf16.mxu0 0
      %2435 = vmatpush1.bf16.msra.mxu0 %v454
      %2436 = vmatprep.subr.bf16.mxu0 0
      %2437 = vmatpush2.bf16.msra.mxu0 0
      %2438 = vmatprep.subr.bf16.mxu0 0
      %2439 = vmatpush2.bf16.msra.mxu0 0
      %2440 = vmatprep.subr.bf16.mxu0 0
      %2441 = vmatpush2.bf16.msra.mxu0 0
      %2442 = vmatprep.subr.bf16.mxu0 0
      %2443 = vmatpush2.bf16.msra.mxu0 0
      %2444 = vmatprep.subr.bf16.mxu0 0
      %2445 = vmatpush2.bf16.msra.mxu0 0
      %2446 = vmatprep.subr.bf16.mxu0 0
      %2447 = vmatpush2.bf16.msra.mxu0 0
      %2448 = vmatprep.subr.bf16.mxu0 0
      %2449 = vmatpush2.bf16.msra.mxu0 0
      %2450 = vmatprep.subr.bf16.mxu0 0
      %2451 = vmatpush2.bf16.msra.mxu0 0
      %2452 = vmatprep.mubr.bf16.mxu0 0
      %2453 = vmatmul.mubr.bf16.gmra.mxu0 %v690
      %v2454 = vpop.f32.mrf.mxu0
      %v2455 = vadd.f32 %v2383, %v2454
      %v2456 = vpop.f32.mrf.mxu0
      %v2457 = vpop.f32.mrf.mxu0
      %v2458 = vadd.f32 %v2386, %v2457
      %v2459 = vpop.f32.mrf.mxu0
      %2460 = vmatprep.mubr.bf16.mxu0 0
      %2461 = vmatmul.mubr.bf16.gmra.mxu0 %v693
      %v2462 = vpop.f32.mrf.mxu0
      %v2463 = vadd.f32 %v2391, %v2462
      %v2464 = vpop.f32.mrf.mxu0
      %v2465 = vpop.f32.mrf.mxu0
      %v2466 = vadd.f32 %v2394, %v2465
      %v2467 = vpop.f32.mrf.mxu0
      %2468 = vmatprep.mubr.bf16.mxu0 0
      %2469 = vmatmul.mubr.bf16.gmra.mxu0 %v696
      %v2470 = vpop.f32.mrf.mxu0
      %v2471 = vadd.f32 %v2399, %v2470
      %v2472 = vpop.f32.mrf.mxu0
      %v2473 = vpop.f32.mrf.mxu0
      %v2474 = vadd.f32 %v2402, %v2473
      %v2475 = vpop.f32.mrf.mxu0
      %2476 = vmatprep.mubr.bf16.mxu0 0
      %2477 = vmatmul.mubr.bf16.gmra.mxu0 %v699
      %v2478 = vpop.f32.mrf.mxu0
      %v2479 = vadd.f32 %v2407, %v2478
      %v2480 = vpop.f32.mrf.mxu0
      %v2481 = vpop.f32.mrf.mxu0
      %v2482 = vadd.f32 %v2410, %v2481
      %v2483 = vpop.f32.mrf.mxu0
      %2484 = vmatprep.mubr.bf16.mxu0 0
      %2485 = vmatmul.mubr.bf16.gmra.mxu0 %v702
      %v2486 = vpop.f32.mrf.mxu0
      %v2487 = vadd.f32 %v2415, %v2486
      %v2488 = vpop.f32.mrf.mxu0
      %v2489 = vpop.f32.mrf.mxu0
      %v2490 = vpop.f32.mrf.mxu0
      %2491 = vdwg.mxu0
      %2492 = vmatprep.subr.bf16.mxu0 0
      %2493 = vmatpush1.bf16.msra.mxu0 0
      %2494 = vmatprep.subr.bf16.mxu0 0
      %2495 = vmatpush1.bf16.msra.mxu0 0
      %2496 = vmatprep.subr.bf16.mxu0 0
      %2497 = vmatpush1.bf16.msra.mxu0 0
      %2498 = vmatprep.subr.bf16.mxu0 0
      %2499 = vmatpush1.bf16.msra.mxu0 0
      %2500 = vmatprep.subr.bf16.mxu0 0
      %2501 = vmatpush1.bf16.msra.mxu0 0
      %2502 = vmatprep.subr.bf16.mxu0 0
      %2503 = vmatpush1.bf16.msra.mxu0 0
      %2504 = vmatprep.subr.bf16.mxu0 0
      %2505 = vmatpush1.bf16.msra.mxu0 0
      %2506 = vmatprep.subr.bf16.mxu0 0
      %2507 = vmatpush1.bf16.msra.mxu0 %v581
      %2508 = vmatprep.subr.bf16.mxu0 0
      %2509 = vmatpush2.bf16.msra.mxu0 0
      %2510 = vmatprep.subr.bf16.mxu0 0
      %2511 = vmatpush2.bf16.msra.mxu0 0
      %2512 = vmatprep.subr.bf16.mxu0 0
      %2513 = vmatpush2.bf16.msra.mxu0 0
      %2514 = vmatprep.subr.bf16.mxu0 0
      %2515 = vmatpush2.bf16.msra.mxu0 0
      %2516 = vmatprep.subr.bf16.mxu0 0
      %2517 = vmatpush2.bf16.msra.mxu0 0
      %2518 = vmatprep.subr.bf16.mxu0 0
      %2519 = vmatpush2.bf16.msra.mxu0 0
      %2520 = vmatprep.subr.bf16.mxu0 0
      %2521 = vmatpush2.bf16.msra.mxu0 0
      %2522 = vmatprep.subr.bf16.mxu0 0
      %2523 = vmatpush2.bf16.msra.mxu0 0
      %2524 = vmatprep.mubr.bf16.mxu0 0
      %2525 = vmatmul.mubr.bf16.gmra.mxu0 %v949
      %v2526 = vpop.f32.mrf.mxu0
      %v2527 = vadd.f32 0.0, %v2526
      %v2528 = vpop.f32.mrf.mxu0
      %v2529 = vpop.f32.mrf.mxu0
      %v2530 = vadd.f32 0.0, %v2529
      %v2531 = vpop.f32.mrf.mxu0
      %2532 = vmatprep.mubr.bf16.mxu0 0
      %2533 = vmatmul.mubr.bf16.gmra.mxu0 %v952
      %v2534 = vpop.f32.mrf.mxu0
      %v2535 = vadd.f32 0.0, %v2534
      %v2536 = vpop.f32.mrf.mxu0
      %v2537 = vpop.f32.mrf.mxu0
      %v2538 = vadd.f32 0.0, %v2537
      %v2539 = vpop.f32.mrf.mxu0
      %2540 = vmatprep.mubr.bf16.mxu0 0
      %2541 = vmatmul.mubr.bf16.gmra.mxu0 %v955
      %v2542 = vpop.f32.mrf.mxu0
      %v2543 = vadd.f32 0.0, %v2542
      %v2544 = vpop.f32.mrf.mxu0
      %v2545 = vpop.f32.mrf.mxu0
      %v2546 = vadd.f32 0.0, %v2545
      %v2547 = vpop.f32.mrf.mxu0
      %2548 = vmatprep.mubr.bf16.mxu0 0
      %2549 = vmatmul.mubr.bf16.gmra.mxu0 %v958
      %v2550 = vpop.f32.mrf.mxu0
      %v2551 = vadd.f32 0.0, %v2550
      %v2552 = vpop.f32.mrf.mxu0
      %v2553 = vpop.f32.mrf.mxu0
      %v2554 = vadd.f32 0.0, %v2553
      %v2555 = vpop.f32.mrf.mxu0
      %2556 = vmatprep.mubr.bf16.mxu0 0
      %2557 = vmatmul.mubr.bf16.gmra.mxu0 %v961
      %v2558 = vpop.f32.mrf.mxu0
      %v2559 = vadd.f32 0.0, %v2558
      %v2560 = vpop.f32.mrf.mxu0
      %v2561 = vpop.f32.mrf.mxu0
      %v2562 = vpop.f32.mrf.mxu0
      %2563 = vdwg.mxu0
      %v2564 = vadd.f32 %v2455, %v2527
      %v2565 = vadd.f32 %v2458, %v2530
      %v2566 = vadd.f32 %v2463, %v2535
      %v2567 = vadd.f32 %v2466, %v2538
      %v2568 = vadd.f32 %v2471, %v2543
      %v2569 = vadd.f32 %v2474, %v2546
      %v2570 = vadd.f32 %v2479, %v2551
      %v2571 = vadd.f32 %v2482, %v2554
      %v2572 = vadd.f32 %v2487, %v2559
      %2573 = vmatprep.subr.bf16.mxu0 0
      %2574 = vmatpush1.bf16.msra.mxu0 0
      %2575 = vmatprep.subr.bf16.mxu0 0
      %2576 = vmatpush1.bf16.msra.mxu0 0
      %2577 = vmatprep.subr.bf16.mxu0 0
      %2578 = vmatpush1.bf16.msra.mxu0 0
      %2579 = vmatprep.subr.bf16.mxu0 0
      %2580 = vmatpush1.bf16.msra.mxu0 0
      %2581 = vmatprep.subr.bf16.mxu0 0
      %2582 = vmatpush1.bf16.msra.mxu0 0
      %2583 = vmatprep.subr.bf16.mxu0 0
      %2584 = vmatpush1.bf16.msra.mxu0 0
      %2585 = vmatprep.subr.bf16.mxu0 0
      %2586 = vmatpush1.bf16.msra.mxu0 0
      %2587 = vmatprep.subr.bf16.mxu0 0
      %2588 = vmatpush1.bf16.msra.mxu0 %v705
      %2589 = vmatprep.subr.bf16.mxu0 0
      %2590 = vmatpush2.bf16.msra.mxu0 0
      %2591 = vmatprep.subr.bf16.mxu0 0
      %2592 = vmatpush2.bf16.msra.mxu0 0
      %2593 = vmatprep.subr.bf16.mxu0 0
      %2594 = vmatpush2.bf16.msra.mxu0 0
      %2595 = vmatprep.subr.bf16.mxu0 0
      %2596 = vmatpush2.bf16.msra.mxu0 0
      %2597 = vmatprep.subr.bf16.mxu0 0
      %2598 = vmatpush2.bf16.msra.mxu0 0
      %2599 = vmatprep.subr.bf16.mxu0 0
      %2600 = vmatpush2.bf16.msra.mxu0 0
      %2601 = vmatprep.subr.bf16.mxu0 0
      %2602 = vmatpush2.bf16.msra.mxu0 0
      %2603 = vmatprep.subr.bf16.mxu0 0
      %2604 = vmatpush2.bf16.msra.mxu0 0
      %2605 = vmatprep.mubr.bf16.mxu0 0
      %2606 = vmatmul.mubr.bf16.gmra.mxu0 %v1096
      %v2607 = vpop.f32.mrf.mxu0
      %v2608 = vadd.f32 0.0, %v2607
      %v2609 = vpop.f32.mrf.mxu0
      %v2610 = vpop.f32.mrf.mxu0
      %v2611 = vadd.f32 0.0, %v2610
      %v2612 = vpop.f32.mrf.mxu0
      %2613 = vmatprep.mubr.bf16.mxu0 0
      %2614 = vmatmul.mubr.bf16.gmra.mxu0 %v1099
      %v2615 = vpop.f32.mrf.mxu0
      %v2616 = vadd.f32 0.0, %v2615
      %v2617 = vpop.f32.mrf.mxu0
      %v2618 = vpop.f32.mrf.mxu0
      %v2619 = vadd.f32 0.0, %v2618
      %v2620 = vpop.f32.mrf.mxu0
      %2621 = vmatprep.mubr.bf16.mxu0 0
      %2622 = vmatmul.mubr.bf16.gmra.mxu0 %v1102
      %v2623 = vpop.f32.mrf.mxu0
      %v2624 = vadd.f32 0.0, %v2623
      %v2625 = vpop.f32.mrf.mxu0
      %v2626 = vpop.f32.mrf.mxu0
      %v2627 = vadd.f32 0.0, %v2626
      %v2628 = vpop.f32.mrf.mxu0
      %2629 = vmatprep.mubr.bf16.mxu0 0
      %2630 = vmatmul.mubr.bf16.gmra.mxu0 %v1105
      %v2631 = vpop.f32.mrf.mxu0
      %v2632 = vadd.f32 0.0, %v2631
      %v2633 = vpop.f32.mrf.mxu0
      %v2634 = vpop.f32.mrf.mxu0
      %v2635 = vadd.f32 0.0, %v2634
      %v2636 = vpop.f32.mrf.mxu0
      %2637 = vmatprep.mubr.bf16.mxu0 0
      %2638 = vmatmul.mubr.bf16.gmra.mxu0 %v1108
      %v2639 = vpop.f32.mrf.mxu0
      %v2640 = vadd.f32 0.0, %v2639
      %v2641 = vpop.f32.mrf.mxu0
      %v2642 = vpop.f32.mrf.mxu0
      %v2643 = vpop.f32.mrf.mxu0
      %2644 = vdwg.mxu0
      %v2645 = vadd.f32 %v2564, %v2608
      %v2646 = vadd.f32 %v2565, %v2611
      %v2647 = vadd.f32 %v2566, %v2616
      %v2648 = vadd.f32 %v2567, %v2619
      %v2649 = vadd.f32 %v2568, %v2624
      %v2650 = vadd.f32 %v2569, %v2627
      %v2651 = vadd.f32 %v2570, %v2632
      %v2652 = vadd.f32 %v2571, %v2635
      %v2653 = vadd.f32 %v2572, %v2640
      %2654 = vmatprep.subr.bf16.mxu0 0
      %2655 = vmatpush1.bf16.msra.mxu0 0
      %2656 = vmatprep.subr.bf16.mxu0 0
      %2657 = vmatpush1.bf16.msra.mxu0 0
      %2658 = vmatprep.subr.bf16.mxu0 0
      %2659 = vmatpush1.bf16.msra.mxu0 0
      %2660 = vmatprep.subr.bf16.mxu0 0
      %2661 = vmatpush1.bf16.msra.mxu0 0
      %2662 = vmatprep.subr.bf16.mxu0 0
      %2663 = vmatpush1.bf16.msra.mxu0 0
      %2664 = vmatprep.subr.bf16.mxu0 0
      %2665 = vmatpush1.bf16.msra.mxu0 0
      %2666 = vmatprep.subr.bf16.mxu0 0
      %2667 = vmatpush1.bf16.msra.mxu0 0
      %2668 = vmatprep.subr.bf16.mxu0 0
      %2669 = vmatpush1.bf16.msra.mxu0 %v829
      %2670 = vmatprep.subr.bf16.mxu0 0
      %2671 = vmatpush2.bf16.msra.mxu0 0
      %2672 = vmatprep.subr.bf16.mxu0 0
      %2673 = vmatpush2.bf16.msra.mxu0 0
      %2674 = vmatprep.subr.bf16.mxu0 0
      %2675 = vmatpush2.bf16.msra.mxu0 0
      %2676 = vmatprep.subr.bf16.mxu0 0
      %2677 = vmatpush2.bf16.msra.mxu0 0
      %2678 = vmatprep.subr.bf16.mxu0 0
      %2679 = vmatpush2.bf16.msra.mxu0 0
      %2680 = vmatprep.subr.bf16.mxu0 0
      %2681 = vmatpush2.bf16.msra.mxu0 0
      %2682 = vmatprep.subr.bf16.mxu0 0
      %2683 = vmatpush2.bf16.msra.mxu0 0
      %2684 = vmatprep.subr.bf16.mxu0 0
      %2685 = vmatpush2.bf16.msra.mxu0 0
      %2686 = vmatprep.mubr.bf16.mxu0 0
      %2687 = vmatmul.mubr.bf16.gmra.mxu0 %v1243
      %v2688 = vpop.f32.mrf.mxu0
      %v2689 = vadd.f32 0.0, %v2688
      %v2690 = vpop.f32.mrf.mxu0
      %v2691 = vpop.f32.mrf.mxu0
      %v2692 = vadd.f32 0.0, %v2691
      %v2693 = vpop.f32.mrf.mxu0
      %2694 = vmatprep.mubr.bf16.mxu0 0
      %2695 = vmatmul.mubr.bf16.gmra.mxu0 %v1246
      %v2696 = vpop.f32.mrf.mxu0
      %v2697 = vadd.f32 0.0, %v2696
      %v2698 = vpop.f32.mrf.mxu0
      %v2699 = vpop.f32.mrf.mxu0
      %v2700 = vadd.f32 0.0, %v2699
      %v2701 = vpop.f32.mrf.mxu0
      %2702 = vmatprep.mubr.bf16.mxu0 0
      %2703 = vmatmul.mubr.bf16.gmra.mxu0 %v1249
      %v2704 = vpop.f32.mrf.mxu0
      %v2705 = vadd.f32 0.0, %v2704
      %v2706 = vpop.f32.mrf.mxu0
      %v2707 = vpop.f32.mrf.mxu0
      %v2708 = vadd.f32 0.0, %v2707
      %v2709 = vpop.f32.mrf.mxu0
      %2710 = vmatprep.mubr.bf16.mxu0 0
      %2711 = vmatmul.mubr.bf16.gmra.mxu0 %v1252
      %v2712 = vpop.f32.mrf.mxu0
      %v2713 = vadd.f32 0.0, %v2712
      %v2714 = vpop.f32.mrf.mxu0
      %v2715 = vpop.f32.mrf.mxu0
      %v2716 = vadd.f32 0.0, %v2715
      %v2717 = vpop.f32.mrf.mxu0
      %2718 = vmatprep.mubr.bf16.mxu0 0
      %2719 = vmatmul.mubr.bf16.gmra.mxu0 %v1255
      %v2720 = vpop.f32.mrf.mxu0
      %v2721 = vadd.f32 0.0, %v2720
      %v2722 = vpop.f32.mrf.mxu0
      %v2723 = vpop.f32.mrf.mxu0
      %v2724 = vpop.f32.mrf.mxu0
      %2725 = vdwg.mxu0
      %v2726 = vadd.f32 %v2645, %v2689
      %v2727 = vadd.f32 %v2646, %v2692
      %v2728 = vadd.f32 %v2647, %v2697
      %v2729 = vadd.f32 %v2648, %v2700
      %v2730 = vadd.f32 %v2649, %v2705
      %v2731 = vadd.f32 %v2650, %v2708
      %v2732 = vadd.f32 %v2651, %v2713
      %v2733 = vadd.f32 %v2652, %v2716
      %v2734 = vadd.f32 %v2653, %v2721
      %2735 = vmatprep.subr.bf16.mxu0 0
      %2736 = vmatpush1.bf16.msra.mxu0 0
      %2737 = vmatprep.subr.bf16.mxu0 0
      %2738 = vmatpush1.bf16.msra.mxu0 0
      %2739 = vmatprep.subr.bf16.mxu0 0
      %2740 = vmatpush1.bf16.msra.mxu0 0
      %2741 = vmatprep.subr.bf16.mxu0 0
      %2742 = vmatpush1.bf16.msra.mxu0 0
      %2743 = vmatprep.subr.bf16.mxu0 0
      %2744 = vmatpush1.bf16.msra.mxu0 0
      %2745 = vmatprep.subr.bf16.mxu0 0
      %2746 = vmatpush1.bf16.msra.mxu0 0
      %2747 = vmatprep.subr.bf16.mxu0 0
      %2748 = vmatpush1.bf16.msra.mxu0 0
      %2749 = vmatprep.subr.bf16.mxu0 0
      %2750 = vmatpush1.bf16.msra.mxu0 %v964
      %2751 = vmatprep.subr.bf16.mxu0 0
      %2752 = vmatpush2.bf16.msra.mxu0 0
      %2753 = vmatprep.subr.bf16.mxu0 0
      %2754 = vmatpush2.bf16.msra.mxu0 0
      %2755 = vmatprep.subr.bf16.mxu0 0
      %2756 = vmatpush2.bf16.msra.mxu0 0
      %2757 = vmatprep.subr.bf16.mxu0 0
      %2758 = vmatpush2.bf16.msra.mxu0 0
      %2759 = vmatprep.subr.bf16.mxu0 0
      %2760 = vmatpush2.bf16.msra.mxu0 0
      %2761 = vmatprep.subr.bf16.mxu0 0
      %2762 = vmatpush2.bf16.msra.mxu0 0
      %2763 = vmatprep.subr.bf16.mxu0 0
      %2764 = vmatpush2.bf16.msra.mxu0 0
      %2765 = vmatprep.subr.bf16.mxu0 0
      %2766 = vmatpush2.bf16.msra.mxu0 0
      %2767 = vmatprep.mubr.bf16.mxu0 0
      %2768 = vmatmul.mubr.bf16.gmra.mxu0 %v1360
      %v2769 = vpop.f32.mrf.mxu0
      %v2770 = vadd.f32 0.0, %v2769
      %v2771 = vpop.f32.mrf.mxu0
      %v2772 = vpop.f32.mrf.mxu0
      %v2773 = vadd.f32 0.0, %v2772
      %v2774 = vpop.f32.mrf.mxu0
      %2775 = vmatprep.mubr.bf16.mxu0 0
      %2776 = vmatmul.mubr.bf16.gmra.mxu0 %v1363
      %v2777 = vpop.f32.mrf.mxu0
      %v2778 = vadd.f32 0.0, %v2777
      %v2779 = vpop.f32.mrf.mxu0
      %v2780 = vpop.f32.mrf.mxu0
      %v2781 = vadd.f32 0.0, %v2780
      %v2782 = vpop.f32.mrf.mxu0
      %2783 = vmatprep.mubr.bf16.mxu0 0
      %2784 = vmatmul.mubr.bf16.gmra.mxu0 %v1366
      %v2785 = vpop.f32.mrf.mxu0
      %v2786 = vadd.f32 0.0, %v2785
      %v2787 = vpop.f32.mrf.mxu0
      %v2788 = vpop.f32.mrf.mxu0
      %v2789 = vadd.f32 0.0, %v2788
      %v2790 = vpop.f32.mrf.mxu0
      %2791 = vmatprep.mubr.bf16.mxu0 0
      %2792 = vmatmul.mubr.bf16.gmra.mxu0 %v1369
      %v2793 = vpop.f32.mrf.mxu0
      %v2794 = vadd.f32 0.0, %v2793
      %v2795 = vpop.f32.mrf.mxu0
      %v2796 = vpop.f32.mrf.mxu0
      %v2797 = vadd.f32 0.0, %v2796
      %v2798 = vpop.f32.mrf.mxu0
      %2799 = vmatprep.mubr.bf16.mxu0 0
      %2800 = vmatmul.mubr.bf16.gmra.mxu0 %v1372
      %v2801 = vpop.f32.mrf.mxu0
      %v2802 = vadd.f32 0.0, %v2801
      %v2803 = vpop.f32.mrf.mxu0
      %v2804 = vpop.f32.mrf.mxu0
      %v2805 = vpop.f32.mrf.mxu0
      %2806 = vdwg.mxu0
      %v2807 = vadd.f32 %v2726, %v2770
      %v2808 = vadd.f32 %v2727, %v2773
      %v2809 = vadd.f32 %v2728, %v2778
      %v2810 = vadd.f32 %v2729, %v2781
      %v2811 = vadd.f32 %v2730, %v2786
      %v2812 = vadd.f32 %v2731, %v2789
      %v2813 = vadd.f32 %v2732, %v2794
      %v2814 = vadd.f32 %v2733, %v2797
      %v2815 = vadd.f32 %v2734, %v2802
      %v2817 = vunpack.c.l.b16 %v288
      %v2818 = vpack.c.b16 %v677, %v676
      %v2819 = vpack.c.b16 %v679, %v678
      %v2820 = vpack.c.b16 %v681, %v680
      %v2821 = vpack.c.b16 %v683, %v682
      %v2822 = vpack.c.b16 %v2817, %v2817
      %v2824 = vshrl.u32 %v2818, 16
      %v2826 = vshll.u32 %v2818, 16
      %v2828 = vrot.slane %v2826, 1
      %v2829 = vor.u32 %v2824, %v2828
      %v2831 = vshll.u32 %v2819, 16
      %v2833 = vrot.slane %v2831, 1
      %v2834 = vsel %vm530, %v2829, %v2833
      %v2835 = vshrl.u32 %v2819, 16
      %v2837 = vor.u32 %v2835, %v2833
      %v2839 = vshll.u32 %v2820, 16
      %v2841 = vrot.slane %v2839, 1
      %v2842 = vsel %vm530, %v2837, %v2841
      %v2843 = vshrl.u32 %v2820, 16
      %v2845 = vor.u32 %v2843, %v2841
      %v2847 = vshll.u32 %v2821, 16
      %v2849 = vrot.slane %v2847, 1
      %v2850 = vsel %vm530, %v2845, %v2849
      %v2851 = vshrl.u32 %v2821, 16
      %v2853 = vor.u32 %v2851, %v2849
      %v2855 = vshll.u32 %v2822, 16
      %v2857 = vrot.slane %v2855, 1
      %v2858 = vsel %vm530, %v2853, %v2857
      %v2859 = vshrl.u32 %v2822, 16
      %v2861 = vor.u32 %v2859, %v2857
      %v2863 = vsel %vm320, %v2834, 0
      %v2866 = vsel %vm320, %v2842, 0
      %v2869 = vsel %vm320, %v2850, 0
      %v2872 = vsel %vm320, %v2858, 0
      %v2875 = vsel %vm320, %v2861, 0
      %2877 = vmatprep.subr.bf16.mxu0 0
      %2878 = vmatpush1.bf16.msra.mxu0 0
      %2879 = vmatprep.subr.bf16.mxu0 0
      %2880 = vmatpush1.bf16.msra.mxu0 0
      %2881 = vmatprep.subr.bf16.mxu0 0
      %2882 = vmatpush1.bf16.msra.mxu0 0
      %2883 = vmatprep.subr.bf16.mxu0 0
      %2884 = vmatpush1.bf16.msra.mxu0 0
      %2885 = vmatprep.subr.bf16.mxu0 0
      %2886 = vmatpush1.bf16.msra.mxu0 0
      %2887 = vmatprep.subr.bf16.mxu0 0
      %2888 = vmatpush1.bf16.msra.mxu0 0
      %2889 = vmatprep.subr.bf16.mxu0 0
      %2890 = vmatpush1.bf16.msra.mxu0 0
      %2891 = vmatprep.subr.bf16.mxu0 0
      %2892 = vmatpush1.bf16.msra.mxu0 %v1111
      %2893 = vmatprep.subr.bf16.mxu0 0
      %2894 = vmatpush2.bf16.msra.mxu0 0
      %2895 = vmatprep.subr.bf16.mxu0 0
      %2896 = vmatpush2.bf16.msra.mxu0 0
      %2897 = vmatprep.subr.bf16.mxu0 0
      %2898 = vmatpush2.bf16.msra.mxu0 0
      %2899 = vmatprep.subr.bf16.mxu0 0
      %2900 = vmatpush2.bf16.msra.mxu0 0
      %2901 = vmatprep.subr.bf16.mxu0 0
      %2902 = vmatpush2.bf16.msra.mxu0 0
      %2903 = vmatprep.subr.bf16.mxu0 0
      %2904 = vmatpush2.bf16.msra.mxu0 0
      %2905 = vmatprep.subr.bf16.mxu0 0
      %2906 = vmatpush2.bf16.msra.mxu0 0
      %2907 = vmatprep.subr.bf16.mxu0 0
      %2908 = vmatpush2.bf16.msra.mxu0 0
      %2909 = vmatprep.mubr.bf16.mxu0 0
      %2910 = vmatmul.mubr.bf16.gmra.mxu0 %v2863
      %v2911 = vpop.f32.mrf.mxu0
      %v2912 = vadd.f32 0.0, %v2911
      %v2913 = vpop.f32.mrf.mxu0
      %v2914 = vpop.f32.mrf.mxu0
      %v2915 = vadd.f32 0.0, %v2914
      %v2916 = vpop.f32.mrf.mxu0
      %2917 = vmatprep.mubr.bf16.mxu0 0
      %2918 = vmatmul.mubr.bf16.gmra.mxu0 %v2866
      %v2919 = vpop.f32.mrf.mxu0
      %v2920 = vadd.f32 0.0, %v2919
      %v2921 = vpop.f32.mrf.mxu0
      %v2922 = vpop.f32.mrf.mxu0
      %v2923 = vadd.f32 0.0, %v2922
      %v2924 = vpop.f32.mrf.mxu0
      %2925 = vmatprep.mubr.bf16.mxu0 0
      %2926 = vmatmul.mubr.bf16.gmra.mxu0 %v2869
      %v2927 = vpop.f32.mrf.mxu0
      %v2928 = vadd.f32 0.0, %v2927
      %v2929 = vpop.f32.mrf.mxu0
      %v2930 = vpop.f32.mrf.mxu0
      %v2931 = vadd.f32 0.0, %v2930
      %v2932 = vpop.f32.mrf.mxu0
      %2933 = vmatprep.mubr.bf16.mxu0 0
      %2934 = vmatmul.mubr.bf16.gmra.mxu0 %v2872
      %v2935 = vpop.f32.mrf.mxu0
      %v2936 = vadd.f32 0.0, %v2935
      %v2937 = vpop.f32.mrf.mxu0
      %v2938 = vpop.f32.mrf.mxu0
      %v2939 = vadd.f32 0.0, %v2938
      %v2940 = vpop.f32.mrf.mxu0
      %2941 = vmatprep.mubr.bf16.mxu0 0
      %2942 = vmatmul.mubr.bf16.gmra.mxu0 %v2875
      %v2943 = vpop.f32.mrf.mxu0
      %v2944 = vadd.f32 0.0, %v2943
      %v2945 = vpop.f32.mrf.mxu0
      %v2946 = vpop.f32.mrf.mxu0
      %v2947 = vpop.f32.mrf.mxu0
      %2948 = vdwg.mxu0
      %v2949 = vadd.f32 %v2807, %v2912
      %v2950 = vadd.f32 %v2808, %v2915
      %v2951 = vadd.f32 %v2809, %v2920
      %v2952 = vadd.f32 %v2810, %v2923
      %v2953 = vadd.f32 %v2811, %v2928
      %v2954 = vadd.f32 %v2812, %v2931
      %v2955 = vadd.f32 %v2813, %v2936
      %v2956 = vadd.f32 %v2814, %v2939
      %v2957 = vadd.f32 %v2815, %v2944
      %v2959 = vunpack.c.l.b16 %v289
      %v2960 = vpack.c.b16 %v801, %v800
      %v2961 = vpack.c.b16 %v803, %v802
      %v2962 = vpack.c.b16 %v805, %v804
      %v2963 = vpack.c.b16 %v807, %v806
      %v2964 = vpack.c.b16 %v2959, %v2959
      %v2966 = vshrl.u32 %v2960, 16
      %v2968 = vshll.u32 %v2960, 16
      %v2970 = vrot.slane %v2968, 1
      %v2971 = vor.u32 %v2966, %v2970
      %v2973 = vshll.u32 %v2961, 16
      %v2975 = vrot.slane %v2973, 1
      %v2976 = vsel %vm530, %v2971, %v2975
      %v2977 = vshrl.u32 %v2961, 16
      %v2979 = vor.u32 %v2977, %v2975
      %v2981 = vshll.u32 %v2962, 16
      %v2983 = vrot.slane %v2981, 1
      %v2984 = vsel %vm530, %v2979, %v2983
      %v2985 = vshrl.u32 %v2962, 16
      %v2987 = vor.u32 %v2985, %v2983
      %v2989 = vshll.u32 %v2963, 16
      %v2991 = vrot.slane %v2989, 1
      %v2992 = vsel %vm530, %v2987, %v2991
      %v2993 = vshrl.u32 %v2963, 16
      %v2995 = vor.u32 %v2993, %v2991
      %v2997 = vshll.u32 %v2964, 16
      %v2999 = vrot.slane %v2997, 1
      %v3000 = vsel %vm530, %v2995, %v2999
      %v3001 = vshrl.u32 %v2964, 16
      %v3003 = vor.u32 %v3001, %v2999
      %v3005 = vsel %vm320, %v2976, 0
      %v3008 = vsel %vm320, %v2984, 0
      %v3011 = vsel %vm320, %v2992, 0
      %v3014 = vsel %vm320, %v3000, 0
      %v3017 = vsel %vm320, %v3003, 0
      %3019 = vmatprep.subr.bf16.mxu0 0
      %3020 = vmatpush1.bf16.msra.mxu0 0
      %3021 = vmatprep.subr.bf16.mxu0 0
      %3022 = vmatpush1.bf16.msra.mxu0 0
      %3023 = vmatprep.subr.bf16.mxu0 0
      %3024 = vmatpush1.bf16.msra.mxu0 0
      %3025 = vmatprep.subr.bf16.mxu0 0
      %3026 = vmatpush1.bf16.msra.mxu0 0
      %3027 = vmatprep.subr.bf16.mxu0 0
      %3028 = vmatpush1.bf16.msra.mxu0 0
      %3029 = vmatprep.subr.bf16.mxu0 0
      %3030 = vmatpush1.bf16.msra.mxu0 0
      %3031 = vmatprep.subr.bf16.mxu0 0
      %3032 = vmatpush1.bf16.msra.mxu0 0
      %3033 = vmatprep.subr.bf16.mxu0 0
      %3034 = vmatpush1.bf16.msra.mxu0 %v1258
      %3035 = vmatprep.subr.bf16.mxu0 0
      %3036 = vmatpush2.bf16.msra.mxu0 0
      %3037 = vmatprep.subr.bf16.mxu0 0
      %3038 = vmatpush2.bf16.msra.mxu0 0
      %3039 = vmatprep.subr.bf16.mxu0 0
      %3040 = vmatpush2.bf16.msra.mxu0 0
      %3041 = vmatprep.subr.bf16.mxu0 0
      %3042 = vmatpush2.bf16.msra.mxu0 0
      %3043 = vmatprep.subr.bf16.mxu0 0
      %3044 = vmatpush2.bf16.msra.mxu0 0
      %3045 = vmatprep.subr.bf16.mxu0 0
      %3046 = vmatpush2.bf16.msra.mxu0 0
      %3047 = vmatprep.subr.bf16.mxu0 0
      %3048 = vmatpush2.bf16.msra.mxu0 0
      %3049 = vmatprep.subr.bf16.mxu0 0
      %3050 = vmatpush2.bf16.msra.mxu0 0
      %3051 = vmatprep.mubr.bf16.mxu0 0
      %3052 = vmatmul.mubr.bf16.gmra.mxu0 %v3005
      %v3053 = vpop.f32.mrf.mxu0
      %v3054 = vadd.f32 0.0, %v3053
      %v3055 = vpop.f32.mrf.mxu0
      %v3056 = vpop.f32.mrf.mxu0
      %v3057 = vadd.f32 0.0, %v3056
      %v3058 = vpop.f32.mrf.mxu0
      %3059 = vmatprep.mubr.bf16.mxu0 0
      %3060 = vmatmul.mubr.bf16.gmra.mxu0 %v3008
      %v3061 = vpop.f32.mrf.mxu0
      %v3062 = vadd.f32 0.0, %v3061
      %v3063 = vpop.f32.mrf.mxu0
      %v3064 = vpop.f32.mrf.mxu0
      %v3065 = vadd.f32 0.0, %v3064
      %v3066 = vpop.f32.mrf.mxu0
      %3067 = vmatprep.mubr.bf16.mxu0 0
      %3068 = vmatmul.mubr.bf16.gmra.mxu0 %v3011
      %v3069 = vpop.f32.mrf.mxu0
      %v3070 = vadd.f32 0.0, %v3069
      %v3071 = vpop.f32.mrf.mxu0
      %v3072 = vpop.f32.mrf.mxu0
      %v3073 = vadd.f32 0.0, %v3072
      %v3074 = vpop.f32.mrf.mxu0
      %3075 = vmatprep.mubr.bf16.mxu0 0
      %3076 = vmatmul.mubr.bf16.gmra.mxu0 %v3014
      %v3077 = vpop.f32.mrf.mxu0
      %v3078 = vadd.f32 0.0, %v3077
      %v3079 = vpop.f32.mrf.mxu0
      %v3080 = vpop.f32.mrf.mxu0
      %v3081 = vadd.f32 0.0, %v3080
      %v3082 = vpop.f32.mrf.mxu0
      %3083 = vmatprep.mubr.bf16.mxu0 0
      %3084 = vmatmul.mubr.bf16.gmra.mxu0 %v3017
      %v3085 = vpop.f32.mrf.mxu0
      %v3086 = vadd.f32 0.0, %v3085
      %v3087 = vpop.f32.mrf.mxu0
      %v3088 = vpop.f32.mrf.mxu0
      %v3089 = vpop.f32.mrf.mxu0
      %3090 = vdwg.mxu0
      %v3091 = vadd.f32 %v2949, %v3054
      %v3092 = vadd.f32 %v2950, %v3057
      %v3093 = vadd.f32 %v2951, %v3062
      %v3094 = vadd.f32 %v2952, %v3065
      %v3095 = vadd.f32 %v2953, %v3070
      %v3096 = vadd.f32 %v2954, %v3073
      %v3097 = vadd.f32 %v2955, %v3078
      %v3098 = vadd.f32 %v2956, %v3081
      %v3099 = vadd.f32 %v2957, %v3086
      %v3102 = vunpack.c.l.b16 %v290
      %v3103 = vunpack.c.l.b16 %v291
      %v3104 = vpack.c.b16 %v677, %v3102
      %v3105 = vpack.c.b16 %v3103, %v2817
      %v3106 = vrot.slane %v3104, 1
      %v3107 = vrot.slane %v2819, 1
      %v3108 = vsel %vm1349, %v3106, %v3107
      %v3109 = vrot.slane %v2820, 1
      %v3110 = vsel %vm1349, %v3107, %v3109
      %v3111 = vrot.slane %v2821, 1
      %v3112 = vsel %vm1349, %v3109, %v3111
      %v3113 = vrot.slane %v3105, 1
      %v3114 = vsel %vm1349, %v3111, %v3113
      %v3116 = vsel %vm320, %v3108, 0
      %v3119 = vsel %vm320, %v3110, 0
      %v3122 = vsel %vm320, %v3112, 0
      %v3125 = vsel %vm320, %v3114, 0
      %v3128 = vsel %vm320, %v3113, 0
      %3130 = vmatprep.subr.bf16.mxu0 0
      %3131 = vmatpush1.bf16.msra.mxu0 0
      %3132 = vmatprep.subr.bf16.mxu0 0
      %3133 = vmatpush1.bf16.msra.mxu0 0
      %3134 = vmatprep.subr.bf16.mxu0 0
      %3135 = vmatpush1.bf16.msra.mxu0 0
      %3136 = vmatprep.subr.bf16.mxu0 0
      %3137 = vmatpush1.bf16.msra.mxu0 0
      %3138 = vmatprep.subr.bf16.mxu0 0
      %3139 = vmatpush1.bf16.msra.mxu0 0
      %3140 = vmatprep.subr.bf16.mxu0 0
      %3141 = vmatpush1.bf16.msra.mxu0 0
      %3142 = vmatprep.subr.bf16.mxu0 0
      %3143 = vmatpush1.bf16.msra.mxu0 0
      %3144 = vmatprep.subr.bf16.mxu0 0
      %3145 = vmatpush1.bf16.msra.mxu0 %v1375
      %3146 = vmatprep.subr.bf16.mxu0 0
      %3147 = vmatpush2.bf16.msra.mxu0 0
      %3148 = vmatprep.subr.bf16.mxu0 0
      %3149 = vmatpush2.bf16.msra.mxu0 0
      %3150 = vmatprep.subr.bf16.mxu0 0
      %3151 = vmatpush2.bf16.msra.mxu0 0
      %3152 = vmatprep.subr.bf16.mxu0 0
      %3153 = vmatpush2.bf16.msra.mxu0 0
      %3154 = vmatprep.subr.bf16.mxu0 0
      %3155 = vmatpush2.bf16.msra.mxu0 0
      %3156 = vmatprep.subr.bf16.mxu0 0
      %3157 = vmatpush2.bf16.msra.mxu0 0
      %3158 = vmatprep.subr.bf16.mxu0 0
      %3159 = vmatpush2.bf16.msra.mxu0 0
      %3160 = vmatprep.subr.bf16.mxu0 0
      %3161 = vmatpush2.bf16.msra.mxu0 0
      %3162 = vmatprep.mubr.bf16.mxu0 0
      %3163 = vmatmul.mubr.bf16.gmra.mxu0 %v3116
      %v3164 = vpop.f32.mrf.mxu0
      %v3165 = vadd.f32 0.0, %v3164
      %v3166 = vpop.f32.mrf.mxu0
      %v3167 = vpop.f32.mrf.mxu0
      %v3168 = vadd.f32 0.0, %v3167
      %v3169 = vpop.f32.mrf.mxu0
      %3170 = vmatprep.mubr.bf16.mxu0 0
      %3171 = vmatmul.mubr.bf16.gmra.mxu0 %v3119
      %v3172 = vpop.f32.mrf.mxu0
      %v3173 = vadd.f32 0.0, %v3172
      %v3174 = vpop.f32.mrf.mxu0
      %v3175 = vpop.f32.mrf.mxu0
      %v3176 = vadd.f32 0.0, %v3175
      %v3177 = vpop.f32.mrf.mxu0
      %3178 = vmatprep.mubr.bf16.mxu0 0
      %3179 = vmatmul.mubr.bf16.gmra.mxu0 %v3122
      %v3180 = vpop.f32.mrf.mxu0
      %v3181 = vadd.f32 0.0, %v3180
      %v3182 = vpop.f32.mrf.mxu0
      %v3183 = vpop.f32.mrf.mxu0
      %v3184 = vadd.f32 0.0, %v3183
      %v3185 = vpop.f32.mrf.mxu0
      %3186 = vmatprep.mubr.bf16.mxu0 0
      %3187 = vmatmul.mubr.bf16.gmra.mxu0 %v3125
      %v3188 = vpop.f32.mrf.mxu0
      %v3189 = vadd.f32 0.0, %v3188
      %v3190 = vpop.f32.mrf.mxu0
      %v3191 = vpop.f32.mrf.mxu0
      %v3192 = vadd.f32 0.0, %v3191
      %v3193 = vpop.f32.mrf.mxu0
      %3194 = vmatprep.mubr.bf16.mxu0 0
      %3195 = vmatmul.mubr.bf16.gmra.mxu0 %v3128
      %v3196 = vpop.f32.mrf.mxu0
      %v3197 = vadd.f32 0.0, %v3196
      %v3198 = vpop.f32.mrf.mxu0
      %v3199 = vpop.f32.mrf.mxu0
      %v3200 = vpop.f32.mrf.mxu0
      %3201 = vdwg.mxu0
      %v3202 = vadd.f32 %v3091, %v3165
      %v3203 = vadd.f32 %v3092, %v3168
      %v3204 = vadd.f32 %v3093, %v3173
      %v3205 = vadd.f32 %v3094, %v3176
      %v3206 = vadd.f32 %v3095, %v3181
      %v3207 = vadd.f32 %v3096, %v3184
      %v3208 = vadd.f32 %v3097, %v3189
      %v3209 = vadd.f32 %v3098, %v3192
      %v3210 = vadd.f32 %v3099, %v3197
      %v3211 = vadd.f32 %v3202, %v1462
      %v3212 = vadd.f32 %v3203, %v1462
      %v3213 = vadd.f32 %v3204, %v1462
      %v3214 = vadd.f32 %v3205, %v1462
      %v3215 = vadd.f32 %v3206, %v1462
      %v3216 = vadd.f32 %v3207, %v1462
      %v3217 = vadd.f32 %v3208, %v1462
      %v3218 = vadd.f32 %v3209, %v1462
      %v3219 = vadd.f32 %v3210, %v1462
      %v3220 = vmax.f32 %v3211, 0.0
      %v3221 = vmax.f32 %v3212, 0.0
      %v3222 = vmax.f32 %v3213, 0.0
      %v3223 = vmax.f32 %v3214, 0.0
      %v3224 = vmax.f32 %v3215, 0.0
      %v3225 = vmax.f32 %v3216, 0.0
      %v3226 = vmax.f32 %v3217, 0.0
      %v3227 = vmax.f32 %v3218, 0.0
      %v3228 = vmax.f32 %v3219, 0.0
      %v3229 = vmax.f32 %v2339, %v3220
      %v3230 = vmax.f32 %v2340, %v3221
      %v3231 = vmax.f32 %v2341, %v3222
      %v3232 = vmax.f32 %v2342, %v3223
      %v3233 = vmax.f32 %v2343, %v3224
      %v3234 = vmax.f32 %v2344, %v3225
      %v3235 = vmax.f32 %v2345, %v3226
      %v3236 = vmax.f32 %v2346, %v3227
      %v3237 = vmax.f32 %v2347, %v3228
      %3238 = vmatprep.subr.bf16.mxu0 0
      %3239 = vmatpush1.bf16.msra.mxu0 0
      %3240 = vmatprep.subr.bf16.mxu0 0
      %3241 = vmatpush1.bf16.msra.mxu0 0
      %3242 = vmatprep.subr.bf16.mxu0 0
      %3243 = vmatpush1.bf16.msra.mxu0 0
      %3244 = vmatprep.subr.bf16.mxu0 0
      %3245 = vmatpush1.bf16.msra.mxu0 0
      %3246 = vmatprep.subr.bf16.mxu0 0
      %3247 = vmatpush1.bf16.msra.mxu0 0
      %3248 = vmatprep.subr.bf16.mxu0 0
      %3249 = vmatpush1.bf16.msra.mxu0 0
      %3250 = vmatprep.subr.bf16.mxu0 0
      %3251 = vmatpush1.bf16.msra.mxu0 0
      %3252 = vmatprep.subr.bf16.mxu0 0
      %3253 = vmatpush1.bf16.msra.mxu0 %v341
      %3254 = vmatprep.subr.bf16.mxu0 0
      %3255 = vmatpush2.bf16.msra.mxu0 0
      %3256 = vmatprep.subr.bf16.mxu0 0
      %3257 = vmatpush2.bf16.msra.mxu0 0
      %3258 = vmatprep.subr.bf16.mxu0 0
      %3259 = vmatpush2.bf16.msra.mxu0 0
      %3260 = vmatprep.subr.bf16.mxu0 0
      %3261 = vmatpush2.bf16.msra.mxu0 0
      %3262 = vmatprep.subr.bf16.mxu0 0
      %3263 = vmatpush2.bf16.msra.mxu0 0
      %3264 = vmatprep.subr.bf16.mxu0 0
      %3265 = vmatpush2.bf16.msra.mxu0 0
      %3266 = vmatprep.subr.bf16.mxu0 0
      %3267 = vmatpush2.bf16.msra.mxu0 0
      %3268 = vmatprep.subr.bf16.mxu0 0
      %3269 = vmatpush2.bf16.msra.mxu0 0
      %3270 = vmatprep.mubr.bf16.mxu0 0
      %3271 = vmatmul.mubr.bf16.gmra.mxu0 %v949
      %v3272 = vpop.f32.mrf.mxu0
      %v3273 = vadd.f32 0.0, %v3272
      %v3274 = vpop.f32.mrf.mxu0
      %v3275 = vpop.f32.mrf.mxu0
      %v3276 = vadd.f32 0.0, %v3275
      %v3277 = vpop.f32.mrf.mxu0
      %3278 = vmatprep.mubr.bf16.mxu0 0
      %3279 = vmatmul.mubr.bf16.gmra.mxu0 %v952
      %v3280 = vpop.f32.mrf.mxu0
      %v3281 = vadd.f32 0.0, %v3280
      %v3282 = vpop.f32.mrf.mxu0
      %v3283 = vpop.f32.mrf.mxu0
      %v3284 = vadd.f32 0.0, %v3283
      %v3285 = vpop.f32.mrf.mxu0
      %3286 = vmatprep.mubr.bf16.mxu0 0
      %3287 = vmatmul.mubr.bf16.gmra.mxu0 %v955
      %v3288 = vpop.f32.mrf.mxu0
      %v3289 = vadd.f32 0.0, %v3288
      %v3290 = vpop.f32.mrf.mxu0
      %v3291 = vpop.f32.mrf.mxu0
      %v3292 = vadd.f32 0.0, %v3291
      %v3293 = vpop.f32.mrf.mxu0
      %3294 = vmatprep.mubr.bf16.mxu0 0
      %3295 = vmatmul.mubr.bf16.gmra.mxu0 %v958
      %v3296 = vpop.f32.mrf.mxu0
      %v3297 = vadd.f32 0.0, %v3296
      %v3298 = vpop.f32.mrf.mxu0
      %v3299 = vpop.f32.mrf.mxu0
      %v3300 = vadd.f32 0.0, %v3299
      %v3301 = vpop.f32.mrf.mxu0
      %3302 = vmatprep.mubr.bf16.mxu0 0
      %3303 = vmatmul.mubr.bf16.gmra.mxu0 %v961
      %v3304 = vpop.f32.mrf.mxu0
      %v3305 = vadd.f32 0.0, %v3304
      %v3306 = vpop.f32.mrf.mxu0
      %v3307 = vpop.f32.mrf.mxu0
      %v3308 = vpop.f32.mrf.mxu0
      %3309 = vdwg.mxu0
      %3310 = vmatprep.subr.bf16.mxu0 0
      %3311 = vmatpush1.bf16.msra.mxu0 0
      %3312 = vmatprep.subr.bf16.mxu0 0
      %3313 = vmatpush1.bf16.msra.mxu0 0
      %3314 = vmatprep.subr.bf16.mxu0 0
      %3315 = vmatpush1.bf16.msra.mxu0 0
      %3316 = vmatprep.subr.bf16.mxu0 0
      %3317 = vmatpush1.bf16.msra.mxu0 0
      %3318 = vmatprep.subr.bf16.mxu0 0
      %3319 = vmatpush1.bf16.msra.mxu0 0
      %3320 = vmatprep.subr.bf16.mxu0 0
      %3321 = vmatpush1.bf16.msra.mxu0 0
      %3322 = vmatprep.subr.bf16.mxu0 0
      %3323 = vmatpush1.bf16.msra.mxu0 0
      %3324 = vmatprep.subr.bf16.mxu0 0
      %3325 = vmatpush1.bf16.msra.mxu0 %v454
      %3326 = vmatprep.subr.bf16.mxu0 0
      %3327 = vmatpush2.bf16.msra.mxu0 0
      %3328 = vmatprep.subr.bf16.mxu0 0
      %3329 = vmatpush2.bf16.msra.mxu0 0
      %3330 = vmatprep.subr.bf16.mxu0 0
      %3331 = vmatpush2.bf16.msra.mxu0 0
      %3332 = vmatprep.subr.bf16.mxu0 0
      %3333 = vmatpush2.bf16.msra.mxu0 0
      %3334 = vmatprep.subr.bf16.mxu0 0
      %3335 = vmatpush2.bf16.msra.mxu0 0
      %3336 = vmatprep.subr.bf16.mxu0 0
      %3337 = vmatpush2.bf16.msra.mxu0 0
      %3338 = vmatprep.subr.bf16.mxu0 0
      %3339 = vmatpush2.bf16.msra.mxu0 0
      %3340 = vmatprep.subr.bf16.mxu0 0
      %3341 = vmatpush2.bf16.msra.mxu0 0
      %3342 = vmatprep.mubr.bf16.mxu0 0
      %3343 = vmatmul.mubr.bf16.gmra.mxu0 %v814
      %v3344 = vpop.f32.mrf.mxu0
      %v3345 = vadd.f32 %v3273, %v3344
      %v3346 = vpop.f32.mrf.mxu0
      %v3347 = vpop.f32.mrf.mxu0
      %v3348 = vadd.f32 %v3276, %v3347
      %v3349 = vpop.f32.mrf.mxu0
      %3350 = vmatprep.mubr.bf16.mxu0 0
      %3351 = vmatmul.mubr.bf16.gmra.mxu0 %v817
      %v3352 = vpop.f32.mrf.mxu0
      %v3353 = vadd.f32 %v3281, %v3352
      %v3354 = vpop.f32.mrf.mxu0
      %v3355 = vpop.f32.mrf.mxu0
      %v3356 = vadd.f32 %v3284, %v3355
      %v3357 = vpop.f32.mrf.mxu0
      %3358 = vmatprep.mubr.bf16.mxu0 0
      %3359 = vmatmul.mubr.bf16.gmra.mxu0 %v820
      %v3360 = vpop.f32.mrf.mxu0
      %v3361 = vadd.f32 %v3289, %v3360
      %v3362 = vpop.f32.mrf.mxu0
      %v3363 = vpop.f32.mrf.mxu0
      %v3364 = vadd.f32 %v3292, %v3363
      %v3365 = vpop.f32.mrf.mxu0
      %3366 = vmatprep.mubr.bf16.mxu0 0
      %3367 = vmatmul.mubr.bf16.gmra.mxu0 %v823
      %v3368 = vpop.f32.mrf.mxu0
      %v3369 = vadd.f32 %v3297, %v3368
      %v3370 = vpop.f32.mrf.mxu0
      %v3371 = vpop.f32.mrf.mxu0
      %v3372 = vadd.f32 %v3300, %v3371
      %v3373 = vpop.f32.mrf.mxu0
      %3374 = vmatprep.mubr.bf16.mxu0 0
      %3375 = vmatmul.mubr.bf16.gmra.mxu0 %v826
      %v3376 = vpop.f32.mrf.mxu0
      %v3377 = vadd.f32 %v3305, %v3376
      %v3378 = vpop.f32.mrf.mxu0
      %v3379 = vpop.f32.mrf.mxu0
      %v3380 = vpop.f32.mrf.mxu0
      %3381 = vdwg.mxu0
      %3382 = vmatprep.subr.bf16.mxu0 0
      %3383 = vmatpush1.bf16.msra.mxu0 0
      %3384 = vmatprep.subr.bf16.mxu0 0
      %3385 = vmatpush1.bf16.msra.mxu0 0
      %3386 = vmatprep.subr.bf16.mxu0 0
      %3387 = vmatpush1.bf16.msra.mxu0 0
      %3388 = vmatprep.subr.bf16.mxu0 0
      %3389 = vmatpush1.bf16.msra.mxu0 0
      %3390 = vmatprep.subr.bf16.mxu0 0
      %3391 = vmatpush1.bf16.msra.mxu0 0
      %3392 = vmatprep.subr.bf16.mxu0 0
      %3393 = vmatpush1.bf16.msra.mxu0 0
      %3394 = vmatprep.subr.bf16.mxu0 0
      %3395 = vmatpush1.bf16.msra.mxu0 0
      %3396 = vmatprep.subr.bf16.mxu0 0
      %3397 = vmatpush1.bf16.msra.mxu0 %v581
      %3398 = vmatprep.subr.bf16.mxu0 0
      %3399 = vmatpush2.bf16.msra.mxu0 0
      %3400 = vmatprep.subr.bf16.mxu0 0
      %3401 = vmatpush2.bf16.msra.mxu0 0
      %3402 = vmatprep.subr.bf16.mxu0 0
      %3403 = vmatpush2.bf16.msra.mxu0 0
      %3404 = vmatprep.subr.bf16.mxu0 0
      %3405 = vmatpush2.bf16.msra.mxu0 0
      %3406 = vmatprep.subr.bf16.mxu0 0
      %3407 = vmatpush2.bf16.msra.mxu0 0
      %3408 = vmatprep.subr.bf16.mxu0 0
      %3409 = vmatpush2.bf16.msra.mxu0 0
      %3410 = vmatprep.subr.bf16.mxu0 0
      %3411 = vmatpush2.bf16.msra.mxu0 0
      %3412 = vmatprep.subr.bf16.mxu0 0
      %3413 = vmatpush2.bf16.msra.mxu0 0
      %3414 = vmatprep.mubr.bf16.mxu0 0
      %3415 = vmatmul.mubr.bf16.gmra.mxu0 %v1953
      %v3416 = vpop.f32.mrf.mxu0
      %v3417 = vadd.f32 0.0, %v3416
      %v3418 = vpop.f32.mrf.mxu0
      %v3419 = vpop.f32.mrf.mxu0
      %v3420 = vadd.f32 0.0, %v3419
      %v3421 = vpop.f32.mrf.mxu0
      %3422 = vmatprep.mubr.bf16.mxu0 0
      %3423 = vmatmul.mubr.bf16.gmra.mxu0 %v1956
      %v3424 = vpop.f32.mrf.mxu0
      %v3425 = vadd.f32 0.0, %v3424
      %v3426 = vpop.f32.mrf.mxu0
      %v3427 = vpop.f32.mrf.mxu0
      %v3428 = vadd.f32 0.0, %v3427
      %v3429 = vpop.f32.mrf.mxu0
      %3430 = vmatprep.mubr.bf16.mxu0 0
      %3431 = vmatmul.mubr.bf16.gmra.mxu0 %v1959
      %v3432 = vpop.f32.mrf.mxu0
      %v3433 = vadd.f32 0.0, %v3432
      %v3434 = vpop.f32.mrf.mxu0
      %v3435 = vpop.f32.mrf.mxu0
      %v3436 = vadd.f32 0.0, %v3435
      %v3437 = vpop.f32.mrf.mxu0
      %3438 = vmatprep.mubr.bf16.mxu0 0
      %3439 = vmatmul.mubr.bf16.gmra.mxu0 %v1962
      %v3440 = vpop.f32.mrf.mxu0
      %v3441 = vadd.f32 0.0, %v3440
      %v3442 = vpop.f32.mrf.mxu0
      %v3443 = vpop.f32.mrf.mxu0
      %v3444 = vadd.f32 0.0, %v3443
      %v3445 = vpop.f32.mrf.mxu0
      %3446 = vmatprep.mubr.bf16.mxu0 0
      %3447 = vmatmul.mubr.bf16.gmra.mxu0 %v1965
      %v3448 = vpop.f32.mrf.mxu0
      %v3449 = vadd.f32 0.0, %v3448
      %v3450 = vpop.f32.mrf.mxu0
      %v3451 = vpop.f32.mrf.mxu0
      %v3452 = vpop.f32.mrf.mxu0
      %3453 = vdwg.mxu0
      %v3454 = vadd.f32 %v3345, %v3417
      %v3455 = vadd.f32 %v3348, %v3420
      %v3456 = vadd.f32 %v3353, %v3425
      %v3457 = vadd.f32 %v3356, %v3428
      %v3458 = vadd.f32 %v3361, %v3433
      %v3459 = vadd.f32 %v3364, %v3436
      %v3460 = vadd.f32 %v3369, %v3441
      %v3461 = vadd.f32 %v3372, %v3444
      %v3462 = vadd.f32 %v3377, %v3449
      %3463 = vmatprep.subr.bf16.mxu0 0
      %3464 = vmatpush1.bf16.msra.mxu0 0
      %3465 = vmatprep.subr.bf16.mxu0 0
      %3466 = vmatpush1.bf16.msra.mxu0 0
      %3467 = vmatprep.subr.bf16.mxu0 0
      %3468 = vmatpush1.bf16.msra.mxu0 0
      %3469 = vmatprep.subr.bf16.mxu0 0
      %3470 = vmatpush1.bf16.msra.mxu0 0
      %3471 = vmatprep.subr.bf16.mxu0 0
      %3472 = vmatpush1.bf16.msra.mxu0 0
      %3473 = vmatprep.subr.bf16.mxu0 0
      %3474 = vmatpush1.bf16.msra.mxu0 0
      %3475 = vmatprep.subr.bf16.mxu0 0
      %3476 = vmatpush1.bf16.msra.mxu0 0
      %3477 = vmatprep.subr.bf16.mxu0 0
      %3478 = vmatpush1.bf16.msra.mxu0 %v705
      %3479 = vmatprep.subr.bf16.mxu0 0
      %3480 = vmatpush2.bf16.msra.mxu0 0
      %3481 = vmatprep.subr.bf16.mxu0 0
      %3482 = vmatpush2.bf16.msra.mxu0 0
      %3483 = vmatprep.subr.bf16.mxu0 0
      %3484 = vmatpush2.bf16.msra.mxu0 0
      %3485 = vmatprep.subr.bf16.mxu0 0
      %3486 = vmatpush2.bf16.msra.mxu0 0
      %3487 = vmatprep.subr.bf16.mxu0 0
      %3488 = vmatpush2.bf16.msra.mxu0 0
      %3489 = vmatprep.subr.bf16.mxu0 0
      %3490 = vmatpush2.bf16.msra.mxu0 0
      %3491 = vmatprep.subr.bf16.mxu0 0
      %3492 = vmatpush2.bf16.msra.mxu0 0
      %3493 = vmatprep.subr.bf16.mxu0 0
      %3494 = vmatpush2.bf16.msra.mxu0 0
      %3495 = vmatprep.mubr.bf16.mxu0 0
      %3496 = vmatmul.mubr.bf16.gmra.mxu0 %v1243
      %v3497 = vpop.f32.mrf.mxu0
      %v3498 = vadd.f32 0.0, %v3497
      %v3499 = vpop.f32.mrf.mxu0
      %v3500 = vpop.f32.mrf.mxu0
      %v3501 = vadd.f32 0.0, %v3500
      %v3502 = vpop.f32.mrf.mxu0
      %3503 = vmatprep.mubr.bf16.mxu0 0
      %3504 = vmatmul.mubr.bf16.gmra.mxu0 %v1246
      %v3505 = vpop.f32.mrf.mxu0
      %v3506 = vadd.f32 0.0, %v3505
      %v3507 = vpop.f32.mrf.mxu0
      %v3508 = vpop.f32.mrf.mxu0
      %v3509 = vadd.f32 0.0, %v3508
      %v3510 = vpop.f32.mrf.mxu0
      %3511 = vmatprep.mubr.bf16.mxu0 0
      %3512 = vmatmul.mubr.bf16.gmra.mxu0 %v1249
      %v3513 = vpop.f32.mrf.mxu0
      %v3514 = vadd.f32 0.0, %v3513
      %v3515 = vpop.f32.mrf.mxu0
      %v3516 = vpop.f32.mrf.mxu0
      %v3517 = vadd.f32 0.0, %v3516
      %v3518 = vpop.f32.mrf.mxu0
      %3519 = vmatprep.mubr.bf16.mxu0 0
      %3520 = vmatmul.mubr.bf16.gmra.mxu0 %v1252
      %v3521 = vpop.f32.mrf.mxu0
      %v3522 = vadd.f32 0.0, %v3521
      %v3523 = vpop.f32.mrf.mxu0
      %v3524 = vpop.f32.mrf.mxu0
      %v3525 = vadd.f32 0.0, %v3524
      %v3526 = vpop.f32.mrf.mxu0
      %3527 = vmatprep.mubr.bf16.mxu0 0
      %3528 = vmatmul.mubr.bf16.gmra.mxu0 %v1255
      %v3529 = vpop.f32.mrf.mxu0
      %v3530 = vadd.f32 0.0, %v3529
      %v3531 = vpop.f32.mrf.mxu0
      %v3532 = vpop.f32.mrf.mxu0
      %v3533 = vpop.f32.mrf.mxu0
      %3534 = vdwg.mxu0
      %v3535 = vadd.f32 %v3454, %v3498
      %v3536 = vadd.f32 %v3455, %v3501
      %v3537 = vadd.f32 %v3456, %v3506
      %v3538 = vadd.f32 %v3457, %v3509
      %v3539 = vadd.f32 %v3458, %v3514
      %v3540 = vadd.f32 %v3459, %v3517
      %v3541 = vadd.f32 %v3460, %v3522
      %v3542 = vadd.f32 %v3461, %v3525
      %v3543 = vadd.f32 %v3462, %v3530
      %3544 = vmatprep.subr.bf16.mxu0 0
      %3545 = vmatpush1.bf16.msra.mxu0 0
      %3546 = vmatprep.subr.bf16.mxu0 0
      %3547 = vmatpush1.bf16.msra.mxu0 0
      %3548 = vmatprep.subr.bf16.mxu0 0
      %3549 = vmatpush1.bf16.msra.mxu0 0
      %3550 = vmatprep.subr.bf16.mxu0 0
      %3551 = vmatpush1.bf16.msra.mxu0 0
      %3552 = vmatprep.subr.bf16.mxu0 0
      %3553 = vmatpush1.bf16.msra.mxu0 0
      %3554 = vmatprep.subr.bf16.mxu0 0
      %3555 = vmatpush1.bf16.msra.mxu0 0
      %3556 = vmatprep.subr.bf16.mxu0 0
      %3557 = vmatpush1.bf16.msra.mxu0 0
      %3558 = vmatprep.subr.bf16.mxu0 0
      %3559 = vmatpush1.bf16.msra.mxu0 %v829
      %3560 = vmatprep.subr.bf16.mxu0 0
      %3561 = vmatpush2.bf16.msra.mxu0 0
      %3562 = vmatprep.subr.bf16.mxu0 0
      %3563 = vmatpush2.bf16.msra.mxu0 0
      %3564 = vmatprep.subr.bf16.mxu0 0
      %3565 = vmatpush2.bf16.msra.mxu0 0
      %3566 = vmatprep.subr.bf16.mxu0 0
      %3567 = vmatpush2.bf16.msra.mxu0 0
      %3568 = vmatprep.subr.bf16.mxu0 0
      %3569 = vmatpush2.bf16.msra.mxu0 0
      %3570 = vmatprep.subr.bf16.mxu0 0
      %3571 = vmatpush2.bf16.msra.mxu0 0
      %3572 = vmatprep.subr.bf16.mxu0 0
      %3573 = vmatpush2.bf16.msra.mxu0 0
      %3574 = vmatprep.subr.bf16.mxu0 0
      %3575 = vmatpush2.bf16.msra.mxu0 0
      %3576 = vmatprep.mubr.bf16.mxu0 0
      %3577 = vmatmul.mubr.bf16.gmra.mxu0 %v1360
      %v3578 = vpop.f32.mrf.mxu0
      %v3579 = vadd.f32 0.0, %v3578
      %v3580 = vpop.f32.mrf.mxu0
      %v3581 = vpop.f32.mrf.mxu0
      %v3582 = vadd.f32 0.0, %v3581
      %v3583 = vpop.f32.mrf.mxu0
      %3584 = vmatprep.mubr.bf16.mxu0 0
      %3585 = vmatmul.mubr.bf16.gmra.mxu0 %v1363
      %v3586 = vpop.f32.mrf.mxu0
      %v3587 = vadd.f32 0.0, %v3586
      %v3588 = vpop.f32.mrf.mxu0
      %v3589 = vpop.f32.mrf.mxu0
      %v3590 = vadd.f32 0.0, %v3589
      %v3591 = vpop.f32.mrf.mxu0
      %3592 = vmatprep.mubr.bf16.mxu0 0
      %3593 = vmatmul.mubr.bf16.gmra.mxu0 %v1366
      %v3594 = vpop.f32.mrf.mxu0
      %v3595 = vadd.f32 0.0, %v3594
      %v3596 = vpop.f32.mrf.mxu0
      %v3597 = vpop.f32.mrf.mxu0
      %v3598 = vadd.f32 0.0, %v3597
      %v3599 = vpop.f32.mrf.mxu0
      %3600 = vmatprep.mubr.bf16.mxu0 0
      %3601 = vmatmul.mubr.bf16.gmra.mxu0 %v1369
      %v3602 = vpop.f32.mrf.mxu0
      %v3603 = vadd.f32 0.0, %v3602
      %v3604 = vpop.f32.mrf.mxu0
      %v3605 = vpop.f32.mrf.mxu0
      %v3606 = vadd.f32 0.0, %v3605
      %v3607 = vpop.f32.mrf.mxu0
      %3608 = vmatprep.mubr.bf16.mxu0 0
      %3609 = vmatmul.mubr.bf16.gmra.mxu0 %v1372
      %v3610 = vpop.f32.mrf.mxu0
      %v3611 = vadd.f32 0.0, %v3610
      %v3612 = vpop.f32.mrf.mxu0
      %v3613 = vpop.f32.mrf.mxu0
      %v3614 = vpop.f32.mrf.mxu0
      %3615 = vdwg.mxu0
      %v3616 = vadd.f32 %v3535, %v3579
      %v3617 = vadd.f32 %v3536, %v3582
      %v3618 = vadd.f32 %v3537, %v3587
      %v3619 = vadd.f32 %v3538, %v3590
      %v3620 = vadd.f32 %v3539, %v3595
      %v3621 = vadd.f32 %v3540, %v3598
      %v3622 = vadd.f32 %v3541, %v3603
      %v3623 = vadd.f32 %v3542, %v3606
      %v3624 = vadd.f32 %v3543, %v3611
      %3625 = vmatprep.subr.bf16.mxu0 0
      %3626 = vmatpush1.bf16.msra.mxu0 0
      %3627 = vmatprep.subr.bf16.mxu0 0
      %3628 = vmatpush1.bf16.msra.mxu0 0
      %3629 = vmatprep.subr.bf16.mxu0 0
      %3630 = vmatpush1.bf16.msra.mxu0 0
      %3631 = vmatprep.subr.bf16.mxu0 0
      %3632 = vmatpush1.bf16.msra.mxu0 0
      %3633 = vmatprep.subr.bf16.mxu0 0
      %3634 = vmatpush1.bf16.msra.mxu0 0
      %3635 = vmatprep.subr.bf16.mxu0 0
      %3636 = vmatpush1.bf16.msra.mxu0 0
      %3637 = vmatprep.subr.bf16.mxu0 0
      %3638 = vmatpush1.bf16.msra.mxu0 0
      %3639 = vmatprep.subr.bf16.mxu0 0
      %3640 = vmatpush1.bf16.msra.mxu0 %v964
      %3641 = vmatprep.subr.bf16.mxu0 0
      %3642 = vmatpush2.bf16.msra.mxu0 0
      %3643 = vmatprep.subr.bf16.mxu0 0
      %3644 = vmatpush2.bf16.msra.mxu0 0
      %3645 = vmatprep.subr.bf16.mxu0 0
      %3646 = vmatpush2.bf16.msra.mxu0 0
      %3647 = vmatprep.subr.bf16.mxu0 0
      %3648 = vmatpush2.bf16.msra.mxu0 0
      %3649 = vmatprep.subr.bf16.mxu0 0
      %3650 = vmatpush2.bf16.msra.mxu0 0
      %3651 = vmatprep.subr.bf16.mxu0 0
      %3652 = vmatpush2.bf16.msra.mxu0 0
      %3653 = vmatprep.subr.bf16.mxu0 0
      %3654 = vmatpush2.bf16.msra.mxu0 0
      %3655 = vmatprep.subr.bf16.mxu0 0
      %3656 = vmatpush2.bf16.msra.mxu0 0
      %3657 = vmatprep.mubr.bf16.mxu0 0
      %3658 = vmatmul.mubr.bf16.gmra.mxu0 %v2226
      %v3659 = vpop.f32.mrf.mxu0
      %v3660 = vadd.f32 0.0, %v3659
      %v3661 = vpop.f32.mrf.mxu0
      %v3662 = vpop.f32.mrf.mxu0
      %v3663 = vadd.f32 0.0, %v3662
      %v3664 = vpop.f32.mrf.mxu0
      %3665 = vmatprep.mubr.bf16.mxu0 0
      %3666 = vmatmul.mubr.bf16.gmra.mxu0 %v2229
      %v3667 = vpop.f32.mrf.mxu0
      %v3668 = vadd.f32 0.0, %v3667
      %v3669 = vpop.f32.mrf.mxu0
      %v3670 = vpop.f32.mrf.mxu0
      %v3671 = vadd.f32 0.0, %v3670
      %v3672 = vpop.f32.mrf.mxu0
      %3673 = vmatprep.mubr.bf16.mxu0 0
      %3674 = vmatmul.mubr.bf16.gmra.mxu0 %v2232
      %v3675 = vpop.f32.mrf.mxu0
      %v3676 = vadd.f32 0.0, %v3675
      %v3677 = vpop.f32.mrf.mxu0
      %v3678 = vpop.f32.mrf.mxu0
      %v3679 = vadd.f32 0.0, %v3678
      %v3680 = vpop.f32.mrf.mxu0
      %3681 = vmatprep.mubr.bf16.mxu0 0
      %3682 = vmatmul.mubr.bf16.gmra.mxu0 %v2235
      %v3683 = vpop.f32.mrf.mxu0
      %v3684 = vadd.f32 0.0, %v3683
      %v3685 = vpop.f32.mrf.mxu0
      %v3686 = vpop.f32.mrf.mxu0
      %v3687 = vadd.f32 0.0, %v3686
      %v3688 = vpop.f32.mrf.mxu0
      %3689 = vmatprep.mubr.bf16.mxu0 0
      %3690 = vmatmul.mubr.bf16.gmra.mxu0 %v2238
      %v3691 = vpop.f32.mrf.mxu0
      %v3692 = vadd.f32 0.0, %v3691
      %v3693 = vpop.f32.mrf.mxu0
      %v3694 = vpop.f32.mrf.mxu0
      %v3695 = vpop.f32.mrf.mxu0
      %3696 = vdwg.mxu0
      %v3697 = vadd.f32 %v3616, %v3660
      %v3698 = vadd.f32 %v3617, %v3663
      %v3699 = vadd.f32 %v3618, %v3668
      %v3700 = vadd.f32 %v3619, %v3671
      %v3701 = vadd.f32 %v3620, %v3676
      %v3702 = vadd.f32 %v3621, %v3679
      %v3703 = vadd.f32 %v3622, %v3684
      %v3704 = vadd.f32 %v3623, %v3687
      %v3705 = vadd.f32 %v3624, %v3692
      %3706 = vmatprep.subr.bf16.mxu0 0
      %3707 = vmatpush1.bf16.msra.mxu0 0
      %3708 = vmatprep.subr.bf16.mxu0 0
      %3709 = vmatpush1.bf16.msra.mxu0 0
      %3710 = vmatprep.subr.bf16.mxu0 0
      %3711 = vmatpush1.bf16.msra.mxu0 0
      %3712 = vmatprep.subr.bf16.mxu0 0
      %3713 = vmatpush1.bf16.msra.mxu0 0
      %3714 = vmatprep.subr.bf16.mxu0 0
      %3715 = vmatpush1.bf16.msra.mxu0 0
      %3716 = vmatprep.subr.bf16.mxu0 0
      %3717 = vmatpush1.bf16.msra.mxu0 0
      %3718 = vmatprep.subr.bf16.mxu0 0
      %3719 = vmatpush1.bf16.msra.mxu0 0
      %3720 = vmatprep.subr.bf16.mxu0 0
      %3721 = vmatpush1.bf16.msra.mxu0 %v1111
      %3722 = vmatprep.subr.bf16.mxu0 0
      %3723 = vmatpush2.bf16.msra.mxu0 0
      %3724 = vmatprep.subr.bf16.mxu0 0
      %3725 = vmatpush2.bf16.msra.mxu0 0
      %3726 = vmatprep.subr.bf16.mxu0 0
      %3727 = vmatpush2.bf16.msra.mxu0 0
      %3728 = vmatprep.subr.bf16.mxu0 0
      %3729 = vmatpush2.bf16.msra.mxu0 0
      %3730 = vmatprep.subr.bf16.mxu0 0
      %3731 = vmatpush2.bf16.msra.mxu0 0
      %3732 = vmatprep.subr.bf16.mxu0 0
      %3733 = vmatpush2.bf16.msra.mxu0 0
      %3734 = vmatprep.subr.bf16.mxu0 0
      %3735 = vmatpush2.bf16.msra.mxu0 0
      %3736 = vmatprep.subr.bf16.mxu0 0
      %3737 = vmatpush2.bf16.msra.mxu0 0
      %3738 = vmatprep.mubr.bf16.mxu0 0
      %3739 = vmatmul.mubr.bf16.gmra.mxu0 %v3005
      %v3740 = vpop.f32.mrf.mxu0
      %v3741 = vadd.f32 0.0, %v3740
      %v3742 = vpop.f32.mrf.mxu0
      %v3743 = vpop.f32.mrf.mxu0
      %v3744 = vadd.f32 0.0, %v3743
      %v3745 = vpop.f32.mrf.mxu0
      %3746 = vmatprep.mubr.bf16.mxu0 0
      %3747 = vmatmul.mubr.bf16.gmra.mxu0 %v3008
      %v3748 = vpop.f32.mrf.mxu0
      %v3749 = vadd.f32 0.0, %v3748
      %v3750 = vpop.f32.mrf.mxu0
      %v3751 = vpop.f32.mrf.mxu0
      %v3752 = vadd.f32 0.0, %v3751
      %v3753 = vpop.f32.mrf.mxu0
      %3754 = vmatprep.mubr.bf16.mxu0 0
      %3755 = vmatmul.mubr.bf16.gmra.mxu0 %v3011
      %v3756 = vpop.f32.mrf.mxu0
      %v3757 = vadd.f32 0.0, %v3756
      %v3758 = vpop.f32.mrf.mxu0
      %v3759 = vpop.f32.mrf.mxu0
      %v3760 = vadd.f32 0.0, %v3759
      %v3761 = vpop.f32.mrf.mxu0
      %3762 = vmatprep.mubr.bf16.mxu0 0
      %3763 = vmatmul.mubr.bf16.gmra.mxu0 %v3014
      %v3764 = vpop.f32.mrf.mxu0
      %v3765 = vadd.f32 0.0, %v3764
      %v3766 = vpop.f32.mrf.mxu0
      %v3767 = vpop.f32.mrf.mxu0
      %v3768 = vadd.f32 0.0, %v3767
      %v3769 = vpop.f32.mrf.mxu0
      %3770 = vmatprep.mubr.bf16.mxu0 0
      %3771 = vmatmul.mubr.bf16.gmra.mxu0 %v3017
      %v3772 = vpop.f32.mrf.mxu0
      %v3773 = vadd.f32 0.0, %v3772
      %v3774 = vpop.f32.mrf.mxu0
      %v3775 = vpop.f32.mrf.mxu0
      %v3776 = vpop.f32.mrf.mxu0
      %3777 = vdwg.mxu0
      %v3778 = vadd.f32 %v3697, %v3741
      %v3779 = vadd.f32 %v3698, %v3744
      %v3780 = vadd.f32 %v3699, %v3749
      %v3781 = vadd.f32 %v3700, %v3752
      %v3782 = vadd.f32 %v3701, %v3757
      %v3783 = vadd.f32 %v3702, %v3760
      %v3784 = vadd.f32 %v3703, %v3765
      %v3785 = vadd.f32 %v3704, %v3768
      %v3786 = vadd.f32 %v3705, %v3773
      %3787 = vmatprep.subr.bf16.mxu0 0
      %3788 = vmatpush1.bf16.msra.mxu0 0
      %3789 = vmatprep.subr.bf16.mxu0 0
      %3790 = vmatpush1.bf16.msra.mxu0 0
      %3791 = vmatprep.subr.bf16.mxu0 0
      %3792 = vmatpush1.bf16.msra.mxu0 0
      %3793 = vmatprep.subr.bf16.mxu0 0
      %3794 = vmatpush1.bf16.msra.mxu0 0
      %3795 = vmatprep.subr.bf16.mxu0 0
      %3796 = vmatpush1.bf16.msra.mxu0 0
      %3797 = vmatprep.subr.bf16.mxu0 0
      %3798 = vmatpush1.bf16.msra.mxu0 0
      %3799 = vmatprep.subr.bf16.mxu0 0
      %3800 = vmatpush1.bf16.msra.mxu0 0
      %3801 = vmatprep.subr.bf16.mxu0 0
      %3802 = vmatpush1.bf16.msra.mxu0 %v1258
      %3803 = vmatprep.subr.bf16.mxu0 0
      %3804 = vmatpush2.bf16.msra.mxu0 0
      %3805 = vmatprep.subr.bf16.mxu0 0
      %3806 = vmatpush2.bf16.msra.mxu0 0
      %3807 = vmatprep.subr.bf16.mxu0 0
      %3808 = vmatpush2.bf16.msra.mxu0 0
      %3809 = vmatprep.subr.bf16.mxu0 0
      %3810 = vmatpush2.bf16.msra.mxu0 0
      %3811 = vmatprep.subr.bf16.mxu0 0
      %3812 = vmatpush2.bf16.msra.mxu0 0
      %3813 = vmatprep.subr.bf16.mxu0 0
      %3814 = vmatpush2.bf16.msra.mxu0 0
      %3815 = vmatprep.subr.bf16.mxu0 0
      %3816 = vmatpush2.bf16.msra.mxu0 0
      %3817 = vmatprep.subr.bf16.mxu0 0
      %3818 = vmatpush2.bf16.msra.mxu0 0
      %3819 = vmatprep.mubr.bf16.mxu0 0
      %3820 = vmatmul.mubr.bf16.gmra.mxu0 %v3116
      %v3821 = vpop.f32.mrf.mxu0
      %v3822 = vadd.f32 0.0, %v3821
      %v3823 = vpop.f32.mrf.mxu0
      %v3824 = vpop.f32.mrf.mxu0
      %v3825 = vadd.f32 0.0, %v3824
      %v3826 = vpop.f32.mrf.mxu0
      %3827 = vmatprep.mubr.bf16.mxu0 0
      %3828 = vmatmul.mubr.bf16.gmra.mxu0 %v3119
      %v3829 = vpop.f32.mrf.mxu0
      %v3830 = vadd.f32 0.0, %v3829
      %v3831 = vpop.f32.mrf.mxu0
      %v3832 = vpop.f32.mrf.mxu0
      %v3833 = vadd.f32 0.0, %v3832
      %v3834 = vpop.f32.mrf.mxu0
      %3835 = vmatprep.mubr.bf16.mxu0 0
      %3836 = vmatmul.mubr.bf16.gmra.mxu0 %v3122
      %v3837 = vpop.f32.mrf.mxu0
      %v3838 = vadd.f32 0.0, %v3837
      %v3839 = vpop.f32.mrf.mxu0
      %v3840 = vpop.f32.mrf.mxu0
      %v3841 = vadd.f32 0.0, %v3840
      %v3842 = vpop.f32.mrf.mxu0
      %3843 = vmatprep.mubr.bf16.mxu0 0
      %3844 = vmatmul.mubr.bf16.gmra.mxu0 %v3125
      %v3845 = vpop.f32.mrf.mxu0
      %v3846 = vadd.f32 0.0, %v3845
      %v3847 = vpop.f32.mrf.mxu0
      %v3848 = vpop.f32.mrf.mxu0
      %v3849 = vadd.f32 0.0, %v3848
      %v3850 = vpop.f32.mrf.mxu0
      %3851 = vmatprep.mubr.bf16.mxu0 0
      %3852 = vmatmul.mubr.bf16.gmra.mxu0 %v3128
      %v3853 = vpop.f32.mrf.mxu0
      %v3854 = vadd.f32 0.0, %v3853
      %v3855 = vpop.f32.mrf.mxu0
      %v3856 = vpop.f32.mrf.mxu0
      %v3857 = vpop.f32.mrf.mxu0
      %3858 = vdwg.mxu0
      %v3859 = vadd.f32 %v3778, %v3822
      %v3860 = vadd.f32 %v3779, %v3825
      %v3861 = vadd.f32 %v3780, %v3830
      %v3862 = vadd.f32 %v3781, %v3833
      %v3863 = vadd.f32 %v3782, %v3838
      %v3864 = vadd.f32 %v3783, %v3841
      %v3865 = vadd.f32 %v3784, %v3846
      %v3866 = vadd.f32 %v3785, %v3849
      %v3867 = vadd.f32 %v3786, %v3854
      %v3870 = vunpack.c.l.b16 %v292
      %v3871 = vunpack.c.l.b16 %v293
      %v3872 = vpack.c.b16 %v801, %v3870
      %v3873 = vpack.c.b16 %v3871, %v2959
      %v3874 = vrot.slane %v3872, 1
      %v3875 = vrot.slane %v2961, 1
      %v3876 = vsel %vm1349, %v3874, %v3875
      %v3877 = vrot.slane %v2962, 1
      %v3878 = vsel %vm1349, %v3875, %v3877
      %v3879 = vrot.slane %v2963, 1
      %v3880 = vsel %vm1349, %v3877, %v3879
      %v3881 = vrot.slane %v3873, 1
      %v3882 = vsel %vm1349, %v3879, %v3881
      %v3884 = vsel %vm320, %v3876, 0
      %v3887 = vsel %vm320, %v3878, 0
      %v3890 = vsel %vm320, %v3880, 0
      %v3893 = vsel %vm320, %v3882, 0
      %v3896 = vsel %vm320, %v3881, 0
      %3898 = vmatprep.subr.bf16.mxu0 0
      %3899 = vmatpush1.bf16.msra.mxu0 0
      %3900 = vmatprep.subr.bf16.mxu0 0
      %3901 = vmatpush1.bf16.msra.mxu0 0
      %3902 = vmatprep.subr.bf16.mxu0 0
      %3903 = vmatpush1.bf16.msra.mxu0 0
      %3904 = vmatprep.subr.bf16.mxu0 0
      %3905 = vmatpush1.bf16.msra.mxu0 0
      %3906 = vmatprep.subr.bf16.mxu0 0
      %3907 = vmatpush1.bf16.msra.mxu0 0
      %3908 = vmatprep.subr.bf16.mxu0 0
      %3909 = vmatpush1.bf16.msra.mxu0 0
      %3910 = vmatprep.subr.bf16.mxu0 0
      %3911 = vmatpush1.bf16.msra.mxu0 0
      %3912 = vmatprep.subr.bf16.mxu0 0
      %3913 = vmatpush1.bf16.msra.mxu0 %v1375
      %3914 = vmatprep.subr.bf16.mxu0 0
      %3915 = vmatpush2.bf16.msra.mxu0 0
      %3916 = vmatprep.subr.bf16.mxu0 0
      %3917 = vmatpush2.bf16.msra.mxu0 0
      %3918 = vmatprep.subr.bf16.mxu0 0
      %3919 = vmatpush2.bf16.msra.mxu0 0
      %3920 = vmatprep.subr.bf16.mxu0 0
      %3921 = vmatpush2.bf16.msra.mxu0 0
      %3922 = vmatprep.subr.bf16.mxu0 0
      %3923 = vmatpush2.bf16.msra.mxu0 0
      %3924 = vmatprep.subr.bf16.mxu0 0
      %3925 = vmatpush2.bf16.msra.mxu0 0
      %3926 = vmatprep.subr.bf16.mxu0 0
      %3927 = vmatpush2.bf16.msra.mxu0 0
      %3928 = vmatprep.subr.bf16.mxu0 0
      %3929 = vmatpush2.bf16.msra.mxu0 0
      %3930 = vmatprep.mubr.bf16.mxu0 0
      %3931 = vmatmul.mubr.bf16.gmra.mxu0 %v3884
      %v3932 = vpop.f32.mrf.mxu0
      %v3933 = vadd.f32 0.0, %v3932
      %v3934 = vpop.f32.mrf.mxu0
      %v3935 = vpop.f32.mrf.mxu0
      %v3936 = vadd.f32 0.0, %v3935
      %v3937 = vpop.f32.mrf.mxu0
      %3938 = vmatprep.mubr.bf16.mxu0 0
      %3939 = vmatmul.mubr.bf16.gmra.mxu0 %v3887
      %v3940 = vpop.f32.mrf.mxu0
      %v3941 = vadd.f32 0.0, %v3940
      %v3942 = vpop.f32.mrf.mxu0
      %v3943 = vpop.f32.mrf.mxu0
      %v3944 = vadd.f32 0.0, %v3943
      %v3945 = vpop.f32.mrf.mxu0
      %3946 = vmatprep.mubr.bf16.mxu0 0
      %3947 = vmatmul.mubr.bf16.gmra.mxu0 %v3890
      %v3948 = vpop.f32.mrf.mxu0
      %v3949 = vadd.f32 0.0, %v3948
      %v3950 = vpop.f32.mrf.mxu0
      %v3951 = vpop.f32.mrf.mxu0
      %v3952 = vadd.f32 0.0, %v3951
      %v3953 = vpop.f32.mrf.mxu0
      %3954 = vmatprep.mubr.bf16.mxu0 0
      %3955 = vmatmul.mubr.bf16.gmra.mxu0 %v3893
      %v3956 = vpop.f32.mrf.mxu0
      %v3957 = vadd.f32 0.0, %v3956
      %v3958 = vpop.f32.mrf.mxu0
      %v3959 = vpop.f32.mrf.mxu0
      %v3960 = vadd.f32 0.0, %v3959
      %v3961 = vpop.f32.mrf.mxu0
      %3962 = vmatprep.mubr.bf16.mxu0 0
      %3963 = vmatmul.mubr.bf16.gmra.mxu0 %v3896
      %v3964 = vpop.f32.mrf.mxu0
      %v3965 = vadd.f32 0.0, %v3964
      %v3966 = vpop.f32.mrf.mxu0
      %v3967 = vpop.f32.mrf.mxu0
      %v3968 = vpop.f32.mrf.mxu0
      %3969 = vdwg.mxu0
      %v3970 = vadd.f32 %v3859, %v3933
      %v3971 = vadd.f32 %v3860, %v3936
      %v3972 = vadd.f32 %v3861, %v3941
      %v3973 = vadd.f32 %v3862, %v3944
      %v3974 = vadd.f32 %v3863, %v3949
      %v3975 = vadd.f32 %v3864, %v3952
      %v3976 = vadd.f32 %v3865, %v3957
      %v3977 = vadd.f32 %v3866, %v3960
      %v3978 = vadd.f32 %v3867, %v3965
      %v3979 = vadd.f32 %v3970, %v1462
      %v3980 = vadd.f32 %v3971, %v1462
      %v3981 = vadd.f32 %v3972, %v1462
      %v3982 = vadd.f32 %v3973, %v1462
      %v3983 = vadd.f32 %v3974, %v1462
      %v3984 = vadd.f32 %v3975, %v1462
      %v3985 = vadd.f32 %v3976, %v1462
      %v3986 = vadd.f32 %v3977, %v1462
      %v3987 = vadd.f32 %v3978, %v1462
      %v3988 = vmax.f32 %v3979, 0.0
      %v3989 = vmax.f32 %v3980, 0.0
      %v3990 = vmax.f32 %v3981, 0.0
      %v3991 = vmax.f32 %v3982, 0.0
      %v3992 = vmax.f32 %v3983, 0.0
      %v3993 = vmax.f32 %v3984, 0.0
      %v3994 = vmax.f32 %v3985, 0.0
      %v3995 = vmax.f32 %v3986, 0.0
      %v3996 = vmax.f32 %v3987, 0.0
      %v3997 = vmax.f32 %v3229, %v3988
      %v3998 = vmax.f32 %v3230, %v3989
      %v3999 = vmax.f32 %v3231, %v3990
      %v4000 = vmax.f32 %v3232, %v3991
      %v4001 = vmax.f32 %v3233, %v3992
      %v4002 = vmax.f32 %v3234, %v3993
      %v4003 = vmax.f32 %v3235, %v3994
      %v4004 = vmax.f32 %v3236, %v3995
      %v4005 = vmax.f32 %v3237, %v3996
      %v4006 = vpack.c.bf16 %v3998, %v3997
      %v4007 = vpack.c.bf16 %v4000, %v3999
      %v4008 = vpack.c.bf16 %v4002, %v4001
      %v4009 = vpack.c.bf16 %v4004, %v4003
      %v4010 = vpack.c.bf16 %v4005, %v4005
      %v4016 = vunpack.c.l.b16 %v4006
      %v4017 = vunpack.c.h.b16 %v4006
      %v4018 = vunpack.c.l.b16 %v4007
      %v4019 = vunpack.c.h.b16 %v4007
      %v4020 = vunpack.c.l.b16 %v4008
      %v4021 = vunpack.c.h.b16 %v4008
      %v4022 = vunpack.c.l.b16 %v4009
      %v4023 = vunpack.c.h.b16 %v4009
      %v4024 = vunpack.c.l.b16 %v4010
      %v4025 = vpack.c.b16 %v4016, %v4016
      %v4026 = vpack.c.b16 %v4017, %v4017
      %v4027 = vpack.c.b16 %v4018, %v4018
      %v4028 = vpack.c.b16 %v4019, %v4019
      %v4029 = vpack.c.b16 %v4020, %v4020
      %v4030 = vpack.c.b16 %v4021, %v4021
      %v4031 = vpack.c.b16 %v4022, %v4022
      %v4032 = vpack.c.b16 %v4023, %v4023
      %v4033 = vpack.c.b16 %v4024, %v4024
      %vm4043 = vcmask 257024
      %4044 = vst.msk [vmem:[%s238] sm:$0xf] %vm4043, %v4025
      %4045 = vst.msk [vmem:[%s238 + $0x4] sm:$0xf] %vm4043, %v4026
      %4046 = vst.msk [vmem:[%s238 + $0x8] sm:$0xf] %vm4043, %v4027
      %4047 = vst.msk [vmem:[%s238 + $0xc] sm:$0xf] %vm4043, %v4028
      %4048 = vst.msk [vmem:[%s238 + $0x10] sm:$0xf] %vm4043, %v4029
      %4049 = vst.msk [vmem:[%s238 + $0x14] sm:$0xf] %vm4043, %v4030
      %4050 = vst.msk [vmem:[%s238 + $0x18] sm:$0xf] %vm4043, %v4031
      %4051 = vst.msk [vmem:[%s238 + $0x1c] sm:$0xf] %vm4043, %v4032
      %vm4052 = vcmask 257024
      %vm4053 = vsmask.f32 3328
      %vm4054 = vmand %vm4052, %vm4053
      %v4055 = vld [vmem:[%s238 + $0x20] sm:$0xf]
      %v4056 = vsel %vm4054, %v4033, %v4055
      %4057 = vst [vmem:[%s238 + $0x20] sm:$0xf] %v4056
      %vm4058 = vcmask 257027
      %vm4059 = vsmask.f32 7950
      %vm4060 = vmand %vm4058, %vm4059
      %v4061 = vld [vmem:[%s238 + $0x20] sm:$0x8]
      %v4062 = vsel %vm4060, 0, %v4061
      %4063 = vst [vmem:[%s238 + $0x20] sm:$0x8] %v4062
      %s4064 = smul.u32 %s18, 2
      %s4065 = sadd.s32 %s4064, %s19
      %p4066 = scmp.lt.s32.totalorder %s4065, 3
      %s4067 = scalar_select %p4066, %s4065, 3
      %s4068 = smul.addr %s4067, 9
      %s4069 = smul.addr %s4068, 4
      %s4070 = scalar_lea.vmem %s3, %s4069
      // Predicated region
      $region33: #{image_mask_net.3} parent=31 // pred_check
        %p4071 = pneg %p130
      $region34: #{image_mask_net.3} parent=31 // pred_check_branch
        %4073 = sbr.rel (%p4071) target = $region36
      $region35: #{image_mask_net.3} parent=31 // pred_region
        %s4074 = smul.u32 %s18, 2
        %s4075 = sadd.s32 %s4074, %s19
      $region36: #{image_mask_net.3} parent=31 // pred_fallthru
        _
    $region32: #{image_mask_net.3} parent=5 // pred_fallthru
      _
    %p4076 = scmp.le.s32.totalorder 2, %s9
    // Predicated region
    $region37: #{image_mask_net.3} parent=5 // pred_check
      %p4077 = pneg %p4076
    $region38: #{image_mask_net.3} parent=5 // pred_check_branch
      %4079 = sbr.rel (%p4077) target = $region40
    $region39: #{image_mask_net.3} parent=5 // pred_region
      %s4080 = ssub.s32 %s9, 2
      // Predicated region
      $region41: #{image_mask_net.3} parent=39 // pred_check
        %p4081 = pneg %p136
      $region42: #{image_mask_net.3} parent=39 // pred_check_branch
        %4083 = sbr.rel (%p4081) target = $region44
      $region43: #{image_mask_net.3} parent=39 // pred_region
        %s4084 = smul.u32 %s20, 2
        %s4085 = sadd.s32 %s4084, %s21
        %p4086 = scmp.lt.s32.totalorder %s4085, 3
        %s4087 = scalar_select %p4086, %s4085, 3
        %s4088 = smul.addr %s4087, 9
        %s4089 = smul.addr %s4088, 4
        %s4090 = scalar_lea.vmem %s3, %s4089
      $region44: #{image_mask_net.3} parent=39 // pred_fallthru
        _
    $region40: #{image_mask_net.3} parent=5 // pred_fallthru
      _
  $region6: #{image_mask_net.3} parent=0 // loop_footer
    %s13 = sadd.s32 1, %s9
  $region7: #{image_mask_net.3} parent=0 // loop_footer_branch
    %8 = sbr.rel target = $region3
  $region8: #{image_mask_net.3} parent=0 // loop_exit
    _

// kernel: image_mask_net.5
$region0: #{image_mask_net.5}
  #allocation0 [shape = 'u32[]', space=smem, size = 0x4, offset = 0x4, fixed_abs, tag = 'smem constant byte address 0x4 - core index']
  #allocation1 [shape = 'u32[144,128]{1,0:T(1,128)}', space=vmem, size = 0x12000, scoped, tag = 'internal scratch']
  #allocation2 [shape = 'f32[2,128]{1,0:T(2,128)}', space=vmem, size = 0x400, scoped, tag = 'scratch operand']
  %s0 = inlined_call_operand.vmem [shape: bf16[2,2048], index: 0, kind: input, shape index: {}]
  %s1 = inlined_call_operand.vmem [shape: bf16[2048,128], index: 1, kind: input, shape index: {}]
  %s2 = inlined_call_operand.vmem [shape: f32[1,128], index: 2, kind: input, shape index: {}]
  %s3 = inlined_call_operand.vmem [shape: f32[128,3], index: 3, kind: input, shape index: {}]
  %s4 = inlined_call_operand.vmem [shape: f32[1,3], index: 4, kind: input, shape index: {}]
  %s5 = inlined_call_operand.hbm [shape: f32[2,3], index: 5, kind: output, shape index: {}]
  %s6 = sld [smem:[#allocation0]]
  $region38: #{image_mask_net.5} parent=0
    _
  %s8 = ssub.s32 1, %s6
  %s9 = scalar_select 0, %s8, %s6
  $region1: #{image_mask_net.5} parent=0
    #allocation3 [shape = 'u8[1024]{0}', space=vmem, size = 0x400, scoped, tag = 'output window, operand 0, single buffered']
    #allocation4 [shape = 's32[1]{0}', space=sflag, size = 0x4, scoped, tag = 'scoped memory for image_mask_net.5']
    %10 = vsyncpa [#allocation4], 0
    // Predicated region
    $region2: #{image_mask_net.5} parent=1 // pred_check
      _
    $region3: #{image_mask_net.5} parent=1 // pred_check_branch
      %12 = sbr.rel (0) target = $region5
    $region4: #{image_mask_net.5} parent=1 // pred_region
      _
    $region5: #{image_mask_net.5} parent=1 // pred_fallthru
      _
    // Predicated region
    $region6: #{image_mask_net.5} parent=1 // pred_check
      _
    $region7: #{image_mask_net.5} parent=1 // pred_check_branch
      %14 = sbr.rel (0) target = $region9
    $region8: #{image_mask_net.5} parent=1 // pred_region
      _
    $region9: #{image_mask_net.5} parent=1 // pred_fallthru
      _
    // Predicated region
    $region10: #{image_mask_net.5} parent=1 // pred_check
      _
    $region11: #{image_mask_net.5} parent=1 // pred_check_branch
      %16 = sbr.rel (0) target = $region13
    $region12: #{image_mask_net.5} parent=1 // pred_region
      _
    $region13: #{image_mask_net.5} parent=1 // pred_fallthru
      _
    // Predicated region
    $region14: #{image_mask_net.5} parent=1 // pred_check
      _
    $region15: #{image_mask_net.5} parent=1 // pred_check_branch
      %18 = sbr.rel (0) target = $region17
    $region16: #{image_mask_net.5} parent=1 // pred_region
      _
    $region17: #{image_mask_net.5} parent=1 // pred_fallthru
      _
    // Predicated region
    $region18: #{image_mask_net.5} parent=1 // pred_check
      _
    $region19: #{image_mask_net.5} parent=1 // pred_check_branch
      %20 = sbr.rel (0) target = $region21
    $region20: #{image_mask_net.5} parent=1 // pred_region
      _
    $region21: #{image_mask_net.5} parent=1 // pred_fallthru
      _
    %p22 = scmp.eq.s32.totalorder 0, 0
    // Predicated region
    $region22: #{image_mask_net.5} parent=1 // pred_check
      %p23 = pneg %p22
    $region23: #{image_mask_net.5} parent=1 // pred_check_branch
      %25 = sbr.rel (%p23) target = $region25
    $region24: #{image_mask_net.5} parent=1 // pred_region
      %26 = vst [vmem:[#allocation2] sm:$0x3] 0.0
    $region25: #{image_mask_net.5} parent=1 // pred_fallthru
      _
    %v27 = vld [vmem:[#allocation2] sm:$0x3]
    %v28 = vld [vmem:[%s0] sm:$0xff]
    %v29 = vld [vmem:[%s0 + $0x8] sm:$0xff]
    %v30 = vld [vmem:[%s1] sm:$0xf]
    %v31 = vld [vmem:[%s1 + $0x4] sm:$0xf]
    %v32 = vld [vmem:[%s1 + $0x8] sm:$0xf]
    %v33 = vld [vmem:[%s1 + $0xc] sm:$0xf]
    %v34 = vld [vmem:[%s1 + $0x10] sm:$0xf]
    %v35 = vld [vmem:[%s1 + $0x14] sm:$0xf]
    %v36 = vld [vmem:[%s1 + $0x18] sm:$0xf]
    %v37 = vld [vmem:[%s1 + $0x1c] sm:$0xf]
    %v38 = vld [vmem:[%s1 + $0x20] sm:$0xf]
    %v39 = vld [vmem:[%s1 + $0x24] sm:$0xf]
    %v40 = vld [vmem:[%s1 + $0x28] sm:$0xf]
    %v41 = vld [vmem:[%s1 + $0x2c] sm:$0xf]
    %v42 = vld [vmem:[%s1 + $0x30] sm:$0xf]
    %v43 = vld [vmem:[%s1 + $0x34] sm:$0xf]
    %v44 = vld [vmem:[%s1 + $0x38] sm:$0xf]
    %v45 = vld [vmem:[%s1 + $0x3c] sm:$0xf]
    %v46 = vld [vmem:[%s1 + $0x40] sm:$0xf]
    %v47 = vld [vmem:[%s1 + $0x44] sm:$0xf]
    %v48 = vld [vmem:[%s1 + $0x48] sm:$0xf]
    %v49 = vld [vmem:[%s1 + $0x4c] sm:$0xf]
    %v50 = vld [vmem:[%s1 + $0x50] sm:$0xf]
    %v51 = vld [vmem:[%s1 + $0x54] sm:$0xf]
    %v52 = vld [vmem:[%s1 + $0x58] sm:$0xf]
    %v53 = vld [vmem:[%s1 + $0x5c] sm:$0xf]
    %v54 = vld [vmem:[%s1 + $0x60] sm:$0xf]
    %v55 = vld [vmem:[%s1 + $0x64] sm:$0xf]
    %v56 = vld [vmem:[%s1 + $0x68] sm:$0xf]
    %v57 = vld [vmem:[%s1 + $0x6c] sm:$0xf]
    %v58 = vld [vmem:[%s1 + $0x70] sm:$0xf]
    %v59 = vld [vmem:[%s1 + $0x74] sm:$0xf]
    %v60 = vld [vmem:[%s1 + $0x78] sm:$0xf]
    %v61 = vld [vmem:[%s1 + $0x7c] sm:$0xf]
    %v62 = vld [vmem:[%s1 + $0x80] sm:$0xf]
    %v63 = vld [vmem:[%s1 + $0x84] sm:$0xf]
    %v64 = vld [vmem:[%s1 + $0x88] sm:$0xf]
    %v65 = vld [vmem:[%s1 + $0x8c] sm:$0xf]
    %v66 = vld [vmem:[%s1 + $0x90] sm:$0xf]
    %v67 = vld [vmem:[%s1 + $0x94] sm:$0xf]
    %v68 = vld [vmem:[%s1 + $0x98] sm:$0xf]
    %v69 = vld [vmem:[%s1 + $0x9c] sm:$0xf]
    %v70 = vld [vmem:[%s1 + $0xa0] sm:$0xf]
    %v71 = vld [vmem:[%s1 + $0xa4] sm:$0xf]
    %v72 = vld [vmem:[%s1 + $0xa8] sm:$0xf]
    %v73 = vld [vmem:[%s1 + $0xac] sm:$0xf]
    %v74 = vld [vmem:[%s1 + $0xb0] sm:$0xf]
    %v75 = vld [vmem:[%s1 + $0xb4] sm:$0xf]
    %v76 = vld [vmem:[%s1 + $0xb8] sm:$0xf]
    %v77 = vld [vmem:[%s1 + $0xbc] sm:$0xf]
    %v78 = vld [vmem:[%s1 + $0xc0] sm:$0xf]
    %v79 = vld [vmem:[%s1 + $0xc4] sm:$0xf]
    %v80 = vld [vmem:[%s1 + $0xc8] sm:$0xf]
    %v81 = vld [vmem:[%s1 + $0xcc] sm:$0xf]
    %v82 = vld [vmem:[%s1 + $0xd0] sm:$0xf]
    %v83 = vld [vmem:[%s1 + $0xd4] sm:$0xf]
    %v84 = vld [vmem:[%s1 + $0xd8] sm:$0xf]
    %v85 = vld [vmem:[%s1 + $0xdc] sm:$0xf]
    %v86 = vld [vmem:[%s1 + $0xe0] sm:$0xf]
    %v87 = vld [vmem:[%s1 + $0xe4] sm:$0xf]
    %v88 = vld [vmem:[%s1 + $0xe8] sm:$0xf]
    %v89 = vld [vmem:[%s1 + $0xec] sm:$0xf]
    %v90 = vld [vmem:[%s1 + $0xf0] sm:$0xf]
    %v91 = vld [vmem:[%s1 + $0xf4] sm:$0xf]
    %v92 = vld [vmem:[%s1 + $0xf8] sm:$0xf]
    %v93 = vld [vmem:[%s1 + $0xfc] sm:$0xf]
    %v94 = vld [vmem:[%s1 + $0x100] sm:$0xf]
    %v95 = vld [vmem:[%s1 + $0x104] sm:$0xf]
    %v96 = vld [vmem:[%s1 + $0x108] sm:$0xf]
    %v97 = vld [vmem:[%s1 + $0x10c] sm:$0xf]
    %v98 = vld [vmem:[%s1 + $0x110] sm:$0xf]
    %v99 = vld [vmem:[%s1 + $0x114] sm:$0xf]
    %v100 = vld [vmem:[%s1 + $0x118] sm:$0xf]
    %v101 = vld [vmem:[%s1 + $0x11c] sm:$0xf]
    %v102 = vld [vmem:[%s1 + $0x120] sm:$0xf]
    %v103 = vld [vmem:[%s1 + $0x124] sm:$0xf]
    %v104 = vld [vmem:[%s1 + $0x128] sm:$0xf]
    %v105 = vld [vmem:[%s1 + $0x12c] sm:$0xf]
    %v106 = vld [vmem:[%s1 + $0x130] sm:$0xf]
    %v107 = vld [vmem:[%s1 + $0x134] sm:$0xf]
    %v108 = vld [vmem:[%s1 + $0x138] sm:$0xf]
    %v109 = vld [vmem:[%s1 + $0x13c] sm:$0xf]
    %v110 = vld [vmem:[%s1 + $0x140] sm:$0xf]
    %v111 = vld [vmem:[%s1 + $0x144] sm:$0xf]
    %v112 = vld [vmem:[%s1 + $0x148] sm:$0xf]
    %v113 = vld [vmem:[%s1 + $0x14c] sm:$0xf]
    %v114 = vld [vmem:[%s1 + $0x150] sm:$0xf]
    %v115 = vld [vmem:[%s1 + $0x154] sm:$0xf]
    %v116 = vld [vmem:[%s1 + $0x158] sm:$0xf]
    %v117 = vld [vmem:[%s1 + $0x15c] sm:$0xf]
    %v118 = vld [vmem:[%s1 + $0x160] sm:$0xf]
    %v119 = vld [vmem:[%s1 + $0x164] sm:$0xf]
    %v120 = vld [vmem:[%s1 + $0x168] sm:$0xf]
    %v121 = vld [vmem:[%s1 + $0x16c] sm:$0xf]
    %v122 = vld [vmem:[%s1 + $0x170] sm:$0xf]
    %v123 = vld [vmem:[%s1 + $0x174] sm:$0xf]
    %v124 = vld [vmem:[%s1 + $0x178] sm:$0xf]
    %v125 = vld [vmem:[%s1 + $0x17c] sm:$0xf]
    %v126 = vld [vmem:[%s1 + $0x180] sm:$0xf]
    %v127 = vld [vmem:[%s1 + $0x184] sm:$0xf]
    %v128 = vld [vmem:[%s1 + $0x188] sm:$0xf]
    %v129 = vld [vmem:[%s1 + $0x18c] sm:$0xf]
    %v130 = vld [vmem:[%s1 + $0x190] sm:$0xf]
    %v131 = vld [vmem:[%s1 + $0x194] sm:$0xf]
    %v132 = vld [vmem:[%s1 + $0x198] sm:$0xf]
    %v133 = vld [vmem:[%s1 + $0x19c] sm:$0xf]
    %v134 = vld [vmem:[%s1 + $0x1a0] sm:$0xf]
    %v135 = vld [vmem:[%s1 + $0x1a4] sm:$0xf]
    %v136 = vld [vmem:[%s1 + $0x1a8] sm:$0xf]
    %v137 = vld [vmem:[%s1 + $0x1ac] sm:$0xf]
    %v138 = vld [vmem:[%s1 + $0x1b0] sm:$0xf]
    %v139 = vld [vmem:[%s1 + $0x1b4] sm:$0xf]
    %v140 = vld [vmem:[%s1 + $0x1b8] sm:$0xf]
    %v141 = vld [vmem:[%s1 + $0x1bc] sm:$0xf]
    %v142 = vld [vmem:[%s1 + $0x1c0] sm:$0xf]
    %v143 = vld [vmem:[%s1 + $0x1c4] sm:$0xf]
    %v144 = vld [vmem:[%s1 + $0x1c8] sm:$0xf]
    %v145 = vld [vmem:[%s1 + $0x1cc] sm:$0xf]
    %v146 = vld [vmem:[%s1 + $0x1d0] sm:$0xf]
    %v147 = vld [vmem:[%s1 + $0x1d4] sm:$0xf]
    %v148 = vld [vmem:[%s1 + $0x1d8] sm:$0xf]
    %v149 = vld [vmem:[%s1 + $0x1dc] sm:$0xf]
    %v150 = vld [vmem:[%s1 + $0x1e0] sm:$0xf]
    %v151 = vld [vmem:[%s1 + $0x1e4] sm:$0xf]
    %v152 = vld [vmem:[%s1 + $0x1e8] sm:$0xf]
    %v153 = vld [vmem:[%s1 + $0x1ec] sm:$0xf]
    %v154 = vld [vmem:[%s1 + $0x1f0] sm:$0xf]
    %v155 = vld [vmem:[%s1 + $0x1f4] sm:$0xf]
    %v156 = vld [vmem:[%s1 + $0x1f8] sm:$0xf]
    %v157 = vld [vmem:[%s1 + $0x1fc] sm:$0xf]
    %v158 = vld [vmem:[%s1 + $0x200] sm:$0xf]
    %v159 = vld [vmem:[%s1 + $0x204] sm:$0xf]
    %v160 = vld [vmem:[%s1 + $0x208] sm:$0xf]
    %v161 = vld [vmem:[%s1 + $0x20c] sm:$0xf]
    %v162 = vld [vmem:[%s1 + $0x210] sm:$0xf]
    %v163 = vld [vmem:[%s1 + $0x214] sm:$0xf]
    %v164 = vld [vmem:[%s1 + $0x218] sm:$0xf]
    %v165 = vld [vmem:[%s1 + $0x21c] sm:$0xf]
    %v166 = vld [vmem:[%s1 + $0x220] sm:$0xf]
    %v167 = vld [vmem:[%s1 + $0x224] sm:$0xf]
    %v168 = vld [vmem:[%s1 + $0x228] sm:$0xf]
    %v169 = vld [vmem:[%s1 + $0x22c] sm:$0xf]
    %v170 = vld [vmem:[%s1 + $0x230] sm:$0xf]
    %v171 = vld [vmem:[%s1 + $0x234] sm:$0xf]
    %v172 = vld [vmem:[%s1 + $0x238] sm:$0xf]
    %v173 = vld [vmem:[%s1 + $0x23c] sm:$0xf]
    %v174 = vld [vmem:[%s1 + $0x240] sm:$0xf]
    %v175 = vld [vmem:[%s1 + $0x244] sm:$0xf]
    %v176 = vld [vmem:[%s1 + $0x248] sm:$0xf]
    %v177 = vld [vmem:[%s1 + $0x24c] sm:$0xf]
    %v178 = vld [vmem:[%s1 + $0x250] sm:$0xf]
    %v179 = vld [vmem:[%s1 + $0x254] sm:$0xf]
    %v180 = vld [vmem:[%s1 + $0x258] sm:$0xf]
    %v181 = vld [vmem:[%s1 + $0x25c] sm:$0xf]
    %v182 = vld [vmem:[%s1 + $0x260] sm:$0xf]
    %v183 = vld [vmem:[%s1 + $0x264] sm:$0xf]
    %v184 = vld [vmem:[%s1 + $0x268] sm:$0xf]
    %v185 = vld [vmem:[%s1 + $0x26c] sm:$0xf]
    %v186 = vld [vmem:[%s1 + $0x270] sm:$0xf]
    %v187 = vld [vmem:[%s1 + $0x274] sm:$0xf]
    %v188 = vld [vmem:[%s1 + $0x278] sm:$0xf]
    %v189 = vld [vmem:[%s1 + $0x27c] sm:$0xf]
    %v190 = vld [vmem:[%s1 + $0x280] sm:$0xf]
    %v191 = vld [vmem:[%s1 + $0x284] sm:$0xf]
    %v192 = vld [vmem:[%s1 + $0x288] sm:$0xf]
    %v193 = vld [vmem:[%s1 + $0x28c] sm:$0xf]
    %v194 = vld [vmem:[%s1 + $0x290] sm:$0xf]
    %v195 = vld [vmem:[%s1 + $0x294] sm:$0xf]
    %v196 = vld [vmem:[%s1 + $0x298] sm:$0xf]
    %v197 = vld [vmem:[%s1 + $0x29c] sm:$0xf]
    %v198 = vld [vmem:[%s1 + $0x2a0] sm:$0xf]
    %v199 = vld [vmem:[%s1 + $0x2a4] sm:$0xf]
    %v200 = vld [vmem:[%s1 + $0x2a8] sm:$0xf]
    %v201 = vld [vmem:[%s1 + $0x2ac] sm:$0xf]
    %v202 = vld [vmem:[%s1 + $0x2b0] sm:$0xf]
    %v203 = vld [vmem:[%s1 + $0x2b4] sm:$0xf]
    %v204 = vld [vmem:[%s1 + $0x2b8] sm:$0xf]
    %v205 = vld [vmem:[%s1 + $0x2bc] sm:$0xf]
    %v206 = vld [vmem:[%s1 + $0x2c0] sm:$0xf]
    %v207 = vld [vmem:[%s1 + $0x2c4] sm:$0xf]
    %v208 = vld [vmem:[%s1 + $0x2c8] sm:$0xf]
    %v209 = vld [vmem:[%s1 + $0x2cc] sm:$0xf]
    %v210 = vld [vmem:[%s1 + $0x2d0] sm:$0xf]
    %v211 = vld [vmem:[%s1 + $0x2d4] sm:$0xf]
    %v212 = vld [vmem:[%s1 + $0x2d8] sm:$0xf]
    %v213 = vld [vmem:[%s1 + $0x2dc] sm:$0xf]
    %v214 = vld [vmem:[%s1 + $0x2e0] sm:$0xf]
    %v215 = vld [vmem:[%s1 + $0x2e4] sm:$0xf]
    %v216 = vld [vmem:[%s1 + $0x2e8] sm:$0xf]
    %v217 = vld [vmem:[%s1 + $0x2ec] sm:$0xf]
    %v218 = vld [vmem:[%s1 + $0x2f0] sm:$0xf]
    %v219 = vld [vmem:[%s1 + $0x2f4] sm:$0xf]
    %v220 = vld [vmem:[%s1 + $0x2f8] sm:$0xf]
    %v221 = vld [vmem:[%s1 + $0x2fc] sm:$0xf]
    %v222 = vld [vmem:[%s1 + $0x300] sm:$0xf]
    %v223 = vld [vmem:[%s1 + $0x304] sm:$0xf]
    %v224 = vld [vmem:[%s1 + $0x308] sm:$0xf]
    %v225 = vld [vmem:[%s1 + $0x30c] sm:$0xf]
    %v226 = vld [vmem:[%s1 + $0x310] sm:$0xf]
    %v227 = vld [vmem:[%s1 + $0x314] sm:$0xf]
    %v228 = vld [vmem:[%s1 + $0x318] sm:$0xf]
    %v229 = vld [vmem:[%s1 + $0x31c] sm:$0xf]
    %v230 = vld [vmem:[%s1 + $0x320] sm:$0xf]
    %v231 = vld [vmem:[%s1 + $0x324] sm:$0xf]
    %v232 = vld [vmem:[%s1 + $0x328] sm:$0xf]
    %v233 = vld [vmem:[%s1 + $0x32c] sm:$0xf]
    %v234 = vld [vmem:[%s1 + $0x330] sm:$0xf]
    %v235 = vld [vmem:[%s1 + $0x334] sm:$0xf]
    %v236 = vld [vmem:[%s1 + $0x338] sm:$0xf]
    %v237 = vld [vmem:[%s1 + $0x33c] sm:$0xf]
    %v238 = vld [vmem:[%s1 + $0x340] sm:$0xf]
    %v239 = vld [vmem:[%s1 + $0x344] sm:$0xf]
    %v240 = vld [vmem:[%s1 + $0x348] sm:$0xf]
    %v241 = vld [vmem:[%s1 + $0x34c] sm:$0xf]
    %v242 = vld [vmem:[%s1 + $0x350] sm:$0xf]
    %v243 = vld [vmem:[%s1 + $0x354] sm:$0xf]
    %v244 = vld [vmem:[%s1 + $0x358] sm:$0xf]
    %v245 = vld [vmem:[%s1 + $0x35c] sm:$0xf]
    %v246 = vld [vmem:[%s1 + $0x360] sm:$0xf]
    %v247 = vld [vmem:[%s1 + $0x364] sm:$0xf]
    %v248 = vld [vmem:[%s1 + $0x368] sm:$0xf]
    %v249 = vld [vmem:[%s1 + $0x36c] sm:$0xf]
    %v250 = vld [vmem:[%s1 + $0x370] sm:$0xf]
    %v251 = vld [vmem:[%s1 + $0x374] sm:$0xf]
    %v252 = vld [vmem:[%s1 + $0x378] sm:$0xf]
    %v253 = vld [vmem:[%s1 + $0x37c] sm:$0xf]
    %v254 = vld [vmem:[%s1 + $0x380] sm:$0xf]
    %v255 = vld [vmem:[%s1 + $0x384] sm:$0xf]
    %v256 = vld [vmem:[%s1 + $0x388] sm:$0xf]
    %v257 = vld [vmem:[%s1 + $0x38c] sm:$0xf]
    %v258 = vld [vmem:[%s1 + $0x390] sm:$0xf]
    %v259 = vld [vmem:[%s1 + $0x394] sm:$0xf]
    %v260 = vld [vmem:[%s1 + $0x398] sm:$0xf]
    %v261 = vld [vmem:[%s1 + $0x39c] sm:$0xf]
    %v262 = vld [vmem:[%s1 + $0x3a0] sm:$0xf]
    %v263 = vld [vmem:[%s1 + $0x3a4] sm:$0xf]
    %v264 = vld [vmem:[%s1 + $0x3a8] sm:$0xf]
    %v265 = vld [vmem:[%s1 + $0x3ac] sm:$0xf]
    %v266 = vld [vmem:[%s1 + $0x3b0] sm:$0xf]
    %v267 = vld [vmem:[%s1 + $0x3b4] sm:$0xf]
    %v268 = vld [vmem:[%s1 + $0x3b8] sm:$0xf]
    %v269 = vld [vmem:[%s1 + $0x3bc] sm:$0xf]
    %v270 = vld [vmem:[%s1 + $0x3c0] sm:$0xf]
    %v271 = vld [vmem:[%s1 + $0x3c4] sm:$0xf]
    %v272 = vld [vmem:[%s1 + $0x3c8] sm:$0xf]
    %v273 = vld [vmem:[%s1 + $0x3cc] sm:$0xf]
    %v274 = vld [vmem:[%s1 + $0x3d0] sm:$0xf]
    %v275 = vld [vmem:[%s1 + $0x3d4] sm:$0xf]
    %v276 = vld [vmem:[%s1 + $0x3d8] sm:$0xf]
    %v277 = vld [vmem:[%s1 + $0x3dc] sm:$0xf]
    %v278 = vld [vmem:[%s1 + $0x3e0] sm:$0xf]
    %v279 = vld [vmem:[%s1 + $0x3e4] sm:$0xf]
    %v280 = vld [vmem:[%s1 + $0x3e8] sm:$0xf]
    %v281 = vld [vmem:[%s1 + $0x3ec] sm:$0xf]
    %v282 = vld [vmem:[%s1 + $0x3f0] sm:$0xf]
    %v283 = vld [vmem:[%s1 + $0x3f4] sm:$0xf]
    %v284 = vld [vmem:[%s1 + $0x3f8] sm:$0xf]
    %v285 = vld [vmem:[%s1 + $0x3fc] sm:$0xf]
    %v288 = vcombine.high %v28, %v28
    %v290 = vunpack.c.l.s4 1966171168
    %v291 = vunpack.c.0.s8 %v290
    %v292 = vlaneseq
    %v293 = vshrl.u32 %v292, 7
    %v294 = vsub.s32 %v291, %v293
    %v295 = vrot.slane %v28, %v294
    %v297 = vunpack.c.l.s4 1966171168
    %v298 = vunpack.c.0.s8 %v297
    %v299 = vlaneseq
    %v300 = vshrl.u32 %v299, 7
    %v301 = vsub.s32 %v298, %v300
    %v302 = vrot.slane %v288, %v301
    %v303 = vcombine.high %v295, %v295
    %v304 = vcombine.high %v302, %v302
    %v306 = vunpack.c.l.s4 1966171168
    %v307 = vunpack.c.0.s8 %v306
    %v308 = vlaneseq
    %v309 = vshrl.u32 %v308, 7
    %v310 = vsub.s32 %v307, %v309
    %v311 = vrot.slane %v295, %v310
    %v313 = vunpack.c.l.s4 1966171168
    %v314 = vunpack.c.0.s8 %v313
    %v315 = vlaneseq
    %v316 = vshrl.u32 %v315, 7
    %v317 = vsub.s32 %v314, %v316
    %v318 = vrot.slane %v302, %v317
    %v320 = vunpack.c.l.s4 1966171168
    %v321 = vunpack.c.0.s8 %v320
    %v322 = vlaneseq
    %v323 = vshrl.u32 %v322, 7
    %v324 = vsub.s32 %v321, %v323
    %v325 = vrot.slane %v303, %v324
    %v327 = vunpack.c.l.s4 1966171168
    %v328 = vunpack.c.0.s8 %v327
    %v329 = vlaneseq
    %v330 = vshrl.u32 %v329, 7
    %v331 = vsub.s32 %v328, %v330
    %v332 = vrot.slane %v304, %v331
    %v333 = vcombine.high %v311, %v311
    %v334 = vcombine.high %v318, %v318
    %v335 = vcombine.high %v325, %v325
    %v336 = vcombine.high %v332, %v332
    %v337 = vcombine.high %v29, %v29
    %v339 = vunpack.c.l.s4 1966171168
    %v340 = vunpack.c.0.s8 %v339
    %v341 = vlaneseq
    %v342 = vshrl.u32 %v341, 7
    %v343 = vsub.s32 %v340, %v342
    %v344 = vrot.slane %v29, %v343
    %v346 = vunpack.c.l.s4 1966171168
    %v347 = vunpack.c.0.s8 %v346
    %v348 = vlaneseq
    %v349 = vshrl.u32 %v348, 7
    %v350 = vsub.s32 %v347, %v349
    %v351 = vrot.slane %v337, %v350
    %v352 = vcombine.high %v344, %v344
    %v353 = vcombine.high %v351, %v351
    %v355 = vunpack.c.l.s4 1966171168
    %v356 = vunpack.c.0.s8 %v355
    %v357 = vlaneseq
    %v358 = vshrl.u32 %v357, 7
    %v359 = vsub.s32 %v356, %v358
    %v360 = vrot.slane %v344, %v359
    %v362 = vunpack.c.l.s4 1966171168
    %v363 = vunpack.c.0.s8 %v362
    %v364 = vlaneseq
    %v365 = vshrl.u32 %v364, 7
    %v366 = vsub.s32 %v363, %v365
    %v367 = vrot.slane %v351, %v366
    %v369 = vunpack.c.l.s4 1966171168
    %v370 = vunpack.c.0.s8 %v369
    %v371 = vlaneseq
    %v372 = vshrl.u32 %v371, 7
    %v373 = vsub.s32 %v370, %v372
    %v374 = vrot.slane %v352, %v373
    %v376 = vunpack.c.l.s4 1966171168
    %v377 = vunpack.c.0.s8 %v376
    %v378 = vlaneseq
    %v379 = vshrl.u32 %v378, 7
    %v380 = vsub.s32 %v377, %v379
    %v381 = vrot.slane %v353, %v380
    %v382 = vcombine.high %v360, %v360
    %v383 = vcombine.high %v367, %v367
    %v384 = vcombine.high %v374, %v374
    %v385 = vcombine.high %v381, %v381
    %v658 = vunpack.c.l.b16 %v30
    %v659 = vunpack.c.l.b16 %v31
    %v660 = vunpack.c.l.b16 %v32
    %v661 = vunpack.c.l.b16 %v33
    %v662 = vunpack.c.l.b16 %v34
    %v663 = vunpack.c.l.b16 %v35
    %v664 = vunpack.c.l.b16 %v36
    %v665 = vunpack.c.l.b16 %v37
    %v666 = vunpack.c.l.b16 %v38
    %v667 = vunpack.c.l.b16 %v39
    %v668 = vunpack.c.l.b16 %v40
    %v669 = vunpack.c.l.b16 %v41
    %v670 = vunpack.c.l.b16 %v42
    %v671 = vunpack.c.l.b16 %v43
    %v672 = vunpack.c.l.b16 %v44
    %v673 = vunpack.c.l.b16 %v45
    %v674 = vunpack.c.l.b16 %v46
    %v675 = vunpack.c.l.b16 %v47
    %v676 = vunpack.c.l.b16 %v48
    %v677 = vunpack.c.l.b16 %v49
    %v678 = vunpack.c.l.b16 %v50
    %v679 = vunpack.c.l.b16 %v51
    %v680 = vunpack.c.l.b16 %v52
    %v681 = vunpack.c.l.b16 %v53
    %v682 = vunpack.c.l.b16 %v54
    %v683 = vunpack.c.l.b16 %v55
    %v684 = vunpack.c.l.b16 %v56
    %v685 = vunpack.c.l.b16 %v57
    %v686 = vunpack.c.l.b16 %v58
    %v687 = vunpack.c.l.b16 %v59
    %v688 = vunpack.c.l.b16 %v60
    %v689 = vunpack.c.l.b16 %v61
    %v690 = vunpack.c.l.b16 %v62
    %v691 = vunpack.c.l.b16 %v63
    %v692 = vunpack.c.l.b16 %v64
    %v693 = vunpack.c.l.b16 %v65
    %v694 = vunpack.c.l.b16 %v66
    %v695 = vunpack.c.l.b16 %v67
    %v696 = vunpack.c.l.b16 %v68
    %v697 = vunpack.c.l.b16 %v69
    %v698 = vunpack.c.l.b16 %v70
    %v699 = vunpack.c.l.b16 %v71
    %v700 = vunpack.c.l.b16 %v72
    %v701 = vunpack.c.l.b16 %v73
    %v702 = vunpack.c.l.b16 %v74
    %v703 = vunpack.c.l.b16 %v75
    %v704 = vunpack.c.l.b16 %v76
    %v705 = vunpack.c.l.b16 %v77
    %v706 = vunpack.c.l.b16 %v78
    %v707 = vunpack.c.l.b16 %v79
    %v708 = vunpack.c.l.b16 %v80
    %v709 = vunpack.c.l.b16 %v81
    %v710 = vunpack.c.l.b16 %v82
    %v711 = vunpack.c.l.b16 %v83
    %v712 = vunpack.c.l.b16 %v84
    %v713 = vunpack.c.l.b16 %v85
    %v714 = vunpack.c.l.b16 %v86
    %v715 = vunpack.c.l.b16 %v87
    %v716 = vunpack.c.l.b16 %v88
    %v717 = vunpack.c.l.b16 %v89
    %v718 = vunpack.c.l.b16 %v90
    %v719 = vunpack.c.l.b16 %v91
    %v720 = vunpack.c.l.b16 %v92
    %v721 = vunpack.c.l.b16 %v93
    %v722 = vunpack.c.l.b16 %v94
    %v723 = vunpack.c.l.b16 %v95
    %v724 = vunpack.c.l.b16 %v96
    %v725 = vunpack.c.l.b16 %v97
    %v726 = vunpack.c.l.b16 %v98
    %v727 = vunpack.c.l.b16 %v99
    %v728 = vunpack.c.l.b16 %v100
    %v729 = vunpack.c.l.b16 %v101
    %v730 = vunpack.c.l.b16 %v102
    %v731 = vunpack.c.l.b16 %v103
    %v732 = vunpack.c.l.b16 %v104
    %v733 = vunpack.c.l.b16 %v105
    %v734 = vunpack.c.l.b16 %v106
    %v735 = vunpack.c.l.b16 %v107
    %v736 = vunpack.c.l.b16 %v108
    %v737 = vunpack.c.l.b16 %v109
    %v738 = vunpack.c.l.b16 %v110
    %v739 = vunpack.c.l.b16 %v111
    %v740 = vunpack.c.l.b16 %v112
    %v741 = vunpack.c.l.b16 %v113
    %v742 = vunpack.c.l.b16 %v114
    %v743 = vunpack.c.l.b16 %v115
    %v744 = vunpack.c.l.b16 %v116
    %v745 = vunpack.c.l.b16 %v117
    %v746 = vunpack.c.l.b16 %v118
    %v747 = vunpack.c.l.b16 %v119
    %v748 = vunpack.c.l.b16 %v120
    %v749 = vunpack.c.l.b16 %v121
    %v750 = vunpack.c.l.b16 %v122
    %v751 = vunpack.c.l.b16 %v123
    %v752 = vunpack.c.l.b16 %v124
    %v753 = vunpack.c.l.b16 %v125
    %v754 = vunpack.c.l.b16 %v126
    %v755 = vunpack.c.l.b16 %v127
    %v756 = vunpack.c.l.b16 %v128
    %v757 = vunpack.c.l.b16 %v129
    %v758 = vunpack.c.l.b16 %v130
    %v759 = vunpack.c.l.b16 %v131
    %v760 = vunpack.c.l.b16 %v132
    %v761 = vunpack.c.l.b16 %v133
    %v762 = vunpack.c.l.b16 %v134
    %v763 = vunpack.c.l.b16 %v135
    %v764 = vunpack.c.l.b16 %v136
    %v765 = vunpack.c.l.b16 %v137
    %v766 = vunpack.c.l.b16 %v138
    %v767 = vunpack.c.l.b16 %v139
    %v768 = vunpack.c.l.b16 %v140
    %v769 = vunpack.c.l.b16 %v141
    %v770 = vunpack.c.l.b16 %v142
    %v771 = vunpack.c.l.b16 %v143
    %v772 = vunpack.c.l.b16 %v144
    %v773 = vunpack.c.l.b16 %v145
    %v774 = vunpack.c.l.b16 %v146
    %v775 = vunpack.c.l.b16 %v147
    %v776 = vunpack.c.l.b16 %v148
    %v777 = vunpack.c.l.b16 %v149
    %v778 = vunpack.c.l.b16 %v150
    %v779 = vunpack.c.l.b16 %v151
    %v780 = vunpack.c.l.b16 %v152
    %v781 = vunpack.c.l.b16 %v153
    %v782 = vunpack.c.l.b16 %v154
    %v783 = vunpack.c.l.b16 %v155
    %v784 = vunpack.c.l.b16 %v156
    %v785 = vunpack.c.l.b16 %v157
    %v786 = vunpack.c.l.b16 %v158
    %v787 = vunpack.c.l.b16 %v159
    %v788 = vunpack.c.l.b16 %v160
    %v789 = vunpack.c.l.b16 %v161
    %v790 = vunpack.c.l.b16 %v162
    %v791 = vunpack.c.l.b16 %v163
    %v792 = vunpack.c.l.b16 %v164
    %v793 = vunpack.c.l.b16 %v165
    %v794 = vunpack.c.l.b16 %v166
    %v795 = vunpack.c.l.b16 %v167
    %v796 = vunpack.c.l.b16 %v168
    %v797 = vunpack.c.l.b16 %v169
    %v798 = vunpack.c.l.b16 %v170
    %v799 = vunpack.c.l.b16 %v171
    %v800 = vunpack.c.l.b16 %v172
    %v801 = vunpack.c.l.b16 %v173
    %v802 = vunpack.c.l.b16 %v174
    %v803 = vunpack.c.l.b16 %v175
    %v804 = vunpack.c.l.b16 %v176
    %v805 = vunpack.c.l.b16 %v177
    %v806 = vunpack.c.l.b16 %v178
    %v807 = vunpack.c.l.b16 %v179
    %v808 = vunpack.c.l.b16 %v180
    %v809 = vunpack.c.l.b16 %v181
    %v810 = vunpack.c.l.b16 %v182
    %v811 = vunpack.c.l.b16 %v183
    %v812 = vunpack.c.l.b16 %v184
    %v813 = vunpack.c.l.b16 %v185
    %v814 = vunpack.c.l.b16 %v186
    %v815 = vunpack.c.l.b16 %v187
    %v816 = vunpack.c.l.b16 %v188
    %v817 = vunpack.c.l.b16 %v189
    %v818 = vunpack.c.l.b16 %v190
    %v819 = vunpack.c.l.b16 %v191
    %v820 = vunpack.c.l.b16 %v192
    %v821 = vunpack.c.l.b16 %v193
    %v822 = vunpack.c.l.b16 %v194
    %v823 = vunpack.c.l.b16 %v195
    %v824 = vunpack.c.l.b16 %v196
    %v825 = vunpack.c.l.b16 %v197
    %v826 = vunpack.c.l.b16 %v198
    %v827 = vunpack.c.l.b16 %v199
    %v828 = vunpack.c.l.b16 %v200
    %v829 = vunpack.c.l.b16 %v201
    %v830 = vunpack.c.l.b16 %v202
    %v831 = vunpack.c.l.b16 %v203
    %v832 = vunpack.c.l.b16 %v204
    %v833 = vunpack.c.l.b16 %v205
    %v834 = vunpack.c.l.b16 %v206
    %v835 = vunpack.c.l.b16 %v207
    %v836 = vunpack.c.l.b16 %v208
    %v837 = vunpack.c.l.b16 %v209
    %v838 = vunpack.c.l.b16 %v210
    %v839 = vunpack.c.l.b16 %v211
    %v840 = vunpack.c.l.b16 %v212
    %v841 = vunpack.c.l.b16 %v213
    %v842 = vunpack.c.l.b16 %v214
    %v843 = vunpack.c.l.b16 %v215
    %v844 = vunpack.c.l.b16 %v216
    %v845 = vunpack.c.l.b16 %v217
    %v846 = vunpack.c.l.b16 %v218
    %v847 = vunpack.c.l.b16 %v219
    %v848 = vunpack.c.l.b16 %v220
    %v849 = vunpack.c.l.b16 %v221
    %v850 = vunpack.c.l.b16 %v222
    %v851 = vunpack.c.l.b16 %v223
    %v852 = vunpack.c.l.b16 %v224
    %v853 = vunpack.c.l.b16 %v225
    %v854 = vunpack.c.l.b16 %v226
    %v855 = vunpack.c.l.b16 %v227
    %v856 = vunpack.c.l.b16 %v228
    %v857 = vunpack.c.l.b16 %v229
    %v858 = vunpack.c.l.b16 %v230
    %v859 = vunpack.c.l.b16 %v231
    %v860 = vunpack.c.l.b16 %v232
    %v861 = vunpack.c.l.b16 %v233
    %v862 = vunpack.c.l.b16 %v234
    %v863 = vunpack.c.l.b16 %v235
    %v864 = vunpack.c.l.b16 %v236
    %v865 = vunpack.c.l.b16 %v237
    %v866 = vunpack.c.l.b16 %v238
    %v867 = vunpack.c.l.b16 %v239
    %v868 = vunpack.c.l.b16 %v240
    %v869 = vunpack.c.l.b16 %v241
    %v870 = vunpack.c.l.b16 %v242
    %v871 = vunpack.c.l.b16 %v243
    %v872 = vunpack.c.l.b16 %v244
    %v873 = vunpack.c.l.b16 %v245
    %v874 = vunpack.c.l.b16 %v246
    %v875 = vunpack.c.l.b16 %v247
    %v876 = vunpack.c.l.b16 %v248
    %v877 = vunpack.c.l.b16 %v249
    %v878 = vunpack.c.l.b16 %v250
    %v879 = vunpack.c.l.b16 %v251
    %v880 = vunpack.c.l.b16 %v252
    %v881 = vunpack.c.l.b16 %v253
    %v882 = vunpack.c.l.b16 %v254
    %v883 = vunpack.c.l.b16 %v255
    %v884 = vunpack.c.l.b16 %v256
    %v885 = vunpack.c.l.b16 %v257
    %v886 = vunpack.c.l.b16 %v258
    %v887 = vunpack.c.l.b16 %v259
    %v888 = vunpack.c.l.b16 %v260
    %v889 = vunpack.c.l.b16 %v261
    %v890 = vunpack.c.l.b16 %v262
    %v891 = vunpack.c.l.b16 %v263
    %v892 = vunpack.c.l.b16 %v264
    %v893 = vunpack.c.l.b16 %v265
    %v894 = vunpack.c.l.b16 %v266
    %v895 = vunpack.c.l.b16 %v267
    %v896 = vunpack.c.l.b16 %v268
    %v897 = vunpack.c.l.b16 %v269
    %v898 = vunpack.c.l.b16 %v270
    %v899 = vunpack.c.l.b16 %v271
    %v900 = vunpack.c.l.b16 %v272
    %v901 = vunpack.c.l.b16 %v273
    %v902 = vunpack.c.l.b16 %v274
    %v903 = vunpack.c.l.b16 %v275
    %v904 = vunpack.c.l.b16 %v276
    %v905 = vunpack.c.l.b16 %v277
    %v906 = vunpack.c.l.b16 %v278
    %v907 = vunpack.c.l.b16 %v279
    %v908 = vunpack.c.l.b16 %v280
    %v909 = vunpack.c.l.b16 %v281
    %v910 = vunpack.c.l.b16 %v282
    %v911 = vunpack.c.l.b16 %v283
    %v912 = vunpack.c.l.b16 %v284
    %v913 = vunpack.c.l.b16 %v285
    %v914 = vpack.c.b16 %v659, %v658
    %v915 = vpack.c.b16 %v661, %v660
    %v916 = vpack.c.b16 %v663, %v662
    %v917 = vpack.c.b16 %v665, %v664
    %v918 = vpack.c.b16 %v667, %v666
    %v919 = vpack.c.b16 %v669, %v668
    %v920 = vpack.c.b16 %v671, %v670
    %v921 = vpack.c.b16 %v673, %v672
    %v922 = vpack.c.b16 %v675, %v674
    %v923 = vpack.c.b16 %v677, %v676
    %v924 = vpack.c.b16 %v679, %v678
    %v925 = vpack.c.b16 %v681, %v680
    %v926 = vpack.c.b16 %v683, %v682
    %v927 = vpack.c.b16 %v685, %v684
    %v928 = vpack.c.b16 %v687, %v686
    %v929 = vpack.c.b16 %v689, %v688
    %v930 = vpack.c.b16 %v691, %v690
    %v931 = vpack.c.b16 %v693, %v692
    %v932 = vpack.c.b16 %v695, %v694
    %v933 = vpack.c.b16 %v697, %v696
    %v934 = vpack.c.b16 %v699, %v698
    %v935 = vpack.c.b16 %v701, %v700
    %v936 = vpack.c.b16 %v703, %v702
    %v937 = vpack.c.b16 %v705, %v704
    %v938 = vpack.c.b16 %v707, %v706
    %v939 = vpack.c.b16 %v709, %v708
    %v940 = vpack.c.b16 %v711, %v710
    %v941 = vpack.c.b16 %v713, %v712
    %v942 = vpack.c.b16 %v715, %v714
    %v943 = vpack.c.b16 %v717, %v716
    %v944 = vpack.c.b16 %v719, %v718
    %v945 = vpack.c.b16 %v721, %v720
    %v946 = vpack.c.b16 %v723, %v722
    %v947 = vpack.c.b16 %v725, %v724
    %v948 = vpack.c.b16 %v727, %v726
    %v949 = vpack.c.b16 %v729, %v728
    %v950 = vpack.c.b16 %v731, %v730
    %v951 = vpack.c.b16 %v733, %v732
    %v952 = vpack.c.b16 %v735, %v734
    %v953 = vpack.c.b16 %v737, %v736
    %v954 = vpack.c.b16 %v739, %v738
    %v955 = vpack.c.b16 %v741, %v740
    %v956 = vpack.c.b16 %v743, %v742
    %v957 = vpack.c.b16 %v745, %v744
    %v958 = vpack.c.b16 %v747, %v746
    %v959 = vpack.c.b16 %v749, %v748
    %v960 = vpack.c.b16 %v751, %v750
    %v961 = vpack.c.b16 %v753, %v752
    %v962 = vpack.c.b16 %v755, %v754
    %v963 = vpack.c.b16 %v757, %v756
    %v964 = vpack.c.b16 %v759, %v758
    %v965 = vpack.c.b16 %v761, %v760
    %v966 = vpack.c.b16 %v763, %v762
    %v967 = vpack.c.b16 %v765, %v764
    %v968 = vpack.c.b16 %v767, %v766
    %v969 = vpack.c.b16 %v769, %v768
    %v970 = vpack.c.b16 %v771, %v770
    %v971 = vpack.c.b16 %v773, %v772
    %v972 = vpack.c.b16 %v775, %v774
    %v973 = vpack.c.b16 %v777, %v776
    %v974 = vpack.c.b16 %v779, %v778
    %v975 = vpack.c.b16 %v781, %v780
    %v976 = vpack.c.b16 %v783, %v782
    %v977 = vpack.c.b16 %v785, %v784
    %v978 = vpack.c.b16 %v787, %v786
    %v979 = vpack.c.b16 %v789, %v788
    %v980 = vpack.c.b16 %v791, %v790
    %v981 = vpack.c.b16 %v793, %v792
    %v982 = vpack.c.b16 %v795, %v794
    %v983 = vpack.c.b16 %v797, %v796
    %v984 = vpack.c.b16 %v799, %v798
    %v985 = vpack.c.b16 %v801, %v800
    %v986 = vpack.c.b16 %v803, %v802
    %v987 = vpack.c.b16 %v805, %v804
    %v988 = vpack.c.b16 %v807, %v806
    %v989 = vpack.c.b16 %v809, %v808
    %v990 = vpack.c.b16 %v811, %v810
    %v991 = vpack.c.b16 %v813, %v812
    %v992 = vpack.c.b16 %v815, %v814
    %v993 = vpack.c.b16 %v817, %v816
    %v994 = vpack.c.b16 %v819, %v818
    %v995 = vpack.c.b16 %v821, %v820
    %v996 = vpack.c.b16 %v823, %v822
    %v997 = vpack.c.b16 %v825, %v824
    %v998 = vpack.c.b16 %v827, %v826
    %v999 = vpack.c.b16 %v829, %v828
    %v1000 = vpack.c.b16 %v831, %v830
    %v1001 = vpack.c.b16 %v833, %v832
    %v1002 = vpack.c.b16 %v835, %v834
    %v1003 = vpack.c.b16 %v837, %v836
    %v1004 = vpack.c.b16 %v839, %v838
    %v1005 = vpack.c.b16 %v841, %v840
    %v1006 = vpack.c.b16 %v843, %v842
    %v1007 = vpack.c.b16 %v845, %v844
    %v1008 = vpack.c.b16 %v847, %v846
    %v1009 = vpack.c.b16 %v849, %v848
    %v1010 = vpack.c.b16 %v851, %v850
    %v1011 = vpack.c.b16 %v853, %v852
    %v1012 = vpack.c.b16 %v855, %v854
    %v1013 = vpack.c.b16 %v857, %v856
    %v1014 = vpack.c.b16 %v859, %v858
    %v1015 = vpack.c.b16 %v861, %v860
    %v1016 = vpack.c.b16 %v863, %v862
    %v1017 = vpack.c.b16 %v865, %v864
    %v1018 = vpack.c.b16 %v867, %v866
    %v1019 = vpack.c.b16 %v869, %v868
    %v1020 = vpack.c.b16 %v871, %v870
    %v1021 = vpack.c.b16 %v873, %v872
    %v1022 = vpack.c.b16 %v875, %v874
    %v1023 = vpack.c.b16 %v877, %v876
    %v1024 = vpack.c.b16 %v879, %v878
    %v1025 = vpack.c.b16 %v881, %v880
    %v1026 = vpack.c.b16 %v883, %v882
    %v1027 = vpack.c.b16 %v885, %v884
    %v1028 = vpack.c.b16 %v887, %v886
    %v1029 = vpack.c.b16 %v889, %v888
    %v1030 = vpack.c.b16 %v891, %v890
    %v1031 = vpack.c.b16 %v893, %v892
    %v1032 = vpack.c.b16 %v895, %v894
    %v1033 = vpack.c.b16 %v897, %v896
    %v1034 = vpack.c.b16 %v899, %v898
    %v1035 = vpack.c.b16 %v901, %v900
    %v1036 = vpack.c.b16 %v903, %v902
    %v1037 = vpack.c.b16 %v905, %v904
    %v1038 = vpack.c.b16 %v907, %v906
    %v1039 = vpack.c.b16 %v909, %v908
    %v1040 = vpack.c.b16 %v911, %v910
    %v1041 = vpack.c.b16 %v913, %v912
    %1170 = vmatprep.subr.bf16.mxu0 0
    %1171 = vmatpush1.bf16.msra.mxu0 %v921
    %1172 = vmatprep.subr.bf16.mxu0 0
    %1173 = vmatpush1.bf16.msra.mxu0 %v920
    %1174 = vmatprep.subr.bf16.mxu0 0
    %1175 = vmatpush1.bf16.msra.mxu0 %v919
    %1176 = vmatprep.subr.bf16.mxu0 0
    %1177 = vmatpush1.bf16.msra.mxu0 %v918
    %1178 = vmatprep.subr.bf16.mxu0 0
    %1179 = vmatpush1.bf16.msra.mxu0 %v917
    %1180 = vmatprep.subr.bf16.mxu0 0
    %1181 = vmatpush1.bf16.msra.mxu0 %v916
    %1182 = vmatprep.subr.bf16.mxu0 0
    %1183 = vmatpush1.bf16.msra.mxu0 %v915
    %1184 = vmatprep.subr.bf16.mxu0 0
    %1185 = vmatpush1.bf16.msra.mxu0 %v914
    %1186 = vmatprep.subr.bf16.mxu0 0
    %1187 = vmatpush2.bf16.msra.mxu0 %v929
    %1188 = vmatprep.subr.bf16.mxu0 0
    %1189 = vmatpush2.bf16.msra.mxu0 %v928
    %1190 = vmatprep.subr.bf16.mxu0 0
    %1191 = vmatpush2.bf16.msra.mxu0 %v927
    %1192 = vmatprep.subr.bf16.mxu0 0
    %1193 = vmatpush2.bf16.msra.mxu0 %v926
    %1194 = vmatprep.subr.bf16.mxu0 0
    %1195 = vmatpush2.bf16.msra.mxu0 %v925
    %1196 = vmatprep.subr.bf16.mxu0 0
    %1197 = vmatpush2.bf16.msra.mxu0 %v924
    %1198 = vmatprep.subr.bf16.mxu0 0
    %1199 = vmatpush2.bf16.msra.mxu0 %v923
    %1200 = vmatprep.subr.bf16.mxu0 0
    %1201 = vmatpush2.bf16.msra.mxu0 %v922
    %1202 = vmatprep.mubr.bf16.mxu0 %v325
    %1203 = vmatmul.mubr.bf16.gmra.mxu0 %v311
    %v1204 = vpop.f32.mrf.mxu0
    %v1205 = vadd.f32 0.0, %v1204
    %v1206 = vpop.f32.mrf.mxu0
    %v1207 = vpop.f32.mrf.mxu0
    %v1208 = vpop.f32.mrf.mxu0
    %1209 = vdwg.mxu0
    %1210 = vmatprep.subr.bf16.mxu0 0
    %1211 = vmatpush1.bf16.msra.mxu0 %v937
    %1212 = vmatprep.subr.bf16.mxu0 0
    %1213 = vmatpush1.bf16.msra.mxu0 %v936
    %1214 = vmatprep.subr.bf16.mxu0 0
    %1215 = vmatpush1.bf16.msra.mxu0 %v935
    %1216 = vmatprep.subr.bf16.mxu0 0
    %1217 = vmatpush1.bf16.msra.mxu0 %v934
    %1218 = vmatprep.subr.bf16.mxu0 0
    %1219 = vmatpush1.bf16.msra.mxu0 %v933
    %1220 = vmatprep.subr.bf16.mxu0 0
    %1221 = vmatpush1.bf16.msra.mxu0 %v932
    %1222 = vmatprep.subr.bf16.mxu0 0
    %1223 = vmatpush1.bf16.msra.mxu0 %v931
    %1224 = vmatprep.subr.bf16.mxu0 0
    %1225 = vmatpush1.bf16.msra.mxu0 %v930
    %1226 = vmatprep.subr.bf16.mxu0 0
    %1227 = vmatpush2.bf16.msra.mxu0 %v945
    %1228 = vmatprep.subr.bf16.mxu0 0
    %1229 = vmatpush2.bf16.msra.mxu0 %v944
    %1230 = vmatprep.subr.bf16.mxu0 0
    %1231 = vmatpush2.bf16.msra.mxu0 %v943
    %1232 = vmatprep.subr.bf16.mxu0 0
    %1233 = vmatpush2.bf16.msra.mxu0 %v942
    %1234 = vmatprep.subr.bf16.mxu0 0
    %1235 = vmatpush2.bf16.msra.mxu0 %v941
    %1236 = vmatprep.subr.bf16.mxu0 0
    %1237 = vmatpush2.bf16.msra.mxu0 %v940
    %1238 = vmatprep.subr.bf16.mxu0 0
    %1239 = vmatpush2.bf16.msra.mxu0 %v939
    %1240 = vmatprep.subr.bf16.mxu0 0
    %1241 = vmatpush2.bf16.msra.mxu0 %v938
    %1242 = vmatprep.mubr.bf16.mxu0 %v335
    %1243 = vmatmul.mubr.bf16.gmra.mxu0 %v333
    %v1244 = vpop.f32.mrf.mxu0
    %v1245 = vadd.f32 %v1205, %v1244
    %v1246 = vpop.f32.mrf.mxu0
    %v1247 = vpop.f32.mrf.mxu0
    %v1248 = vpop.f32.mrf.mxu0
    %1249 = vdwg.mxu0
    %1250 = vmatprep.subr.bf16.mxu0 0
    %1251 = vmatpush1.bf16.msra.mxu0 %v953
    %1252 = vmatprep.subr.bf16.mxu0 0
    %1253 = vmatpush1.bf16.msra.mxu0 %v952
    %1254 = vmatprep.subr.bf16.mxu0 0
    %1255 = vmatpush1.bf16.msra.mxu0 %v951
    %1256 = vmatprep.subr.bf16.mxu0 0
    %1257 = vmatpush1.bf16.msra.mxu0 %v950
    %1258 = vmatprep.subr.bf16.mxu0 0
    %1259 = vmatpush1.bf16.msra.mxu0 %v949
    %1260 = vmatprep.subr.bf16.mxu0 0
    %1261 = vmatpush1.bf16.msra.mxu0 %v948
    %1262 = vmatprep.subr.bf16.mxu0 0
    %1263 = vmatpush1.bf16.msra.mxu0 %v947
    %1264 = vmatprep.subr.bf16.mxu0 0
    %1265 = vmatpush1.bf16.msra.mxu0 %v946
    %1266 = vmatprep.subr.bf16.mxu0 0
    %1267 = vmatpush2.bf16.msra.mxu0 %v961
    %1268 = vmatprep.subr.bf16.mxu0 0
    %1269 = vmatpush2.bf16.msra.mxu0 %v960
    %1270 = vmatprep.subr.bf16.mxu0 0
    %1271 = vmatpush2.bf16.msra.mxu0 %v959
    %1272 = vmatprep.subr.bf16.mxu0 0
    %1273 = vmatpush2.bf16.msra.mxu0 %v958
    %1274 = vmatprep.subr.bf16.mxu0 0
    %1275 = vmatpush2.bf16.msra.mxu0 %v957
    %1276 = vmatprep.subr.bf16.mxu0 0
    %1277 = vmatpush2.bf16.msra.mxu0 %v956
    %1278 = vmatprep.subr.bf16.mxu0 0
    %1279 = vmatpush2.bf16.msra.mxu0 %v955
    %1280 = vmatprep.subr.bf16.mxu0 0
    %1281 = vmatpush2.bf16.msra.mxu0 %v954
    %1282 = vmatprep.mubr.bf16.mxu0 %v332
    %1283 = vmatmul.mubr.bf16.gmra.mxu0 %v318
    %v1284 = vpop.f32.mrf.mxu0
    %v1285 = vadd.f32 %v1245, %v1284
    %v1286 = vpop.f32.mrf.mxu0
    %v1287 = vpop.f32.mrf.mxu0
    %v1288 = vpop.f32.mrf.mxu0
    %1289 = vdwg.mxu0
    %1290 = vmatprep.subr.bf16.mxu0 0
    %1291 = vmatpush1.bf16.msra.mxu0 %v969
    %1292 = vmatprep.subr.bf16.mxu0 0
    %1293 = vmatpush1.bf16.msra.mxu0 %v968
    %1294 = vmatprep.subr.bf16.mxu0 0
    %1295 = vmatpush1.bf16.msra.mxu0 %v967
    %1296 = vmatprep.subr.bf16.mxu0 0
    %1297 = vmatpush1.bf16.msra.mxu0 %v966
    %1298 = vmatprep.subr.bf16.mxu0 0
    %1299 = vmatpush1.bf16.msra.mxu0 %v965
    %1300 = vmatprep.subr.bf16.mxu0 0
    %1301 = vmatpush1.bf16.msra.mxu0 %v964
    %1302 = vmatprep.subr.bf16.mxu0 0
    %1303 = vmatpush1.bf16.msra.mxu0 %v963
    %1304 = vmatprep.subr.bf16.mxu0 0
    %1305 = vmatpush1.bf16.msra.mxu0 %v962
    %1306 = vmatprep.subr.bf16.mxu0 0
    %1307 = vmatpush2.bf16.msra.mxu0 %v977
    %1308 = vmatprep.subr.bf16.mxu0 0
    %1309 = vmatpush2.bf16.msra.mxu0 %v976
    %1310 = vmatprep.subr.bf16.mxu0 0
    %1311 = vmatpush2.bf16.msra.mxu0 %v975
    %1312 = vmatprep.subr.bf16.mxu0 0
    %1313 = vmatpush2.bf16.msra.mxu0 %v974
    %1314 = vmatprep.subr.bf16.mxu0 0
    %1315 = vmatpush2.bf16.msra.mxu0 %v973
    %1316 = vmatprep.subr.bf16.mxu0 0
    %1317 = vmatpush2.bf16.msra.mxu0 %v972
    %1318 = vmatprep.subr.bf16.mxu0 0
    %1319 = vmatpush2.bf16.msra.mxu0 %v971
    %1320 = vmatprep.subr.bf16.mxu0 0
    %1321 = vmatpush2.bf16.msra.mxu0 %v970
    %1322 = vmatprep.mubr.bf16.mxu0 %v336
    %1323 = vmatmul.mubr.bf16.gmra.mxu0 %v334
    %v1324 = vpop.f32.mrf.mxu0
    %v1325 = vadd.f32 %v1285, %v1324
    %v1326 = vpop.f32.mrf.mxu0
    %v1327 = vpop.f32.mrf.mxu0
    %v1328 = vpop.f32.mrf.mxu0
    %1329 = vdwg.mxu0
    %1330 = vmatprep.subr.bf16.mxu0 0
    %1331 = vmatpush1.bf16.msra.mxu0 %v985
    %1332 = vmatprep.subr.bf16.mxu0 0
    %1333 = vmatpush1.bf16.msra.mxu0 %v984
    %1334 = vmatprep.subr.bf16.mxu0 0
    %1335 = vmatpush1.bf16.msra.mxu0 %v983
    %1336 = vmatprep.subr.bf16.mxu0 0
    %1337 = vmatpush1.bf16.msra.mxu0 %v982
    %1338 = vmatprep.subr.bf16.mxu0 0
    %1339 = vmatpush1.bf16.msra.mxu0 %v981
    %1340 = vmatprep.subr.bf16.mxu0 0
    %1341 = vmatpush1.bf16.msra.mxu0 %v980
    %1342 = vmatprep.subr.bf16.mxu0 0
    %1343 = vmatpush1.bf16.msra.mxu0 %v979
    %1344 = vmatprep.subr.bf16.mxu0 0
    %1345 = vmatpush1.bf16.msra.mxu0 %v978
    %1346 = vmatprep.subr.bf16.mxu0 0
    %1347 = vmatpush2.bf16.msra.mxu0 %v993
    %1348 = vmatprep.subr.bf16.mxu0 0
    %1349 = vmatpush2.bf16.msra.mxu0 %v992
    %1350 = vmatprep.subr.bf16.mxu0 0
    %1351 = vmatpush2.bf16.msra.mxu0 %v991
    %1352 = vmatprep.subr.bf16.mxu0 0
    %1353 = vmatpush2.bf16.msra.mxu0 %v990
    %1354 = vmatprep.subr.bf16.mxu0 0
    %1355 = vmatpush2.bf16.msra.mxu0 %v989
    %1356 = vmatprep.subr.bf16.mxu0 0
    %1357 = vmatpush2.bf16.msra.mxu0 %v988
    %1358 = vmatprep.subr.bf16.mxu0 0
    %1359 = vmatpush2.bf16.msra.mxu0 %v987
    %1360 = vmatprep.subr.bf16.mxu0 0
    %1361 = vmatpush2.bf16.msra.mxu0 %v986
    %1362 = vmatprep.mubr.bf16.mxu0 %v374
    %1363 = vmatmul.mubr.bf16.gmra.mxu0 %v360
    %v1364 = vpop.f32.mrf.mxu0
    %v1365 = vadd.f32 %v1325, %v1364
    %v1366 = vpop.f32.mrf.mxu0
    %v1367 = vpop.f32.mrf.mxu0
    %v1368 = vpop.f32.mrf.mxu0
    %1369 = vdwg.mxu0
    %1370 = vmatprep.subr.bf16.mxu0 0
    %1371 = vmatpush1.bf16.msra.mxu0 %v1001
    %1372 = vmatprep.subr.bf16.mxu0 0
    %1373 = vmatpush1.bf16.msra.mxu0 %v1000
    %1374 = vmatprep.subr.bf16.mxu0 0
    %1375 = vmatpush1.bf16.msra.mxu0 %v999
    %1376 = vmatprep.subr.bf16.mxu0 0
    %1377 = vmatpush1.bf16.msra.mxu0 %v998
    %1378 = vmatprep.subr.bf16.mxu0 0
    %1379 = vmatpush1.bf16.msra.mxu0 %v997
    %1380 = vmatprep.subr.bf16.mxu0 0
    %1381 = vmatpush1.bf16.msra.mxu0 %v996
    %1382 = vmatprep.subr.bf16.mxu0 0
    %1383 = vmatpush1.bf16.msra.mxu0 %v995
    %1384 = vmatprep.subr.bf16.mxu0 0
    %1385 = vmatpush1.bf16.msra.mxu0 %v994
    %1386 = vmatprep.subr.bf16.mxu0 0
    %1387 = vmatpush2.bf16.msra.mxu0 %v1009
    %1388 = vmatprep.subr.bf16.mxu0 0
    %1389 = vmatpush2.bf16.msra.mxu0 %v1008
    %1390 = vmatprep.subr.bf16.mxu0 0
    %1391 = vmatpush2.bf16.msra.mxu0 %v1007
    %1392 = vmatprep.subr.bf16.mxu0 0
    %1393 = vmatpush2.bf16.msra.mxu0 %v1006
    %1394 = vmatprep.subr.bf16.mxu0 0
    %1395 = vmatpush2.bf16.msra.mxu0 %v1005
    %1396 = vmatprep.subr.bf16.mxu0 0
    %1397 = vmatpush2.bf16.msra.mxu0 %v1004
    %1398 = vmatprep.subr.bf16.mxu0 0
    %1399 = vmatpush2.bf16.msra.mxu0 %v1003
    %1400 = vmatprep.subr.bf16.mxu0 0
    %1401 = vmatpush2.bf16.msra.mxu0 %v1002
    %1402 = vmatprep.mubr.bf16.mxu0 %v384
    %1403 = vmatmul.mubr.bf16.gmra.mxu0 %v382
    %v1404 = vpop.f32.mrf.mxu0
    %v1405 = vadd.f32 %v1365, %v1404
    %v1406 = vpop.f32.mrf.mxu0
    %v1407 = vpop.f32.mrf.mxu0
    %v1408 = vpop.f32.mrf.mxu0
    %1409 = vdwg.mxu0
    %1410 = vmatprep.subr.bf16.mxu0 0
    %1411 = vmatpush1.bf16.msra.mxu0 %v1017
    %1412 = vmatprep.subr.bf16.mxu0 0
    %1413 = vmatpush1.bf16.msra.mxu0 %v1016
    %1414 = vmatprep.subr.bf16.mxu0 0
    %1415 = vmatpush1.bf16.msra.mxu0 %v1015
    %1416 = vmatprep.subr.bf16.mxu0 0
    %1417 = vmatpush1.bf16.msra.mxu0 %v1014
    %1418 = vmatprep.subr.bf16.mxu0 0
    %1419 = vmatpush1.bf16.msra.mxu0 %v1013
    %1420 = vmatprep.subr.bf16.mxu0 0
    %1421 = vmatpush1.bf16.msra.mxu0 %v1012
    %1422 = vmatprep.subr.bf16.mxu0 0
    %1423 = vmatpush1.bf16.msra.mxu0 %v1011
    %1424 = vmatprep.subr.bf16.mxu0 0
    %1425 = vmatpush1.bf16.msra.mxu0 %v1010
    %1426 = vmatprep.subr.bf16.mxu0 0
    %1427 = vmatpush2.bf16.msra.mxu0 %v1025
    %1428 = vmatprep.subr.bf16.mxu0 0
    %1429 = vmatpush2.bf16.msra.mxu0 %v1024
    %1430 = vmatprep.subr.bf16.mxu0 0
    %1431 = vmatpush2.bf16.msra.mxu0 %v1023
    %1432 = vmatprep.subr.bf16.mxu0 0
    %1433 = vmatpush2.bf16.msra.mxu0 %v1022
    %1434 = vmatprep.subr.bf16.mxu0 0
    %1435 = vmatpush2.bf16.msra.mxu0 %v1021
    %1436 = vmatprep.subr.bf16.mxu0 0
    %1437 = vmatpush2.bf16.msra.mxu0 %v1020
    %1438 = vmatprep.subr.bf16.mxu0 0
    %1439 = vmatpush2.bf16.msra.mxu0 %v1019
    %1440 = vmatprep.subr.bf16.mxu0 0
    %1441 = vmatpush2.bf16.msra.mxu0 %v1018
    %1442 = vmatprep.mubr.bf16.mxu0 %v381
    %1443 = vmatmul.mubr.bf16.gmra.mxu0 %v367
    %v1444 = vpop.f32.mrf.mxu0
    %v1445 = vadd.f32 %v1405, %v1444
    %v1446 = vpop.f32.mrf.mxu0
    %v1447 = vpop.f32.mrf.mxu0
    %v1448 = vpop.f32.mrf.mxu0
    %1449 = vdwg.mxu0
    %1450 = vmatprep.subr.bf16.mxu0 0
    %1451 = vmatpush1.bf16.msra.mxu0 %v1033
    %1452 = vmatprep.subr.bf16.mxu0 0
    %1453 = vmatpush1.bf16.msra.mxu0 %v1032
    %1454 = vmatprep.subr.bf16.mxu0 0
    %1455 = vmatpush1.bf16.msra.mxu0 %v1031
    %1456 = vmatprep.subr.bf16.mxu0 0
    %1457 = vmatpush1.bf16.msra.mxu0 %v1030
    %1458 = vmatprep.subr.bf16.mxu0 0
    %1459 = vmatpush1.bf16.msra.mxu0 %v1029
    %1460 = vmatprep.subr.bf16.mxu0 0
    %1461 = vmatpush1.bf16.msra.mxu0 %v1028
    %1462 = vmatprep.subr.bf16.mxu0 0
    %1463 = vmatpush1.bf16.msra.mxu0 %v1027
    %1464 = vmatprep.subr.bf16.mxu0 0
    %1465 = vmatpush1.bf16.msra.mxu0 %v1026
    %1466 = vmatprep.subr.bf16.mxu0 0
    %1467 = vmatpush2.bf16.msra.mxu0 %v1041
    %1468 = vmatprep.subr.bf16.mxu0 0
    %1469 = vmatpush2.bf16.msra.mxu0 %v1040
    %1470 = vmatprep.subr.bf16.mxu0 0
    %1471 = vmatpush2.bf16.msra.mxu0 %v1039
    %1472 = vmatprep.subr.bf16.mxu0 0
    %1473 = vmatpush2.bf16.msra.mxu0 %v1038
    %1474 = vmatprep.subr.bf16.mxu0 0
    %1475 = vmatpush2.bf16.msra.mxu0 %v1037
    %1476 = vmatprep.subr.bf16.mxu0 0
    %1477 = vmatpush2.bf16.msra.mxu0 %v1036
    %1478 = vmatprep.subr.bf16.mxu0 0
    %1479 = vmatpush2.bf16.msra.mxu0 %v1035
    %1480 = vmatprep.subr.bf16.mxu0 0
    %1481 = vmatpush2.bf16.msra.mxu0 %v1034
    %1482 = vmatprep.mubr.bf16.mxu0 %v385
    %1483 = vmatmul.mubr.bf16.gmra.mxu0 %v383
    %v1484 = vpop.f32.mrf.mxu0
    %v1485 = vadd.f32 %v1445, %v1484
    %v1486 = vpop.f32.mrf.mxu0
    %v1487 = vpop.f32.mrf.mxu0
    %v1488 = vpop.f32.mrf.mxu0
    %1489 = vdwg.mxu0
    %v1490 = vadd.f32 %v27, %v1485
    %1491 = vst [vmem:[#allocation2] sm:$0x3] %v1490
    // Predicated region
    $region26: #{image_mask_net.5} parent=1 // pred_check
      %p1492 = pneg %p22
    $region27: #{image_mask_net.5} parent=1 // pred_check_branch
      %1494 = sbr.rel (%p1492) target = $region29
    $region28: #{image_mask_net.5} parent=1 // pred_region
      %v1495 = vld [vmem:[#allocation2] sm:$0x3]
      %v1496 = vld [vmem:[%s2] sm:$0x1]
      %v1498 = vlaneseq
      %v1499 = vshrl.u32 %v1498, 7
      %v1500 = vsub.s32 0, %v1499
      %v1501 = vrot.slane %v1496, %v1500
      %v1503 = vadd.f32 %v1495, %v1501
      %v1504 = vmax.f32 %v1503, 0.0
      %v1505 = vld [vmem:[%s3] sm:$0xff]
      %v1506 = vld [vmem:[%s3 + $0x8] sm:$0xff]
      %v1507 = vld [vmem:[%s3 + $0x10] sm:$0xff]
      %v1508 = vld [vmem:[%s3 + $0x18] sm:$0xff]
      %v1509 = vld [vmem:[%s3 + $0x20] sm:$0xff]
      %v1510 = vld [vmem:[%s3 + $0x28] sm:$0xff]
      %v1511 = vld [vmem:[%s3 + $0x30] sm:$0xff]
      %v1512 = vld [vmem:[%s3 + $0x38] sm:$0xff]
      %v1513 = vld [vmem:[%s3 + $0x40] sm:$0xff]
      %v1514 = vld [vmem:[%s3 + $0x48] sm:$0xff]
      %v1515 = vld [vmem:[%s3 + $0x50] sm:$0xff]
      %v1516 = vld [vmem:[%s3 + $0x58] sm:$0xff]
      %v1517 = vld [vmem:[%s3 + $0x60] sm:$0xff]
      %v1518 = vld [vmem:[%s3 + $0x68] sm:$0xff]
      %v1519 = vld [vmem:[%s3 + $0x70] sm:$0xff]
      %v1520 = vld [vmem:[%s3 + $0x78] sm:$0xff]
      %v1521 = vld [vmem:[%s4] sm:$0x1]
      %v1523 = vlaneseq
      %v1524 = vshrl.u32 %v1523, 7
      %v1525 = vsub.s32 0, %v1524
      %v1526 = vrot.slane %v1521, %v1525
      %1528 = vmatprep.subr.mxu0 0.0
      %1529 = vmatpush1.msra.mxu0 %v1520
      %1530 = vmatprep.subr.mxu0 0.0
      %1531 = vmatpush1.msra.mxu0 %v1519
      %1532 = vmatprep.subr.mxu0 0.0
      %1533 = vmatpush1.msra.mxu0 %v1518
      %1534 = vmatprep.subr.mxu0 0.0
      %1535 = vmatpush1.msra.mxu0 %v1517
      %1536 = vmatprep.subr.mxu0 0.0
      %1537 = vmatpush1.msra.mxu0 %v1516
      %1538 = vmatprep.subr.mxu0 0.0
      %1539 = vmatpush1.msra.mxu0 %v1515
      %1540 = vmatprep.subr.mxu0 0.0
      %1541 = vmatpush1.msra.mxu0 %v1514
      %1542 = vmatprep.subr.mxu0 0.0
      %1543 = vmatpush1.msra.mxu0 %v1513
      %1544 = vmatprep.subr.mxu0 0.0
      %1545 = vmatpush1.msra.mxu0 %v1512
      %1546 = vmatprep.subr.mxu0 0.0
      %1547 = vmatpush1.msra.mxu0 %v1511
      %1548 = vmatprep.subr.mxu0 0.0
      %1549 = vmatpush1.msra.mxu0 %v1510
      %1550 = vmatprep.subr.mxu0 0.0
      %1551 = vmatpush1.msra.mxu0 %v1509
      %1552 = vmatprep.subr.mxu0 0.0
      %1553 = vmatpush1.msra.mxu0 %v1508
      %1554 = vmatprep.subr.mxu0 0.0
      %1555 = vmatpush1.msra.mxu0 %v1507
      %1556 = vmatprep.subr.mxu0 0.0
      %1557 = vmatpush1.msra.mxu0 %v1506
      %1558 = vmatprep.subr.mxu0 0.0
      %1559 = vmatpush1.msra.mxu0 %v1505
      %1560 = vmatprep.subr.mxu0 0.0
      %1561 = vmatpush2.msra.mxu0 0.0
      %1562 = vmatprep.subr.mxu0 0.0
      %1563 = vmatpush2.msra.mxu0 0.0
      %1564 = vmatprep.subr.mxu0 0.0
      %1565 = vmatpush2.msra.mxu0 0.0
      %1566 = vmatprep.subr.mxu0 0.0
      %1567 = vmatpush2.msra.mxu0 0.0
      %1568 = vmatprep.subr.mxu0 0.0
      %1569 = vmatpush2.msra.mxu0 0.0
      %1570 = vmatprep.subr.mxu0 0.0
      %1571 = vmatpush2.msra.mxu0 0.0
      %1572 = vmatprep.subr.mxu0 0.0
      %1573 = vmatpush2.msra.mxu0 0.0
      %1574 = vmatprep.subr.mxu0 0.0
      %1575 = vmatpush2.msra.mxu0 0.0
      %1576 = vmatprep.subr.mxu0 0.0
      %1577 = vmatpush2.msra.mxu0 0.0
      %1578 = vmatprep.subr.mxu0 0.0
      %1579 = vmatpush2.msra.mxu0 0.0
      %1580 = vmatprep.subr.mxu0 0.0
      %1581 = vmatpush2.msra.mxu0 0.0
      %1582 = vmatprep.subr.mxu0 0.0
      %1583 = vmatpush2.msra.mxu0 0.0
      %1584 = vmatprep.subr.mxu0 0.0
      %1585 = vmatpush2.msra.mxu0 0.0
      %1586 = vmatprep.subr.mxu0 0.0
      %1587 = vmatpush2.msra.mxu0 0.0
      %1588 = vmatprep.subr.mxu0 0.0
      %1589 = vmatpush2.msra.mxu0 0.0
      %1590 = vmatprep.subr.mxu0 0.0
      %1591 = vmatpush2.msra.mxu0 0.0
      %1592 = vmatprep.mubr.f32.mxu0 0.0
      %1593 = vmatmul.mubr.f32.gmra.mxu0 %v1504
      %v1594 = vpop.f32.mrf.mxu0
      %v1595 = vadd.f32 %v1526, %v1594
      %v1596 = vpop.f32.mrf.mxu0
      %1597 = vdwg.mxu0
      %vm1598 = vcmask 17408
      %1599 = vst.msk [vmem:[#allocation3] sm:$0x3] %vm1598, %v1595
    $region29: #{image_mask_net.5} parent=1 // pred_fallthru
      _
    // Predicated region
    $region30: #{image_mask_net.5} parent=1 // pred_check
      _
    $region31: #{image_mask_net.5} parent=1 // pred_check_branch
      %1601 = sbr.rel (0) target = $region33
    $region32: #{image_mask_net.5} parent=1 // pred_region
      %s1603 = ssub.s32 32, 32
      %1604 = vsyncadd [#allocation4], %s1603
      %s1606 = sshll.u32 [#allocation3], 4
      %s1607 = int_to_ptr.vmem [resolvable:$true] %s1606
      %1609 = dma.vmem_to_hbm [thread:$0]  %s1607, 32, %s5, [#allocation4]
    $region33: #{image_mask_net.5} parent=1 // pred_fallthru
      _
    // Predicated region
    $region34: #{image_mask_net.5} parent=1 // pred_check
      _
    $region35: #{image_mask_net.5} parent=1 // pred_check_branch
      %1611 = sbr.rel (0) target = $region37
    $region36: #{image_mask_net.5} parent=1 // pred_region
      %1612 = dma.done [#allocation4], 32
    $region37: #{image_mask_net.5} parent=1 // pred_fallthru
      _
    %1613 = vsyncpa [#allocation4], 1

</llo_original>
